<compile_context>
chip_gen: v6e
topology: v6e:2x2x1
jax: 0.10.0
libtpu: 0.0.40
codegen_flags: <defaults>
</compile_context>

<pallas_src>
import functools

import jax
import jax.numpy as jnp
from jax.experimental import pallas as pl
from jax.experimental.pallas import tpu as pltpu


# ---------------------------------------------------------------------------
# small helpers
# ---------------------------------------------------------------------------
def _round_up(x, m):
    return -(-x // m) * m


def _pad_to(a, axis, size):
    if a.shape[axis] == size:
        return a
    widths = [(0, 0)] * a.ndim
    widths[axis] = (0, size - a.shape[axis])
    return jnp.pad(a, widths)


def _fold_bn(gamma, beta, mean, var, eps=1e-5):
    scale = gamma / jnp.sqrt(var + eps)
    bias = beta - mean * scale
    return scale, bias


def _frame_flat(x_nhwc, c_p):
    """Pad NHWC with a 1-pixel zero halo (+1 guard row at the bottom so in-kernel tap
    slices never run out of bounds), zero-pad channels to c_p, cast bf16, flatten
    spatial dims -> (N, (H+3)*(W+2), c_p)."""
    n, h, w, c = x_nhwc.shape
    xp = jnp.pad(x_nhwc.astype(jnp.bfloat16),
                 ((0, 0), (1, 2), (1, 1), (0, c_p - c)))
    return xp.reshape(n, (h + 3) * (w + 2), c_p)


def _weight3x3(w_oihw, cin_p, cout_p):
    """OIHW [Cout,Cin,3,3] -> lane-dense [9*cin_p, cout_p] bf16 matmul weight whose row
    layout (tap-major, cin minor) matches the in-kernel im2col column layout."""
    t = jnp.transpose(w_oihw, (2, 3, 1, 0))              # [3,3,Cin,Cout]
    t = _pad_to(_pad_to(t, 2, cin_p), 3, cout_p)
    return t.reshape(9 * cin_p, cout_p).astype(jnp.bfloat16)


def _scale_bias(scale, bias, sc_scale, cout_p):
    """f32 [3, cout_p]: row0 = BN scale, row1 = total bias, row2 = shortcut BN scale."""
    if sc_scale is None:
        sc_scale = jnp.zeros_like(scale)
    sb = jnp.stack([scale, bias, sc_scale], axis=0).astype(jnp.float32)
    return _pad_to(sb, 1, cout_p)


# ---------------------------------------------------------------------------
# Kernel 1: 3x3 stride-1 conv on a flattened halo-framed input.
#   - 9 taps gathered as contiguous row-offset slices into a VMEM im2col scratch
#   - single MXU matmul with K = 9*Cin_p, f32 accumulation
#   - f32 epilogue: BN scale/bias, fused shortcut (1x1 conv+BN matmul or identity
#     add), optional ReLU
#   - framed_out=True writes the zero halo frame in-kernel so the next conv can
#     consume the output buffer directly (no XLA pad of the intermediate).
# ---------------------------------------------------------------------------
def _conv3x3_kernel(x_ref, w_ref, sb_ref, *rest, Ho, Wo, shortcut, apply_relu,
                    framed_out):
    if shortcut == "matmul":
        sc_ref, scw_ref, out_ref, patch_ref = rest
    elif shortcut == "add":
        sc_ref, out_ref, patch_ref = rest
    else:
        out_ref, patch_ref = rest

    cin = x_ref.shape[-1]
    Wp = Wo + 2
    M = Ho * Wp                   # "wide" rows: Wo valid + 2 garbage columns per row

    # im2col in VMEM: tap (kh,kw) is a contiguous row-offset slice of the flat frame
    # (no strided-window reshape/relayout), stored lane-aligned at column t*cin.
    for kh in range(3):
        for kw in range(3):
            t = kh * 3 + kw
            patch_ref[:, t * cin:(t + 1) * cin] = x_ref[0, pl.ds(kh * Wp + kw, M), :]

    # One MXU matmul with K = 9*Cin_p; f32 accumulation.
    acc = jnp.dot(patch_ref[...], w_ref[...], preferred_element_type=jnp.float32)
    y = acc * sb_ref[0:1, :] + sb_ref[1:2, :]             # folded BN (eval) in f32

    if shortcut == "matmul":      # fused 1x1-conv + BN projection shortcut
        sc = sc_ref[0, pl.ds(Wp + 1, M), :]               # center-tap offset = residual
        y = y + jnp.dot(sc, scw_ref[...],
                        preferred_element_type=jnp.float32) * sb_ref[2:3, :]
    elif shortcut == "add":       # identity shortcut (bf16-quantized residual)
        y = y + sc_ref[0, pl.ds(Wp + 1, M), :].astype(jnp.float32)

    if apply_relu:
        y = jnp.maximum(y, 0.0)

    if framed_out:
        # zero the 2 garbage columns per wide row and embed the result into the
        # zeroed halo frame so the next conv reads this buffer directly.
        col = jax.lax.broadcasted_iota(jnp.int32, (M, 1), 0) % Wp
        y = jnp.where(col < Wo, y, 0.0)
        out_ref[...] = jnp.zeros_like(out_ref)
        out_ref[0, pl.ds(Wp + 1, M), :] = y.astype(out_ref.dtype)
    else:
        out_ref[...] = y.reshape(out_ref.shape).astype(out_ref.dtype)


def conv3x3_bn_act(x_fr, w_mat, sb, Ho, Wo, *, shortcut="none", sc_src=None,
                   sc_w=None, apply_relu=True, framed_out=False,
                   out_dtype=jnp.bfloat16):
    """x_fr: [N, (Ho+3)*(Wo+2), Cin_p] bf16 framed; w_mat: [9*Cin_p, Cout_p] bf16;
    sb: [3, Cout_p] f32 (scale, total bias, shortcut scale)."""
    N, L, Cin = x_fr.shape
    K, Cout = w_mat.shape
    Wp = Wo + 2
    M = Ho * Wp
    assert L == (Ho + 3) * Wp and K == 9 * Cin
    L_out = L if framed_out else M

    in_specs = [
        pl.BlockSpec((1, L, Cin), lambda n: (n, 0, 0)),
        # TODO(synk): mark the grid-invariant weight/scale blocks pl.Buffered(1)
        #             (single-buffered) once pipeline_mode support is verified.
        pl.BlockSpec((K, Cout), lambda n: (0, 0)),
        pl.BlockSpec((3, Cout), lambda n: (0, 0)),
    ]
    args = [x_fr, w_mat, sb]
    if shortcut == "matmul":
        Ls, Cs = sc_src.shape[1], sc_src.shape[2]
        in_specs += [pl.BlockSpec((1, Ls, Cs), lambda n: (n, 0, 0)),
                     pl.BlockSpec((Cs, Cout), lambda n: (0, 0))]
        args += [sc_src, sc_w]
    elif shortcut == "add":
        Ls, Cs = sc_src.shape[1], sc_src.shape[2]
        in_specs += [pl.BlockSpec((1, Ls, Cs), lambda n: (n, 0, 0))]
        args += [sc_src]

    kernel = functools.partial(_conv3x3_kernel, Ho=Ho, Wo=Wo, shortcut=shortcut,
                               apply_relu=apply_relu, framed_out=framed_out)
    # TODO(synk): add a halo-overlapping H-row grid axis for very large spatial
    #             extents / better 2-TensorCore load balance on v7x.
    return pl.pallas_call(
        kernel,
        out_shape=jax.ShapeDtypeStruct((N, L_out, Cout), out_dtype),
        grid=(N,),
        in_specs=in_specs,
        out_specs=pl.BlockSpec((1, L_out, Cout), lambda n: (n, 0, 0)),
        scratch_shapes=[pltpu.VMEM((M, K), jnp.bfloat16)],
        compiler_params=pltpu.CompilerParams(
            dimension_semantics=("parallel",),
            vmem_limit_bytes=64 * 1024 * 1024),
    )(*args)


# ---------------------------------------------------------------------------
# Kernel 2 (fallback for the stride != 1 first conv): im2col matmul with K tiling,
#           f32 VMEM accumulator, BN scale/bias epilogue (+ ReLU).
# ---------------------------------------------------------------------------
def _matmul_bn_act_kernel(p_ref, w_ref, sb_ref, o_ref, acc_ref, *, apply_relu):
    @pl.when(pl.program_id(1) == 0)
    def _():
        acc_ref[...] = jnp.zeros_like(acc_ref)

    acc_ref[...] += jnp.dot(p_ref[...], w_ref[...],
                            preferred_element_type=jnp.float32)

    @pl.when(pl.program_id(1) == pl.num_programs(1) - 1)
    def _():
        y = acc_ref[...] * sb_ref[0:1, :] + sb_ref[1:2, :]
        if apply_relu:
            y = jnp.maximum(y, 0.0)
        o_ref[...] = y.astype(o_ref.dtype)


def matmul_bn_act(patches, w_mat, scale, bias, *, apply_relu,
                  out_dtype=jnp.bfloat16, tile_m=1024, tile_k=512, lane=128):
    """[M, K] bf16 @ [K, Cout] + BN scale/bias (+ ReLU).  Returns [M, Cout_p]."""
    M, K = patches.shape
    Kw, Cout = w_mat.shape
    assert K == Kw
    Cout_p = _round_up(Cout, lane)
    tile_m = min(tile_m, _round_up(M, lane))
    tile_k = min(tile_k, _round_up(K, lane))
    M_p = _round_up(M, tile_m)
    K_p = _round_up(K, tile_k)

    p = _pad_to(_pad_to(patches.astype(jnp.bfloat16), 0, M_p), 1, K_p)
    w = _pad_to(_pad_to(w_mat, 0, K_p), 1, Cout_p).astype(jnp.bfloat16)
    sb = _pad_to(jnp.stack([scale, bias], 0).astype(jnp.float32), 1, Cout_p)

    out = pl.pallas_call(
        functools.partial(_matmul_bn_act_kernel, apply_relu=apply_relu),
        out_shape=jax.ShapeDtypeStruct((M_p, Cout_p), out_dtype),
        grid=(M_p // tile_m, K_p // tile_k),
        in_specs=[
            pl.BlockSpec((tile_m, tile_k), lambda i, k: (i, k)),
            pl.BlockSpec((tile_k, Cout_p), lambda i, k: (k, 0)),
            pl.BlockSpec((2, Cout_p), lambda i, k: (0, 0)),
        ],
        out_specs=pl.BlockSpec((tile_m, Cout_p), lambda i, k: (i, 0)),
        scratch_shapes=[pltpu.VMEM((tile_m, Cout_p), jnp.float32)],
        compiler_params=pltpu.CompilerParams(
            dimension_semantics=("parallel", "arbitrary"),
            vmem_limit_bytes=64 * 1024 * 1024),
    )(p, w, sb)
    return out[:M]


def _im2col(x_nhwc, k, stride, padding):
    """Only used for the stride != 1 first conv (fallback path); input is bf16."""
    N, H, W, C = x_nhwc.shape
    Ho = (H + 2 * padding - k) // stride + 1
    Wo = (W + 2 * padding - k) // stride + 1
    xp = jnp.pad(x_nhwc, ((0, 0), (padding, padding), (padding, padding), (0, 0)))
    cols = []
    for i in range(k):
        for j in range(k):
            cols.append(xp[:, i:i + stride * (Ho - 1) + 1:stride,
                           j:j + stride * (Wo - 1) + 1:stride, :])
    patches = jnp.stack(cols, axis=3)                     # [N, Ho, Wo, k*k, C]
    return patches.reshape(N * Ho * Wo, k * k * C), Ho, Wo


# ---------------------------------------------------------------------------
# ResidualBlock forward
# ---------------------------------------------------------------------------
def residual_block_forward(x_nchw, params, stride=1, lane=128):
    N, Cin, H, W = x_nchw.shape
    Cout = params["w1"].shape[0]
    Ho = (H + 2 - 3) // stride + 1
    Wo = (W + 2 - 3) // stride + 1
    Cin_p = _round_up(Cin, lane)
    Cout_p = _round_up(Cout, lane)
    Wp = Wo + 2

    # bf16 NHWC once, before any pads/frames (half-width layout plumbing).
    x = jnp.transpose(x_nchw.astype(jnp.bfloat16), (0, 2, 3, 1))    # [N,H,W,Cin]

    # eval-mode BN folded to per-channel scale/bias, applied in the f32 epilogue.
    s1, b1 = _fold_bn(*params["bn1"])
    s2, b2 = _fold_bn(*params["bn2"])

    need_proj = (stride != 1) or (Cin != Cout)
    if need_proj:
        s_sc, b_sc = _fold_bn(*params["bn_sc"])
        sc_w = _pad_to(_pad_to(params["w_sc"][:, :, 0, 0].T, 0, Cin_p), 1, Cout_p)
        sc_w = sc_w.astype(jnp.bfloat16)                             # [Cin_p, Cout_p]
        bias2 = b2 + b_sc
    else:
        s_sc, sc_w, bias2 = None, None, b2

    # --- cnn1: conv3x3(stride) + BN + ReLU -> framed bf16 y1 (halo written in-kernel)
    if stride == 1:
        x_fr = _frame_flat(x, Cin_p)                                 # [N, L, Cin_p]
        w1 = _weight3x3(params["w1"], Cin_p, Cout_p)
        y1_fr = conv3x3_bn_act(x_fr, w1, _scale_bias(s1, b1, None, Cout_p),
                               Ho, Wo, apply_relu=True, framed_out=True,
                               out_dtype=jnp.bfloat16)
        sc_src = x_fr        # shortcut (1x1 conv or identity) reuses the framed input
    else:
        # stride != 1 fallback: bf16 XLA im2col + K-tiled matmul kernel.
        w1_flat = jnp.transpose(params["w1"], (2, 3, 1, 0)).reshape(9 * Cin, Cout)
        patches, _, _ = _im2col(x, 3, stride, 1)
        y1 = matmul_bn_act(patches, w1_flat, s1, b1, apply_relu=True)
        # TODO(synk): teach the fallback kernel to emit the framed halo directly too.
        y1_fr = _frame_flat(y1.reshape(N, Ho, Wo, Cout_p), Cout_p)
        sc_src = _frame_flat(x[:, ::stride, ::stride, :], Cin_p)

    # --- cnn2 (conv3x3 s1 + BN) + shortcut (+BN) + ReLU, one fused kernel ---
    w2 = _weight3x3(params["w2"], Cout_p, Cout_p)
    out = conv3x3_bn_act(y1_fr, w2, _scale_bias(s2, bias2, s_sc, Cout_p),
                         Ho, Wo, shortcut="matmul" if need_proj else "add",
                         sc_src=sc_src, sc_w=sc_w, apply_relu=True,
                         framed_out=False, out_dtype=jnp.float32)
    out = out.reshape(N, Ho, Wp, Cout_p)[:, :, :Wo, :Cout]   # drop wide cols / pad ch
    return jnp.transpose(out, (0, 3, 1, 2))                  # NHWC -> NCHW


# ---------------------------------------------------------------------------
# Pure-JAX reference (eval-mode BN) for correctness checking
# ---------------------------------------------------------------------------
def reference_forward(x, params, stride, eps=1e-5):
    def conv(v, w, s, pad):
        return jax.lax.conv_general_dilated(
            v, w, (s, s), [(pad, pad), (pad, pad)],
            dimension_numbers=("NCHW", "OIHW", "NCHW"))

    def bn(v, p):
        g, b, m, var = p
        sc = g / jnp.sqrt(var + eps)
        return v * sc[None, :, None, None] + (b - m * sc)[None, :, None, None]

    y = jax.nn.relu(bn(conv(x, params["w1"], stride, 1), params["bn1"]))
    y = bn(conv(y, params["w2"], 1, 1), params["bn2"])
    if stride != 1 or x.shape[1] != params["w1"].shape[0]:
        sc = bn(conv(x, params["w_sc"], stride, 0), params["bn_sc"])
    else:
        sc = x
    return jax.nn.relu(y + sc)


# ---------------------------------------------------------------------------
# Deterministic parameter init (synthetic — matches module shapes)
# ---------------------------------------------------------------------------
def init_params(key, in_channels, out_channels):
    ks = jax.random.split(key, 6)
    f32 = jnp.float32

    def bn_params(k, c):
        k1, k2, k3, k4 = jax.random.split(k, 4)
        gamma = 1.0 + 0.1 * jax.random.normal(k1, (c,), f32)
        beta = 0.1 * jax.random.normal(k2, (c,), f32)
        mean = 0.1 * jax.random.normal(k3, (c,), f32)
        var = jnp.abs(jax.random.normal(k4, (c,), f32)) + 0.5
        return gamma, beta, mean, var

    return {
        "w1": 0.1 * jax.random.normal(ks[0], (out_channels, in_channels, 3, 3), f32),
        "bn1": bn_params(ks[1], out_channels),
        "w2": 0.1 * jax.random.normal(ks[2], (out_channels, out_channels, 3, 3), f32),
        "bn2": bn_params(ks[3], out_channels),
        "w_sc": 0.1 * jax.random.normal(ks[4], (out_channels, in_channels, 1, 1), f32),
        "bn_sc": bn_params(ks[5], out_channels),
    }


if __name__ == "__main__":
    key = jax.random.PRNGKey(0)
    fwd = jax.jit(residual_block_forward, static_argnames=("stride",))

    configs = [
        (4, 8, 1),   # projection shortcut (1x1 conv + BN) fused as extra matmul
        (8, 8, 1),   # identity shortcut fused as residual add
        (4, 8, 2),   # strided first conv -> im2col fallback kernel
    ]
    for idx, (cin, cout, stride) in enumerate(configs):
        k_x, k_p = jax.random.split(jax.random.fold_in(key, idx))
        x = jax.random.normal(k_x, (2, cin, 16, 16), jnp.float32)
        params = init_params(k_p, cin, cout)

        out = fwd(x, params, stride=stride)
        jax.block_until_ready(out)

        ho = (16 + 2 - 3) // stride + 1
        assert out.shape == (2, cout, ho, ho), out.shape
        assert bool(jnp.all(out >= 0.0))                  # final ReLU
        ref = reference_forward(x, params, stride)
        assert bool(jnp.allclose(out, ref, atol=1e-1, rtol=5e-2)), (
            "max abs diff", float(jnp.max(jnp.abs(out - ref))))

    print("KERNEL_OK")
</pallas_src>

<mosaic_0001>
module attributes {stable_mosaic.version = 11 : i64} {
  func.func @_conv3x3_kernel(%arg0: i32, %arg1: memref<1x342x128xbf16, #tpu.memory_space<vmem>>, %arg2: memref<1152x128xbf16, #tpu.memory_space<vmem>>, %arg3: memref<3x128xf32, #tpu.memory_space<vmem>>, %arg4: memref<1x342x128xbf16, #tpu.memory_space<vmem>>, %arg5: memref<288x1152xbf16, #tpu.memory_space<vmem>>) attributes {dimension_semantics = [#tpu.dimension_semantics<parallel>], iteration_bounds = array<i64: 2>, scalar_prefetch = 0 : i64, scratch_operands = 1 : i64, tpu.core_type = #tpu.core_type<tc>, window_params = [{transform_indices = @transform_0, window_bounds = array<i64: 1, 342, 128>}, {pipeline_mode = #tpu.pipeline_mode<synchronous>, transform_indices = @transform_1, window_bounds = array<i64: 1152, 128>}, {pipeline_mode = #tpu.pipeline_mode<synchronous>, transform_indices = @transform_2, window_bounds = array<i64: 3, 128>}, {transform_indices = @transform_3, window_bounds = array<i64: 1, 342, 128>}]} {
    %c0 = arith.constant 0 : index
    %c0_0 = arith.constant 0 : index
    %c0_1 = arith.constant 0 : index
    %0 = vector.load %arg1[%c0, %c0_0, %c0_1] : memref<1x342x128xbf16, #tpu.memory_space<vmem>>, vector<1x288x128xbf16>
    %1 = vector.shape_cast %0 : vector<1x288x128xbf16> to vector<288x128xbf16>
    %c0_2 = arith.constant 0 : index
    %c0_3 = arith.constant 0 : index
    %2 = vector.load %arg5[%c0_2, %c0_3] : memref<288x1152xbf16, #tpu.memory_space<vmem>>, vector<288x128xbf16>
    tpu.vector_store %arg5[%c0_2, %c0_3], %1 {strides = array<i32>} : memref<288x1152xbf16, #tpu.memory_space<vmem>>, vector<288x128xbf16>,
    %c0_4 = arith.constant 0 : index
    %c1 = arith.constant 1 : index
    %c0_5 = arith.constant 0 : index
    %3 = vector.load %arg1[%c0_4, %c1, %c0_5] : memref<1x342x128xbf16, #tpu.memory_space<vmem>>, vector<1x288x128xbf16>
    %4 = vector.shape_cast %3 : vector<1x288x128xbf16> to vector<288x128xbf16>
    %c0_6 = arith.constant 0 : index
    %c128 = arith.constant 128 : index
    %5 = vector.load %arg5[%c0_6, %c128] : memref<288x1152xbf16, #tpu.memory_space<vmem>>, vector<288x128xbf16>
    tpu.vector_store %arg5[%c0_6, %c128], %4 {strides = array<i32>} : memref<288x1152xbf16, #tpu.memory_space<vmem>>, vector<288x128xbf16>,
    %c0_7 = arith.constant 0 : index
    %c2 = arith.constant 2 : index
    %c0_8 = arith.constant 0 : index
    %6 = vector.load %arg1[%c0_7, %c2, %c0_8] : memref<1x342x128xbf16, #tpu.memory_space<vmem>>, vector<1x288x128xbf16>
    %7 = vector.shape_cast %6 : vector<1x288x128xbf16> to vector<288x128xbf16>
    %c0_9 = arith.constant 0 : index
    %c256 = arith.constant 256 : index
    %8 = vector.load %arg5[%c0_9, %c256] : memref<288x1152xbf16, #tpu.memory_space<vmem>>, vector<288x128xbf16>
    tpu.vector_store %arg5[%c0_9, %c256], %7 {strides = array<i32>} : memref<288x1152xbf16, #tpu.memory_space<vmem>>, vector<288x128xbf16>,
    %c0_10 = arith.constant 0 : index
    %c18 = arith.constant 18 : index
    %c0_11 = arith.constant 0 : index
    %9 = vector.load %arg1[%c0_10, %c18, %c0_11] : memref<1x342x128xbf16, #tpu.memory_space<vmem>>, vector<1x288x128xbf16>
    %10 = vector.shape_cast %9 : vector<1x288x128xbf16> to vector<288x128xbf16>
    %c0_12 = arith.constant 0 : index
    %c384 = arith.constant 384 : index
    %11 = vector.load %arg5[%c0_12, %c384] : memref<288x1152xbf16, #tpu.memory_space<vmem>>, vector<288x128xbf16>
    tpu.vector_store %arg5[%c0_12, %c384], %10 {strides = array<i32>} : memref<288x1152xbf16, #tpu.memory_space<vmem>>, vector<288x128xbf16>,
    %c0_13 = arith.constant 0 : index
    %c19 = arith.constant 19 : index
    %c0_14 = arith.constant 0 : index
    %12 = vector.load %arg1[%c0_13, %c19, %c0_14] : memref<1x342x128xbf16, #tpu.memory_space<vmem>>, vector<1x288x128xbf16>
    %13 = vector.shape_cast %12 : vector<1x288x128xbf16> to vector<288x128xbf16>
    %c0_15 = arith.constant 0 : index
    %c512 = arith.constant 512 : index
    %14 = vector.load %arg5[%c0_15, %c512] : memref<288x1152xbf16, #tpu.memory_space<vmem>>, vector<288x128xbf16>
    tpu.vector_store %arg5[%c0_15, %c512], %13 {strides = array<i32>} : memref<288x1152xbf16, #tpu.memory_space<vmem>>, vector<288x128xbf16>,
    %c0_16 = arith.constant 0 : index
    %c20 = arith.constant 20 : index
    %c0_17 = arith.constant 0 : index
    %15 = vector.load %arg1[%c0_16, %c20, %c0_17] : memref<1x342x128xbf16, #tpu.memory_space<vmem>>, vector<1x288x128xbf16>
    %16 = vector.shape_cast %15 : vector<1x288x128xbf16> to vector<288x128xbf16>
    %c0_18 = arith.constant 0 : index
    %c640 = arith.constant 640 : index
    %17 = vector.load %arg5[%c0_18, %c640] : memref<288x1152xbf16, #tpu.memory_space<vmem>>, vector<288x128xbf16>
    tpu.vector_store %arg5[%c0_18, %c640], %16 {strides = array<i32>} : memref<288x1152xbf16, #tpu.memory_space<vmem>>, vector<288x128xbf16>,
    %c0_19 = arith.constant 0 : index
    %c36 = arith.constant 36 : index
    %c0_20 = arith.constant 0 : index
    %18 = vector.load %arg1[%c0_19, %c36, %c0_20] : memref<1x342x128xbf16, #tpu.memory_space<vmem>>, vector<1x288x128xbf16>
    %19 = vector.shape_cast %18 : vector<1x288x128xbf16> to vector<288x128xbf16>
    %c0_21 = arith.constant 0 : index
    %c768 = arith.constant 768 : index
    %20 = vector.load %arg5[%c0_21, %c768] : memref<288x1152xbf16, #tpu.memory_space<vmem>>, vector<288x128xbf16>
    tpu.vector_store %arg5[%c0_21, %c768], %19 {strides = array<i32>} : memref<288x1152xbf16, #tpu.memory_space<vmem>>, vector<288x128xbf16>,
    %c0_22 = arith.constant 0 : index
    %c37 = arith.constant 37 : index
    %c0_23 = arith.constant 0 : index
    %21 = vector.load %arg1[%c0_22, %c37, %c0_23] : memref<1x342x128xbf16, #tpu.memory_space<vmem>>, vector<1x288x128xbf16>
    %22 = vector.shape_cast %21 : vector<1x288x128xbf16> to vector<288x128xbf16>
    %c0_24 = arith.constant 0 : index
    %c896 = arith.constant 896 : index
    %23 = vector.load %arg5[%c0_24, %c896] : memref<288x1152xbf16, #tpu.memory_space<vmem>>, vector<288x128xbf16>
    tpu.vector_store %arg5[%c0_24, %c896], %22 {strides = array<i32>} : memref<288x1152xbf16, #tpu.memory_space<vmem>>, vector<288x128xbf16>,
    %c0_25 = arith.constant 0 : index
    %c38 = arith.constant 38 : index
    %c0_26 = arith.constant 0 : index
    %24 = vector.load %arg1[%c0_25, %c38, %c0_26] : memref<1x342x128xbf16, #tpu.memory_space<vmem>>, vector<1x288x128xbf16>
    %25 = vector.shape_cast %24 : vector<1x288x128xbf16> to vector<288x128xbf16>
    %c0_27 = arith.constant 0 : index
    %c1024 = arith.constant 1024 : index
    %26 = vector.load %arg5[%c0_27, %c1024] : memref<288x1152xbf16, #tpu.memory_space<vmem>>, vector<288x128xbf16>
    tpu.vector_store %arg5[%c0_27, %c1024], %25 {strides = array<i32>} : memref<288x1152xbf16, #tpu.memory_space<vmem>>, vector<288x128xbf16>,
    %c0_28 = arith.constant 0 : index
    %c0_29 = arith.constant 0 : index
    %27 = vector.load %arg5[%c0_28, %c0_29] : memref<288x1152xbf16, #tpu.memory_space<vmem>>, vector<288x1152xbf16>
    %c0_30 = arith.constant 0 : index
    %c0_31 = arith.constant 0 : index
    %28 = vector.load %arg2[%c0_30, %c0_31] : memref<1152x128xbf16, #tpu.memory_space<vmem>>, vector<1152x128xbf16>
    %cst = arith.constant dense<0.000000e+00> : vector<288x128xf32>
    %29 = tpu.matmul %27, %28, %cst {dimension_numbers = #tpu.dot_dimension_numbers<[1], [0], [0], [1], [0, 0, 1, 1], [], []>} : vector<288x1152xbf16>, vector<1152x128xbf16>, vector<288x128xf32> -> vector<288x128xf32>
    %c0_32 = arith.constant 0 : index
    %c0_33 = arith.constant 0 : index
    %30 = vector.load %arg3[%c0_32, %c0_33] : memref<3x128xf32, #tpu.memory_space<vmem>>, vector<1x128xf32>
    %31 = vector.broadcast %30 : vector<1x128xf32> to vector<288x128xf32>
    %32 = arith.mulf %29, %31 : vector<288x128xf32>
    %c1_34 = arith.constant 1 : index
    %c0_35 = arith.constant 0 : index
    %33 = vector.load %arg3[%c1_34, %c0_35] : memref<3x128xf32, #tpu.memory_space<vmem>>, vector<1x128xf32>
    %34 = vector.broadcast %33 : vector<1x128xf32> to vector<288x128xf32>
    %35 = arith.addf %32, %34 : vector<288x128xf32>
    %cst_36 = arith.constant 0.000000e+00 : f32
    %36 = vector.broadcast %cst_36 : f32 to vector<288x128xf32>
    %37 = arith.maximumf %35, %36 : vector<288x128xf32>
    %38 = tpu.iota {dimensions = array<i32: 0>} : vector<288x1xi32>
    %c18_i32 = arith.constant 18 : i32
    %c0_i32 = arith.constant 0 : i32
    %39 = arith.cmpi eq, %c18_i32, %c0_i32 : i32
    %c1_i32 = arith.constant 1 : i32
    %40 = arith.select %39, %c1_i32, %c18_i32 : i32
    %41 = vector.broadcast %40 : i32 to vector<288x1xi32>
    %42 = arith.remsi %38, %41 : vector<288x1xi32>
    %c0_i32_37 = arith.constant 0 : i32
    %43 = vector.broadcast %c0_i32_37 : i32 to vector<288x1xi32>
    %44 = arith.cmpi ne, %42, %43 : vector<288x1xi32>
    %c0_i32_38 = arith.constant 0 : i32
    %45 = vector.broadcast %c0_i32_38 : i32 to vector<288x1xi32>
    %46 = arith.cmpi slt, %42, %45 : vector<288x1xi32>
    %c0_i32_39 = arith.constant 0 : i32
    %47 = arith.cmpi slt, %40, %c0_i32_39 : i32
    %48 = vector.broadcast %47 : i1 to vector<288x1xi1>
    %49 = vector.broadcast %48 : vector<288x1xi1> to vector<288x1xi1>
    %50 = arith.xori %46, %49 : vector<288x1xi1>
    %51 = arith.andi %50, %44 : vector<288x1xi1>
    %52 = vector.broadcast %40 : i32 to vector<288x1xi32>
    %53 = arith.addi %42, %52 : vector<288x1xi32>
    %54 = arith.select %51, %53, %42 : vector<288x1xi1>, vector<288x1xi32>
    %c16_i32 = arith.constant 16 : i32
    %55 = vector.broadcast %c16_i32 : i32 to vector<288x1xi32>
    %56 = arith.cmpi slt, %54, %55 : vector<288x1xi32>
    %cst_40 = arith.constant 0.000000e+00 : f32
    %57 = vector.shape_cast %56 : vector<288x1xi1> to vector<288x1xi1>
    %58 = vector.broadcast %57 : vector<288x1xi1> to vector<288x128xi1>
    %59 = vector.broadcast %cst_40 : f32 to vector<288x128xf32>
    %60 = arith.select %58, %37, %59 : vector<288x128xi1>, vector<288x128xf32>
    %cst_41 = arith.constant 0.000000e+00 : bf16
    %61 = vector.broadcast %cst_41 : bf16 to vector<1x342x128xbf16>
    %c0_42 = arith.constant 0 : index
    %c0_43 = arith.constant 0 : index
    %c0_44 = arith.constant 0 : index
    %62 = vector.load %arg4[%c0_42, %c0_43, %c0_44] : memref<1x342x128xbf16, #tpu.memory_space<vmem>>, vector<1x342x128xbf16>
    tpu.vector_store %arg4[%c0_42, %c0_43, %c0_44], %61 {strides = array<i32>} : memref<1x342x128xbf16, #tpu.memory_space<vmem>>, vector<1x342x128xbf16>,
    %63 = arith.truncf %60 : vector<288x128xf32> to vector<288x128xbf16>
    %c0_45 = arith.constant 0 : index
    %c19_46 = arith.constant 19 : index
    %c0_47 = arith.constant 0 : index
    %64 = vector.load %arg4[%c0_45, %c19_46, %c0_47] : memref<1x342x128xbf16, #tpu.memory_space<vmem>>, vector<1x288x128xbf16>
    %65 = vector.shape_cast %64 : vector<1x288x128xbf16> to vector<288x128xbf16>
    %66 = vector.shape_cast %63 : vector<288x128xbf16> to vector<1x288x128xbf16>
    tpu.vector_store %arg4[%c0_45, %c19_46, %c0_47], %66 {strides = array<i32>} : memref<1x342x128xbf16, #tpu.memory_space<vmem>>, vector<1x288x128xbf16>,
    return
  }
  func.func @transform_0(%arg0: i32) -> (i32, i32, i32) {
    %c0_i32 = arith.constant 0 : i32
    %c0_i32_0 = arith.constant 0 : i32
    %c0_i32_1 = arith.constant 0 : i32
    return %arg0, %c0_i32, %c0_i32_0 : i32, i32, i32
  }
  func.func @transform_1(%arg0: i32) -> (i32, i32) {
    %c0_i32 = arith.constant 0 : i32
    %c0_i32_0 = arith.constant 0 : i32
    %c0_i32_1 = arith.constant 0 : i32
    return %c0_i32, %c0_i32_0 : i32, i32
  }
  func.func @transform_2(%arg0: i32) -> (i32, i32) {
    %c0_i32 = arith.constant 0 : i32
    %c0_i32_0 = arith.constant 0 : i32
    %c0_i32_1 = arith.constant 0 : i32
    return %c0_i32, %c0_i32_0 : i32, i32
  }
  func.func @transform_3(%arg0: i32) -> (i32, i32, i32) {
    %c0_i32 = arith.constant 0 : i32
    %c0_i32_0 = arith.constant 0 : i32
    %c0_i32_1 = arith.constant 0 : i32
    return %arg0, %c0_i32, %c0_i32_0 : i32, i32, i32
  }
}

module attributes {stable_mosaic.version = 11 : i64} {
  func.func @_conv3x3_kernel(%arg0: i32, %arg1: memref<1x342x128xbf16, #tpu.memory_space<vmem>>, %arg2: memref<1152x128xbf16, #tpu.memory_space<vmem>>, %arg3: memref<3x128xf32, #tpu.memory_space<vmem>>, %arg4: memref<1x342x128xbf16, #tpu.memory_space<vmem>>, %arg5: memref<128x128xbf16, #tpu.memory_space<vmem>>, %arg6: memref<1x288x128xf32, #tpu.memory_space<vmem>>, %arg7: memref<288x1152xbf16, #tpu.memory_space<vmem>>) attributes {dimension_semantics = [#tpu.dimension_semantics<parallel>], iteration_bounds = array<i64: 2>, scalar_prefetch = 0 : i64, scratch_operands = 1 : i64, tpu.core_type = #tpu.core_type<tc>, window_params = [{transform_indices = @transform_0, window_bounds = array<i64: 1, 342, 128>}, {pipeline_mode = #tpu.pipeline_mode<synchronous>, transform_indices = @transform_1, window_bounds = array<i64: 1152, 128>}, {pipeline_mode = #tpu.pipeline_mode<synchronous>, transform_indices = @transform_2, window_bounds = array<i64: 3, 128>}, {transform_indices = @transform_3, window_bounds = array<i64: 1, 342, 128>}, {pipeline_mode = #tpu.pipeline_mode<synchronous>, transform_indices = @transform_4, window_bounds = array<i64: 128, 128>}, {transform_indices = @transform_5, window_bounds = array<i64: 1, 288, 128>}]} {
    %c0 = arith.constant 0 : index
    %c0_0 = arith.constant 0 : index
    %c0_1 = arith.constant 0 : index
    %0 = vector.load %arg1[%c0, %c0_0, %c0_1] : memref<1x342x128xbf16, #tpu.memory_space<vmem>>, vector<1x288x128xbf16>
    %1 = vector.shape_cast %0 : vector<1x288x128xbf16> to vector<288x128xbf16>
    %c0_2 = arith.constant 0 : index
    %c0_3 = arith.constant 0 : index
    %2 = vector.load %arg7[%c0_2, %c0_3] : memref<288x1152xbf16, #tpu.memory_space<vmem>>, vector<288x128xbf16>
    tpu.vector_store %arg7[%c0_2, %c0_3], %1 {strides = array<i32>} : memref<288x1152xbf16, #tpu.memory_space<vmem>>, vector<288x128xbf16>,
    %c0_4 = arith.constant 0 : index
    %c1 = arith.constant 1 : index
    %c0_5 = arith.constant 0 : index
    %3 = vector.load %arg1[%c0_4, %c1, %c0_5] : memref<1x342x128xbf16, #tpu.memory_space<vmem>>, vector<1x288x128xbf16>
    %4 = vector.shape_cast %3 : vector<1x288x128xbf16> to vector<288x128xbf16>
    %c0_6 = arith.constant 0 : index
    %c128 = arith.constant 128 : index
    %5 = vector.load %arg7[%c0_6, %c128] : memref<288x1152xbf16, #tpu.memory_space<vmem>>, vector<288x128xbf16>
    tpu.vector_store %arg7[%c0_6, %c128], %4 {strides = array<i32>} : memref<288x1152xbf16, #tpu.memory_space<vmem>>, vector<288x128xbf16>,
    %c0_7 = arith.constant 0 : index
    %c2 = arith.constant 2 : index
    %c0_8 = arith.constant 0 : index
    %6 = vector.load %arg1[%c0_7, %c2, %c0_8] : memref<1x342x128xbf16, #tpu.memory_space<vmem>>, vector<1x288x128xbf16>
    %7 = vector.shape_cast %6 : vector<1x288x128xbf16> to vector<288x128xbf16>
    %c0_9 = arith.constant 0 : index
    %c256 = arith.constant 256 : index
    %8 = vector.load %arg7[%c0_9, %c256] : memref<288x1152xbf16, #tpu.memory_space<vmem>>, vector<288x128xbf16>
    tpu.vector_store %arg7[%c0_9, %c256], %7 {strides = array<i32>} : memref<288x1152xbf16, #tpu.memory_space<vmem>>, vector<288x128xbf16>,
    %c0_10 = arith.constant 0 : index
    %c18 = arith.constant 18 : index
    %c0_11 = arith.constant 0 : index
    %9 = vector.load %arg1[%c0_10, %c18, %c0_11] : memref<1x342x128xbf16, #tpu.memory_space<vmem>>, vector<1x288x128xbf16>
    %10 = vector.shape_cast %9 : vector<1x288x128xbf16> to vector<288x128xbf16>
    %c0_12 = arith.constant 0 : index
    %c384 = arith.constant 384 : index
    %11 = vector.load %arg7[%c0_12, %c384] : memref<288x1152xbf16, #tpu.memory_space<vmem>>, vector<288x128xbf16>
    tpu.vector_store %arg7[%c0_12, %c384], %10 {strides = array<i32>} : memref<288x1152xbf16, #tpu.memory_space<vmem>>, vector<288x128xbf16>,
    %c0_13 = arith.constant 0 : index
    %c19 = arith.constant 19 : index
    %c0_14 = arith.constant 0 : index
    %12 = vector.load %arg1[%c0_13, %c19, %c0_14] : memref<1x342x128xbf16, #tpu.memory_space<vmem>>, vector<1x288x128xbf16>
    %13 = vector.shape_cast %12 : vector<1x288x128xbf16> to vector<288x128xbf16>
    %c0_15 = arith.constant 0 : index
    %c512 = arith.constant 512 : index
    %14 = vector.load %arg7[%c0_15, %c512] : memref<288x1152xbf16, #tpu.memory_space<vmem>>, vector<288x128xbf16>
    tpu.vector_store %arg7[%c0_15, %c512], %13 {strides = array<i32>} : memref<288x1152xbf16, #tpu.memory_space<vmem>>, vector<288x128xbf16>,
    %c0_16 = arith.constant 0 : index
    %c20 = arith.constant 20 : index
    %c0_17 = arith.constant 0 : index
    %15 = vector.load %arg1[%c0_16, %c20, %c0_17] : memref<1x342x128xbf16, #tpu.memory_space<vmem>>, vector<1x288x128xbf16>
    %16 = vector.shape_cast %15 : vector<1x288x128xbf16> to vector<288x128xbf16>
    %c0_18 = arith.constant 0 : index
    %c640 = arith.constant 640 : index
    %17 = vector.load %arg7[%c0_18, %c640] : memref<288x1152xbf16, #tpu.memory_space<vmem>>, vector<288x128xbf16>
    tpu.vector_store %arg7[%c0_18, %c640], %16 {strides = array<i32>} : memref<288x1152xbf16, #tpu.memory_space<vmem>>, vector<288x128xbf16>,
    %c0_19 = arith.constant 0 : index
    %c36 = arith.constant 36 : index
    %c0_20 = arith.constant 0 : index
    %18 = vector.load %arg1[%c0_19, %c36, %c0_20] : memref<1x342x128xbf16, #tpu.memory_space<vmem>>, vector<1x288x128xbf16>
    %19 = vector.shape_cast %18 : vector<1x288x128xbf16> to vector<288x128xbf16>
    %c0_21 = arith.constant 0 : index
    %c768 = arith.constant 768 : index
    %20 = vector.load %arg7[%c0_21, %c768] : memref<288x1152xbf16, #tpu.memory_space<vmem>>, vector<288x128xbf16>
    tpu.vector_store %arg7[%c0_21, %c768], %19 {strides = array<i32>} : memref<288x1152xbf16, #tpu.memory_space<vmem>>, vector<288x128xbf16>,
    %c0_22 = arith.constant 0 : index
    %c37 = arith.constant 37 : index
    %c0_23 = arith.constant 0 : index
    %21 = vector.load %arg1[%c0_22, %c37, %c0_23] : memref<1x342x128xbf16, #tpu.memory_space<vmem>>, vector<1x288x128xbf16>
    %22 = vector.shape_cast %21 : vector<1x288x128xbf16> to vector<288x128xbf16>
    %c0_24 = arith.constant 0 : index
    %c896 = arith.constant 896 : index
    %23 = vector.load %arg7[%c0_24, %c896] : memref<288x1152xbf16, #tpu.memory_space<vmem>>, vector<288x128xbf16>
    tpu.vector_store %arg7[%c0_24, %c896], %22 {strides = array<i32>} : memref<288x1152xbf16, #tpu.memory_space<vmem>>, vector<288x128xbf16>,
    %c0_25 = arith.constant 0 : index
    %c38 = arith.constant 38 : index
    %c0_26 = arith.constant 0 : index
    %24 = vector.load %arg1[%c0_25, %c38, %c0_26] : memref<1x342x128xbf16, #tpu.memory_space<vmem>>, vector<1x288x128xbf16>
    %25 = vector.shape_cast %24 : vector<1x288x128xbf16> to vector<288x128xbf16>
    %c0_27 = arith.constant 0 : index
    %c1024 = arith.constant 1024 : index
    %26 = vector.load %arg7[%c0_27, %c1024] : memref<288x1152xbf16, #tpu.memory_space<vmem>>, vector<288x128xbf16>
    tpu.vector_store %arg7[%c0_27, %c1024], %25 {strides = array<i32>} : memref<288x1152xbf16, #tpu.memory_space<vmem>>, vector<288x128xbf16>,
    %c0_28 = arith.constant 0 : index
    %c0_29 = arith.constant 0 : index
    %27 = vector.load %arg7[%c0_28, %c0_29] : memref<288x1152xbf16, #tpu.memory_space<vmem>>, vector<288x1152xbf16>
    %c0_30 = arith.constant 0 : index
    %c0_31 = arith.constant 0 : index
    %28 = vector.load %arg2[%c0_30, %c0_31] : memref<1152x128xbf16, #tpu.memory_space<vmem>>, vector<1152x128xbf16>
    %cst = arith.constant dense<0.000000e+00> : vector<288x128xf32>
    %29 = tpu.matmul %27, %28, %cst {dimension_numbers = #tpu.dot_dimension_numbers<[1], [0], [0], [1], [0, 0, 1, 1], [], []>} : vector<288x1152xbf16>, vector<1152x128xbf16>, vector<288x128xf32> -> vector<288x128xf32>
    %c0_32 = arith.constant 0 : index
    %c0_33 = arith.constant 0 : index
    %30 = vector.load %arg3[%c0_32, %c0_33] : memref<3x128xf32, #tpu.memory_space<vmem>>, vector<1x128xf32>
    %31 = vector.broadcast %30 : vector<1x128xf32> to vector<288x128xf32>
    %32 = arith.mulf %29, %31 : vector<288x128xf32>
    %c1_34 = arith.constant 1 : index
    %c0_35 = arith.constant 0 : index
    %33 = vector.load %arg3[%c1_34, %c0_35] : memref<3x128xf32, #tpu.memory_space<vmem>>, vector<1x128xf32>
    %34 = vector.broadcast %33 : vector<1x128xf32> to vector<288x128xf32>
    %35 = arith.addf %32, %34 : vector<288x128xf32>
    %c0_36 = arith.constant 0 : index
    %c19_37 = arith.constant 19 : index
    %c0_38 = arith.constant 0 : index
    %36 = vector.load %arg4[%c0_36, %c19_37, %c0_38] : memref<1x342x128xbf16, #tpu.memory_space<vmem>>, vector<1x288x128xbf16>
    %37 = vector.shape_cast %36 : vector<1x288x128xbf16> to vector<288x128xbf16>
    %c0_39 = arith.constant 0 : index
    %c0_40 = arith.constant 0 : index
    %38 = vector.load %arg5[%c0_39, %c0_40] : memref<128x128xbf16, #tpu.memory_space<vmem>>, vector<128x128xbf16>
    %cst_41 = arith.constant dense<0.000000e+00> : vector<288x128xf32>
    %39 = tpu.matmul %37, %38, %cst_41 {dimension_numbers = #tpu.dot_dimension_numbers<[1], [0], [0], [1], [0, 0, 1, 1], [], []>} : vector<288x128xbf16>, vector<128x128xbf16>, vector<288x128xf32> -> vector<288x128xf32>
    %c2_42 = arith.constant 2 : index
    %c0_43 = arith.constant 0 : index
    %40 = vector.load %arg3[%c2_42, %c0_43] : memref<3x128xf32, #tpu.memory_space<vmem>>, vector<1x128xf32>
    %41 = vector.broadcast %40 : vector<1x128xf32> to vector<288x128xf32>
    %42 = arith.mulf %39, %41 : vector<288x128xf32>
    %43 = arith.addf %35, %42 : vector<288x128xf32>
    %cst_44 = arith.constant 0.000000e+00 : f32
    %44 = vector.broadcast %cst_44 : f32 to vector<288x128xf32>
    %45 = arith.maximumf %43, %44 : vector<288x128xf32>
    %46 = vector.shape_cast %45 : vector<288x128xf32> to vector<1x288x128xf32>
    %c0_45 = arith.constant 0 : index
    %c0_46 = arith.constant 0 : index
    %c0_47 = arith.constant 0 : index
    %47 = vector.load %arg6[%c0_45, %c0_46, %c0_47] : memref<1x288x128xf32, #tpu.memory_space<vmem>>, vector<1x288x128xf32>
    tpu.vector_store %arg6[%c0_45, %c0_46, %c0_47], %46 {strides = array<i32>} : memref<1x288x128xf32, #tpu.memory_space<vmem>>, vector<1x288x128xf32>,
    return
  }
  func.func @transform_0(%arg0: i32) -> (i32, i32, i32) {
    %c0_i32 = arith.constant 0 : i32
    %c0_i32_0 = arith.constant 0 : i32
    %c0_i32_1 = arith.constant 0 : i32
    return %arg0, %c0_i32, %c0_i32_0 : i32, i32, i32
  }
  func.func @transform_1(%arg0: i32) -> (i32, i32) {
    %c0_i32 = arith.constant 0 : i32
    %c0_i32_0 = arith.constant 0 : i32
    %c0_i32_1 = arith.constant 0 : i32
    return %c0_i32, %c0_i32_0 : i32, i32
  }
  func.func @transform_2(%arg0: i32) -> (i32, i32) {
    %c0_i32 = arith.constant 0 : i32
    %c0_i32_0 = arith.constant 0 : i32
    %c0_i32_1 = arith.constant 0 : i32
    return %c0_i32, %c0_i32_0 : i32, i32
  }
  func.func @transform_3(%arg0: i32) -> (i32, i32, i32) {
    %c0_i32 = arith.constant 0 : i32
    %c0_i32_0 = arith.constant 0 : i32
    %c0_i32_1 = arith.constant 0 : i32
    return %arg0, %c0_i32, %c0_i32_0 : i32, i32, i32
  }
  func.func @transform_4(%arg0: i32) -> (i32, i32) {
    %c0_i32 = arith.constant 0 : i32
    %c0_i32_0 = arith.constant 0 : i32
    %c0_i32_1 = arith.constant 0 : i32
    return %c0_i32, %c0_i32_0 : i32, i32
  }
  func.func @transform_5(%arg0: i32) -> (i32, i32, i32) {
    %c0_i32 = arith.constant 0 : i32
    %c0_i32_0 = arith.constant 0 : i32
    %c0_i32_1 = arith.constant 0 : i32
    return %arg0, %c0_i32, %c0_i32_0 : i32, i32, i32
  }
}

</mosaic_0001>

<llo_original>
// kernel: residual_block_forward.3
$region0: #{residual_block_forward.3}
  #allocation0 [shape = 'u32[]', space=smem, size = 0x4, offset = 0x4, fixed_abs, tag = 'smem constant byte address 0x4 - core index']
  #allocation1 [shape = 'u32[144,128]{1,0:T(1,128)}', space=vmem, size = 0x12000, scoped, tag = 'internal scratch']
  #allocation2 [shape = 'bf16[288,1152]{1,0:T(8,128)(2,1)}', space=vmem, size = 0xa2000, scoped, tag = 'scratch operand']
  %s0 = inlined_call_operand.vmem [shape: bf16[2,342,128], index: 0, kind: input, shape index: {}]
  %s1 = inlined_call_operand.vmem [shape: bf16[1152,128], index: 1, kind: input, shape index: {}]
  %s2 = inlined_call_operand.vmem [shape: f32[3,128], index: 2, kind: input, shape index: {}]
  %s3 = inlined_call_operand.vmem [shape: bf16[2,342,128], index: 3, kind: input, shape index: {}]
  %s4 = inlined_call_operand.vmem [shape: bf16[128,128], index: 4, kind: input, shape index: {}]
  %s5 = inlined_call_operand.vmem [shape: f32[2,288,128], index: 5, kind: output, shape index: {}]
  %s6 = sld [smem:[#allocation0]]
  $region53: #{residual_block_forward.3} parent=0
    _
  %s8 = ssub.s32 1, %s6
  %s9 = scalar_select 0, %s8, %s6
  loop: start=0, step=1, limit=4
  $region2: #{residual_block_forward.3} parent=0 // loop_pre_header
    _
  $region3: #{residual_block_forward.3} parent=0 // loop_header
    %s11 = sphi 0, %s15
    %p12 = scmp.ge.s32.totalorder %s11, 4
    %s21 = sphi 0, %s23
    %s24 = sphi 0, %s21
    %s25 = sphi 0, %s24
    %s41 = sphi 0, %s25
    %s45 = sphi 0, %s45
    %s47 = sphi 0, %s45
    %s48 = sphi 0, %s47
    %s62 = sphi 0, %s48
    %s66 = sphi 0, %s66
    %s68 = sphi 0, %s66
    %s69 = sphi 0, %s68
    %s83 = sphi 0, %s69
    %s89 = sphi 0, %s91
    %s92 = sphi 0, %s89
    %s93 = sphi 0, %s92
    %s109 = sphi 0, %s93
    %s113 = sphi 0, %s113
    %s115 = sphi 0, %s113
    %s116 = sphi 0, %s115
    %s130 = sphi 0, %s116
    %s136 = sphi 0, %s138
    %s139 = sphi 0, %s136
    %s140 = sphi 0, %s139
    %s156 = sphi 0, %s140
  $region4: #{residual_block_forward.3} parent=0 // loop_header_branch
    %14 = sbr.rel (%p12) target = $region8
  $region5: #{residual_block_forward.3} parent=0 // loop_body
    %s16 = ssub.s32 %s11, 1
    %s17 = ssub.s32 %s11, 2
    %s18 = sadd.s32 %s11, 1
    %s19 = ssub.s32 %s11, %s18
    %p20 = scmp.eq.s32.totalorder %s19, 0
    %s22 = sadd.s32 %s21, 1
    %s23 = scalar_select %p20, %s21, %s22
    %p26 = pneg %p20
    %p27 = scmp.eq.s32.totalorder %s11, 1
    %p28 = por %p26, %p27
    %p29 = scmp.ne.s32.totalorder %s21, %s24
    %p30 = scmp.eq.s32.totalorder %s11, 0
    %p31 = por %p29, %p30
    %p32 = scmp.ne.s32.totalorder %s21, %s24
    %p33 = scmp.eq.s32.totalorder %s16, 1
    %p34 = por %p32, %p33
    %p35 = scmp.ne.s32.totalorder %s24, %s25
    %p36 = scmp.eq.s32.totalorder %s16, 0
    %p37 = por %p35, %p36
    %p38 = scmp.ne.s32.totalorder %s24, %s25
    %p39 = scmp.eq.s32.totalorder %s17, 1
    %p40 = por %p38, %p39
    %p42 = scmp.ne.s32.totalorder %s25, %s41
    %p43 = scmp.eq.s32.totalorder %s17, 0
    %p44 = por %p42, %p43
    %s46 = sadd.s32 %s45, 1
    %p49 = scmp.eq.s32.totalorder %s11, 1
    %p50 = scmp.ne.s32.totalorder %s45, %s47
    %p51 = scmp.eq.s32.totalorder %s11, 0
    %p52 = por %p50, %p51
    %p53 = scmp.ne.s32.totalorder %s45, %s47
    %p54 = scmp.eq.s32.totalorder %s16, 1
    %p55 = por %p53, %p54
    %p56 = scmp.ne.s32.totalorder %s47, %s48
    %p57 = scmp.eq.s32.totalorder %s16, 0
    %p58 = por %p56, %p57
    %p59 = scmp.ne.s32.totalorder %s47, %s48
    %p60 = scmp.eq.s32.totalorder %s17, 1
    %p61 = por %p59, %p60
    %p63 = scmp.ne.s32.totalorder %s48, %s62
    %p64 = scmp.eq.s32.totalorder %s17, 0
    %p65 = por %p63, %p64
    %s67 = sadd.s32 %s66, 1
    %p70 = scmp.eq.s32.totalorder %s11, 1
    %p71 = scmp.ne.s32.totalorder %s66, %s68
    %p72 = scmp.eq.s32.totalorder %s11, 0
    %p73 = por %p71, %p72
    %p74 = scmp.ne.s32.totalorder %s66, %s68
    %p75 = scmp.eq.s32.totalorder %s16, 1
    %p76 = por %p74, %p75
    %p77 = scmp.ne.s32.totalorder %s68, %s69
    %p78 = scmp.eq.s32.totalorder %s16, 0
    %p79 = por %p77, %p78
    %p80 = scmp.ne.s32.totalorder %s68, %s69
    %p81 = scmp.eq.s32.totalorder %s17, 1
    %p82 = por %p80, %p81
    %p84 = scmp.ne.s32.totalorder %s69, %s83
    %p85 = scmp.eq.s32.totalorder %s17, 0
    %p86 = por %p84, %p85
    %s87 = ssub.s32 %s11, %s18
    %p88 = scmp.eq.s32.totalorder %s87, 0
    %s90 = sadd.s32 %s89, 1
    %s91 = scalar_select %p88, %s89, %s90
    %p94 = pneg %p88
    %p95 = scmp.eq.s32.totalorder %s11, 1
    %p96 = por %p94, %p95
    %p97 = scmp.ne.s32.totalorder %s89, %s92
    %p98 = scmp.eq.s32.totalorder %s11, 0
    %p99 = por %p97, %p98
    %p100 = scmp.ne.s32.totalorder %s89, %s92
    %p101 = scmp.eq.s32.totalorder %s16, 1
    %p102 = por %p100, %p101
    %p103 = scmp.ne.s32.totalorder %s92, %s93
    %p104 = scmp.eq.s32.totalorder %s16, 0
    %p105 = por %p103, %p104
    %p106 = scmp.ne.s32.totalorder %s92, %s93
    %p107 = scmp.eq.s32.totalorder %s17, 1
    %p108 = por %p106, %p107
    %p110 = scmp.ne.s32.totalorder %s93, %s109
    %p111 = scmp.eq.s32.totalorder %s17, 0
    %p112 = por %p110, %p111
    %s114 = sadd.s32 %s113, 1
    %p117 = scmp.eq.s32.totalorder %s11, 1
    %p118 = scmp.ne.s32.totalorder %s113, %s115
    %p119 = scmp.eq.s32.totalorder %s11, 0
    %p120 = por %p118, %p119
    %p121 = scmp.ne.s32.totalorder %s113, %s115
    %p122 = scmp.eq.s32.totalorder %s16, 1
    %p123 = por %p121, %p122
    %p124 = scmp.ne.s32.totalorder %s115, %s116
    %p125 = scmp.eq.s32.totalorder %s16, 0
    %p126 = por %p124, %p125
    %p127 = scmp.ne.s32.totalorder %s115, %s116
    %p128 = scmp.eq.s32.totalorder %s17, 1
    %p129 = por %p127, %p128
    %p131 = scmp.ne.s32.totalorder %s116, %s130
    %p132 = scmp.eq.s32.totalorder %s17, 0
    %p133 = por %p131, %p132
    %s134 = ssub.s32 %s11, %s18
    %p135 = scmp.eq.s32.totalorder %s134, 0
    %s137 = sadd.s32 %s136, 1
    %s138 = scalar_select %p135, %s136, %s137
    %p141 = pneg %p135
    %p142 = scmp.eq.s32.totalorder %s11, 1
    %p143 = por %p141, %p142
    %p144 = scmp.ne.s32.totalorder %s136, %s139
    %p145 = scmp.eq.s32.totalorder %s11, 0
    %p146 = por %p144, %p145
    %p147 = scmp.ne.s32.totalorder %s136, %s139
    %p148 = scmp.eq.s32.totalorder %s16, 1
    %p149 = por %p147, %p148
    %p150 = scmp.ne.s32.totalorder %s139, %s140
    %p151 = scmp.eq.s32.totalorder %s16, 0
    %p152 = por %p150, %p151
    %p153 = scmp.ne.s32.totalorder %s139, %s140
    %p154 = scmp.eq.s32.totalorder %s17, 1
    %p155 = por %p153, %p154
    %p157 = scmp.ne.s32.totalorder %s140, %s156
    %p158 = scmp.eq.s32.totalorder %s17, 0
    %p159 = por %p157, %p158
    %p160 = scmp.le.s32.totalorder 1, %s11
    %p161 = scmp.lt.s32.totalorder %s11, 3
    %p162 = pnand %p160, %p161
    %p163 = pneg %p162
    // Predicated region
    $region9: #{residual_block_forward.3} parent=5 // pred_check
      _
    $region10: #{residual_block_forward.3} parent=5 // pred_check_branch
      %165 = sbr.rel (%p162) target = $region12
    $region11: #{residual_block_forward.3} parent=5 // pred_region
      %s166 = ssub.s32 %s11, 1
      // Predicated region
      $region13: #{residual_block_forward.3} parent=11 // pred_check
        %p167 = pneg %p58
      $region14: #{residual_block_forward.3} parent=11 // pred_check_branch
        %169 = sbr.rel (%p167) target = $region16
      $region15: #{residual_block_forward.3} parent=11 // pred_region
        _
      $region16: #{residual_block_forward.3} parent=11 // pred_fallthru
        _
      // Predicated region
      $region17: #{residual_block_forward.3} parent=11 // pred_check
        %p170 = pneg %p79
      $region18: #{residual_block_forward.3} parent=11 // pred_check_branch
        %172 = sbr.rel (%p170) target = $region20
      $region19: #{residual_block_forward.3} parent=11 // pred_region
        _
      $region20: #{residual_block_forward.3} parent=11 // pred_fallthru
        _
      // Predicated region
      $region21: #{residual_block_forward.3} parent=11 // pred_check
        %p173 = pneg %p126
      $region22: #{residual_block_forward.3} parent=11 // pred_check_branch
        %175 = sbr.rel (%p173) target = $region24
      $region23: #{residual_block_forward.3} parent=11 // pred_region
        _
      $region24: #{residual_block_forward.3} parent=11 // pred_fallthru
        _
    $region12: #{residual_block_forward.3} parent=5 // pred_fallthru
      _
    %p176 = scmp.lt.s32.totalorder %s11, 2
    // Predicated region
    $region25: #{residual_block_forward.3} parent=5 // pred_check
      %p177 = pneg %p176
    $region26: #{residual_block_forward.3} parent=5 // pred_check_branch
      %179 = sbr.rel (%p177) target = $region28
    $region27: #{residual_block_forward.3} parent=5 // pred_region
      // Predicated region
      $region29: #{residual_block_forward.3} parent=27 // pred_check
        %p180 = pneg %p31
      $region30: #{residual_block_forward.3} parent=27 // pred_check_branch
        %182 = sbr.rel (%p180) target = $region32
      $region31: #{residual_block_forward.3} parent=27 // pred_region
        %p183 = scmp.lt.s32.totalorder %s11, 1
        %s184 = scalar_select %p183, %s11, 1
        %s185 = smul.addr %s184, 43
        %s186 = smul.addr %s185, 4
        %s187 = scalar_lea.vmem %s0, %s186
      $region32: #{residual_block_forward.3} parent=27 // pred_fallthru
        _
      // Predicated region
      $region33: #{residual_block_forward.3} parent=27 // pred_check
        %p188 = pneg %p99
      $region34: #{residual_block_forward.3} parent=27 // pred_check_branch
        %190 = sbr.rel (%p188) target = $region36
      $region35: #{residual_block_forward.3} parent=27 // pred_region
        %p191 = scmp.lt.s32.totalorder %s11, 1
        %s192 = scalar_select %p191, %s11, 1
        %s193 = smul.addr %s192, 43
        %s194 = smul.addr %s193, 4
        %s195 = scalar_lea.vmem %s3, %s194
      $region36: #{residual_block_forward.3} parent=27 // pred_fallthru
        _
    $region28: #{residual_block_forward.3} parent=5 // pred_fallthru
      _
    %p196 = scmp.le.s32.totalorder 1, %s11
    %p197 = scmp.lt.s32.totalorder %s11, 3
    %p198 = pnand %p196, %p197
    %p199 = pneg %p198
    // Predicated region
    $region37: #{residual_block_forward.3} parent=5 // pred_check
      _
    $region38: #{residual_block_forward.3} parent=5 // pred_check_branch
      %201 = sbr.rel (%p198) target = $region40
    $region39: #{residual_block_forward.3} parent=5 // pred_region
      %s202 = ssub.s32 %s11, 1
      %p203 = scmp.lt.s32.totalorder %s16, 1
      %s204 = scalar_select %p203, %s16, 1
      %s205 = smul.addr %s204, 43
      %s206 = smul.addr %s205, 4
      %s207 = scalar_lea.vmem %s0, %s206
      %p208 = pneg %p37
      %p209 = pneg %p34
      %p210 = pneg %p58
      %p211 = pneg %p55
      %p212 = pneg %p79
      %p213 = pneg %p76
      %p214 = scmp.lt.s32.totalorder %s16, 1
      %s215 = scalar_select %p214, %s16, 1
      %s216 = smul.addr %s215, 43
      %s217 = smul.addr %s216, 4
      %s218 = scalar_lea.vmem %s3, %s217
      %p219 = pneg %p105
      %p220 = pneg %p102
      %p221 = pneg %p126
      %p222 = pneg %p123
      %p223 = pneg %p152
      %p224 = pneg %p149
      %p225 = scmp.lt.s32.totalorder %s16, 1
      %s226 = scalar_select %p225, %s16, 1
      %s227 = smul.addr %s226, 36
      %s228 = smul.addr %s227, 8
      %s229 = scalar_lea.vmem %s5, %s228
      %p230 = scmp.lt.s32.totalorder %s16, 1
      %s231 = scalar_select %p230, %s16, 1
      %s232 = smul.addr %s231, 43
      %s233 = smul.addr %s232, 4
      %s234 = scalar_lea.vmem %s0, %s233
      %p235 = scmp.lt.s32.totalorder %s16, 1
      %s236 = scalar_select %p235, %s16, 1
      %s237 = smul.addr %s236, 43
      %s238 = smul.addr %s237, 4
      %s239 = scalar_lea.vmem %s3, %s238
      %p240 = scmp.lt.s32.totalorder %s16, 1
      %s241 = scalar_select %p240, %s16, 1
      %s242 = smul.addr %s241, 36
      %s243 = smul.addr %s242, 8
      %s244 = scalar_lea.vmem %s5, %s243
      %v246 = vld [vmem:[%s234] sm:$0xf]
      %v247 = vld [vmem:[%s234 + $0x4] sm:$0xf]
      %v248 = vld [vmem:[%s234 + $0x8] sm:$0xf]
      %v249 = vld [vmem:[%s234 + $0xc] sm:$0xf]
      %v250 = vld [vmem:[%s234 + $0x10] sm:$0xf]
      %v251 = vld [vmem:[%s234 + $0x14] sm:$0xf]
      %v252 = vld [vmem:[%s234 + $0x18] sm:$0xf]
      %v253 = vld [vmem:[%s234 + $0x1c] sm:$0xf]
      %v254 = vld [vmem:[%s234 + $0x20] sm:$0xf]
      %v255 = vld [vmem:[%s234 + $0x24] sm:$0xf]
      %v256 = vld [vmem:[%s234 + $0x28] sm:$0xf]
      %v257 = vld [vmem:[%s234 + $0x2c] sm:$0xf]
      %v258 = vld [vmem:[%s234 + $0x30] sm:$0xf]
      %v259 = vld [vmem:[%s234 + $0x34] sm:$0xf]
      %v260 = vld [vmem:[%s234 + $0x38] sm:$0xf]
      %v261 = vld [vmem:[%s234 + $0x3c] sm:$0xf]
      %v262 = vld [vmem:[%s234 + $0x40] sm:$0xf]
      %v263 = vld [vmem:[%s234 + $0x44] sm:$0xf]
      %v264 = vld [vmem:[%s234 + $0x48] sm:$0xf]
      %v265 = vld [vmem:[%s234 + $0x4c] sm:$0xf]
      %v266 = vld [vmem:[%s234 + $0x50] sm:$0xf]
      %v267 = vld [vmem:[%s234 + $0x54] sm:$0xf]
      %v268 = vld [vmem:[%s234 + $0x58] sm:$0xf]
      %v269 = vld [vmem:[%s234 + $0x5c] sm:$0xf]
      %v270 = vld [vmem:[%s234 + $0x60] sm:$0xf]
      %v271 = vld [vmem:[%s234 + $0x64] sm:$0xf]
      %v272 = vld [vmem:[%s234 + $0x68] sm:$0xf]
      %v273 = vld [vmem:[%s234 + $0x6c] sm:$0xf]
      %v274 = vld [vmem:[%s234 + $0x70] sm:$0xf]
      %v275 = vld [vmem:[%s234 + $0x74] sm:$0xf]
      %v276 = vld [vmem:[%s234 + $0x78] sm:$0xf]
      %v277 = vld [vmem:[%s234 + $0x7c] sm:$0xf]
      %v278 = vld [vmem:[%s234 + $0x80] sm:$0xf]
      %v279 = vld [vmem:[%s234 + $0x84] sm:$0xf]
      %v280 = vld [vmem:[%s234 + $0x88] sm:$0xf]
      %v281 = vld [vmem:[%s234 + $0x8c] sm:$0xf]
      %282 = vst [vmem:[#allocation2] sm:$0xf] %v246
      %283 = vst [vmem:[#allocation2 + $0x24] sm:$0xf] %v247
      %284 = vst [vmem:[#allocation2 + $0x48] sm:$0xf] %v248
      %285 = vst [vmem:[#allocation2 + $0x6c] sm:$0xf] %v249
      %286 = vst [vmem:[#allocation2 + $0x90] sm:$0xf] %v250
      %287 = vst [vmem:[#allocation2 + $0xb4] sm:$0xf] %v251
      %288 = vst [vmem:[#allocation2 + $0xd8] sm:$0xf] %v252
      %289 = vst [vmem:[#allocation2 + $0xfc] sm:$0xf] %v253
      %290 = vst [vmem:[#allocation2 + $0x120] sm:$0xf] %v254
      %291 = vst [vmem:[#allocation2 + $0x144] sm:$0xf] %v255
      %292 = vst [vmem:[#allocation2 + $0x168] sm:$0xf] %v256
      %293 = vst [vmem:[#allocation2 + $0x18c] sm:$0xf] %v257
      %294 = vst [vmem:[#allocation2 + $0x1b0] sm:$0xf] %v258
      %295 = vst [vmem:[#allocation2 + $0x1d4] sm:$0xf] %v259
      %296 = vst [vmem:[#allocation2 + $0x1f8] sm:$0xf] %v260
      %297 = vst [vmem:[#allocation2 + $0x21c] sm:$0xf] %v261
      %298 = vst [vmem:[#allocation2 + $0x240] sm:$0xf] %v262
      %299 = vst [vmem:[#allocation2 + $0x264] sm:$0xf] %v263
      %300 = vst [vmem:[#allocation2 + $0x288] sm:$0xf] %v264
      %301 = vst [vmem:[#allocation2 + $0x2ac] sm:$0xf] %v265
      %302 = vst [vmem:[#allocation2 + $0x2d0] sm:$0xf] %v266
      %303 = vst [vmem:[#allocation2 + $0x2f4] sm:$0xf] %v267
      %304 = vst [vmem:[#allocation2 + $0x318] sm:$0xf] %v268
      %305 = vst [vmem:[#allocation2 + $0x33c] sm:$0xf] %v269
      %306 = vst [vmem:[#allocation2 + $0x360] sm:$0xf] %v270
      %307 = vst [vmem:[#allocation2 + $0x384] sm:$0xf] %v271
      %308 = vst [vmem:[#allocation2 + $0x3a8] sm:$0xf] %v272
      %309 = vst [vmem:[#allocation2 + $0x3cc] sm:$0xf] %v273
      %310 = vst [vmem:[#allocation2 + $0x3f0] sm:$0xf] %v274
      %311 = vst [vmem:[#allocation2 + $0x414] sm:$0xf] %v275
      %312 = vst [vmem:[#allocation2 + $0x438] sm:$0xf] %v276
      %313 = vst [vmem:[#allocation2 + $0x45c] sm:$0xf] %v277
      %314 = vst [vmem:[#allocation2 + $0x480] sm:$0xf] %v278
      %315 = vst [vmem:[#allocation2 + $0x4a4] sm:$0xf] %v279
      %316 = vst [vmem:[#allocation2 + $0x4c8] sm:$0xf] %v280
      %317 = vst [vmem:[#allocation2 + $0x4ec] sm:$0xf] %v281
      %v318 = vld [vmem:[%s234] sm:$0xf]
      %v319 = vld [vmem:[%s234 + $0x4] sm:$0xf]
      %v320 = vld [vmem:[%s234 + $0x8] sm:$0xf]
      %v321 = vld [vmem:[%s234 + $0xc] sm:$0xf]
      %v322 = vld [vmem:[%s234 + $0x10] sm:$0xf]
      %v323 = vld [vmem:[%s234 + $0x14] sm:$0xf]
      %v324 = vld [vmem:[%s234 + $0x18] sm:$0xf]
      %v325 = vld [vmem:[%s234 + $0x1c] sm:$0xf]
      %v326 = vld [vmem:[%s234 + $0x20] sm:$0xf]
      %v327 = vld [vmem:[%s234 + $0x24] sm:$0xf]
      %v328 = vld [vmem:[%s234 + $0x28] sm:$0xf]
      %v329 = vld [vmem:[%s234 + $0x2c] sm:$0xf]
      %v330 = vld [vmem:[%s234 + $0x30] sm:$0xf]
      %v331 = vld [vmem:[%s234 + $0x34] sm:$0xf]
      %v332 = vld [vmem:[%s234 + $0x38] sm:$0xf]
      %v333 = vld [vmem:[%s234 + $0x3c] sm:$0xf]
      %v334 = vld [vmem:[%s234 + $0x40] sm:$0xf]
      %v335 = vld [vmem:[%s234 + $0x44] sm:$0xf]
      %v336 = vld [vmem:[%s234 + $0x48] sm:$0xf]
      %v337 = vld [vmem:[%s234 + $0x4c] sm:$0xf]
      %v338 = vld [vmem:[%s234 + $0x50] sm:$0xf]
      %v339 = vld [vmem:[%s234 + $0x54] sm:$0xf]
      %v340 = vld [vmem:[%s234 + $0x58] sm:$0xf]
      %v341 = vld [vmem:[%s234 + $0x5c] sm:$0xf]
      %v342 = vld [vmem:[%s234 + $0x60] sm:$0xf]
      %v343 = vld [vmem:[%s234 + $0x64] sm:$0xf]
      %v344 = vld [vmem:[%s234 + $0x68] sm:$0xf]
      %v345 = vld [vmem:[%s234 + $0x6c] sm:$0xf]
      %v346 = vld [vmem:[%s234 + $0x70] sm:$0xf]
      %v347 = vld [vmem:[%s234 + $0x74] sm:$0xf]
      %v348 = vld [vmem:[%s234 + $0x78] sm:$0xf]
      %v349 = vld [vmem:[%s234 + $0x7c] sm:$0xf]
      %v350 = vld [vmem:[%s234 + $0x80] sm:$0xf]
      %v351 = vld [vmem:[%s234 + $0x84] sm:$0xf]
      %v352 = vld [vmem:[%s234 + $0x88] sm:$0xf]
      %v353 = vld [vmem:[%s234 + $0x8c] sm:$0xf]
      %v354 = vld [vmem:[%s234 + $0x90] sm:$0x1]
      %vm355 = vsmask.f32 3328
      %vm356 = vsmask.f32 7440
      %vm357 = vmor %vm355, %vm356
      %v359 = vshrl.u32 %v318, 16
      %v361 = vrot.slane %v359, 4
      %v362 = vshll.u32 %v318, 16
      %v364 = vrot.slane %v362, 5
      %v365 = vor.u32 %v361, %v364
      %v366 = vrot.slane %v365, 4
      %v368 = vshll.u32 %v319, 16
      %v370 = vrot.slane %v368, 5
      %v371 = vsel %vm357, %v366, %v370
      %v372 = vshrl.u32 %v319, 16
      %v374 = vrot.slane %v372, 4
      %v375 = vor.u32 %v374, %v370
      %v376 = vrot.slane %v375, 4
      %v378 = vshll.u32 %v320, 16
      %v380 = vrot.slane %v378, 5
      %v381 = vsel %vm357, %v376, %v380
      %v382 = vshrl.u32 %v320, 16
      %v384 = vrot.slane %v382, 4
      %v385 = vor.u32 %v384, %v380
      %v386 = vrot.slane %v385, 4
      %v388 = vshll.u32 %v321, 16
      %v390 = vrot.slane %v388, 5
      %v391 = vsel %vm357, %v386, %v390
      %v392 = vshrl.u32 %v321, 16
      %v394 = vrot.slane %v392, 4
      %v395 = vor.u32 %v394, %v390
      %v396 = vrot.slane %v395, 4
      %v398 = vshll.u32 %v322, 16
      %v400 = vrot.slane %v398, 5
      %v401 = vsel %vm357, %v396, %v400
      %v402 = vshrl.u32 %v322, 16
      %v404 = vrot.slane %v402, 4
      %v405 = vor.u32 %v404, %v400
      %v406 = vrot.slane %v405, 4
      %v408 = vshll.u32 %v323, 16
      %v410 = vrot.slane %v408, 5
      %v411 = vsel %vm357, %v406, %v410
      %v412 = vshrl.u32 %v323, 16
      %v414 = vrot.slane %v412, 4
      %v415 = vor.u32 %v414, %v410
      %v416 = vrot.slane %v415, 4
      %v418 = vshll.u32 %v324, 16
      %v420 = vrot.slane %v418, 5
      %v421 = vsel %vm357, %v416, %v420
      %v422 = vshrl.u32 %v324, 16
      %v424 = vrot.slane %v422, 4
      %v425 = vor.u32 %v424, %v420
      %v426 = vrot.slane %v425, 4
      %v428 = vshll.u32 %v325, 16
      %v430 = vrot.slane %v428, 5
      %v431 = vsel %vm357, %v426, %v430
      %v432 = vshrl.u32 %v325, 16
      %v434 = vrot.slane %v432, 4
      %v435 = vor.u32 %v434, %v430
      %v436 = vrot.slane %v435, 4
      %v438 = vshll.u32 %v326, 16
      %v440 = vrot.slane %v438, 5
      %v441 = vsel %vm357, %v436, %v440
      %v442 = vshrl.u32 %v326, 16
      %v444 = vrot.slane %v442, 4
      %v445 = vor.u32 %v444, %v440
      %v446 = vrot.slane %v445, 4
      %v448 = vshll.u32 %v327, 16
      %v450 = vrot.slane %v448, 5
      %v451 = vsel %vm357, %v446, %v450
      %v452 = vshrl.u32 %v327, 16
      %v454 = vrot.slane %v452, 4
      %v455 = vor.u32 %v454, %v450
      %v456 = vrot.slane %v455, 4
      %v458 = vshll.u32 %v328, 16
      %v460 = vrot.slane %v458, 5
      %v461 = vsel %vm357, %v456, %v460
      %v462 = vshrl.u32 %v328, 16
      %v464 = vrot.slane %v462, 4
      %v465 = vor.u32 %v464, %v460
      %v466 = vrot.slane %v465, 4
      %v468 = vshll.u32 %v329, 16
      %v470 = vrot.slane %v468, 5
      %v471 = vsel %vm357, %v466, %v470
      %v472 = vshrl.u32 %v329, 16
      %v474 = vrot.slane %v472, 4
      %v475 = vor.u32 %v474, %v470
      %v476 = vrot.slane %v475, 4
      %v478 = vshll.u32 %v330, 16
      %v480 = vrot.slane %v478, 5
      %v481 = vsel %vm357, %v476, %v480
      %v482 = vshrl.u32 %v330, 16
      %v484 = vrot.slane %v482, 4
      %v485 = vor.u32 %v484, %v480
      %v486 = vrot.slane %v485, 4
      %v488 = vshll.u32 %v331, 16
      %v490 = vrot.slane %v488, 5
      %v491 = vsel %vm357, %v486, %v490
      %v492 = vshrl.u32 %v331, 16
      %v494 = vrot.slane %v492, 4
      %v495 = vor.u32 %v494, %v490
      %v496 = vrot.slane %v495, 4
      %v498 = vshll.u32 %v332, 16
      %v500 = vrot.slane %v498, 5
      %v501 = vsel %vm357, %v496, %v500
      %v502 = vshrl.u32 %v332, 16
      %v504 = vrot.slane %v502, 4
      %v505 = vor.u32 %v504, %v500
      %v506 = vrot.slane %v505, 4
      %v508 = vshll.u32 %v333, 16
      %v510 = vrot.slane %v508, 5
      %v511 = vsel %vm357, %v506, %v510
      %v512 = vshrl.u32 %v333, 16
      %v514 = vrot.slane %v512, 4
      %v515 = vor.u32 %v514, %v510
      %v516 = vrot.slane %v515, 4
      %v518 = vshll.u32 %v334, 16
      %v520 = vrot.slane %v518, 5
      %v521 = vsel %vm357, %v516, %v520
      %v522 = vshrl.u32 %v334, 16
      %v524 = vrot.slane %v522, 4
      %v525 = vor.u32 %v524, %v520
      %v526 = vrot.slane %v525, 4
      %v528 = vshll.u32 %v335, 16
      %v530 = vrot.slane %v528, 5
      %v531 = vsel %vm357, %v526, %v530
      %v532 = vshrl.u32 %v335, 16
      %v534 = vrot.slane %v532, 4
      %v535 = vor.u32 %v534, %v530
      %v536 = vrot.slane %v535, 4
      %v538 = vshll.u32 %v336, 16
      %v540 = vrot.slane %v538, 5
      %v541 = vsel %vm357, %v536, %v540
      %v542 = vshrl.u32 %v336, 16
      %v544 = vrot.slane %v542, 4
      %v545 = vor.u32 %v544, %v540
      %v546 = vrot.slane %v545, 4
      %v548 = vshll.u32 %v337, 16
      %v550 = vrot.slane %v548, 5
      %v551 = vsel %vm357, %v546, %v550
      %v552 = vshrl.u32 %v337, 16
      %v554 = vrot.slane %v552, 4
      %v555 = vor.u32 %v554, %v550
      %v556 = vrot.slane %v555, 4
      %v558 = vshll.u32 %v338, 16
      %v560 = vrot.slane %v558, 5
      %v561 = vsel %vm357, %v556, %v560
      %v562 = vshrl.u32 %v338, 16
      %v564 = vrot.slane %v562, 4
      %v565 = vor.u32 %v564, %v560
      %v566 = vrot.slane %v565, 4
      %v568 = vshll.u32 %v339, 16
      %v570 = vrot.slane %v568, 5
      %v571 = vsel %vm357, %v566, %v570
      %v572 = vshrl.u32 %v339, 16
      %v574 = vrot.slane %v572, 4
      %v575 = vor.u32 %v574, %v570
      %v576 = vrot.slane %v575, 4
      %v578 = vshll.u32 %v340, 16
      %v580 = vrot.slane %v578, 5
      %v581 = vsel %vm357, %v576, %v580
      %v582 = vshrl.u32 %v340, 16
      %v584 = vrot.slane %v582, 4
      %v585 = vor.u32 %v584, %v580
      %v586 = vrot.slane %v585, 4
      %v588 = vshll.u32 %v341, 16
      %v590 = vrot.slane %v588, 5
      %v591 = vsel %vm357, %v586, %v590
      %v592 = vshrl.u32 %v341, 16
      %v594 = vrot.slane %v592, 4
      %v595 = vor.u32 %v594, %v590
      %v596 = vrot.slane %v595, 4
      %v598 = vshll.u32 %v342, 16
      %v600 = vrot.slane %v598, 5
      %v601 = vsel %vm357, %v596, %v600
      %v602 = vshrl.u32 %v342, 16
      %v604 = vrot.slane %v602, 4
      %v605 = vor.u32 %v604, %v600
      %v606 = vrot.slane %v605, 4
      %v608 = vshll.u32 %v343, 16
      %v610 = vrot.slane %v608, 5
      %v611 = vsel %vm357, %v606, %v610
      %v612 = vshrl.u32 %v343, 16
      %v614 = vrot.slane %v612, 4
      %v615 = vor.u32 %v614, %v610
      %v616 = vrot.slane %v615, 4
      %v618 = vshll.u32 %v344, 16
      %v620 = vrot.slane %v618, 5
      %v621 = vsel %vm357, %v616, %v620
      %v622 = vshrl.u32 %v344, 16
      %v624 = vrot.slane %v622, 4
      %v625 = vor.u32 %v624, %v620
      %v626 = vrot.slane %v625, 4
      %v628 = vshll.u32 %v345, 16
      %v630 = vrot.slane %v628, 5
      %v631 = vsel %vm357, %v626, %v630
      %v632 = vshrl.u32 %v345, 16
      %v634 = vrot.slane %v632, 4
      %v635 = vor.u32 %v634, %v630
      %v636 = vrot.slane %v635, 4
      %v638 = vshll.u32 %v346, 16
      %v640 = vrot.slane %v638, 5
      %v641 = vsel %vm357, %v636, %v640
      %v642 = vshrl.u32 %v346, 16
      %v644 = vrot.slane %v642, 4
      %v645 = vor.u32 %v644, %v640
      %v646 = vrot.slane %v645, 4
      %v648 = vshll.u32 %v347, 16
      %v650 = vrot.slane %v648, 5
      %v651 = vsel %vm357, %v646, %v650
      %v652 = vshrl.u32 %v347, 16
      %v654 = vrot.slane %v652, 4
      %v655 = vor.u32 %v654, %v650
      %v656 = vrot.slane %v655, 4
      %v658 = vshll.u32 %v348, 16
      %v660 = vrot.slane %v658, 5
      %v661 = vsel %vm357, %v656, %v660
      %v662 = vshrl.u32 %v348, 16
      %v664 = vrot.slane %v662, 4
      %v665 = vor.u32 %v664, %v660
      %v666 = vrot.slane %v665, 4
      %v668 = vshll.u32 %v349, 16
      %v670 = vrot.slane %v668, 5
      %v671 = vsel %vm357, %v666, %v670
      %v672 = vshrl.u32 %v349, 16
      %v674 = vrot.slane %v672, 4
      %v675 = vor.u32 %v674, %v670
      %v676 = vrot.slane %v675, 4
      %v678 = vshll.u32 %v350, 16
      %v680 = vrot.slane %v678, 5
      %v681 = vsel %vm357, %v676, %v680
      %v682 = vshrl.u32 %v350, 16
      %v684 = vrot.slane %v682, 4
      %v685 = vor.u32 %v684, %v680
      %v686 = vrot.slane %v685, 4
      %v688 = vshll.u32 %v351, 16
      %v690 = vrot.slane %v688, 5
      %v691 = vsel %vm357, %v686, %v690
      %v692 = vshrl.u32 %v351, 16
      %v694 = vrot.slane %v692, 4
      %v695 = vor.u32 %v694, %v690
      %v696 = vrot.slane %v695, 4
      %v698 = vshll.u32 %v352, 16
      %v700 = vrot.slane %v698, 5
      %v701 = vsel %vm357, %v696, %v700
      %v702 = vshrl.u32 %v352, 16
      %v704 = vrot.slane %v702, 4
      %v705 = vor.u32 %v704, %v700
      %v706 = vrot.slane %v705, 4
      %v708 = vshll.u32 %v353, 16
      %v710 = vrot.slane %v708, 5
      %v711 = vsel %vm357, %v706, %v710
      %v712 = vshrl.u32 %v353, 16
      %v714 = vrot.slane %v712, 4
      %v715 = vor.u32 %v714, %v710
      %v716 = vrot.slane %v715, 4
      %v718 = vshll.u32 %v354, 16
      %v720 = vrot.slane %v718, 5
      %v721 = vsel %vm357, %v716, %v720
      %758 = vst [vmem:[#allocation2 + $0x4] sm:$0xf] %v371
      %759 = vst [vmem:[#allocation2 + $0x28] sm:$0xf] %v381
      %760 = vst [vmem:[#allocation2 + $0x4c] sm:$0xf] %v391
      %761 = vst [vmem:[#allocation2 + $0x70] sm:$0xf] %v401
      %762 = vst [vmem:[#allocation2 + $0x94] sm:$0xf] %v411
      %763 = vst [vmem:[#allocation2 + $0xb8] sm:$0xf] %v421
      %764 = vst [vmem:[#allocation2 + $0xdc] sm:$0xf] %v431
      %765 = vst [vmem:[#allocation2 + $0x100] sm:$0xf] %v441
      %766 = vst [vmem:[#allocation2 + $0x124] sm:$0xf] %v451
      %767 = vst [vmem:[#allocation2 + $0x148] sm:$0xf] %v461
      %768 = vst [vmem:[#allocation2 + $0x16c] sm:$0xf] %v471
      %769 = vst [vmem:[#allocation2 + $0x190] sm:$0xf] %v481
      %770 = vst [vmem:[#allocation2 + $0x1b4] sm:$0xf] %v491
      %771 = vst [vmem:[#allocation2 + $0x1d8] sm:$0xf] %v501
      %772 = vst [vmem:[#allocation2 + $0x1fc] sm:$0xf] %v511
      %773 = vst [vmem:[#allocation2 + $0x220] sm:$0xf] %v521
      %774 = vst [vmem:[#allocation2 + $0x244] sm:$0xf] %v531
      %775 = vst [vmem:[#allocation2 + $0x268] sm:$0xf] %v541
      %776 = vst [vmem:[#allocation2 + $0x28c] sm:$0xf] %v551
      %777 = vst [vmem:[#allocation2 + $0x2b0] sm:$0xf] %v561
      %778 = vst [vmem:[#allocation2 + $0x2d4] sm:$0xf] %v571
      %779 = vst [vmem:[#allocation2 + $0x2f8] sm:$0xf] %v581
      %780 = vst [vmem:[#allocation2 + $0x31c] sm:$0xf] %v591
      %781 = vst [vmem:[#allocation2 + $0x340] sm:$0xf] %v601
      %782 = vst [vmem:[#allocation2 + $0x364] sm:$0xf] %v611
      %783 = vst [vmem:[#allocation2 + $0x388] sm:$0xf] %v621
      %784 = vst [vmem:[#allocation2 + $0x3ac] sm:$0xf] %v631
      %785 = vst [vmem:[#allocation2 + $0x3d0] sm:$0xf] %v641
      %786 = vst [vmem:[#allocation2 + $0x3f4] sm:$0xf] %v651
      %787 = vst [vmem:[#allocation2 + $0x418] sm:$0xf] %v661
      %788 = vst [vmem:[#allocation2 + $0x43c] sm:$0xf] %v671
      %789 = vst [vmem:[#allocation2 + $0x460] sm:$0xf] %v681
      %790 = vst [vmem:[#allocation2 + $0x484] sm:$0xf] %v691
      %791 = vst [vmem:[#allocation2 + $0x4a8] sm:$0xf] %v701
      %792 = vst [vmem:[#allocation2 + $0x4cc] sm:$0xf] %v711
      %793 = vst [vmem:[#allocation2 + $0x4f0] sm:$0xf] %v721
      %v794 = vld [vmem:[%s234] sm:$0xe]
      %v795 = vld [vmem:[%s234 + $0x4] sm:$0xf]
      %v796 = vld [vmem:[%s234 + $0x8] sm:$0xf]
      %v797 = vld [vmem:[%s234 + $0xc] sm:$0xf]
      %v798 = vld [vmem:[%s234 + $0x10] sm:$0xf]
      %v799 = vld [vmem:[%s234 + $0x14] sm:$0xf]
      %v800 = vld [vmem:[%s234 + $0x18] sm:$0xf]
      %v801 = vld [vmem:[%s234 + $0x1c] sm:$0xf]
      %v802 = vld [vmem:[%s234 + $0x20] sm:$0xf]
      %v803 = vld [vmem:[%s234 + $0x24] sm:$0xf]
      %v804 = vld [vmem:[%s234 + $0x28] sm:$0xf]
      %v805 = vld [vmem:[%s234 + $0x2c] sm:$0xf]
      %v806 = vld [vmem:[%s234 + $0x30] sm:$0xf]
      %v807 = vld [vmem:[%s234 + $0x34] sm:$0xf]
      %v808 = vld [vmem:[%s234 + $0x38] sm:$0xf]
      %v809 = vld [vmem:[%s234 + $0x3c] sm:$0xf]
      %v810 = vld [vmem:[%s234 + $0x40] sm:$0xf]
      %v811 = vld [vmem:[%s234 + $0x44] sm:$0xf]
      %v812 = vld [vmem:[%s234 + $0x48] sm:$0xf]
      %v813 = vld [vmem:[%s234 + $0x4c] sm:$0xf]
      %v814 = vld [vmem:[%s234 + $0x50] sm:$0xf]
      %v815 = vld [vmem:[%s234 + $0x54] sm:$0xf]
      %v816 = vld [vmem:[%s234 + $0x58] sm:$0xf]
      %v817 = vld [vmem:[%s234 + $0x5c] sm:$0xf]
      %v818 = vld [vmem:[%s234 + $0x60] sm:$0xf]
      %v819 = vld [vmem:[%s234 + $0x64] sm:$0xf]
      %v820 = vld [vmem:[%s234 + $0x68] sm:$0xf]
      %v821 = vld [vmem:[%s234 + $0x6c] sm:$0xf]
      %v822 = vld [vmem:[%s234 + $0x70] sm:$0xf]
      %v823 = vld [vmem:[%s234 + $0x74] sm:$0xf]
      %v824 = vld [vmem:[%s234 + $0x78] sm:$0xf]
      %v825 = vld [vmem:[%s234 + $0x7c] sm:$0xf]
      %v826 = vld [vmem:[%s234 + $0x80] sm:$0xf]
      %v827 = vld [vmem:[%s234 + $0x84] sm:$0xf]
      %v828 = vld [vmem:[%s234 + $0x88] sm:$0xf]
      %v829 = vld [vmem:[%s234 + $0x8c] sm:$0xf]
      %v830 = vld [vmem:[%s234 + $0x90] sm:$0x1]
      %vm868 = vcmask 1042432
      %vm869 = vcmask 1046532
      %vm870 = vmor %vm868, %vm869
      %v871 = vrot.slane %v794, 5
      %v872 = vrot.slane %v871, 4
      %v873 = vrot.slane %v795, 5
      %v874 = vsel %vm870, %v872, %v873
      %v875 = vrot.slane %v873, 4
      %v876 = vrot.slane %v796, 5
      %v877 = vsel %vm870, %v875, %v876
      %v878 = vrot.slane %v876, 4
      %v879 = vrot.slane %v797, 5
      %v880 = vsel %vm870, %v878, %v879
      %v881 = vrot.slane %v879, 4
      %v882 = vrot.slane %v798, 5
      %v883 = vsel %vm870, %v881, %v882
      %v884 = vrot.slane %v882, 4
      %v885 = vrot.slane %v799, 5
      %v886 = vsel %vm870, %v884, %v885
      %v887 = vrot.slane %v885, 4
      %v888 = vrot.slane %v800, 5
      %v889 = vsel %vm870, %v887, %v888
      %v890 = vrot.slane %v888, 4
      %v891 = vrot.slane %v801, 5
      %v892 = vsel %vm870, %v890, %v891
      %v893 = vrot.slane %v891, 4
      %v894 = vrot.slane %v802, 5
      %v895 = vsel %vm870, %v893, %v894
      %v896 = vrot.slane %v894, 4
      %v897 = vrot.slane %v803, 5
      %v898 = vsel %vm870, %v896, %v897
      %v899 = vrot.slane %v897, 4
      %v900 = vrot.slane %v804, 5
      %v901 = vsel %vm870, %v899, %v900
      %v902 = vrot.slane %v900, 4
      %v903 = vrot.slane %v805, 5
      %v904 = vsel %vm870, %v902, %v903
      %v905 = vrot.slane %v903, 4
      %v906 = vrot.slane %v806, 5
      %v907 = vsel %vm870, %v905, %v906
      %v908 = vrot.slane %v906, 4
      %v909 = vrot.slane %v807, 5
      %v910 = vsel %vm870, %v908, %v909
      %v911 = vrot.slane %v909, 4
      %v912 = vrot.slane %v808, 5
      %v913 = vsel %vm870, %v911, %v912
      %v914 = vrot.slane %v912, 4
      %v915 = vrot.slane %v809, 5
      %v916 = vsel %vm870, %v914, %v915
      %v917 = vrot.slane %v915, 4
      %v918 = vrot.slane %v810, 5
      %v919 = vsel %vm870, %v917, %v918
      %v920 = vrot.slane %v918, 4
      %v921 = vrot.slane %v811, 5
      %v922 = vsel %vm870, %v920, %v921
      %v923 = vrot.slane %v921, 4
      %v924 = vrot.slane %v812, 5
      %v925 = vsel %vm870, %v923, %v924
      %v926 = vrot.slane %v924, 4
      %v927 = vrot.slane %v813, 5
      %v928 = vsel %vm870, %v926, %v927
      %v929 = vrot.slane %v927, 4
      %v930 = vrot.slane %v814, 5
      %v931 = vsel %vm870, %v929, %v930
      %v932 = vrot.slane %v930, 4
      %v933 = vrot.slane %v815, 5
      %v934 = vsel %vm870, %v932, %v933
      %v935 = vrot.slane %v933, 4
      %v936 = vrot.slane %v816, 5
      %v937 = vsel %vm870, %v935, %v936
      %v938 = vrot.slane %v936, 4
      %v939 = vrot.slane %v817, 5
      %v940 = vsel %vm870, %v938, %v939
      %v941 = vrot.slane %v939, 4
      %v942 = vrot.slane %v818, 5
      %v943 = vsel %vm870, %v941, %v942
      %v944 = vrot.slane %v942, 4
      %v945 = vrot.slane %v819, 5
      %v946 = vsel %vm870, %v944, %v945
      %v947 = vrot.slane %v945, 4
      %v948 = vrot.slane %v820, 5
      %v949 = vsel %vm870, %v947, %v948
      %v950 = vrot.slane %v948, 4
      %v951 = vrot.slane %v821, 5
      %v952 = vsel %vm870, %v950, %v951
      %v953 = vrot.slane %v951, 4
      %v954 = vrot.slane %v822, 5
      %v955 = vsel %vm870, %v953, %v954
      %v956 = vrot.slane %v954, 4
      %v957 = vrot.slane %v823, 5
      %v958 = vsel %vm870, %v956, %v957
      %v959 = vrot.slane %v957, 4
      %v960 = vrot.slane %v824, 5
      %v961 = vsel %vm870, %v959, %v960
      %v962 = vrot.slane %v960, 4
      %v963 = vrot.slane %v825, 5
      %v964 = vsel %vm870, %v962, %v963
      %v965 = vrot.slane %v963, 4
      %v966 = vrot.slane %v826, 5
      %v967 = vsel %vm870, %v965, %v966
      %v968 = vrot.slane %v966, 4
      %v969 = vrot.slane %v827, 5
      %v970 = vsel %vm870, %v968, %v969
      %v971 = vrot.slane %v969, 4
      %v972 = vrot.slane %v828, 5
      %v973 = vsel %vm870, %v971, %v972
      %v974 = vrot.slane %v972, 4
      %v975 = vrot.slane %v829, 5
      %v976 = vsel %vm870, %v974, %v975
      %v977 = vrot.slane %v975, 4
      %v978 = vrot.slane %v830, 5
      %v979 = vsel %vm870, %v977, %v978
      %1016 = vst [vmem:[#allocation2 + $0x8] sm:$0xf] %v874
      %1017 = vst [vmem:[#allocation2 + $0x2c] sm:$0xf] %v877
      %1018 = vst [vmem:[#allocation2 + $0x50] sm:$0xf] %v880
      %1019 = vst [vmem:[#allocation2 + $0x74] sm:$0xf] %v883
      %1020 = vst [vmem:[#allocation2 + $0x98] sm:$0xf] %v886
      %1021 = vst [vmem:[#allocation2 + $0xbc] sm:$0xf] %v889
      %1022 = vst [vmem:[#allocation2 + $0xe0] sm:$0xf] %v892
      %1023 = vst [vmem:[#allocation2 + $0x104] sm:$0xf] %v895
      %1024 = vst [vmem:[#allocation2 + $0x128] sm:$0xf] %v898
      %1025 = vst [vmem:[#allocation2 + $0x14c] sm:$0xf] %v901
      %1026 = vst [vmem:[#allocation2 + $0x170] sm:$0xf] %v904
      %1027 = vst [vmem:[#allocation2 + $0x194] sm:$0xf] %v907
      %1028 = vst [vmem:[#allocation2 + $0x1b8] sm:$0xf] %v910
      %1029 = vst [vmem:[#allocation2 + $0x1dc] sm:$0xf] %v913
      %1030 = vst [vmem:[#allocation2 + $0x200] sm:$0xf] %v916
      %1031 = vst [vmem:[#allocation2 + $0x224] sm:$0xf] %v919
      %1032 = vst [vmem:[#allocation2 + $0x248] sm:$0xf] %v922
      %1033 = vst [vmem:[#allocation2 + $0x26c] sm:$0xf] %v925
      %1034 = vst [vmem:[#allocation2 + $0x290] sm:$0xf] %v928
      %1035 = vst [vmem:[#allocation2 + $0x2b4] sm:$0xf] %v931
      %1036 = vst [vmem:[#allocation2 + $0x2d8] sm:$0xf] %v934
      %1037 = vst [vmem:[#allocation2 + $0x2fc] sm:$0xf] %v937
      %1038 = vst [vmem:[#allocation2 + $0x320] sm:$0xf] %v940
      %1039 = vst [vmem:[#allocation2 + $0x344] sm:$0xf] %v943
      %1040 = vst [vmem:[#allocation2 + $0x368] sm:$0xf] %v946
      %1041 = vst [vmem:[#allocation2 + $0x38c] sm:$0xf] %v949
      %1042 = vst [vmem:[#allocation2 + $0x3b0] sm:$0xf] %v952
      %1043 = vst [vmem:[#allocation2 + $0x3d4] sm:$0xf] %v955
      %1044 = vst [vmem:[#allocation2 + $0x3f8] sm:$0xf] %v958
      %1045 = vst [vmem:[#allocation2 + $0x41c] sm:$0xf] %v961
      %1046 = vst [vmem:[#allocation2 + $0x440] sm:$0xf] %v964
      %1047 = vst [vmem:[#allocation2 + $0x464] sm:$0xf] %v967
      %1048 = vst [vmem:[#allocation2 + $0x488] sm:$0xf] %v970
      %1049 = vst [vmem:[#allocation2 + $0x4ac] sm:$0xf] %v973
      %1050 = vst [vmem:[#allocation2 + $0x4d0] sm:$0xf] %v976
      %1051 = vst [vmem:[#allocation2 + $0x4f4] sm:$0xf] %v979
      %v1052 = vld [vmem:[%s234 + $0x8] sm:$0xe]
      %v1053 = vld [vmem:[%s234 + $0xc] sm:$0xf]
      %v1054 = vld [vmem:[%s234 + $0x10] sm:$0xf]
      %v1055 = vld [vmem:[%s234 + $0x14] sm:$0xf]
      %v1056 = vld [vmem:[%s234 + $0x18] sm:$0xf]
      %v1057 = vld [vmem:[%s234 + $0x1c] sm:$0xf]
      %v1058 = vld [vmem:[%s234 + $0x20] sm:$0xf]
      %v1059 = vld [vmem:[%s234 + $0x24] sm:$0xf]
      %v1060 = vld [vmem:[%s234 + $0x28] sm:$0xf]
      %v1061 = vld [vmem:[%s234 + $0x2c] sm:$0xf]
      %v1062 = vld [vmem:[%s234 + $0x30] sm:$0xf]
      %v1063 = vld [vmem:[%s234 + $0x34] sm:$0xf]
      %v1064 = vld [vmem:[%s234 + $0x38] sm:$0xf]
      %v1065 = vld [vmem:[%s234 + $0x3c] sm:$0xf]
      %v1066 = vld [vmem:[%s234 + $0x40] sm:$0xf]
      %v1067 = vld [vmem:[%s234 + $0x44] sm:$0xf]
      %v1068 = vld [vmem:[%s234 + $0x48] sm:$0xf]
      %v1069 = vld [vmem:[%s234 + $0x4c] sm:$0xf]
      %v1070 = vld [vmem:[%s234 + $0x50] sm:$0xf]
      %v1071 = vld [vmem:[%s234 + $0x54] sm:$0xf]
      %v1072 = vld [vmem:[%s234 + $0x58] sm:$0xf]
      %v1073 = vld [vmem:[%s234 + $0x5c] sm:$0xf]
      %v1074 = vld [vmem:[%s234 + $0x60] sm:$0xf]
      %v1075 = vld [vmem:[%s234 + $0x64] sm:$0xf]
      %v1076 = vld [vmem:[%s234 + $0x68] sm:$0xf]
      %v1077 = vld [vmem:[%s234 + $0x6c] sm:$0xf]
      %v1078 = vld [vmem:[%s234 + $0x70] sm:$0xf]
      %v1079 = vld [vmem:[%s234 + $0x74] sm:$0xf]
      %v1080 = vld [vmem:[%s234 + $0x78] sm:$0xf]
      %v1081 = vld [vmem:[%s234 + $0x7c] sm:$0xf]
      %v1082 = vld [vmem:[%s234 + $0x80] sm:$0xf]
      %v1083 = vld [vmem:[%s234 + $0x84] sm:$0xf]
      %v1084 = vld [vmem:[%s234 + $0x88] sm:$0xf]
      %v1085 = vld [vmem:[%s234 + $0x8c] sm:$0xf]
      %v1086 = vld [vmem:[%s234 + $0x90] sm:$0xf]
      %v1087 = vld [vmem:[%s234 + $0x94] sm:$0xf]
      %v1088 = vld [vmem:[%s234 + $0x98] sm:$0x1]
      %v1126 = vrot.slane %v1052, 5
      %v1127 = vrot.slane %v1126, 4
      %v1128 = vrot.slane %v1053, 5
      %v1129 = vsel %vm870, %v1127, %v1128
      %v1130 = vrot.slane %v1128, 4
      %v1131 = vrot.slane %v1054, 5
      %v1132 = vsel %vm870, %v1130, %v1131
      %v1133 = vrot.slane %v1131, 4
      %v1134 = vrot.slane %v1055, 5
      %v1135 = vsel %vm870, %v1133, %v1134
      %v1136 = vrot.slane %v1134, 4
      %v1137 = vrot.slane %v1056, 5
      %v1138 = vsel %vm870, %v1136, %v1137
      %v1139 = vrot.slane %v1137, 4
      %v1140 = vrot.slane %v1057, 5
      %v1141 = vsel %vm870, %v1139, %v1140
      %v1142 = vrot.slane %v1140, 4
      %v1143 = vrot.slane %v1058, 5
      %v1144 = vsel %vm870, %v1142, %v1143
      %v1145 = vrot.slane %v1143, 4
      %v1146 = vrot.slane %v1059, 5
      %v1147 = vsel %vm870, %v1145, %v1146
      %v1148 = vrot.slane %v1146, 4
      %v1149 = vrot.slane %v1060, 5
      %v1150 = vsel %vm870, %v1148, %v1149
      %v1151 = vrot.slane %v1149, 4
      %v1152 = vrot.slane %v1061, 5
      %v1153 = vsel %vm870, %v1151, %v1152
      %v1154 = vrot.slane %v1152, 4
      %v1155 = vrot.slane %v1062, 5
      %v1156 = vsel %vm870, %v1154, %v1155
      %v1157 = vrot.slane %v1155, 4
      %v1158 = vrot.slane %v1063, 5
      %v1159 = vsel %vm870, %v1157, %v1158
      %v1160 = vrot.slane %v1158, 4
      %v1161 = vrot.slane %v1064, 5
      %v1162 = vsel %vm870, %v1160, %v1161
      %v1163 = vrot.slane %v1161, 4
      %v1164 = vrot.slane %v1065, 5
      %v1165 = vsel %vm870, %v1163, %v1164
      %v1166 = vrot.slane %v1164, 4
      %v1167 = vrot.slane %v1066, 5
      %v1168 = vsel %vm870, %v1166, %v1167
      %v1169 = vrot.slane %v1167, 4
      %v1170 = vrot.slane %v1067, 5
      %v1171 = vsel %vm870, %v1169, %v1170
      %v1172 = vrot.slane %v1170, 4
      %v1173 = vrot.slane %v1068, 5
      %v1174 = vsel %vm870, %v1172, %v1173
      %v1175 = vrot.slane %v1173, 4
      %v1176 = vrot.slane %v1069, 5
      %v1177 = vsel %vm870, %v1175, %v1176
      %v1178 = vrot.slane %v1176, 4
      %v1179 = vrot.slane %v1070, 5
      %v1180 = vsel %vm870, %v1178, %v1179
      %v1181 = vrot.slane %v1179, 4
      %v1182 = vrot.slane %v1071, 5
      %v1183 = vsel %vm870, %v1181, %v1182
      %v1184 = vrot.slane %v1182, 4
      %v1185 = vrot.slane %v1072, 5
      %v1186 = vsel %vm870, %v1184, %v1185
      %v1187 = vrot.slane %v1185, 4
      %v1188 = vrot.slane %v1073, 5
      %v1189 = vsel %vm870, %v1187, %v1188
      %v1190 = vrot.slane %v1188, 4
      %v1191 = vrot.slane %v1074, 5
      %v1192 = vsel %vm870, %v1190, %v1191
      %v1193 = vrot.slane %v1191, 4
      %v1194 = vrot.slane %v1075, 5
      %v1195 = vsel %vm870, %v1193, %v1194
      %v1196 = vrot.slane %v1194, 4
      %v1197 = vrot.slane %v1076, 5
      %v1198 = vsel %vm870, %v1196, %v1197
      %v1199 = vrot.slane %v1197, 4
      %v1200 = vrot.slane %v1077, 5
      %v1201 = vsel %vm870, %v1199, %v1200
      %v1202 = vrot.slane %v1200, 4
      %v1203 = vrot.slane %v1078, 5
      %v1204 = vsel %vm870, %v1202, %v1203
      %v1205 = vrot.slane %v1203, 4
      %v1206 = vrot.slane %v1079, 5
      %v1207 = vsel %vm870, %v1205, %v1206
      %v1208 = vrot.slane %v1206, 4
      %v1209 = vrot.slane %v1080, 5
      %v1210 = vsel %vm870, %v1208, %v1209
      %v1211 = vrot.slane %v1209, 4
      %v1212 = vrot.slane %v1081, 5
      %v1213 = vsel %vm870, %v1211, %v1212
      %v1214 = vrot.slane %v1212, 4
      %v1215 = vrot.slane %v1082, 5
      %v1216 = vsel %vm870, %v1214, %v1215
      %v1217 = vrot.slane %v1215, 4
      %v1218 = vrot.slane %v1083, 5
      %v1219 = vsel %vm870, %v1217, %v1218
      %v1220 = vrot.slane %v1218, 4
      %v1221 = vrot.slane %v1084, 5
      %v1222 = vsel %vm870, %v1220, %v1221
      %v1223 = vrot.slane %v1221, 4
      %v1224 = vrot.slane %v1085, 5
      %v1225 = vsel %vm870, %v1223, %v1224
      %v1226 = vrot.slane %v1224, 4
      %v1227 = vrot.slane %v1086, 5
      %v1228 = vsel %vm870, %v1226, %v1227
      %v1229 = vrot.slane %v1227, 4
      %v1230 = vrot.slane %v1087, 5
      %v1231 = vsel %vm870, %v1229, %v1230
      %v1232 = vrot.slane %v1230, 4
      %v1233 = vrot.slane %v1088, 5
      %v1234 = vsel %vm870, %v1232, %v1233
      %1271 = vst [vmem:[#allocation2 + $0xc] sm:$0xf] %v1129
      %1272 = vst [vmem:[#allocation2 + $0x30] sm:$0xf] %v1132
      %1273 = vst [vmem:[#allocation2 + $0x54] sm:$0xf] %v1135
      %1274 = vst [vmem:[#allocation2 + $0x78] sm:$0xf] %v1138
      %1275 = vst [vmem:[#allocation2 + $0x9c] sm:$0xf] %v1141
      %1276 = vst [vmem:[#allocation2 + $0xc0] sm:$0xf] %v1144
      %1277 = vst [vmem:[#allocation2 + $0xe4] sm:$0xf] %v1147
      %1278 = vst [vmem:[#allocation2 + $0x108] sm:$0xf] %v1150
      %1279 = vst [vmem:[#allocation2 + $0x12c] sm:$0xf] %v1153
      %1280 = vst [vmem:[#allocation2 + $0x150] sm:$0xf] %v1156
      %1281 = vst [vmem:[#allocation2 + $0x174] sm:$0xf] %v1159
      %1282 = vst [vmem:[#allocation2 + $0x198] sm:$0xf] %v1162
      %1283 = vst [vmem:[#allocation2 + $0x1bc] sm:$0xf] %v1165
      %1284 = vst [vmem:[#allocation2 + $0x1e0] sm:$0xf] %v1168
      %1285 = vst [vmem:[#allocation2 + $0x204] sm:$0xf] %v1171
      %1286 = vst [vmem:[#allocation2 + $0x228] sm:$0xf] %v1174
      %1287 = vst [vmem:[#allocation2 + $0x24c] sm:$0xf] %v1177
      %1288 = vst [vmem:[#allocation2 + $0x270] sm:$0xf] %v1180
      %1289 = vst [vmem:[#allocation2 + $0x294] sm:$0xf] %v1183
      %1290 = vst [vmem:[#allocation2 + $0x2b8] sm:$0xf] %v1186
      %1291 = vst [vmem:[#allocation2 + $0x2dc] sm:$0xf] %v1189
      %1292 = vst [vmem:[#allocation2 + $0x300] sm:$0xf] %v1192
      %1293 = vst [vmem:[#allocation2 + $0x324] sm:$0xf] %v1195
      %1294 = vst [vmem:[#allocation2 + $0x348] sm:$0xf] %v1198
      %1295 = vst [vmem:[#allocation2 + $0x36c] sm:$0xf] %v1201
      %1296 = vst [vmem:[#allocation2 + $0x390] sm:$0xf] %v1204
      %1297 = vst [vmem:[#allocation2 + $0x3b4] sm:$0xf] %v1207
      %1298 = vst [vmem:[#allocation2 + $0x3d8] sm:$0xf] %v1210
      %1299 = vst [vmem:[#allocation2 + $0x3fc] sm:$0xf] %v1213
      %1300 = vst [vmem:[#allocation2 + $0x420] sm:$0xf] %v1216
      %1301 = vst [vmem:[#allocation2 + $0x444] sm:$0xf] %v1219
      %1302 = vst [vmem:[#allocation2 + $0x468] sm:$0xf] %v1222
      %1303 = vst [vmem:[#allocation2 + $0x48c] sm:$0xf] %v1225
      %1304 = vst [vmem:[#allocation2 + $0x4b0] sm:$0xf] %v1228
      %1305 = vst [vmem:[#allocation2 + $0x4d4] sm:$0xf] %v1231
      %1306 = vst [vmem:[#allocation2 + $0x4f8] sm:$0xf] %v1234
      %v1307 = vld [vmem:[%s234 + $0x8] sm:$0xe]
      %v1308 = vld [vmem:[%s234 + $0xc] sm:$0xf]
      %v1309 = vld [vmem:[%s234 + $0x10] sm:$0xf]
      %v1310 = vld [vmem:[%s234 + $0x14] sm:$0xf]
      %v1311 = vld [vmem:[%s234 + $0x18] sm:$0xf]
      %v1312 = vld [vmem:[%s234 + $0x1c] sm:$0xf]
      %v1313 = vld [vmem:[%s234 + $0x20] sm:$0xf]
      %v1314 = vld [vmem:[%s234 + $0x24] sm:$0xf]
      %v1315 = vld [vmem:[%s234 + $0x28] sm:$0xf]
      %v1316 = vld [vmem:[%s234 + $0x2c] sm:$0xf]
      %v1317 = vld [vmem:[%s234 + $0x30] sm:$0xf]
      %v1318 = vld [vmem:[%s234 + $0x34] sm:$0xf]
      %v1319 = vld [vmem:[%s234 + $0x38] sm:$0xf]
      %v1320 = vld [vmem:[%s234 + $0x3c] sm:$0xf]
      %v1321 = vld [vmem:[%s234 + $0x40] sm:$0xf]
      %v1322 = vld [vmem:[%s234 + $0x44] sm:$0xf]
      %v1323 = vld [vmem:[%s234 + $0x48] sm:$0xf]
      %v1324 = vld [vmem:[%s234 + $0x4c] sm:$0xf]
      %v1325 = vld [vmem:[%s234 + $0x50] sm:$0xf]
      %v1326 = vld [vmem:[%s234 + $0x54] sm:$0xf]
      %v1327 = vld [vmem:[%s234 + $0x58] sm:$0xf]
      %v1328 = vld [vmem:[%s234 + $0x5c] sm:$0xf]
      %v1329 = vld [vmem:[%s234 + $0x60] sm:$0xf]
      %v1330 = vld [vmem:[%s234 + $0x64] sm:$0xf]
      %v1331 = vld [vmem:[%s234 + $0x68] sm:$0xf]
      %v1332 = vld [vmem:[%s234 + $0x6c] sm:$0xf]
      %v1333 = vld [vmem:[%s234 + $0x70] sm:$0xf]
      %v1334 = vld [vmem:[%s234 + $0x74] sm:$0xf]
      %v1335 = vld [vmem:[%s234 + $0x78] sm:$0xf]
      %v1336 = vld [vmem:[%s234 + $0x7c] sm:$0xf]
      %v1337 = vld [vmem:[%s234 + $0x80] sm:$0xf]
      %v1338 = vld [vmem:[%s234 + $0x84] sm:$0xf]
      %v1339 = vld [vmem:[%s234 + $0x88] sm:$0xf]
      %v1340 = vld [vmem:[%s234 + $0x8c] sm:$0xf]
      %v1341 = vld [vmem:[%s234 + $0x90] sm:$0xf]
      %v1342 = vld [vmem:[%s234 + $0x94] sm:$0xf]
      %v1343 = vld [vmem:[%s234 + $0x98] sm:$0x3]
      %vm1344 = vsmask.f32 2304
      %vm1345 = vsmask.f32 6416
      %vm1346 = vmor %vm1344, %vm1345
      %v1348 = vshrl.u32 %v1307, 16
      %v1350 = vrot.slane %v1348, 5
      %v1351 = vshll.u32 %v1307, 16
      %v1353 = vrot.slane %v1351, 6
      %v1354 = vor.u32 %v1350, %v1353
      %v1355 = vrot.slane %v1354, 4
      %v1357 = vshrl.u32 %v1308, 16
      %v1359 = vrot.slane %v1357, 5
      %v1360 = vshll.u32 %v1308, 16
      %v1362 = vrot.slane %v1360, 6
      %v1363 = vor.u32 %v1359, %v1362
      %v1364 = vsel %vm1346, %v1355, %v1363
      %v1365 = vrot.slane %v1363, 4
      %v1367 = vshrl.u32 %v1309, 16
      %v1369 = vrot.slane %v1367, 5
      %v1370 = vshll.u32 %v1309, 16
      %v1372 = vrot.slane %v1370, 6
      %v1373 = vor.u32 %v1369, %v1372
      %v1374 = vsel %vm1346, %v1365, %v1373
      %v1375 = vrot.slane %v1373, 4
      %v1377 = vshrl.u32 %v1310, 16
      %v1379 = vrot.slane %v1377, 5
      %v1380 = vshll.u32 %v1310, 16
      %v1382 = vrot.slane %v1380, 6
      %v1383 = vor.u32 %v1379, %v1382
      %v1384 = vsel %vm1346, %v1375, %v1383
      %v1385 = vrot.slane %v1383, 4
      %v1387 = vshrl.u32 %v1311, 16
      %v1389 = vrot.slane %v1387, 5
      %v1390 = vshll.u32 %v1311, 16
      %v1392 = vrot.slane %v1390, 6
      %v1393 = vor.u32 %v1389, %v1392
      %v1394 = vsel %vm1346, %v1385, %v1393
      %v1395 = vrot.slane %v1393, 4
      %v1397 = vshrl.u32 %v1312, 16
      %v1399 = vrot.slane %v1397, 5
      %v1400 = vshll.u32 %v1312, 16
      %v1402 = vrot.slane %v1400, 6
      %v1403 = vor.u32 %v1399, %v1402
      %v1404 = vsel %vm1346, %v1395, %v1403
      %v1405 = vrot.slane %v1403, 4
      %v1407 = vshrl.u32 %v1313, 16
      %v1409 = vrot.slane %v1407, 5
      %v1410 = vshll.u32 %v1313, 16
      %v1412 = vrot.slane %v1410, 6
      %v1413 = vor.u32 %v1409, %v1412
      %v1414 = vsel %vm1346, %v1405, %v1413
      %v1415 = vrot.slane %v1413, 4
      %v1417 = vshrl.u32 %v1314, 16
      %v1419 = vrot.slane %v1417, 5
      %v1420 = vshll.u32 %v1314, 16
      %v1422 = vrot.slane %v1420, 6
      %v1423 = vor.u32 %v1419, %v1422
      %v1424 = vsel %vm1346, %v1415, %v1423
      %v1425 = vrot.slane %v1423, 4
      %v1427 = vshrl.u32 %v1315, 16
      %v1429 = vrot.slane %v1427, 5
      %v1430 = vshll.u32 %v1315, 16
      %v1432 = vrot.slane %v1430, 6
      %v1433 = vor.u32 %v1429, %v1432
      %v1434 = vsel %vm1346, %v1425, %v1433
      %v1435 = vrot.slane %v1433, 4
      %v1437 = vshrl.u32 %v1316, 16
      %v1439 = vrot.slane %v1437, 5
      %v1440 = vshll.u32 %v1316, 16
      %v1442 = vrot.slane %v1440, 6
      %v1443 = vor.u32 %v1439, %v1442
      %v1444 = vsel %vm1346, %v1435, %v1443
      %v1445 = vrot.slane %v1443, 4
      %v1447 = vshrl.u32 %v1317, 16
      %v1449 = vrot.slane %v1447, 5
      %v1450 = vshll.u32 %v1317, 16
      %v1452 = vrot.slane %v1450, 6
      %v1453 = vor.u32 %v1449, %v1452
      %v1454 = vsel %vm1346, %v1445, %v1453
      %v1455 = vrot.slane %v1453, 4
      %v1457 = vshrl.u32 %v1318, 16
      %v1459 = vrot.slane %v1457, 5
      %v1460 = vshll.u32 %v1318, 16
      %v1462 = vrot.slane %v1460, 6
      %v1463 = vor.u32 %v1459, %v1462
      %v1464 = vsel %vm1346, %v1455, %v1463
      %v1465 = vrot.slane %v1463, 4
      %v1467 = vshrl.u32 %v1319, 16
      %v1469 = vrot.slane %v1467, 5
      %v1470 = vshll.u32 %v1319, 16
      %v1472 = vrot.slane %v1470, 6
      %v1473 = vor.u32 %v1469, %v1472
      %v1474 = vsel %vm1346, %v1465, %v1473
      %v1475 = vrot.slane %v1473, 4
      %v1477 = vshrl.u32 %v1320, 16
      %v1479 = vrot.slane %v1477, 5
      %v1480 = vshll.u32 %v1320, 16
      %v1482 = vrot.slane %v1480, 6
      %v1483 = vor.u32 %v1479, %v1482
      %v1484 = vsel %vm1346, %v1475, %v1483
      %v1485 = vrot.slane %v1483, 4
      %v1487 = vshrl.u32 %v1321, 16
      %v1489 = vrot.slane %v1487, 5
      %v1490 = vshll.u32 %v1321, 16
      %v1492 = vrot.slane %v1490, 6
      %v1493 = vor.u32 %v1489, %v1492
      %v1494 = vsel %vm1346, %v1485, %v1493
      %v1495 = vrot.slane %v1493, 4
      %v1497 = vshrl.u32 %v1322, 16
      %v1499 = vrot.slane %v1497, 5
      %v1500 = vshll.u32 %v1322, 16
      %v1502 = vrot.slane %v1500, 6
      %v1503 = vor.u32 %v1499, %v1502
      %v1504 = vsel %vm1346, %v1495, %v1503
      %v1505 = vrot.slane %v1503, 4
      %v1507 = vshrl.u32 %v1323, 16
      %v1509 = vrot.slane %v1507, 5
      %v1510 = vshll.u32 %v1323, 16
      %v1512 = vrot.slane %v1510, 6
      %v1513 = vor.u32 %v1509, %v1512
      %v1514 = vsel %vm1346, %v1505, %v1513
      %v1515 = vrot.slane %v1513, 4
      %v1517 = vshrl.u32 %v1324, 16
      %v1519 = vrot.slane %v1517, 5
      %v1520 = vshll.u32 %v1324, 16
      %v1522 = vrot.slane %v1520, 6
      %v1523 = vor.u32 %v1519, %v1522
      %v1524 = vsel %vm1346, %v1515, %v1523
      %v1525 = vrot.slane %v1523, 4
      %v1527 = vshrl.u32 %v1325, 16
      %v1529 = vrot.slane %v1527, 5
      %v1530 = vshll.u32 %v1325, 16
      %v1532 = vrot.slane %v1530, 6
      %v1533 = vor.u32 %v1529, %v1532
      %v1534 = vsel %vm1346, %v1525, %v1533
      %v1535 = vrot.slane %v1533, 4
      %v1537 = vshrl.u32 %v1326, 16
      %v1539 = vrot.slane %v1537, 5
      %v1540 = vshll.u32 %v1326, 16
      %v1542 = vrot.slane %v1540, 6
      %v1543 = vor.u32 %v1539, %v1542
      %v1544 = vsel %vm1346, %v1535, %v1543
      %v1545 = vrot.slane %v1543, 4
      %v1547 = vshrl.u32 %v1327, 16
      %v1549 = vrot.slane %v1547, 5
      %v1550 = vshll.u32 %v1327, 16
      %v1552 = vrot.slane %v1550, 6
      %v1553 = vor.u32 %v1549, %v1552
      %v1554 = vsel %vm1346, %v1545, %v1553
      %v1555 = vrot.slane %v1553, 4
      %v1557 = vshrl.u32 %v1328, 16
      %v1559 = vrot.slane %v1557, 5
      %v1560 = vshll.u32 %v1328, 16
      %v1562 = vrot.slane %v1560, 6
      %v1563 = vor.u32 %v1559, %v1562
      %v1564 = vsel %vm1346, %v1555, %v1563
      %v1565 = vrot.slane %v1563, 4
      %v1567 = vshrl.u32 %v1329, 16
      %v1569 = vrot.slane %v1567, 5
      %v1570 = vshll.u32 %v1329, 16
      %v1572 = vrot.slane %v1570, 6
      %v1573 = vor.u32 %v1569, %v1572
      %v1574 = vsel %vm1346, %v1565, %v1573
      %v1575 = vrot.slane %v1573, 4
      %v1577 = vshrl.u32 %v1330, 16
      %v1579 = vrot.slane %v1577, 5
      %v1580 = vshll.u32 %v1330, 16
      %v1582 = vrot.slane %v1580, 6
      %v1583 = vor.u32 %v1579, %v1582
      %v1584 = vsel %vm1346, %v1575, %v1583
      %v1585 = vrot.slane %v1583, 4
      %v1587 = vshrl.u32 %v1331, 16
      %v1589 = vrot.slane %v1587, 5
      %v1590 = vshll.u32 %v1331, 16
      %v1592 = vrot.slane %v1590, 6
      %v1593 = vor.u32 %v1589, %v1592
      %v1594 = vsel %vm1346, %v1585, %v1593
      %v1595 = vrot.slane %v1593, 4
      %v1597 = vshrl.u32 %v1332, 16
      %v1599 = vrot.slane %v1597, 5
      %v1600 = vshll.u32 %v1332, 16
      %v1602 = vrot.slane %v1600, 6
      %v1603 = vor.u32 %v1599, %v1602
      %v1604 = vsel %vm1346, %v1595, %v1603
      %v1605 = vrot.slane %v1603, 4
      %v1607 = vshrl.u32 %v1333, 16
      %v1609 = vrot.slane %v1607, 5
      %v1610 = vshll.u32 %v1333, 16
      %v1612 = vrot.slane %v1610, 6
      %v1613 = vor.u32 %v1609, %v1612
      %v1614 = vsel %vm1346, %v1605, %v1613
      %v1615 = vrot.slane %v1613, 4
      %v1617 = vshrl.u32 %v1334, 16
      %v1619 = vrot.slane %v1617, 5
      %v1620 = vshll.u32 %v1334, 16
      %v1622 = vrot.slane %v1620, 6
      %v1623 = vor.u32 %v1619, %v1622
      %v1624 = vsel %vm1346, %v1615, %v1623
      %v1625 = vrot.slane %v1623, 4
      %v1627 = vshrl.u32 %v1335, 16
      %v1629 = vrot.slane %v1627, 5
      %v1630 = vshll.u32 %v1335, 16
      %v1632 = vrot.slane %v1630, 6
      %v1633 = vor.u32 %v1629, %v1632
      %v1634 = vsel %vm1346, %v1625, %v1633
      %v1635 = vrot.slane %v1633, 4
      %v1637 = vshrl.u32 %v1336, 16
      %v1639 = vrot.slane %v1637, 5
      %v1640 = vshll.u32 %v1336, 16
      %v1642 = vrot.slane %v1640, 6
      %v1643 = vor.u32 %v1639, %v1642
      %v1644 = vsel %vm1346, %v1635, %v1643
      %v1645 = vrot.slane %v1643, 4
      %v1647 = vshrl.u32 %v1337, 16
      %v1649 = vrot.slane %v1647, 5
      %v1650 = vshll.u32 %v1337, 16
      %v1652 = vrot.slane %v1650, 6
      %v1653 = vor.u32 %v1649, %v1652
      %v1654 = vsel %vm1346, %v1645, %v1653
      %v1655 = vrot.slane %v1653, 4
      %v1657 = vshrl.u32 %v1338, 16
      %v1659 = vrot.slane %v1657, 5
      %v1660 = vshll.u32 %v1338, 16
      %v1662 = vrot.slane %v1660, 6
      %v1663 = vor.u32 %v1659, %v1662
      %v1664 = vsel %vm1346, %v1655, %v1663
      %v1665 = vrot.slane %v1663, 4
      %v1667 = vshrl.u32 %v1339, 16
      %v1669 = vrot.slane %v1667, 5
      %v1670 = vshll.u32 %v1339, 16
      %v1672 = vrot.slane %v1670, 6
      %v1673 = vor.u32 %v1669, %v1672
      %v1674 = vsel %vm1346, %v1665, %v1673
      %v1675 = vrot.slane %v1673, 4
      %v1677 = vshrl.u32 %v1340, 16
      %v1679 = vrot.slane %v1677, 5
      %v1680 = vshll.u32 %v1340, 16
      %v1682 = vrot.slane %v1680, 6
      %v1683 = vor.u32 %v1679, %v1682
      %v1684 = vsel %vm1346, %v1675, %v1683
      %v1685 = vrot.slane %v1683, 4
      %v1687 = vshrl.u32 %v1341, 16
      %v1689 = vrot.slane %v1687, 5
      %v1690 = vshll.u32 %v1341, 16
      %v1692 = vrot.slane %v1690, 6
      %v1693 = vor.u32 %v1689, %v1692
      %v1694 = vsel %vm1346, %v1685, %v1693
      %v1695 = vrot.slane %v1693, 4
      %v1697 = vshrl.u32 %v1342, 16
      %v1699 = vrot.slane %v1697, 5
      %v1700 = vshll.u32 %v1342, 16
      %v1702 = vrot.slane %v1700, 6
      %v1703 = vor.u32 %v1699, %v1702
      %v1704 = vsel %vm1346, %v1695, %v1703
      %v1705 = vrot.slane %v1703, 4
      %v1707 = vshrl.u32 %v1343, 16
      %v1709 = vrot.slane %v1707, 5
      %v1710 = vshll.u32 %v1343, 16
      %v1712 = vrot.slane %v1710, 6
      %v1713 = vor.u32 %v1709, %v1712
      %v1714 = vsel %vm1346, %v1705, %v1713
      %1751 = vst [vmem:[#allocation2 + $0x10] sm:$0xf] %v1364
      %1752 = vst [vmem:[#allocation2 + $0x34] sm:$0xf] %v1374
      %1753 = vst [vmem:[#allocation2 + $0x58] sm:$0xf] %v1384
      %1754 = vst [vmem:[#allocation2 + $0x7c] sm:$0xf] %v1394
      %1755 = vst [vmem:[#allocation2 + $0xa0] sm:$0xf] %v1404
      %1756 = vst [vmem:[#allocation2 + $0xc4] sm:$0xf] %v1414
      %1757 = vst [vmem:[#allocation2 + $0xe8] sm:$0xf] %v1424
      %1758 = vst [vmem:[#allocation2 + $0x10c] sm:$0xf] %v1434
      %1759 = vst [vmem:[#allocation2 + $0x130] sm:$0xf] %v1444
      %1760 = vst [vmem:[#allocation2 + $0x154] sm:$0xf] %v1454
      %1761 = vst [vmem:[#allocation2 + $0x178] sm:$0xf] %v1464
      %1762 = vst [vmem:[#allocation2 + $0x19c] sm:$0xf] %v1474
      %1763 = vst [vmem:[#allocation2 + $0x1c0] sm:$0xf] %v1484
      %1764 = vst [vmem:[#allocation2 + $0x1e4] sm:$0xf] %v1494
      %1765 = vst [vmem:[#allocation2 + $0x208] sm:$0xf] %v1504
      %1766 = vst [vmem:[#allocation2 + $0x22c] sm:$0xf] %v1514
      %1767 = vst [vmem:[#allocation2 + $0x250] sm:$0xf] %v1524
      %1768 = vst [vmem:[#allocation2 + $0x274] sm:$0xf] %v1534
      %1769 = vst [vmem:[#allocation2 + $0x298] sm:$0xf] %v1544
      %1770 = vst [vmem:[#allocation2 + $0x2bc] sm:$0xf] %v1554
      %1771 = vst [vmem:[#allocation2 + $0x2e0] sm:$0xf] %v1564
      %1772 = vst [vmem:[#allocation2 + $0x304] sm:$0xf] %v1574
      %1773 = vst [vmem:[#allocation2 + $0x328] sm:$0xf] %v1584
      %1774 = vst [vmem:[#allocation2 + $0x34c] sm:$0xf] %v1594
      %1775 = vst [vmem:[#allocation2 + $0x370] sm:$0xf] %v1604
      %1776 = vst [vmem:[#allocation2 + $0x394] sm:$0xf] %v1614
      %1777 = vst [vmem:[#allocation2 + $0x3b8] sm:$0xf] %v1624
      %1778 = vst [vmem:[#allocation2 + $0x3dc] sm:$0xf] %v1634
      %1779 = vst [vmem:[#allocation2 + $0x400] sm:$0xf] %v1644
      %1780 = vst [vmem:[#allocation2 + $0x424] sm:$0xf] %v1654
      %1781 = vst [vmem:[#allocation2 + $0x448] sm:$0xf] %v1664
      %1782 = vst [vmem:[#allocation2 + $0x46c] sm:$0xf] %v1674
      %1783 = vst [vmem:[#allocation2 + $0x490] sm:$0xf] %v1684
      %1784 = vst [vmem:[#allocation2 + $0x4b4] sm:$0xf] %v1694
      %1785 = vst [vmem:[#allocation2 + $0x4d8] sm:$0xf] %v1704
      %1786 = vst [vmem:[#allocation2 + $0x4fc] sm:$0xf] %v1714
      %v1787 = vld [vmem:[%s234 + $0x8] sm:$0xc]
      %v1788 = vld [vmem:[%s234 + $0xc] sm:$0xf]
      %v1789 = vld [vmem:[%s234 + $0x10] sm:$0xf]
      %v1790 = vld [vmem:[%s234 + $0x14] sm:$0xf]
      %v1791 = vld [vmem:[%s234 + $0x18] sm:$0xf]
      %v1792 = vld [vmem:[%s234 + $0x1c] sm:$0xf]
      %v1793 = vld [vmem:[%s234 + $0x20] sm:$0xf]
      %v1794 = vld [vmem:[%s234 + $0x24] sm:$0xf]
      %v1795 = vld [vmem:[%s234 + $0x28] sm:$0xf]
      %v1796 = vld [vmem:[%s234 + $0x2c] sm:$0xf]
      %v1797 = vld [vmem:[%s234 + $0x30] sm:$0xf]
      %v1798 = vld [vmem:[%s234 + $0x34] sm:$0xf]
      %v1799 = vld [vmem:[%s234 + $0x38] sm:$0xf]
      %v1800 = vld [vmem:[%s234 + $0x3c] sm:$0xf]
      %v1801 = vld [vmem:[%s234 + $0x40] sm:$0xf]
      %v1802 = vld [vmem:[%s234 + $0x44] sm:$0xf]
      %v1803 = vld [vmem:[%s234 + $0x48] sm:$0xf]
      %v1804 = vld [vmem:[%s234 + $0x4c] sm:$0xf]
      %v1805 = vld [vmem:[%s234 + $0x50] sm:$0xf]
      %v1806 = vld [vmem:[%s234 + $0x54] sm:$0xf]
      %v1807 = vld [vmem:[%s234 + $0x58] sm:$0xf]
      %v1808 = vld [vmem:[%s234 + $0x5c] sm:$0xf]
      %v1809 = vld [vmem:[%s234 + $0x60] sm:$0xf]
      %v1810 = vld [vmem:[%s234 + $0x64] sm:$0xf]
      %v1811 = vld [vmem:[%s234 + $0x68] sm:$0xf]
      %v1812 = vld [vmem:[%s234 + $0x6c] sm:$0xf]
      %v1813 = vld [vmem:[%s234 + $0x70] sm:$0xf]
      %v1814 = vld [vmem:[%s234 + $0x74] sm:$0xf]
      %v1815 = vld [vmem:[%s234 + $0x78] sm:$0xf]
      %v1816 = vld [vmem:[%s234 + $0x7c] sm:$0xf]
      %v1817 = vld [vmem:[%s234 + $0x80] sm:$0xf]
      %v1818 = vld [vmem:[%s234 + $0x84] sm:$0xf]
      %v1819 = vld [vmem:[%s234 + $0x88] sm:$0xf]
      %v1820 = vld [vmem:[%s234 + $0x8c] sm:$0xf]
      %v1821 = vld [vmem:[%s234 + $0x90] sm:$0xf]
      %v1822 = vld [vmem:[%s234 + $0x94] sm:$0xf]
      %v1823 = vld [vmem:[%s234 + $0x98] sm:$0x3]
      %vm1861 = vcmask 1041408
      %vm1862 = vcmask 1045508
      %vm1863 = vmor %vm1861, %vm1862
      %v1864 = vrot.slane %v1787, 6
      %v1865 = vrot.slane %v1864, 4
      %v1866 = vrot.slane %v1788, 6
      %v1867 = vsel %vm1863, %v1865, %v1866
      %v1868 = vrot.slane %v1866, 4
      %v1869 = vrot.slane %v1789, 6
      %v1870 = vsel %vm1863, %v1868, %v1869
      %v1871 = vrot.slane %v1869, 4
      %v1872 = vrot.slane %v1790, 6
      %v1873 = vsel %vm1863, %v1871, %v1872
      %v1874 = vrot.slane %v1872, 4
      %v1875 = vrot.slane %v1791, 6
      %v1876 = vsel %vm1863, %v1874, %v1875
      %v1877 = vrot.slane %v1875, 4
      %v1878 = vrot.slane %v1792, 6
      %v1879 = vsel %vm1863, %v1877, %v1878
      %v1880 = vrot.slane %v1878, 4
      %v1881 = vrot.slane %v1793, 6
      %v1882 = vsel %vm1863, %v1880, %v1881
      %v1883 = vrot.slane %v1881, 4
      %v1884 = vrot.slane %v1794, 6
      %v1885 = vsel %vm1863, %v1883, %v1884
      %v1886 = vrot.slane %v1884, 4
      %v1887 = vrot.slane %v1795, 6
      %v1888 = vsel %vm1863, %v1886, %v1887
      %v1889 = vrot.slane %v1887, 4
      %v1890 = vrot.slane %v1796, 6
      %v1891 = vsel %vm1863, %v1889, %v1890
      %v1892 = vrot.slane %v1890, 4
      %v1893 = vrot.slane %v1797, 6
      %v1894 = vsel %vm1863, %v1892, %v1893
      %v1895 = vrot.slane %v1893, 4
      %v1896 = vrot.slane %v1798, 6
      %v1897 = vsel %vm1863, %v1895, %v1896
      %v1898 = vrot.slane %v1896, 4
      %v1899 = vrot.slane %v1799, 6
      %v1900 = vsel %vm1863, %v1898, %v1899
      %v1901 = vrot.slane %v1899, 4
      %v1902 = vrot.slane %v1800, 6
      %v1903 = vsel %vm1863, %v1901, %v1902
      %v1904 = vrot.slane %v1902, 4
      %v1905 = vrot.slane %v1801, 6
      %v1906 = vsel %vm1863, %v1904, %v1905
      %v1907 = vrot.slane %v1905, 4
      %v1908 = vrot.slane %v1802, 6
      %v1909 = vsel %vm1863, %v1907, %v1908
      %v1910 = vrot.slane %v1908, 4
      %v1911 = vrot.slane %v1803, 6
      %v1912 = vsel %vm1863, %v1910, %v1911
      %v1913 = vrot.slane %v1911, 4
      %v1914 = vrot.slane %v1804, 6
      %v1915 = vsel %vm1863, %v1913, %v1914
      %v1916 = vrot.slane %v1914, 4
      %v1917 = vrot.slane %v1805, 6
      %v1918 = vsel %vm1863, %v1916, %v1917
      %v1919 = vrot.slane %v1917, 4
      %v1920 = vrot.slane %v1806, 6
      %v1921 = vsel %vm1863, %v1919, %v1920
      %v1922 = vrot.slane %v1920, 4
      %v1923 = vrot.slane %v1807, 6
      %v1924 = vsel %vm1863, %v1922, %v1923
      %v1925 = vrot.slane %v1923, 4
      %v1926 = vrot.slane %v1808, 6
      %v1927 = vsel %vm1863, %v1925, %v1926
      %v1928 = vrot.slane %v1926, 4
      %v1929 = vrot.slane %v1809, 6
      %v1930 = vsel %vm1863, %v1928, %v1929
      %v1931 = vrot.slane %v1929, 4
      %v1932 = vrot.slane %v1810, 6
      %v1933 = vsel %vm1863, %v1931, %v1932
      %v1934 = vrot.slane %v1932, 4
      %v1935 = vrot.slane %v1811, 6
      %v1936 = vsel %vm1863, %v1934, %v1935
      %v1937 = vrot.slane %v1935, 4
      %v1938 = vrot.slane %v1812, 6
      %v1939 = vsel %vm1863, %v1937, %v1938
      %v1940 = vrot.slane %v1938, 4
      %v1941 = vrot.slane %v1813, 6
      %v1942 = vsel %vm1863, %v1940, %v1941
      %v1943 = vrot.slane %v1941, 4
      %v1944 = vrot.slane %v1814, 6
      %v1945 = vsel %vm1863, %v1943, %v1944
      %v1946 = vrot.slane %v1944, 4
      %v1947 = vrot.slane %v1815, 6
      %v1948 = vsel %vm1863, %v1946, %v1947
      %v1949 = vrot.slane %v1947, 4
      %v1950 = vrot.slane %v1816, 6
      %v1951 = vsel %vm1863, %v1949, %v1950
      %v1952 = vrot.slane %v1950, 4
      %v1953 = vrot.slane %v1817, 6
      %v1954 = vsel %vm1863, %v1952, %v1953
      %v1955 = vrot.slane %v1953, 4
      %v1956 = vrot.slane %v1818, 6
      %v1957 = vsel %vm1863, %v1955, %v1956
      %v1958 = vrot.slane %v1956, 4
      %v1959 = vrot.slane %v1819, 6
      %v1960 = vsel %vm1863, %v1958, %v1959
      %v1961 = vrot.slane %v1959, 4
      %v1962 = vrot.slane %v1820, 6
      %v1963 = vsel %vm1863, %v1961, %v1962
      %v1964 = vrot.slane %v1962, 4
      %v1965 = vrot.slane %v1821, 6
      %v1966 = vsel %vm1863, %v1964, %v1965
      %v1967 = vrot.slane %v1965, 4
      %v1968 = vrot.slane %v1822, 6
      %v1969 = vsel %vm1863, %v1967, %v1968
      %v1970 = vrot.slane %v1968, 4
      %v1971 = vrot.slane %v1823, 6
      %v1972 = vsel %vm1863, %v1970, %v1971
      %2009 = vst [vmem:[#allocation2 + $0x14] sm:$0xf] %v1867
      %2010 = vst [vmem:[#allocation2 + $0x38] sm:$0xf] %v1870
      %2011 = vst [vmem:[#allocation2 + $0x5c] sm:$0xf] %v1873
      %2012 = vst [vmem:[#allocation2 + $0x80] sm:$0xf] %v1876
      %2013 = vst [vmem:[#allocation2 + $0xa4] sm:$0xf] %v1879
      %2014 = vst [vmem:[#allocation2 + $0xc8] sm:$0xf] %v1882
      %2015 = vst [vmem:[#allocation2 + $0xec] sm:$0xf] %v1885
      %2016 = vst [vmem:[#allocation2 + $0x110] sm:$0xf] %v1888
      %2017 = vst [vmem:[#allocation2 + $0x134] sm:$0xf] %v1891
      %2018 = vst [vmem:[#allocation2 + $0x158] sm:$0xf] %v1894
      %2019 = vst [vmem:[#allocation2 + $0x17c] sm:$0xf] %v1897
      %2020 = vst [vmem:[#allocation2 + $0x1a0] sm:$0xf] %v1900
      %2021 = vst [vmem:[#allocation2 + $0x1c4] sm:$0xf] %v1903
      %2022 = vst [vmem:[#allocation2 + $0x1e8] sm:$0xf] %v1906
      %2023 = vst [vmem:[#allocation2 + $0x20c] sm:$0xf] %v1909
      %2024 = vst [vmem:[#allocation2 + $0x230] sm:$0xf] %v1912
      %2025 = vst [vmem:[#allocation2 + $0x254] sm:$0xf] %v1915
      %2026 = vst [vmem:[#allocation2 + $0x278] sm:$0xf] %v1918
      %2027 = vst [vmem:[#allocation2 + $0x29c] sm:$0xf] %v1921
      %2028 = vst [vmem:[#allocation2 + $0x2c0] sm:$0xf] %v1924
      %2029 = vst [vmem:[#allocation2 + $0x2e4] sm:$0xf] %v1927
      %2030 = vst [vmem:[#allocation2 + $0x308] sm:$0xf] %v1930
      %2031 = vst [vmem:[#allocation2 + $0x32c] sm:$0xf] %v1933
      %2032 = vst [vmem:[#allocation2 + $0x350] sm:$0xf] %v1936
      %2033 = vst [vmem:[#allocation2 + $0x374] sm:$0xf] %v1939
      %2034 = vst [vmem:[#allocation2 + $0x398] sm:$0xf] %v1942
      %2035 = vst [vmem:[#allocation2 + $0x3bc] sm:$0xf] %v1945
      %2036 = vst [vmem:[#allocation2 + $0x3e0] sm:$0xf] %v1948
      %2037 = vst [vmem:[#allocation2 + $0x404] sm:$0xf] %v1951
      %2038 = vst [vmem:[#allocation2 + $0x428] sm:$0xf] %v1954
      %2039 = vst [vmem:[#allocation2 + $0x44c] sm:$0xf] %v1957
      %2040 = vst [vmem:[#allocation2 + $0x470] sm:$0xf] %v1960
      %2041 = vst [vmem:[#allocation2 + $0x494] sm:$0xf] %v1963
      %2042 = vst [vmem:[#allocation2 + $0x4b8] sm:$0xf] %v1966
      %2043 = vst [vmem:[#allocation2 + $0x4dc] sm:$0xf] %v1969
      %2044 = vst [vmem:[#allocation2 + $0x500] sm:$0xf] %v1972
      %v2045 = vld [vmem:[%s234 + $0x10] sm:$0xc]
      %v2046 = vld [vmem:[%s234 + $0x14] sm:$0xf]
      %v2047 = vld [vmem:[%s234 + $0x18] sm:$0xf]
      %v2048 = vld [vmem:[%s234 + $0x1c] sm:$0xf]
      %v2049 = vld [vmem:[%s234 + $0x20] sm:$0xf]
      %v2050 = vld [vmem:[%s234 + $0x24] sm:$0xf]
      %v2051 = vld [vmem:[%s234 + $0x28] sm:$0xf]
      %v2052 = vld [vmem:[%s234 + $0x2c] sm:$0xf]
      %v2053 = vld [vmem:[%s234 + $0x30] sm:$0xf]
      %v2054 = vld [vmem:[%s234 + $0x34] sm:$0xf]
      %v2055 = vld [vmem:[%s234 + $0x38] sm:$0xf]
      %v2056 = vld [vmem:[%s234 + $0x3c] sm:$0xf]
      %v2057 = vld [vmem:[%s234 + $0x40] sm:$0xf]
      %v2058 = vld [vmem:[%s234 + $0x44] sm:$0xf]
      %v2059 = vld [vmem:[%s234 + $0x48] sm:$0xf]
      %v2060 = vld [vmem:[%s234 + $0x4c] sm:$0xf]
      %v2061 = vld [vmem:[%s234 + $0x50] sm:$0xf]
      %v2062 = vld [vmem:[%s234 + $0x54] sm:$0xf]
      %v2063 = vld [vmem:[%s234 + $0x58] sm:$0xf]
      %v2064 = vld [vmem:[%s234 + $0x5c] sm:$0xf]
      %v2065 = vld [vmem:[%s234 + $0x60] sm:$0xf]
      %v2066 = vld [vmem:[%s234 + $0x64] sm:$0xf]
      %v2067 = vld [vmem:[%s234 + $0x68] sm:$0xf]
      %v2068 = vld [vmem:[%s234 + $0x6c] sm:$0xf]
      %v2069 = vld [vmem:[%s234 + $0x70] sm:$0xf]
      %v2070 = vld [vmem:[%s234 + $0x74] sm:$0xf]
      %v2071 = vld [vmem:[%s234 + $0x78] sm:$0xf]
      %v2072 = vld [vmem:[%s234 + $0x7c] sm:$0xf]
      %v2073 = vld [vmem:[%s234 + $0x80] sm:$0xf]
      %v2074 = vld [vmem:[%s234 + $0x84] sm:$0xf]
      %v2075 = vld [vmem:[%s234 + $0x88] sm:$0xf]
      %v2076 = vld [vmem:[%s234 + $0x8c] sm:$0xf]
      %v2077 = vld [vmem:[%s234 + $0x90] sm:$0xf]
      %v2078 = vld [vmem:[%s234 + $0x94] sm:$0xf]
      %v2079 = vld [vmem:[%s234 + $0x98] sm:$0xf]
      %v2080 = vld [vmem:[%s234 + $0x9c] sm:$0xf]
      %v2081 = vld [vmem:[%s234 + $0xa0] sm:$0x3]
      %v2119 = vrot.slane %v2045, 6
      %v2120 = vrot.slane %v2119, 4
      %v2121 = vrot.slane %v2046, 6
      %v2122 = vsel %vm1863, %v2120, %v2121
      %v2123 = vrot.slane %v2121, 4
      %v2124 = vrot.slane %v2047, 6
      %v2125 = vsel %vm1863, %v2123, %v2124
      %v2126 = vrot.slane %v2124, 4
      %v2127 = vrot.slane %v2048, 6
      %v2128 = vsel %vm1863, %v2126, %v2127
      %v2129 = vrot.slane %v2127, 4
      %v2130 = vrot.slane %v2049, 6
      %v2131 = vsel %vm1863, %v2129, %v2130
      %v2132 = vrot.slane %v2130, 4
      %v2133 = vrot.slane %v2050, 6
      %v2134 = vsel %vm1863, %v2132, %v2133
      %v2135 = vrot.slane %v2133, 4
      %v2136 = vrot.slane %v2051, 6
      %v2137 = vsel %vm1863, %v2135, %v2136
      %v2138 = vrot.slane %v2136, 4
      %v2139 = vrot.slane %v2052, 6
      %v2140 = vsel %vm1863, %v2138, %v2139
      %v2141 = vrot.slane %v2139, 4
      %v2142 = vrot.slane %v2053, 6
      %v2143 = vsel %vm1863, %v2141, %v2142
      %v2144 = vrot.slane %v2142, 4
      %v2145 = vrot.slane %v2054, 6
      %v2146 = vsel %vm1863, %v2144, %v2145
      %v2147 = vrot.slane %v2145, 4
      %v2148 = vrot.slane %v2055, 6
      %v2149 = vsel %vm1863, %v2147, %v2148
      %v2150 = vrot.slane %v2148, 4
      %v2151 = vrot.slane %v2056, 6
      %v2152 = vsel %vm1863, %v2150, %v2151
      %v2153 = vrot.slane %v2151, 4
      %v2154 = vrot.slane %v2057, 6
      %v2155 = vsel %vm1863, %v2153, %v2154
      %v2156 = vrot.slane %v2154, 4
      %v2157 = vrot.slane %v2058, 6
      %v2158 = vsel %vm1863, %v2156, %v2157
      %v2159 = vrot.slane %v2157, 4
      %v2160 = vrot.slane %v2059, 6
      %v2161 = vsel %vm1863, %v2159, %v2160
      %v2162 = vrot.slane %v2160, 4
      %v2163 = vrot.slane %v2060, 6
      %v2164 = vsel %vm1863, %v2162, %v2163
      %v2165 = vrot.slane %v2163, 4
      %v2166 = vrot.slane %v2061, 6
      %v2167 = vsel %vm1863, %v2165, %v2166
      %v2168 = vrot.slane %v2166, 4
      %v2169 = vrot.slane %v2062, 6
      %v2170 = vsel %vm1863, %v2168, %v2169
      %v2171 = vrot.slane %v2169, 4
      %v2172 = vrot.slane %v2063, 6
      %v2173 = vsel %vm1863, %v2171, %v2172
      %v2174 = vrot.slane %v2172, 4
      %v2175 = vrot.slane %v2064, 6
      %v2176 = vsel %vm1863, %v2174, %v2175
      %v2177 = vrot.slane %v2175, 4
      %v2178 = vrot.slane %v2065, 6
      %v2179 = vsel %vm1863, %v2177, %v2178
      %v2180 = vrot.slane %v2178, 4
      %v2181 = vrot.slane %v2066, 6
      %v2182 = vsel %vm1863, %v2180, %v2181
      %v2183 = vrot.slane %v2181, 4
      %v2184 = vrot.slane %v2067, 6
      %v2185 = vsel %vm1863, %v2183, %v2184
      %v2186 = vrot.slane %v2184, 4
      %v2187 = vrot.slane %v2068, 6
      %v2188 = vsel %vm1863, %v2186, %v2187
      %v2189 = vrot.slane %v2187, 4
      %v2190 = vrot.slane %v2069, 6
      %v2191 = vsel %vm1863, %v2189, %v2190
      %v2192 = vrot.slane %v2190, 4
      %v2193 = vrot.slane %v2070, 6
      %v2194 = vsel %vm1863, %v2192, %v2193
      %v2195 = vrot.slane %v2193, 4
      %v2196 = vrot.slane %v2071, 6
      %v2197 = vsel %vm1863, %v2195, %v2196
      %v2198 = vrot.slane %v2196, 4
      %v2199 = vrot.slane %v2072, 6
      %v2200 = vsel %vm1863, %v2198, %v2199
      %v2201 = vrot.slane %v2199, 4
      %v2202 = vrot.slane %v2073, 6
      %v2203 = vsel %vm1863, %v2201, %v2202
      %v2204 = vrot.slane %v2202, 4
      %v2205 = vrot.slane %v2074, 6
      %v2206 = vsel %vm1863, %v2204, %v2205
      %v2207 = vrot.slane %v2205, 4
      %v2208 = vrot.slane %v2075, 6
      %v2209 = vsel %vm1863, %v2207, %v2208
      %v2210 = vrot.slane %v2208, 4
      %v2211 = vrot.slane %v2076, 6
      %v2212 = vsel %vm1863, %v2210, %v2211
      %v2213 = vrot.slane %v2211, 4
      %v2214 = vrot.slane %v2077, 6
      %v2215 = vsel %vm1863, %v2213, %v2214
      %v2216 = vrot.slane %v2214, 4
      %v2217 = vrot.slane %v2078, 6
      %v2218 = vsel %vm1863, %v2216, %v2217
      %v2219 = vrot.slane %v2217, 4
      %v2220 = vrot.slane %v2079, 6
      %v2221 = vsel %vm1863, %v2219, %v2220
      %v2222 = vrot.slane %v2220, 4
      %v2223 = vrot.slane %v2080, 6
      %v2224 = vsel %vm1863, %v2222, %v2223
      %v2225 = vrot.slane %v2223, 4
      %v2226 = vrot.slane %v2081, 6
      %v2227 = vsel %vm1863, %v2225, %v2226
      %2264 = vst [vmem:[#allocation2 + $0x18] sm:$0xf] %v2122
      %2265 = vst [vmem:[#allocation2 + $0x3c] sm:$0xf] %v2125
      %2266 = vst [vmem:[#allocation2 + $0x60] sm:$0xf] %v2128
      %2267 = vst [vmem:[#allocation2 + $0x84] sm:$0xf] %v2131
      %2268 = vst [vmem:[#allocation2 + $0xa8] sm:$0xf] %v2134
      %2269 = vst [vmem:[#allocation2 + $0xcc] sm:$0xf] %v2137
      %2270 = vst [vmem:[#allocation2 + $0xf0] sm:$0xf] %v2140
      %2271 = vst [vmem:[#allocation2 + $0x114] sm:$0xf] %v2143
      %2272 = vst [vmem:[#allocation2 + $0x138] sm:$0xf] %v2146
      %2273 = vst [vmem:[#allocation2 + $0x15c] sm:$0xf] %v2149
      %2274 = vst [vmem:[#allocation2 + $0x180] sm:$0xf] %v2152
      %2275 = vst [vmem:[#allocation2 + $0x1a4] sm:$0xf] %v2155
      %2276 = vst [vmem:[#allocation2 + $0x1c8] sm:$0xf] %v2158
      %2277 = vst [vmem:[#allocation2 + $0x1ec] sm:$0xf] %v2161
      %2278 = vst [vmem:[#allocation2 + $0x210] sm:$0xf] %v2164
      %2279 = vst [vmem:[#allocation2 + $0x234] sm:$0xf] %v2167
      %2280 = vst [vmem:[#allocation2 + $0x258] sm:$0xf] %v2170
      %2281 = vst [vmem:[#allocation2 + $0x27c] sm:$0xf] %v2173
      %2282 = vst [vmem:[#allocation2 + $0x2a0] sm:$0xf] %v2176
      %2283 = vst [vmem:[#allocation2 + $0x2c4] sm:$0xf] %v2179
      %2284 = vst [vmem:[#allocation2 + $0x2e8] sm:$0xf] %v2182
      %2285 = vst [vmem:[#allocation2 + $0x30c] sm:$0xf] %v2185
      %2286 = vst [vmem:[#allocation2 + $0x330] sm:$0xf] %v2188
      %2287 = vst [vmem:[#allocation2 + $0x354] sm:$0xf] %v2191
      %2288 = vst [vmem:[#allocation2 + $0x378] sm:$0xf] %v2194
      %2289 = vst [vmem:[#allocation2 + $0x39c] sm:$0xf] %v2197
      %2290 = vst [vmem:[#allocation2 + $0x3c0] sm:$0xf] %v2200
      %2291 = vst [vmem:[#allocation2 + $0x3e4] sm:$0xf] %v2203
      %2292 = vst [vmem:[#allocation2 + $0x408] sm:$0xf] %v2206
      %2293 = vst [vmem:[#allocation2 + $0x42c] sm:$0xf] %v2209
      %2294 = vst [vmem:[#allocation2 + $0x450] sm:$0xf] %v2212
      %2295 = vst [vmem:[#allocation2 + $0x474] sm:$0xf] %v2215
      %2296 = vst [vmem:[#allocation2 + $0x498] sm:$0xf] %v2218
      %2297 = vst [vmem:[#allocation2 + $0x4bc] sm:$0xf] %v2221
      %2298 = vst [vmem:[#allocation2 + $0x4e0] sm:$0xf] %v2224
      %2299 = vst [vmem:[#allocation2 + $0x504] sm:$0xf] %v2227
      %v2300 = vld [vmem:[%s234 + $0x10] sm:$0xc]
      %v2301 = vld [vmem:[%s234 + $0x14] sm:$0xf]
      %v2302 = vld [vmem:[%s234 + $0x18] sm:$0xf]
      %v2303 = vld [vmem:[%s234 + $0x1c] sm:$0xf]
      %v2304 = vld [vmem:[%s234 + $0x20] sm:$0xf]
      %v2305 = vld [vmem:[%s234 + $0x24] sm:$0xf]
      %v2306 = vld [vmem:[%s234 + $0x28] sm:$0xf]
      %v2307 = vld [vmem:[%s234 + $0x2c] sm:$0xf]
      %v2308 = vld [vmem:[%s234 + $0x30] sm:$0xf]
      %v2309 = vld [vmem:[%s234 + $0x34] sm:$0xf]
      %v2310 = vld [vmem:[%s234 + $0x38] sm:$0xf]
      %v2311 = vld [vmem:[%s234 + $0x3c] sm:$0xf]
      %v2312 = vld [vmem:[%s234 + $0x40] sm:$0xf]
      %v2313 = vld [vmem:[%s234 + $0x44] sm:$0xf]
      %v2314 = vld [vmem:[%s234 + $0x48] sm:$0xf]
      %v2315 = vld [vmem:[%s234 + $0x4c] sm:$0xf]
      %v2316 = vld [vmem:[%s234 + $0x50] sm:$0xf]
      %v2317 = vld [vmem:[%s234 + $0x54] sm:$0xf]
      %v2318 = vld [vmem:[%s234 + $0x58] sm:$0xf]
      %v2319 = vld [vmem:[%s234 + $0x5c] sm:$0xf]
      %v2320 = vld [vmem:[%s234 + $0x60] sm:$0xf]
      %v2321 = vld [vmem:[%s234 + $0x64] sm:$0xf]
      %v2322 = vld [vmem:[%s234 + $0x68] sm:$0xf]
      %v2323 = vld [vmem:[%s234 + $0x6c] sm:$0xf]
      %v2324 = vld [vmem:[%s234 + $0x70] sm:$0xf]
      %v2325 = vld [vmem:[%s234 + $0x74] sm:$0xf]
      %v2326 = vld [vmem:[%s234 + $0x78] sm:$0xf]
      %v2327 = vld [vmem:[%s234 + $0x7c] sm:$0xf]
      %v2328 = vld [vmem:[%s234 + $0x80] sm:$0xf]
      %v2329 = vld [vmem:[%s234 + $0x84] sm:$0xf]
      %v2330 = vld [vmem:[%s234 + $0x88] sm:$0xf]
      %v2331 = vld [vmem:[%s234 + $0x8c] sm:$0xf]
      %v2332 = vld [vmem:[%s234 + $0x90] sm:$0xf]
      %v2333 = vld [vmem:[%s234 + $0x94] sm:$0xf]
      %v2334 = vld [vmem:[%s234 + $0x98] sm:$0xf]
      %v2335 = vld [vmem:[%s234 + $0x9c] sm:$0xf]
      %v2336 = vld [vmem:[%s234 + $0xa0] sm:$0x7]
      %vm2337 = vsmask.f32 1280
      %vm2338 = vsmask.f32 5392
      %vm2339 = vmor %vm2337, %vm2338
      %v2341 = vshrl.u32 %v2300, 16
      %v2343 = vrot.slane %v2341, 6
      %v2344 = vshll.u32 %v2300, 16
      %v2346 = vrot.slane %v2344, 7
      %v2347 = vor.u32 %v2343, %v2346
      %v2348 = vrot.slane %v2347, 4
      %v2350 = vshrl.u32 %v2301, 16
      %v2352 = vrot.slane %v2350, 6
      %v2353 = vshll.u32 %v2301, 16
      %v2355 = vrot.slane %v2353, 7
      %v2356 = vor.u32 %v2352, %v2355
      %v2357 = vsel %vm2339, %v2348, %v2356
      %v2358 = vrot.slane %v2356, 4
      %v2360 = vshrl.u32 %v2302, 16
      %v2362 = vrot.slane %v2360, 6
      %v2363 = vshll.u32 %v2302, 16
      %v2365 = vrot.slane %v2363, 7
      %v2366 = vor.u32 %v2362, %v2365
      %v2367 = vsel %vm2339, %v2358, %v2366
      %v2368 = vrot.slane %v2366, 4
      %v2370 = vshrl.u32 %v2303, 16
      %v2372 = vrot.slane %v2370, 6
      %v2373 = vshll.u32 %v2303, 16
      %v2375 = vrot.slane %v2373, 7
      %v2376 = vor.u32 %v2372, %v2375
      %v2377 = vsel %vm2339, %v2368, %v2376
      %v2378 = vrot.slane %v2376, 4
      %v2380 = vshrl.u32 %v2304, 16
      %v2382 = vrot.slane %v2380, 6
      %v2383 = vshll.u32 %v2304, 16
      %v2385 = vrot.slane %v2383, 7
      %v2386 = vor.u32 %v2382, %v2385
      %v2387 = vsel %vm2339, %v2378, %v2386
      %v2388 = vrot.slane %v2386, 4
      %v2390 = vshrl.u32 %v2305, 16
      %v2392 = vrot.slane %v2390, 6
      %v2393 = vshll.u32 %v2305, 16
      %v2395 = vrot.slane %v2393, 7
      %v2396 = vor.u32 %v2392, %v2395
      %v2397 = vsel %vm2339, %v2388, %v2396
      %v2398 = vrot.slane %v2396, 4
      %v2400 = vshrl.u32 %v2306, 16
      %v2402 = vrot.slane %v2400, 6
      %v2403 = vshll.u32 %v2306, 16
      %v2405 = vrot.slane %v2403, 7
      %v2406 = vor.u32 %v2402, %v2405
      %v2407 = vsel %vm2339, %v2398, %v2406
      %v2408 = vrot.slane %v2406, 4
      %v2410 = vshrl.u32 %v2307, 16
      %v2412 = vrot.slane %v2410, 6
      %v2413 = vshll.u32 %v2307, 16
      %v2415 = vrot.slane %v2413, 7
      %v2416 = vor.u32 %v2412, %v2415
      %v2417 = vsel %vm2339, %v2408, %v2416
      %v2418 = vrot.slane %v2416, 4
      %v2420 = vshrl.u32 %v2308, 16
      %v2422 = vrot.slane %v2420, 6
      %v2423 = vshll.u32 %v2308, 16
      %v2425 = vrot.slane %v2423, 7
      %v2426 = vor.u32 %v2422, %v2425
      %v2427 = vsel %vm2339, %v2418, %v2426
      %v2428 = vrot.slane %v2426, 4
      %v2430 = vshrl.u32 %v2309, 16
      %v2432 = vrot.slane %v2430, 6
      %v2433 = vshll.u32 %v2309, 16
      %v2435 = vrot.slane %v2433, 7
      %v2436 = vor.u32 %v2432, %v2435
      %v2437 = vsel %vm2339, %v2428, %v2436
      %v2438 = vrot.slane %v2436, 4
      %v2440 = vshrl.u32 %v2310, 16
      %v2442 = vrot.slane %v2440, 6
      %v2443 = vshll.u32 %v2310, 16
      %v2445 = vrot.slane %v2443, 7
      %v2446 = vor.u32 %v2442, %v2445
      %v2447 = vsel %vm2339, %v2438, %v2446
      %v2448 = vrot.slane %v2446, 4
      %v2450 = vshrl.u32 %v2311, 16
      %v2452 = vrot.slane %v2450, 6
      %v2453 = vshll.u32 %v2311, 16
      %v2455 = vrot.slane %v2453, 7
      %v2456 = vor.u32 %v2452, %v2455
      %v2457 = vsel %vm2339, %v2448, %v2456
      %v2458 = vrot.slane %v2456, 4
      %v2460 = vshrl.u32 %v2312, 16
      %v2462 = vrot.slane %v2460, 6
      %v2463 = vshll.u32 %v2312, 16
      %v2465 = vrot.slane %v2463, 7
      %v2466 = vor.u32 %v2462, %v2465
      %v2467 = vsel %vm2339, %v2458, %v2466
      %v2468 = vrot.slane %v2466, 4
      %v2470 = vshrl.u32 %v2313, 16
      %v2472 = vrot.slane %v2470, 6
      %v2473 = vshll.u32 %v2313, 16
      %v2475 = vrot.slane %v2473, 7
      %v2476 = vor.u32 %v2472, %v2475
      %v2477 = vsel %vm2339, %v2468, %v2476
      %v2478 = vrot.slane %v2476, 4
      %v2480 = vshrl.u32 %v2314, 16
      %v2482 = vrot.slane %v2480, 6
      %v2483 = vshll.u32 %v2314, 16
      %v2485 = vrot.slane %v2483, 7
      %v2486 = vor.u32 %v2482, %v2485
      %v2487 = vsel %vm2339, %v2478, %v2486
      %v2488 = vrot.slane %v2486, 4
      %v2490 = vshrl.u32 %v2315, 16
      %v2492 = vrot.slane %v2490, 6
      %v2493 = vshll.u32 %v2315, 16
      %v2495 = vrot.slane %v2493, 7
      %v2496 = vor.u32 %v2492, %v2495
      %v2497 = vsel %vm2339, %v2488, %v2496
      %v2498 = vrot.slane %v2496, 4
      %v2500 = vshrl.u32 %v2316, 16
      %v2502 = vrot.slane %v2500, 6
      %v2503 = vshll.u32 %v2316, 16
      %v2505 = vrot.slane %v2503, 7
      %v2506 = vor.u32 %v2502, %v2505
      %v2507 = vsel %vm2339, %v2498, %v2506
      %v2508 = vrot.slane %v2506, 4
      %v2510 = vshrl.u32 %v2317, 16
      %v2512 = vrot.slane %v2510, 6
      %v2513 = vshll.u32 %v2317, 16
      %v2515 = vrot.slane %v2513, 7
      %v2516 = vor.u32 %v2512, %v2515
      %v2517 = vsel %vm2339, %v2508, %v2516
      %v2518 = vrot.slane %v2516, 4
      %v2520 = vshrl.u32 %v2318, 16
      %v2522 = vrot.slane %v2520, 6
      %v2523 = vshll.u32 %v2318, 16
      %v2525 = vrot.slane %v2523, 7
      %v2526 = vor.u32 %v2522, %v2525
      %v2527 = vsel %vm2339, %v2518, %v2526
      %v2528 = vrot.slane %v2526, 4
      %v2530 = vshrl.u32 %v2319, 16
      %v2532 = vrot.slane %v2530, 6
      %v2533 = vshll.u32 %v2319, 16
      %v2535 = vrot.slane %v2533, 7
      %v2536 = vor.u32 %v2532, %v2535
      %v2537 = vsel %vm2339, %v2528, %v2536
      %v2538 = vrot.slane %v2536, 4
      %v2540 = vshrl.u32 %v2320, 16
      %v2542 = vrot.slane %v2540, 6
      %v2543 = vshll.u32 %v2320, 16
      %v2545 = vrot.slane %v2543, 7
      %v2546 = vor.u32 %v2542, %v2545
      %v2547 = vsel %vm2339, %v2538, %v2546
      %v2548 = vrot.slane %v2546, 4
      %v2550 = vshrl.u32 %v2321, 16
      %v2552 = vrot.slane %v2550, 6
      %v2553 = vshll.u32 %v2321, 16
      %v2555 = vrot.slane %v2553, 7
      %v2556 = vor.u32 %v2552, %v2555
      %v2557 = vsel %vm2339, %v2548, %v2556
      %v2558 = vrot.slane %v2556, 4
      %v2560 = vshrl.u32 %v2322, 16
      %v2562 = vrot.slane %v2560, 6
      %v2563 = vshll.u32 %v2322, 16
      %v2565 = vrot.slane %v2563, 7
      %v2566 = vor.u32 %v2562, %v2565
      %v2567 = vsel %vm2339, %v2558, %v2566
      %v2568 = vrot.slane %v2566, 4
      %v2570 = vshrl.u32 %v2323, 16
      %v2572 = vrot.slane %v2570, 6
      %v2573 = vshll.u32 %v2323, 16
      %v2575 = vrot.slane %v2573, 7
      %v2576 = vor.u32 %v2572, %v2575
      %v2577 = vsel %vm2339, %v2568, %v2576
      %v2578 = vrot.slane %v2576, 4
      %v2580 = vshrl.u32 %v2324, 16
      %v2582 = vrot.slane %v2580, 6
      %v2583 = vshll.u32 %v2324, 16
      %v2585 = vrot.slane %v2583, 7
      %v2586 = vor.u32 %v2582, %v2585
      %v2587 = vsel %vm2339, %v2578, %v2586
      %v2588 = vrot.slane %v2586, 4
      %v2590 = vshrl.u32 %v2325, 16
      %v2592 = vrot.slane %v2590, 6
      %v2593 = vshll.u32 %v2325, 16
      %v2595 = vrot.slane %v2593, 7
      %v2596 = vor.u32 %v2592, %v2595
      %v2597 = vsel %vm2339, %v2588, %v2596
      %v2598 = vrot.slane %v2596, 4
      %v2600 = vshrl.u32 %v2326, 16
      %v2602 = vrot.slane %v2600, 6
      %v2603 = vshll.u32 %v2326, 16
      %v2605 = vrot.slane %v2603, 7
      %v2606 = vor.u32 %v2602, %v2605
      %v2607 = vsel %vm2339, %v2598, %v2606
      %v2608 = vrot.slane %v2606, 4
      %v2610 = vshrl.u32 %v2327, 16
      %v2612 = vrot.slane %v2610, 6
      %v2613 = vshll.u32 %v2327, 16
      %v2615 = vrot.slane %v2613, 7
      %v2616 = vor.u32 %v2612, %v2615
      %v2617 = vsel %vm2339, %v2608, %v2616
      %v2618 = vrot.slane %v2616, 4
      %v2620 = vshrl.u32 %v2328, 16
      %v2622 = vrot.slane %v2620, 6
      %v2623 = vshll.u32 %v2328, 16
      %v2625 = vrot.slane %v2623, 7
      %v2626 = vor.u32 %v2622, %v2625
      %v2627 = vsel %vm2339, %v2618, %v2626
      %v2628 = vrot.slane %v2626, 4
      %v2630 = vshrl.u32 %v2329, 16
      %v2632 = vrot.slane %v2630, 6
      %v2633 = vshll.u32 %v2329, 16
      %v2635 = vrot.slane %v2633, 7
      %v2636 = vor.u32 %v2632, %v2635
      %v2637 = vsel %vm2339, %v2628, %v2636
      %v2638 = vrot.slane %v2636, 4
      %v2640 = vshrl.u32 %v2330, 16
      %v2642 = vrot.slane %v2640, 6
      %v2643 = vshll.u32 %v2330, 16
      %v2645 = vrot.slane %v2643, 7
      %v2646 = vor.u32 %v2642, %v2645
      %v2647 = vsel %vm2339, %v2638, %v2646
      %v2648 = vrot.slane %v2646, 4
      %v2650 = vshrl.u32 %v2331, 16
      %v2652 = vrot.slane %v2650, 6
      %v2653 = vshll.u32 %v2331, 16
      %v2655 = vrot.slane %v2653, 7
      %v2656 = vor.u32 %v2652, %v2655
      %v2657 = vsel %vm2339, %v2648, %v2656
      %v2658 = vrot.slane %v2656, 4
      %v2660 = vshrl.u32 %v2332, 16
      %v2662 = vrot.slane %v2660, 6
      %v2663 = vshll.u32 %v2332, 16
      %v2665 = vrot.slane %v2663, 7
      %v2666 = vor.u32 %v2662, %v2665
      %v2667 = vsel %vm2339, %v2658, %v2666
      %v2668 = vrot.slane %v2666, 4
      %v2670 = vshrl.u32 %v2333, 16
      %v2672 = vrot.slane %v2670, 6
      %v2673 = vshll.u32 %v2333, 16
      %v2675 = vrot.slane %v2673, 7
      %v2676 = vor.u32 %v2672, %v2675
      %v2677 = vsel %vm2339, %v2668, %v2676
      %v2678 = vrot.slane %v2676, 4
      %v2680 = vshrl.u32 %v2334, 16
      %v2682 = vrot.slane %v2680, 6
      %v2683 = vshll.u32 %v2334, 16
      %v2685 = vrot.slane %v2683, 7
      %v2686 = vor.u32 %v2682, %v2685
      %v2687 = vsel %vm2339, %v2678, %v2686
      %v2688 = vrot.slane %v2686, 4
      %v2690 = vshrl.u32 %v2335, 16
      %v2692 = vrot.slane %v2690, 6
      %v2693 = vshll.u32 %v2335, 16
      %v2695 = vrot.slane %v2693, 7
      %v2696 = vor.u32 %v2692, %v2695
      %v2697 = vsel %vm2339, %v2688, %v2696
      %v2698 = vrot.slane %v2696, 4
      %v2700 = vshrl.u32 %v2336, 16
      %v2702 = vrot.slane %v2700, 6
      %v2703 = vshll.u32 %v2336, 16
      %v2705 = vrot.slane %v2703, 7
      %v2706 = vor.u32 %v2702, %v2705
      %v2707 = vsel %vm2339, %v2698, %v2706
      %2744 = vst [vmem:[#allocation2 + $0x1c] sm:$0xf] %v2357
      %2745 = vst [vmem:[#allocation2 + $0x40] sm:$0xf] %v2367
      %2746 = vst [vmem:[#allocation2 + $0x64] sm:$0xf] %v2377
      %2747 = vst [vmem:[#allocation2 + $0x88] sm:$0xf] %v2387
      %2748 = vst [vmem:[#allocation2 + $0xac] sm:$0xf] %v2397
      %2749 = vst [vmem:[#allocation2 + $0xd0] sm:$0xf] %v2407
      %2750 = vst [vmem:[#allocation2 + $0xf4] sm:$0xf] %v2417
      %2751 = vst [vmem:[#allocation2 + $0x118] sm:$0xf] %v2427
      %2752 = vst [vmem:[#allocation2 + $0x13c] sm:$0xf] %v2437
      %2753 = vst [vmem:[#allocation2 + $0x160] sm:$0xf] %v2447
      %2754 = vst [vmem:[#allocation2 + $0x184] sm:$0xf] %v2457
      %2755 = vst [vmem:[#allocation2 + $0x1a8] sm:$0xf] %v2467
      %2756 = vst [vmem:[#allocation2 + $0x1cc] sm:$0xf] %v2477
      %2757 = vst [vmem:[#allocation2 + $0x1f0] sm:$0xf] %v2487
      %2758 = vst [vmem:[#allocation2 + $0x214] sm:$0xf] %v2497
      %2759 = vst [vmem:[#allocation2 + $0x238] sm:$0xf] %v2507
      %2760 = vst [vmem:[#allocation2 + $0x25c] sm:$0xf] %v2517
      %2761 = vst [vmem:[#allocation2 + $0x280] sm:$0xf] %v2527
      %2762 = vst [vmem:[#allocation2 + $0x2a4] sm:$0xf] %v2537
      %2763 = vst [vmem:[#allocation2 + $0x2c8] sm:$0xf] %v2547
      %2764 = vst [vmem:[#allocation2 + $0x2ec] sm:$0xf] %v2557
      %2765 = vst [vmem:[#allocation2 + $0x310] sm:$0xf] %v2567
      %2766 = vst [vmem:[#allocation2 + $0x334] sm:$0xf] %v2577
      %2767 = vst [vmem:[#allocation2 + $0x358] sm:$0xf] %v2587
      %2768 = vst [vmem:[#allocation2 + $0x37c] sm:$0xf] %v2597
      %2769 = vst [vmem:[#allocation2 + $0x3a0] sm:$0xf] %v2607
      %2770 = vst [vmem:[#allocation2 + $0x3c4] sm:$0xf] %v2617
      %2771 = vst [vmem:[#allocation2 + $0x3e8] sm:$0xf] %v2627
      %2772 = vst [vmem:[#allocation2 + $0x40c] sm:$0xf] %v2637
      %2773 = vst [vmem:[#allocation2 + $0x430] sm:$0xf] %v2647
      %2774 = vst [vmem:[#allocation2 + $0x454] sm:$0xf] %v2657
      %2775 = vst [vmem:[#allocation2 + $0x478] sm:$0xf] %v2667
      %2776 = vst [vmem:[#allocation2 + $0x49c] sm:$0xf] %v2677
      %2777 = vst [vmem:[#allocation2 + $0x4c0] sm:$0xf] %v2687
      %2778 = vst [vmem:[#allocation2 + $0x4e4] sm:$0xf] %v2697
      %2779 = vst [vmem:[#allocation2 + $0x508] sm:$0xf] %v2707
      %v2780 = vld [vmem:[%s234 + $0x10] sm:$0x8]
      %v2781 = vld [vmem:[%s234 + $0x14] sm:$0xf]
      %v2782 = vld [vmem:[%s234 + $0x18] sm:$0xf]
      %v2783 = vld [vmem:[%s234 + $0x1c] sm:$0xf]
      %v2784 = vld [vmem:[%s234 + $0x20] sm:$0xf]
      %v2785 = vld [vmem:[%s234 + $0x24] sm:$0xf]
      %v2786 = vld [vmem:[%s234 + $0x28] sm:$0xf]
      %v2787 = vld [vmem:[%s234 + $0x2c] sm:$0xf]
      %v2788 = vld [vmem:[%s234 + $0x30] sm:$0xf]
      %v2789 = vld [vmem:[%s234 + $0x34] sm:$0xf]
      %v2790 = vld [vmem:[%s234 + $0x38] sm:$0xf]
      %v2791 = vld [vmem:[%s234 + $0x3c] sm:$0xf]
      %v2792 = vld [vmem:[%s234 + $0x40] sm:$0xf]
      %v2793 = vld [vmem:[%s234 + $0x44] sm:$0xf]
      %v2794 = vld [vmem:[%s234 + $0x48] sm:$0xf]
      %v2795 = vld [vmem:[%s234 + $0x4c] sm:$0xf]
      %v2796 = vld [vmem:[%s234 + $0x50] sm:$0xf]
      %v2797 = vld [vmem:[%s234 + $0x54] sm:$0xf]
      %v2798 = vld [vmem:[%s234 + $0x58] sm:$0xf]
      %v2799 = vld [vmem:[%s234 + $0x5c] sm:$0xf]
      %v2800 = vld [vmem:[%s234 + $0x60] sm:$0xf]
      %v2801 = vld [vmem:[%s234 + $0x64] sm:$0xf]
      %v2802 = vld [vmem:[%s234 + $0x68] sm:$0xf]
      %v2803 = vld [vmem:[%s234 + $0x6c] sm:$0xf]
      %v2804 = vld [vmem:[%s234 + $0x70] sm:$0xf]
      %v2805 = vld [vmem:[%s234 + $0x74] sm:$0xf]
      %v2806 = vld [vmem:[%s234 + $0x78] sm:$0xf]
      %v2807 = vld [vmem:[%s234 + $0x7c] sm:$0xf]
      %v2808 = vld [vmem:[%s234 + $0x80] sm:$0xf]
      %v2809 = vld [vmem:[%s234 + $0x84] sm:$0xf]
      %v2810 = vld [vmem:[%s234 + $0x88] sm:$0xf]
      %v2811 = vld [vmem:[%s234 + $0x8c] sm:$0xf]
      %v2812 = vld [vmem:[%s234 + $0x90] sm:$0xf]
      %v2813 = vld [vmem:[%s234 + $0x94] sm:$0xf]
      %v2814 = vld [vmem:[%s234 + $0x98] sm:$0xf]
      %v2815 = vld [vmem:[%s234 + $0x9c] sm:$0xf]
      %v2816 = vld [vmem:[%s234 + $0xa0] sm:$0x7]
      %vm2854 = vcmask 1040384
      %vm2855 = vcmask 1044484
      %vm2856 = vmor %vm2854, %vm2855
      %v2857 = vrot.slane %v2780, 7
      %v2858 = vrot.slane %v2857, 4
      %v2859 = vrot.slane %v2781, 7
      %v2860 = vsel %vm2856, %v2858, %v2859
      %v2861 = vrot.slane %v2859, 4
      %v2862 = vrot.slane %v2782, 7
      %v2863 = vsel %vm2856, %v2861, %v2862
      %v2864 = vrot.slane %v2862, 4
      %v2865 = vrot.slane %v2783, 7
      %v2866 = vsel %vm2856, %v2864, %v2865
      %v2867 = vrot.slane %v2865, 4
      %v2868 = vrot.slane %v2784, 7
      %v2869 = vsel %vm2856, %v2867, %v2868
      %v2870 = vrot.slane %v2868, 4
      %v2871 = vrot.slane %v2785, 7
      %v2872 = vsel %vm2856, %v2870, %v2871
      %v2873 = vrot.slane %v2871, 4
      %v2874 = vrot.slane %v2786, 7
      %v2875 = vsel %vm2856, %v2873, %v2874
      %v2876 = vrot.slane %v2874, 4
      %v2877 = vrot.slane %v2787, 7
      %v2878 = vsel %vm2856, %v2876, %v2877
      %v2879 = vrot.slane %v2877, 4
      %v2880 = vrot.slane %v2788, 7
      %v2881 = vsel %vm2856, %v2879, %v2880
      %v2882 = vrot.slane %v2880, 4
      %v2883 = vrot.slane %v2789, 7
      %v2884 = vsel %vm2856, %v2882, %v2883
      %v2885 = vrot.slane %v2883, 4
      %v2886 = vrot.slane %v2790, 7
      %v2887 = vsel %vm2856, %v2885, %v2886
      %v2888 = vrot.slane %v2886, 4
      %v2889 = vrot.slane %v2791, 7
      %v2890 = vsel %vm2856, %v2888, %v2889
      %v2891 = vrot.slane %v2889, 4
      %v2892 = vrot.slane %v2792, 7
      %v2893 = vsel %vm2856, %v2891, %v2892
      %v2894 = vrot.slane %v2892, 4
      %v2895 = vrot.slane %v2793, 7
      %v2896 = vsel %vm2856, %v2894, %v2895
      %v2897 = vrot.slane %v2895, 4
      %v2898 = vrot.slane %v2794, 7
      %v2899 = vsel %vm2856, %v2897, %v2898
      %v2900 = vrot.slane %v2898, 4
      %v2901 = vrot.slane %v2795, 7
      %v2902 = vsel %vm2856, %v2900, %v2901
      %v2903 = vrot.slane %v2901, 4
      %v2904 = vrot.slane %v2796, 7
      %v2905 = vsel %vm2856, %v2903, %v2904
      %v2906 = vrot.slane %v2904, 4
      %v2907 = vrot.slane %v2797, 7
      %v2908 = vsel %vm2856, %v2906, %v2907
      %v2909 = vrot.slane %v2907, 4
      %v2910 = vrot.slane %v2798, 7
      %v2911 = vsel %vm2856, %v2909, %v2910
      %v2912 = vrot.slane %v2910, 4
      %v2913 = vrot.slane %v2799, 7
      %v2914 = vsel %vm2856, %v2912, %v2913
      %v2915 = vrot.slane %v2913, 4
      %v2916 = vrot.slane %v2800, 7
      %v2917 = vsel %vm2856, %v2915, %v2916
      %v2918 = vrot.slane %v2916, 4
      %v2919 = vrot.slane %v2801, 7
      %v2920 = vsel %vm2856, %v2918, %v2919
      %v2921 = vrot.slane %v2919, 4
      %v2922 = vrot.slane %v2802, 7
      %v2923 = vsel %vm2856, %v2921, %v2922
      %v2924 = vrot.slane %v2922, 4
      %v2925 = vrot.slane %v2803, 7
      %v2926 = vsel %vm2856, %v2924, %v2925
      %v2927 = vrot.slane %v2925, 4
      %v2928 = vrot.slane %v2804, 7
      %v2929 = vsel %vm2856, %v2927, %v2928
      %v2930 = vrot.slane %v2928, 4
      %v2931 = vrot.slane %v2805, 7
      %v2932 = vsel %vm2856, %v2930, %v2931
      %v2933 = vrot.slane %v2931, 4
      %v2934 = vrot.slane %v2806, 7
      %v2935 = vsel %vm2856, %v2933, %v2934
      %v2936 = vrot.slane %v2934, 4
      %v2937 = vrot.slane %v2807, 7
      %v2938 = vsel %vm2856, %v2936, %v2937
      %v2939 = vrot.slane %v2937, 4
      %v2940 = vrot.slane %v2808, 7
      %v2941 = vsel %vm2856, %v2939, %v2940
      %v2942 = vrot.slane %v2940, 4
      %v2943 = vrot.slane %v2809, 7
      %v2944 = vsel %vm2856, %v2942, %v2943
      %v2945 = vrot.slane %v2943, 4
      %v2946 = vrot.slane %v2810, 7
      %v2947 = vsel %vm2856, %v2945, %v2946
      %v2948 = vrot.slane %v2946, 4
      %v2949 = vrot.slane %v2811, 7
      %v2950 = vsel %vm2856, %v2948, %v2949
      %v2951 = vrot.slane %v2949, 4
      %v2952 = vrot.slane %v2812, 7
      %v2953 = vsel %vm2856, %v2951, %v2952
      %v2954 = vrot.slane %v2952, 4
      %v2955 = vrot.slane %v2813, 7
      %v2956 = vsel %vm2856, %v2954, %v2955
      %v2957 = vrot.slane %v2955, 4
      %v2958 = vrot.slane %v2814, 7
      %v2959 = vsel %vm2856, %v2957, %v2958
      %v2960 = vrot.slane %v2958, 4
      %v2961 = vrot.slane %v2815, 7
      %v2962 = vsel %vm2856, %v2960, %v2961
      %v2963 = vrot.slane %v2961, 4
      %v2964 = vrot.slane %v2816, 7
      %v2965 = vsel %vm2856, %v2963, %v2964
      %3002 = vst [vmem:[#allocation2 + $0x20] sm:$0xf] %v2860
      %3003 = vst [vmem:[#allocation2 + $0x44] sm:$0xf] %v2863
      %3004 = vst [vmem:[#allocation2 + $0x68] sm:$0xf] %v2866
      %3005 = vst [vmem:[#allocation2 + $0x8c] sm:$0xf] %v2869
      %3006 = vst [vmem:[#allocation2 + $0xb0] sm:$0xf] %v2872
      %3007 = vst [vmem:[#allocation2 + $0xd4] sm:$0xf] %v2875
      %3008 = vst [vmem:[#allocation2 + $0xf8] sm:$0xf] %v2878
      %3009 = vst [vmem:[#allocation2 + $0x11c] sm:$0xf] %v2881
      %3010 = vst [vmem:[#allocation2 + $0x140] sm:$0xf] %v2884
      %3011 = vst [vmem:[#allocation2 + $0x164] sm:$0xf] %v2887
      %3012 = vst [vmem:[#allocation2 + $0x188] sm:$0xf] %v2890
      %3013 = vst [vmem:[#allocation2 + $0x1ac] sm:$0xf] %v2893
      %3014 = vst [vmem:[#allocation2 + $0x1d0] sm:$0xf] %v2896
      %3015 = vst [vmem:[#allocation2 + $0x1f4] sm:$0xf] %v2899
      %3016 = vst [vmem:[#allocation2 + $0x218] sm:$0xf] %v2902
      %3017 = vst [vmem:[#allocation2 + $0x23c] sm:$0xf] %v2905
      %3018 = vst [vmem:[#allocation2 + $0x260] sm:$0xf] %v2908
      %3019 = vst [vmem:[#allocation2 + $0x284] sm:$0xf] %v2911
      %3020 = vst [vmem:[#allocation2 + $0x2a8] sm:$0xf] %v2914
      %3021 = vst [vmem:[#allocation2 + $0x2cc] sm:$0xf] %v2917
      %3022 = vst [vmem:[#allocation2 + $0x2f0] sm:$0xf] %v2920
      %3023 = vst [vmem:[#allocation2 + $0x314] sm:$0xf] %v2923
      %3024 = vst [vmem:[#allocation2 + $0x338] sm:$0xf] %v2926
      %3025 = vst [vmem:[#allocation2 + $0x35c] sm:$0xf] %v2929
      %3026 = vst [vmem:[#allocation2 + $0x380] sm:$0xf] %v2932
      %3027 = vst [vmem:[#allocation2 + $0x3a4] sm:$0xf] %v2935
      %3028 = vst [vmem:[#allocation2 + $0x3c8] sm:$0xf] %v2938
      %3029 = vst [vmem:[#allocation2 + $0x3ec] sm:$0xf] %v2941
      %3030 = vst [vmem:[#allocation2 + $0x410] sm:$0xf] %v2944
      %3031 = vst [vmem:[#allocation2 + $0x434] sm:$0xf] %v2947
      %3032 = vst [vmem:[#allocation2 + $0x458] sm:$0xf] %v2950
      %3033 = vst [vmem:[#allocation2 + $0x47c] sm:$0xf] %v2953
      %3034 = vst [vmem:[#allocation2 + $0x4a0] sm:$0xf] %v2956
      %3035 = vst [vmem:[#allocation2 + $0x4c4] sm:$0xf] %v2959
      %3036 = vst [vmem:[#allocation2 + $0x4e8] sm:$0xf] %v2962
      %3037 = vst [vmem:[#allocation2 + $0x50c] sm:$0xf] %v2965
      %v3038 = vld [vmem:[#allocation2] sm:$0xff]
      %v3039 = vld [vmem:[#allocation2 + $0x8] sm:$0xff]
      %v3040 = vld [vmem:[#allocation2 + $0x10] sm:$0xff]
      %v3041 = vld [vmem:[#allocation2 + $0x18] sm:$0xff]
      %v3042 = vld [vmem:[#allocation2 + $0x20] sm:$0xf]
      %v3043 = vld [vmem:[#allocation2 + $0x24] sm:$0xff]
      %v3044 = vld [vmem:[#allocation2 + $0x2c] sm:$0xff]
      %v3045 = vld [vmem:[#allocation2 + $0x34] sm:$0xff]
      %v3046 = vld [vmem:[#allocation2 + $0x3c] sm:$0xff]
      %v3047 = vld [vmem:[#allocation2 + $0x44] sm:$0xf]
      %v3048 = vld [vmem:[#allocation2 + $0x48] sm:$0xff]
      %v3049 = vld [vmem:[#allocation2 + $0x50] sm:$0xff]
      %v3050 = vld [vmem:[#allocation2 + $0x58] sm:$0xff]
      %v3051 = vld [vmem:[#allocation2 + $0x60] sm:$0xff]
      %v3052 = vld [vmem:[#allocation2 + $0x68] sm:$0xf]
      %v3053 = vld [vmem:[#allocation2 + $0x6c] sm:$0xff]
      %v3054 = vld [vmem:[#allocation2 + $0x74] sm:$0xff]
      %v3055 = vld [vmem:[#allocation2 + $0x7c] sm:$0xff]
      %v3056 = vld [vmem:[#allocation2 + $0x84] sm:$0xff]
      %v3057 = vld [vmem:[#allocation2 + $0x8c] sm:$0xf]
      %v3058 = vld [vmem:[#allocation2 + $0x90] sm:$0xff]
      %v3059 = vld [vmem:[#allocation2 + $0x98] sm:$0xff]
      %v3060 = vld [vmem:[#allocation2 + $0xa0] sm:$0xff]
      %v3061 = vld [vmem:[#allocation2 + $0xa8] sm:$0xff]
      %v3062 = vld [vmem:[#allocation2 + $0xb0] sm:$0xf]
      %v3063 = vld [vmem:[#allocation2 + $0xb4] sm:$0xff]
      %v3064 = vld [vmem:[#allocation2 + $0xbc] sm:$0xff]
      %v3065 = vld [vmem:[#allocation2 + $0xc4] sm:$0xff]
      %v3066 = vld [vmem:[#allocation2 + $0xcc] sm:$0xff]
      %v3067 = vld [vmem:[#allocation2 + $0xd4] sm:$0xf]
      %v3068 = vld [vmem:[#allocation2 + $0xd8] sm:$0xff]
      %v3069 = vld [vmem:[#allocation2 + $0xe0] sm:$0xff]
      %v3070 = vld [vmem:[#allocation2 + $0xe8] sm:$0xff]
      %v3071 = vld [vmem:[#allocation2 + $0xf0] sm:$0xff]
      %v3072 = vld [vmem:[#allocation2 + $0xf8] sm:$0xf]
      %v3073 = vld [vmem:[#allocation2 + $0xfc] sm:$0xff]
      %v3074 = vld [vmem:[#allocation2 + $0x104] sm:$0xff]
      %v3075 = vld [vmem:[#allocation2 + $0x10c] sm:$0xff]
      %v3076 = vld [vmem:[#allocation2 + $0x114] sm:$0xff]
      %v3077 = vld [vmem:[#allocation2 + $0x11c] sm:$0xf]
      %v3078 = vld [vmem:[#allocation2 + $0x120] sm:$0xff]
      %v3079 = vld [vmem:[#allocation2 + $0x128] sm:$0xff]
      %v3080 = vld [vmem:[#allocation2 + $0x130] sm:$0xff]
      %v3081 = vld [vmem:[#allocation2 + $0x138] sm:$0xff]
      %v3082 = vld [vmem:[#allocation2 + $0x140] sm:$0xf]
      %v3083 = vld [vmem:[#allocation2 + $0x144] sm:$0xff]
      %v3084 = vld [vmem:[#allocation2 + $0x14c] sm:$0xff]
      %v3085 = vld [vmem:[#allocation2 + $0x154] sm:$0xff]
      %v3086 = vld [vmem:[#allocation2 + $0x15c] sm:$0xff]
      %v3087 = vld [vmem:[#allocation2 + $0x164] sm:$0xf]
      %v3088 = vld [vmem:[#allocation2 + $0x168] sm:$0xff]
      %v3089 = vld [vmem:[#allocation2 + $0x170] sm:$0xff]
      %v3090 = vld [vmem:[#allocation2 + $0x178] sm:$0xff]
      %v3091 = vld [vmem:[#allocation2 + $0x180] sm:$0xff]
      %v3092 = vld [vmem:[#allocation2 + $0x188] sm:$0xf]
      %v3093 = vld [vmem:[#allocation2 + $0x18c] sm:$0xff]
      %v3094 = vld [vmem:[#allocation2 + $0x194] sm:$0xff]
      %v3095 = vld [vmem:[#allocation2 + $0x19c] sm:$0xff]
      %v3096 = vld [vmem:[#allocation2 + $0x1a4] sm:$0xff]
      %v3097 = vld [vmem:[#allocation2 + $0x1ac] sm:$0xf]
      %v3098 = vld [vmem:[#allocation2 + $0x1b0] sm:$0xff]
      %v3099 = vld [vmem:[#allocation2 + $0x1b8] sm:$0xff]
      %v3100 = vld [vmem:[#allocation2 + $0x1c0] sm:$0xff]
      %v3101 = vld [vmem:[#allocation2 + $0x1c8] sm:$0xff]
      %v3102 = vld [vmem:[#allocation2 + $0x1d0] sm:$0xf]
      %v3103 = vld [vmem:[#allocation2 + $0x1d4] sm:$0xff]
      %v3104 = vld [vmem:[#allocation2 + $0x1dc] sm:$0xff]
      %v3105 = vld [vmem:[#allocation2 + $0x1e4] sm:$0xff]
      %v3106 = vld [vmem:[#allocation2 + $0x1ec] sm:$0xff]
      %v3107 = vld [vmem:[#allocation2 + $0x1f4] sm:$0xf]
      %v3108 = vld [vmem:[#allocation2 + $0x1f8] sm:$0xff]
      %v3109 = vld [vmem:[#allocation2 + $0x200] sm:$0xff]
      %v3110 = vld [vmem:[#allocation2 + $0x208] sm:$0xff]
      %v3111 = vld [vmem:[#allocation2 + $0x210] sm:$0xff]
      %v3112 = vld [vmem:[#allocation2 + $0x218] sm:$0xf]
      %v3113 = vld [vmem:[#allocation2 + $0x21c] sm:$0xff]
      %v3114 = vld [vmem:[#allocation2 + $0x224] sm:$0xff]
      %v3115 = vld [vmem:[#allocation2 + $0x22c] sm:$0xff]
      %v3116 = vld [vmem:[#allocation2 + $0x234] sm:$0xff]
      %v3117 = vld [vmem:[#allocation2 + $0x23c] sm:$0xf]
      %v3118 = vld [vmem:[#allocation2 + $0x240] sm:$0xff]
      %v3119 = vld [vmem:[#allocation2 + $0x248] sm:$0xff]
      %v3120 = vld [vmem:[#allocation2 + $0x250] sm:$0xff]
      %v3121 = vld [vmem:[#allocation2 + $0x258] sm:$0xff]
      %v3122 = vld [vmem:[#allocation2 + $0x260] sm:$0xf]
      %v3123 = vld [vmem:[#allocation2 + $0x264] sm:$0xff]
      %v3124 = vld [vmem:[#allocation2 + $0x26c] sm:$0xff]
      %v3125 = vld [vmem:[#allocation2 + $0x274] sm:$0xff]
      %v3126 = vld [vmem:[#allocation2 + $0x27c] sm:$0xff]
      %v3127 = vld [vmem:[#allocation2 + $0x284] sm:$0xf]
      %v3128 = vld [vmem:[#allocation2 + $0x288] sm:$0xff]
      %v3129 = vld [vmem:[#allocation2 + $0x290] sm:$0xff]
      %v3130 = vld [vmem:[#allocation2 + $0x298] sm:$0xff]
      %v3131 = vld [vmem:[#allocation2 + $0x2a0] sm:$0xff]
      %v3132 = vld [vmem:[#allocation2 + $0x2a8] sm:$0xf]
      %v3133 = vld [vmem:[#allocation2 + $0x2ac] sm:$0xff]
      %v3134 = vld [vmem:[#allocation2 + $0x2b4] sm:$0xff]
      %v3135 = vld [vmem:[#allocation2 + $0x2bc] sm:$0xff]
      %v3136 = vld [vmem:[#allocation2 + $0x2c4] sm:$0xff]
      %v3137 = vld [vmem:[#allocation2 + $0x2cc] sm:$0xf]
      %v3138 = vld [vmem:[#allocation2 + $0x2d0] sm:$0xff]
      %v3139 = vld [vmem:[#allocation2 + $0x2d8] sm:$0xff]
      %v3140 = vld [vmem:[#allocation2 + $0x2e0] sm:$0xff]
      %v3141 = vld [vmem:[#allocation2 + $0x2e8] sm:$0xff]
      %v3142 = vld [vmem:[#allocation2 + $0x2f0] sm:$0xf]
      %v3143 = vld [vmem:[#allocation2 + $0x2f4] sm:$0xff]
      %v3144 = vld [vmem:[#allocation2 + $0x2fc] sm:$0xff]
      %v3145 = vld [vmem:[#allocation2 + $0x304] sm:$0xff]
      %v3146 = vld [vmem:[#allocation2 + $0x30c] sm:$0xff]
      %v3147 = vld [vmem:[#allocation2 + $0x314] sm:$0xf]
      %v3148 = vld [vmem:[#allocation2 + $0x318] sm:$0xff]
      %v3149 = vld [vmem:[#allocation2 + $0x320] sm:$0xff]
      %v3150 = vld [vmem:[#allocation2 + $0x328] sm:$0xff]
      %v3151 = vld [vmem:[#allocation2 + $0x330] sm:$0xff]
      %v3152 = vld [vmem:[#allocation2 + $0x338] sm:$0xf]
      %v3153 = vld [vmem:[#allocation2 + $0x33c] sm:$0xff]
      %v3154 = vld [vmem:[#allocation2 + $0x344] sm:$0xff]
      %v3155 = vld [vmem:[#allocation2 + $0x34c] sm:$0xff]
      %v3156 = vld [vmem:[#allocation2 + $0x354] sm:$0xff]
      %v3157 = vld [vmem:[#allocation2 + $0x35c] sm:$0xf]
      %v3158 = vld [vmem:[#allocation2 + $0x360] sm:$0xff]
      %v3159 = vld [vmem:[#allocation2 + $0x368] sm:$0xff]
      %v3160 = vld [vmem:[#allocation2 + $0x370] sm:$0xff]
      %v3161 = vld [vmem:[#allocation2 + $0x378] sm:$0xff]
      %v3162 = vld [vmem:[#allocation2 + $0x380] sm:$0xf]
      %v3163 = vld [vmem:[#allocation2 + $0x384] sm:$0xff]
      %v3164 = vld [vmem:[#allocation2 + $0x38c] sm:$0xff]
      %v3165 = vld [vmem:[#allocation2 + $0x394] sm:$0xff]
      %v3166 = vld [vmem:[#allocation2 + $0x39c] sm:$0xff]
      %v3167 = vld [vmem:[#allocation2 + $0x3a4] sm:$0xf]
      %v3168 = vld [vmem:[#allocation2 + $0x3a8] sm:$0xff]
      %v3169 = vld [vmem:[#allocation2 + $0x3b0] sm:$0xff]
      %v3170 = vld [vmem:[#allocation2 + $0x3b8] sm:$0xff]
      %v3171 = vld [vmem:[#allocation2 + $0x3c0] sm:$0xff]
      %v3172 = vld [vmem:[#allocation2 + $0x3c8] sm:$0xf]
      %v3173 = vld [vmem:[#allocation2 + $0x3cc] sm:$0xff]
      %v3174 = vld [vmem:[#allocation2 + $0x3d4] sm:$0xff]
      %v3175 = vld [vmem:[#allocation2 + $0x3dc] sm:$0xff]
      %v3176 = vld [vmem:[#allocation2 + $0x3e4] sm:$0xff]
      %v3177 = vld [vmem:[#allocation2 + $0x3ec] sm:$0xf]
      %v3178 = vld [vmem:[#allocation2 + $0x3f0] sm:$0xff]
      %v3179 = vld [vmem:[#allocation2 + $0x3f8] sm:$0xff]
      %v3180 = vld [vmem:[#allocation2 + $0x400] sm:$0xff]
      %v3181 = vld [vmem:[#allocation2 + $0x408] sm:$0xff]
      %v3182 = vld [vmem:[#allocation2 + $0x410] sm:$0xf]
      %v3183 = vld [vmem:[#allocation2 + $0x414] sm:$0xff]
      %v3184 = vld [vmem:[#allocation2 + $0x41c] sm:$0xff]
      %v3185 = vld [vmem:[#allocation2 + $0x424] sm:$0xff]
      %v3186 = vld [vmem:[#allocation2 + $0x42c] sm:$0xff]
      %v3187 = vld [vmem:[#allocation2 + $0x434] sm:$0xf]
      %v3188 = vld [vmem:[#allocation2 + $0x438] sm:$0xff]
      %v3189 = vld [vmem:[#allocation2 + $0x440] sm:$0xff]
      %v3190 = vld [vmem:[#allocation2 + $0x448] sm:$0xff]
      %v3191 = vld [vmem:[#allocation2 + $0x450] sm:$0xff]
      %v3192 = vld [vmem:[#allocation2 + $0x458] sm:$0xf]
      %v3193 = vld [vmem:[#allocation2 + $0x45c] sm:$0xff]
      %v3194 = vld [vmem:[#allocation2 + $0x464] sm:$0xff]
      %v3195 = vld [vmem:[#allocation2 + $0x46c] sm:$0xff]
      %v3196 = vld [vmem:[#allocation2 + $0x474] sm:$0xff]
      %v3197 = vld [vmem:[#allocation2 + $0x47c] sm:$0xf]
      %v3198 = vld [vmem:[#allocation2 + $0x480] sm:$0xff]
      %v3199 = vld [vmem:[#allocation2 + $0x488] sm:$0xff]
      %v3200 = vld [vmem:[#allocation2 + $0x490] sm:$0xff]
      %v3201 = vld [vmem:[#allocation2 + $0x498] sm:$0xff]
      %v3202 = vld [vmem:[#allocation2 + $0x4a0] sm:$0xf]
      %v3203 = vld [vmem:[#allocation2 + $0x4a4] sm:$0xff]
      %v3204 = vld [vmem:[#allocation2 + $0x4ac] sm:$0xff]
      %v3205 = vld [vmem:[#allocation2 + $0x4b4] sm:$0xff]
      %v3206 = vld [vmem:[#allocation2 + $0x4bc] sm:$0xff]
      %v3207 = vld [vmem:[#allocation2 + $0x4c4] sm:$0xf]
      %v3208 = vld [vmem:[#allocation2 + $0x4c8] sm:$0xff]
      %v3209 = vld [vmem:[#allocation2 + $0x4d0] sm:$0xff]
      %v3210 = vld [vmem:[#allocation2 + $0x4d8] sm:$0xff]
      %v3211 = vld [vmem:[#allocation2 + $0x4e0] sm:$0xff]
      %v3212 = vld [vmem:[#allocation2 + $0x4e8] sm:$0xf]
      %v3213 = vld [vmem:[#allocation2 + $0x4ec] sm:$0xff]
      %v3214 = vld [vmem:[#allocation2 + $0x4f4] sm:$0xff]
      %v3215 = vld [vmem:[#allocation2 + $0x4fc] sm:$0xff]
      %v3216 = vld [vmem:[#allocation2 + $0x504] sm:$0xff]
      %v3217 = vld [vmem:[#allocation2 + $0x50c] sm:$0xf]
      %v3218 = vld [vmem:[%s1] sm:$0xf]
      %v3219 = vld [vmem:[%s1 + $0x4] sm:$0xf]
      %v3220 = vld [vmem:[%s1 + $0x8] sm:$0xf]
      %v3221 = vld [vmem:[%s1 + $0xc] sm:$0xf]
      %v3222 = vld [vmem:[%s1 + $0x10] sm:$0xf]
      %v3223 = vld [vmem:[%s1 + $0x14] sm:$0xf]
      %v3224 = vld [vmem:[%s1 + $0x18] sm:$0xf]
      %v3225 = vld [vmem:[%s1 + $0x1c] sm:$0xf]
      %v3226 = vld [vmem:[%s1 + $0x20] sm:$0xf]
      %v3227 = vld [vmem:[%s1 + $0x24] sm:$0xf]
      %v3228 = vld [vmem:[%s1 + $0x28] sm:$0xf]
      %v3229 = vld [vmem:[%s1 + $0x2c] sm:$0xf]
      %v3230 = vld [vmem:[%s1 + $0x30] sm:$0xf]
      %v3231 = vld [vmem:[%s1 + $0x34] sm:$0xf]
      %v3232 = vld [vmem:[%s1 + $0x38] sm:$0xf]
      %v3233 = vld [vmem:[%s1 + $0x3c] sm:$0xf]
      %v3234 = vld [vmem:[%s1 + $0x40] sm:$0xf]
      %v3235 = vld [vmem:[%s1 + $0x44] sm:$0xf]
      %v3236 = vld [vmem:[%s1 + $0x48] sm:$0xf]
      %v3237 = vld [vmem:[%s1 + $0x4c] sm:$0xf]
      %v3238 = vld [vmem:[%s1 + $0x50] sm:$0xf]
      %v3239 = vld [vmem:[%s1 + $0x54] sm:$0xf]
      %v3240 = vld [vmem:[%s1 + $0x58] sm:$0xf]
      %v3241 = vld [vmem:[%s1 + $0x5c] sm:$0xf]
      %v3242 = vld [vmem:[%s1 + $0x60] sm:$0xf]
      %v3243 = vld [vmem:[%s1 + $0x64] sm:$0xf]
      %v3244 = vld [vmem:[%s1 + $0x68] sm:$0xf]
      %v3245 = vld [vmem:[%s1 + $0x6c] sm:$0xf]
      %v3246 = vld [vmem:[%s1 + $0x70] sm:$0xf]
      %v3247 = vld [vmem:[%s1 + $0x74] sm:$0xf]
      %v3248 = vld [vmem:[%s1 + $0x78] sm:$0xf]
      %v3249 = vld [vmem:[%s1 + $0x7c] sm:$0xf]
      %v3250 = vld [vmem:[%s1 + $0x80] sm:$0xf]
      %v3251 = vld [vmem:[%s1 + $0x84] sm:$0xf]
      %v3252 = vld [vmem:[%s1 + $0x88] sm:$0xf]
      %v3253 = vld [vmem:[%s1 + $0x8c] sm:$0xf]
      %v3254 = vld [vmem:[%s1 + $0x90] sm:$0xf]
      %v3255 = vld [vmem:[%s1 + $0x94] sm:$0xf]
      %v3256 = vld [vmem:[%s1 + $0x98] sm:$0xf]
      %v3257 = vld [vmem:[%s1 + $0x9c] sm:$0xf]
      %v3258 = vld [vmem:[%s1 + $0xa0] sm:$0xf]
      %v3259 = vld [vmem:[%s1 + $0xa4] sm:$0xf]
      %v3260 = vld [vmem:[%s1 + $0xa8] sm:$0xf]
      %v3261 = vld [vmem:[%s1 + $0xac] sm:$0xf]
      %v3262 = vld [vmem:[%s1 + $0xb0] sm:$0xf]
      %v3263 = vld [vmem:[%s1 + $0xb4] sm:$0xf]
      %v3264 = vld [vmem:[%s1 + $0xb8] sm:$0xf]
      %v3265 = vld [vmem:[%s1 + $0xbc] sm:$0xf]
      %v3266 = vld [vmem:[%s1 + $0xc0] sm:$0xf]
      %v3267 = vld [vmem:[%s1 + $0xc4] sm:$0xf]
      %v3268 = vld [vmem:[%s1 + $0xc8] sm:$0xf]
      %v3269 = vld [vmem:[%s1 + $0xcc] sm:$0xf]
      %v3270 = vld [vmem:[%s1 + $0xd0] sm:$0xf]
      %v3271 = vld [vmem:[%s1 + $0xd4] sm:$0xf]
      %v3272 = vld [vmem:[%s1 + $0xd8] sm:$0xf]
      %v3273 = vld [vmem:[%s1 + $0xdc] sm:$0xf]
      %v3274 = vld [vmem:[%s1 + $0xe0] sm:$0xf]
      %v3275 = vld [vmem:[%s1 + $0xe4] sm:$0xf]
      %v3276 = vld [vmem:[%s1 + $0xe8] sm:$0xf]
      %v3277 = vld [vmem:[%s1 + $0xec] sm:$0xf]
      %v3278 = vld [vmem:[%s1 + $0xf0] sm:$0xf]
      %v3279 = vld [vmem:[%s1 + $0xf4] sm:$0xf]
      %v3280 = vld [vmem:[%s1 + $0xf8] sm:$0xf]
      %v3281 = vld [vmem:[%s1 + $0xfc] sm:$0xf]
      %v3282 = vld [vmem:[%s1 + $0x100] sm:$0xf]
      %v3283 = vld [vmem:[%s1 + $0x104] sm:$0xf]
      %v3284 = vld [vmem:[%s1 + $0x108] sm:$0xf]
      %v3285 = vld [vmem:[%s1 + $0x10c] sm:$0xf]
      %v3286 = vld [vmem:[%s1 + $0x110] sm:$0xf]
      %v3287 = vld [vmem:[%s1 + $0x114] sm:$0xf]
      %v3288 = vld [vmem:[%s1 + $0x118] sm:$0xf]
      %v3289 = vld [vmem:[%s1 + $0x11c] sm:$0xf]
      %v3290 = vld [vmem:[%s1 + $0x120] sm:$0xf]
      %v3291 = vld [vmem:[%s1 + $0x124] sm:$0xf]
      %v3292 = vld [vmem:[%s1 + $0x128] sm:$0xf]
      %v3293 = vld [vmem:[%s1 + $0x12c] sm:$0xf]
      %v3294 = vld [vmem:[%s1 + $0x130] sm:$0xf]
      %v3295 = vld [vmem:[%s1 + $0x134] sm:$0xf]
      %v3296 = vld [vmem:[%s1 + $0x138] sm:$0xf]
      %v3297 = vld [vmem:[%s1 + $0x13c] sm:$0xf]
      %v3298 = vld [vmem:[%s1 + $0x140] sm:$0xf]
      %v3299 = vld [vmem:[%s1 + $0x144] sm:$0xf]
      %v3300 = vld [vmem:[%s1 + $0x148] sm:$0xf]
      %v3301 = vld [vmem:[%s1 + $0x14c] sm:$0xf]
      %v3302 = vld [vmem:[%s1 + $0x150] sm:$0xf]
      %v3303 = vld [vmem:[%s1 + $0x154] sm:$0xf]
      %v3304 = vld [vmem:[%s1 + $0x158] sm:$0xf]
      %v3305 = vld [vmem:[%s1 + $0x15c] sm:$0xf]
      %v3306 = vld [vmem:[%s1 + $0x160] sm:$0xf]
      %v3307 = vld [vmem:[%s1 + $0x164] sm:$0xf]
      %v3308 = vld [vmem:[%s1 + $0x168] sm:$0xf]
      %v3309 = vld [vmem:[%s1 + $0x16c] sm:$0xf]
      %v3310 = vld [vmem:[%s1 + $0x170] sm:$0xf]
      %v3311 = vld [vmem:[%s1 + $0x174] sm:$0xf]
      %v3312 = vld [vmem:[%s1 + $0x178] sm:$0xf]
      %v3313 = vld [vmem:[%s1 + $0x17c] sm:$0xf]
      %v3314 = vld [vmem:[%s1 + $0x180] sm:$0xf]
      %v3315 = vld [vmem:[%s1 + $0x184] sm:$0xf]
      %v3316 = vld [vmem:[%s1 + $0x188] sm:$0xf]
      %v3317 = vld [vmem:[%s1 + $0x18c] sm:$0xf]
      %v3318 = vld [vmem:[%s1 + $0x190] sm:$0xf]
      %v3319 = vld [vmem:[%s1 + $0x194] sm:$0xf]
      %v3320 = vld [vmem:[%s1 + $0x198] sm:$0xf]
      %v3321 = vld [vmem:[%s1 + $0x19c] sm:$0xf]
      %v3322 = vld [vmem:[%s1 + $0x1a0] sm:$0xf]
      %v3323 = vld [vmem:[%s1 + $0x1a4] sm:$0xf]
      %v3324 = vld [vmem:[%s1 + $0x1a8] sm:$0xf]
      %v3325 = vld [vmem:[%s1 + $0x1ac] sm:$0xf]
      %v3326 = vld [vmem:[%s1 + $0x1b0] sm:$0xf]
      %v3327 = vld [vmem:[%s1 + $0x1b4] sm:$0xf]
      %v3328 = vld [vmem:[%s1 + $0x1b8] sm:$0xf]
      %v3329 = vld [vmem:[%s1 + $0x1bc] sm:$0xf]
      %v3330 = vld [vmem:[%s1 + $0x1c0] sm:$0xf]
      %v3331 = vld [vmem:[%s1 + $0x1c4] sm:$0xf]
      %v3332 = vld [vmem:[%s1 + $0x1c8] sm:$0xf]
      %v3333 = vld [vmem:[%s1 + $0x1cc] sm:$0xf]
      %v3334 = vld [vmem:[%s1 + $0x1d0] sm:$0xf]
      %v3335 = vld [vmem:[%s1 + $0x1d4] sm:$0xf]
      %v3336 = vld [vmem:[%s1 + $0x1d8] sm:$0xf]
      %v3337 = vld [vmem:[%s1 + $0x1dc] sm:$0xf]
      %v3338 = vld [vmem:[%s1 + $0x1e0] sm:$0xf]
      %v3339 = vld [vmem:[%s1 + $0x1e4] sm:$0xf]
      %v3340 = vld [vmem:[%s1 + $0x1e8] sm:$0xf]
      %v3341 = vld [vmem:[%s1 + $0x1ec] sm:$0xf]
      %v3342 = vld [vmem:[%s1 + $0x1f0] sm:$0xf]
      %v3343 = vld [vmem:[%s1 + $0x1f4] sm:$0xf]
      %v3344 = vld [vmem:[%s1 + $0x1f8] sm:$0xf]
      %v3345 = vld [vmem:[%s1 + $0x1fc] sm:$0xf]
      %v3346 = vld [vmem:[%s1 + $0x200] sm:$0xf]
      %v3347 = vld [vmem:[%s1 + $0x204] sm:$0xf]
      %v3348 = vld [vmem:[%s1 + $0x208] sm:$0xf]
      %v3349 = vld [vmem:[%s1 + $0x20c] sm:$0xf]
      %v3350 = vld [vmem:[%s1 + $0x210] sm:$0xf]
      %v3351 = vld [vmem:[%s1 + $0x214] sm:$0xf]
      %v3352 = vld [vmem:[%s1 + $0x218] sm:$0xf]
      %v3353 = vld [vmem:[%s1 + $0x21c] sm:$0xf]
      %v3354 = vld [vmem:[%s1 + $0x220] sm:$0xf]
      %v3355 = vld [vmem:[%s1 + $0x224] sm:$0xf]
      %v3356 = vld [vmem:[%s1 + $0x228] sm:$0xf]
      %v3357 = vld [vmem:[%s1 + $0x22c] sm:$0xf]
      %v3358 = vld [vmem:[%s1 + $0x230] sm:$0xf]
      %v3359 = vld [vmem:[%s1 + $0x234] sm:$0xf]
      %v3360 = vld [vmem:[%s1 + $0x238] sm:$0xf]
      %v3361 = vld [vmem:[%s1 + $0x23c] sm:$0xf]
      %v3542 = vunpack.c.l.b16 %v3038
      %v3543 = vunpack.c.h.b16 %v3038
      %v3544 = vunpack.c.l.b16 %v3039
      %v3545 = vunpack.c.h.b16 %v3039
      %v3546 = vunpack.c.l.b16 %v3040
      %v3547 = vunpack.c.h.b16 %v3040
      %v3548 = vunpack.c.l.b16 %v3041
      %v3549 = vunpack.c.h.b16 %v3041
      %v3550 = vunpack.c.l.b16 %v3042
      %v3551 = vunpack.c.l.b16 %v3043
      %v3552 = vunpack.c.h.b16 %v3043
      %v3553 = vunpack.c.l.b16 %v3044
      %v3554 = vunpack.c.h.b16 %v3044
      %v3555 = vunpack.c.l.b16 %v3045
      %v3556 = vunpack.c.h.b16 %v3045
      %v3557 = vunpack.c.l.b16 %v3046
      %v3558 = vunpack.c.h.b16 %v3046
      %v3559 = vunpack.c.l.b16 %v3047
      %v3560 = vunpack.c.l.b16 %v3048
      %v3561 = vunpack.c.h.b16 %v3048
      %v3562 = vunpack.c.l.b16 %v3049
      %v3563 = vunpack.c.h.b16 %v3049
      %v3564 = vunpack.c.l.b16 %v3050
      %v3565 = vunpack.c.h.b16 %v3050
      %v3566 = vunpack.c.l.b16 %v3051
      %v3567 = vunpack.c.h.b16 %v3051
      %v3568 = vunpack.c.l.b16 %v3052
      %v3569 = vunpack.c.l.b16 %v3053
      %v3570 = vunpack.c.h.b16 %v3053
      %v3571 = vunpack.c.l.b16 %v3054
      %v3572 = vunpack.c.h.b16 %v3054
      %v3573 = vunpack.c.l.b16 %v3055
      %v3574 = vunpack.c.h.b16 %v3055
      %v3575 = vunpack.c.l.b16 %v3056
      %v3576 = vunpack.c.h.b16 %v3056
      %v3577 = vunpack.c.l.b16 %v3057
      %v3578 = vunpack.c.l.b16 %v3058
      %v3579 = vunpack.c.h.b16 %v3058
      %v3580 = vunpack.c.l.b16 %v3059
      %v3581 = vunpack.c.h.b16 %v3059
      %v3582 = vunpack.c.l.b16 %v3060
      %v3583 = vunpack.c.h.b16 %v3060
      %v3584 = vunpack.c.l.b16 %v3061
      %v3585 = vunpack.c.h.b16 %v3061
      %v3586 = vunpack.c.l.b16 %v3062
      %v3587 = vunpack.c.l.b16 %v3063
      %v3588 = vunpack.c.h.b16 %v3063
      %v3589 = vunpack.c.l.b16 %v3064
      %v3590 = vunpack.c.h.b16 %v3064
      %v3591 = vunpack.c.l.b16 %v3065
      %v3592 = vunpack.c.h.b16 %v3065
      %v3593 = vunpack.c.l.b16 %v3066
      %v3594 = vunpack.c.h.b16 %v3066
      %v3595 = vunpack.c.l.b16 %v3067
      %v3596 = vunpack.c.l.b16 %v3068
      %v3597 = vunpack.c.h.b16 %v3068
      %v3598 = vunpack.c.l.b16 %v3069
      %v3599 = vunpack.c.h.b16 %v3069
      %v3600 = vunpack.c.l.b16 %v3070
      %v3601 = vunpack.c.h.b16 %v3070
      %v3602 = vunpack.c.l.b16 %v3071
      %v3603 = vunpack.c.h.b16 %v3071
      %v3604 = vunpack.c.l.b16 %v3072
      %v3605 = vunpack.c.l.b16 %v3073
      %v3606 = vunpack.c.h.b16 %v3073
      %v3607 = vunpack.c.l.b16 %v3074
      %v3608 = vunpack.c.h.b16 %v3074
      %v3609 = vunpack.c.l.b16 %v3075
      %v3610 = vunpack.c.h.b16 %v3075
      %v3611 = vunpack.c.l.b16 %v3076
      %v3612 = vunpack.c.h.b16 %v3076
      %v3613 = vunpack.c.l.b16 %v3077
      %v3614 = vunpack.c.l.b16 %v3078
      %v3615 = vunpack.c.h.b16 %v3078
      %v3616 = vunpack.c.l.b16 %v3079
      %v3617 = vunpack.c.h.b16 %v3079
      %v3618 = vunpack.c.l.b16 %v3080
      %v3619 = vunpack.c.h.b16 %v3080
      %v3620 = vunpack.c.l.b16 %v3081
      %v3621 = vunpack.c.h.b16 %v3081
      %v3622 = vunpack.c.l.b16 %v3082
      %v3623 = vunpack.c.l.b16 %v3083
      %v3624 = vunpack.c.h.b16 %v3083
      %v3625 = vunpack.c.l.b16 %v3084
      %v3626 = vunpack.c.h.b16 %v3084
      %v3627 = vunpack.c.l.b16 %v3085
      %v3628 = vunpack.c.h.b16 %v3085
      %v3629 = vunpack.c.l.b16 %v3086
      %v3630 = vunpack.c.h.b16 %v3086
      %v3631 = vunpack.c.l.b16 %v3087
      %v3632 = vunpack.c.l.b16 %v3088
      %v3633 = vunpack.c.h.b16 %v3088
      %v3634 = vunpack.c.l.b16 %v3089
      %v3635 = vunpack.c.h.b16 %v3089
      %v3636 = vunpack.c.l.b16 %v3090
      %v3637 = vunpack.c.h.b16 %v3090
      %v3638 = vunpack.c.l.b16 %v3091
      %v3639 = vunpack.c.h.b16 %v3091
      %v3640 = vunpack.c.l.b16 %v3092
      %v3641 = vunpack.c.l.b16 %v3093
      %v3642 = vunpack.c.h.b16 %v3093
      %v3643 = vunpack.c.l.b16 %v3094
      %v3644 = vunpack.c.h.b16 %v3094
      %v3645 = vunpack.c.l.b16 %v3095
      %v3646 = vunpack.c.h.b16 %v3095
      %v3647 = vunpack.c.l.b16 %v3096
      %v3648 = vunpack.c.h.b16 %v3096
      %v3649 = vunpack.c.l.b16 %v3097
      %v3650 = vunpack.c.l.b16 %v3098
      %v3651 = vunpack.c.h.b16 %v3098
      %v3652 = vunpack.c.l.b16 %v3099
      %v3653 = vunpack.c.h.b16 %v3099
      %v3654 = vunpack.c.l.b16 %v3100
      %v3655 = vunpack.c.h.b16 %v3100
      %v3656 = vunpack.c.l.b16 %v3101
      %v3657 = vunpack.c.h.b16 %v3101
      %v3658 = vunpack.c.l.b16 %v3102
      %v3659 = vunpack.c.l.b16 %v3103
      %v3660 = vunpack.c.h.b16 %v3103
      %v3661 = vunpack.c.l.b16 %v3104
      %v3662 = vunpack.c.h.b16 %v3104
      %v3663 = vunpack.c.l.b16 %v3105
      %v3664 = vunpack.c.h.b16 %v3105
      %v3665 = vunpack.c.l.b16 %v3106
      %v3666 = vunpack.c.h.b16 %v3106
      %v3667 = vunpack.c.l.b16 %v3107
      %v3668 = vunpack.c.l.b16 %v3108
      %v3669 = vunpack.c.h.b16 %v3108
      %v3670 = vunpack.c.l.b16 %v3109
      %v3671 = vunpack.c.h.b16 %v3109
      %v3672 = vunpack.c.l.b16 %v3110
      %v3673 = vunpack.c.h.b16 %v3110
      %v3674 = vunpack.c.l.b16 %v3111
      %v3675 = vunpack.c.h.b16 %v3111
      %v3676 = vunpack.c.l.b16 %v3112
      %v3677 = vunpack.c.l.b16 %v3113
      %v3678 = vunpack.c.h.b16 %v3113
      %v3679 = vunpack.c.l.b16 %v3114
      %v3680 = vunpack.c.h.b16 %v3114
      %v3681 = vunpack.c.l.b16 %v3115
      %v3682 = vunpack.c.h.b16 %v3115
      %v3683 = vunpack.c.l.b16 %v3116
      %v3684 = vunpack.c.h.b16 %v3116
      %v3685 = vunpack.c.l.b16 %v3117
      %v3686 = vunpack.c.l.b16 %v3118
      %v3687 = vunpack.c.h.b16 %v3118
      %v3688 = vunpack.c.l.b16 %v3119
      %v3689 = vunpack.c.h.b16 %v3119
      %v3690 = vunpack.c.l.b16 %v3120
      %v3691 = vunpack.c.h.b16 %v3120
      %v3692 = vunpack.c.l.b16 %v3121
      %v3693 = vunpack.c.h.b16 %v3121
      %v3694 = vunpack.c.l.b16 %v3122
      %v3695 = vunpack.c.l.b16 %v3123
      %v3696 = vunpack.c.h.b16 %v3123
      %v3697 = vunpack.c.l.b16 %v3124
      %v3698 = vunpack.c.h.b16 %v3124
      %v3699 = vunpack.c.l.b16 %v3125
      %v3700 = vunpack.c.h.b16 %v3125
      %v3701 = vunpack.c.l.b16 %v3126
      %v3702 = vunpack.c.h.b16 %v3126
      %v3703 = vunpack.c.l.b16 %v3127
      %v3704 = vunpack.c.l.b16 %v3128
      %v3705 = vunpack.c.h.b16 %v3128
      %v3706 = vunpack.c.l.b16 %v3129
      %v3707 = vunpack.c.h.b16 %v3129
      %v3708 = vunpack.c.l.b16 %v3130
      %v3709 = vunpack.c.h.b16 %v3130
      %v3710 = vunpack.c.l.b16 %v3131
      %v3711 = vunpack.c.h.b16 %v3131
      %v3712 = vunpack.c.l.b16 %v3132
      %v3713 = vunpack.c.l.b16 %v3133
      %v3714 = vunpack.c.h.b16 %v3133
      %v3715 = vunpack.c.l.b16 %v3134
      %v3716 = vunpack.c.h.b16 %v3134
      %v3717 = vunpack.c.l.b16 %v3135
      %v3718 = vunpack.c.h.b16 %v3135
      %v3719 = vunpack.c.l.b16 %v3136
      %v3720 = vunpack.c.h.b16 %v3136
      %v3721 = vunpack.c.l.b16 %v3137
      %v3722 = vunpack.c.l.b16 %v3138
      %v3723 = vunpack.c.h.b16 %v3138
      %v3724 = vunpack.c.l.b16 %v3139
      %v3725 = vunpack.c.h.b16 %v3139
      %v3726 = vunpack.c.l.b16 %v3140
      %v3727 = vunpack.c.h.b16 %v3140
      %v3728 = vunpack.c.l.b16 %v3141
      %v3729 = vunpack.c.h.b16 %v3141
      %v3730 = vunpack.c.l.b16 %v3142
      %v3731 = vunpack.c.l.b16 %v3143
      %v3732 = vunpack.c.h.b16 %v3143
      %v3733 = vunpack.c.l.b16 %v3144
      %v3734 = vunpack.c.h.b16 %v3144
      %v3735 = vunpack.c.l.b16 %v3145
      %v3736 = vunpack.c.h.b16 %v3145
      %v3737 = vunpack.c.l.b16 %v3146
      %v3738 = vunpack.c.h.b16 %v3146
      %v3739 = vunpack.c.l.b16 %v3147
      %v3740 = vunpack.c.l.b16 %v3148
      %v3741 = vunpack.c.h.b16 %v3148
      %v3742 = vunpack.c.l.b16 %v3149
      %v3743 = vunpack.c.h.b16 %v3149
      %v3744 = vunpack.c.l.b16 %v3150
      %v3745 = vunpack.c.h.b16 %v3150
      %v3746 = vunpack.c.l.b16 %v3151
      %v3747 = vunpack.c.h.b16 %v3151
      %v3748 = vunpack.c.l.b16 %v3152
      %v3749 = vunpack.c.l.b16 %v3153
      %v3750 = vunpack.c.h.b16 %v3153
      %v3751 = vunpack.c.l.b16 %v3154
      %v3752 = vunpack.c.h.b16 %v3154
      %v3753 = vunpack.c.l.b16 %v3155
      %v3754 = vunpack.c.h.b16 %v3155
      %v3755 = vunpack.c.l.b16 %v3156
      %v3756 = vunpack.c.h.b16 %v3156
      %v3757 = vunpack.c.l.b16 %v3157
      %v3758 = vunpack.c.l.b16 %v3158
      %v3759 = vunpack.c.h.b16 %v3158
      %v3760 = vunpack.c.l.b16 %v3159
      %v3761 = vunpack.c.h.b16 %v3159
      %v3762 = vunpack.c.l.b16 %v3160
      %v3763 = vunpack.c.h.b16 %v3160
      %v3764 = vunpack.c.l.b16 %v3161
      %v3765 = vunpack.c.h.b16 %v3161
      %v3766 = vunpack.c.l.b16 %v3162
      %v3767 = vunpack.c.l.b16 %v3163
      %v3768 = vunpack.c.h.b16 %v3163
      %v3769 = vunpack.c.l.b16 %v3164
      %v3770 = vunpack.c.h.b16 %v3164
      %v3771 = vunpack.c.l.b16 %v3165
      %v3772 = vunpack.c.h.b16 %v3165
      %v3773 = vunpack.c.l.b16 %v3166
      %v3774 = vunpack.c.h.b16 %v3166
      %v3775 = vunpack.c.l.b16 %v3167
      %v3776 = vunpack.c.l.b16 %v3168
      %v3777 = vunpack.c.h.b16 %v3168
      %v3778 = vunpack.c.l.b16 %v3169
      %v3779 = vunpack.c.h.b16 %v3169
      %v3780 = vunpack.c.l.b16 %v3170
      %v3781 = vunpack.c.h.b16 %v3170
      %v3782 = vunpack.c.l.b16 %v3171
      %v3783 = vunpack.c.h.b16 %v3171
      %v3784 = vunpack.c.l.b16 %v3172
      %v3785 = vunpack.c.l.b16 %v3173
      %v3786 = vunpack.c.h.b16 %v3173
      %v3787 = vunpack.c.l.b16 %v3174
      %v3788 = vunpack.c.h.b16 %v3174
      %v3789 = vunpack.c.l.b16 %v3175
      %v3790 = vunpack.c.h.b16 %v3175
      %v3791 = vunpack.c.l.b16 %v3176
      %v3792 = vunpack.c.h.b16 %v3176
      %v3793 = vunpack.c.l.b16 %v3177
      %v3794 = vunpack.c.l.b16 %v3178
      %v3795 = vunpack.c.h.b16 %v3178
      %v3796 = vunpack.c.l.b16 %v3179
      %v3797 = vunpack.c.h.b16 %v3179
      %v3798 = vunpack.c.l.b16 %v3180
      %v3799 = vunpack.c.h.b16 %v3180
      %v3800 = vunpack.c.l.b16 %v3181
      %v3801 = vunpack.c.h.b16 %v3181
      %v3802 = vunpack.c.l.b16 %v3182
      %v3803 = vunpack.c.l.b16 %v3183
      %v3804 = vunpack.c.h.b16 %v3183
      %v3805 = vunpack.c.l.b16 %v3184
      %v3806 = vunpack.c.h.b16 %v3184
      %v3807 = vunpack.c.l.b16 %v3185
      %v3808 = vunpack.c.h.b16 %v3185
      %v3809 = vunpack.c.l.b16 %v3186
      %v3810 = vunpack.c.h.b16 %v3186
      %v3811 = vunpack.c.l.b16 %v3187
      %v3812 = vunpack.c.l.b16 %v3188
      %v3813 = vunpack.c.h.b16 %v3188
      %v3814 = vunpack.c.l.b16 %v3189
      %v3815 = vunpack.c.h.b16 %v3189
      %v3816 = vunpack.c.l.b16 %v3190
      %v3817 = vunpack.c.h.b16 %v3190
      %v3818 = vunpack.c.l.b16 %v3191
      %v3819 = vunpack.c.h.b16 %v3191
      %v3820 = vunpack.c.l.b16 %v3192
      %v3821 = vunpack.c.l.b16 %v3193
      %v3822 = vunpack.c.h.b16 %v3193
      %v3823 = vunpack.c.l.b16 %v3194
      %v3824 = vunpack.c.h.b16 %v3194
      %v3825 = vunpack.c.l.b16 %v3195
      %v3826 = vunpack.c.h.b16 %v3195
      %v3827 = vunpack.c.l.b16 %v3196
      %v3828 = vunpack.c.h.b16 %v3196
      %v3829 = vunpack.c.l.b16 %v3197
      %v3830 = vunpack.c.l.b16 %v3198
      %v3831 = vunpack.c.h.b16 %v3198
      %v3832 = vunpack.c.l.b16 %v3199
      %v3833 = vunpack.c.h.b16 %v3199
      %v3834 = vunpack.c.l.b16 %v3200
      %v3835 = vunpack.c.h.b16 %v3200
      %v3836 = vunpack.c.l.b16 %v3201
      %v3837 = vunpack.c.h.b16 %v3201
      %v3838 = vunpack.c.l.b16 %v3202
      %v3839 = vunpack.c.l.b16 %v3203
      %v3840 = vunpack.c.h.b16 %v3203
      %v3841 = vunpack.c.l.b16 %v3204
      %v3842 = vunpack.c.h.b16 %v3204
      %v3843 = vunpack.c.l.b16 %v3205
      %v3844 = vunpack.c.h.b16 %v3205
      %v3845 = vunpack.c.l.b16 %v3206
      %v3846 = vunpack.c.h.b16 %v3206
      %v3847 = vunpack.c.l.b16 %v3207
      %v3848 = vunpack.c.l.b16 %v3208
      %v3849 = vunpack.c.h.b16 %v3208
      %v3850 = vunpack.c.l.b16 %v3209
      %v3851 = vunpack.c.h.b16 %v3209
      %v3852 = vunpack.c.l.b16 %v3210
      %v3853 = vunpack.c.h.b16 %v3210
      %v3854 = vunpack.c.l.b16 %v3211
      %v3855 = vunpack.c.h.b16 %v3211
      %v3856 = vunpack.c.l.b16 %v3212
      %v3857 = vunpack.c.l.b16 %v3213
      %v3858 = vunpack.c.h.b16 %v3213
      %v3859 = vunpack.c.l.b16 %v3214
      %v3860 = vunpack.c.h.b16 %v3214
      %v3861 = vunpack.c.l.b16 %v3215
      %v3862 = vunpack.c.h.b16 %v3215
      %v3863 = vunpack.c.l.b16 %v3216
      %v3864 = vunpack.c.h.b16 %v3216
      %v3865 = vunpack.c.l.b16 %v3217
      %v3866 = vpack.c.b16 %v3551, %v3542
      %v3867 = vpack.c.b16 %v3552, %v3543
      %v3868 = vpack.c.b16 %v3553, %v3544
      %v3869 = vpack.c.b16 %v3554, %v3545
      %v3870 = vpack.c.b16 %v3555, %v3546
      %v3871 = vpack.c.b16 %v3556, %v3547
      %v3872 = vpack.c.b16 %v3557, %v3548
      %v3873 = vpack.c.b16 %v3558, %v3549
      %v3874 = vpack.c.b16 %v3559, %v3550
      %v3875 = vpack.c.b16 %v3569, %v3560
      %v3876 = vpack.c.b16 %v3570, %v3561
      %v3877 = vpack.c.b16 %v3571, %v3562
      %v3878 = vpack.c.b16 %v3572, %v3563
      %v3879 = vpack.c.b16 %v3573, %v3564
      %v3880 = vpack.c.b16 %v3574, %v3565
      %v3881 = vpack.c.b16 %v3575, %v3566
      %v3882 = vpack.c.b16 %v3576, %v3567
      %v3883 = vpack.c.b16 %v3577, %v3568
      %v3884 = vpack.c.b16 %v3587, %v3578
      %v3885 = vpack.c.b16 %v3588, %v3579
      %v3886 = vpack.c.b16 %v3589, %v3580
      %v3887 = vpack.c.b16 %v3590, %v3581
      %v3888 = vpack.c.b16 %v3591, %v3582
      %v3889 = vpack.c.b16 %v3592, %v3583
      %v3890 = vpack.c.b16 %v3593, %v3584
      %v3891 = vpack.c.b16 %v3594, %v3585
      %v3892 = vpack.c.b16 %v3595, %v3586
      %v3893 = vpack.c.b16 %v3605, %v3596
      %v3894 = vpack.c.b16 %v3606, %v3597
      %v3895 = vpack.c.b16 %v3607, %v3598
      %v3896 = vpack.c.b16 %v3608, %v3599
      %v3897 = vpack.c.b16 %v3609, %v3600
      %v3898 = vpack.c.b16 %v3610, %v3601
      %v3899 = vpack.c.b16 %v3611, %v3602
      %v3900 = vpack.c.b16 %v3612, %v3603
      %v3901 = vpack.c.b16 %v3613, %v3604
      %v3902 = vpack.c.b16 %v3623, %v3614
      %v3903 = vpack.c.b16 %v3624, %v3615
      %v3904 = vpack.c.b16 %v3625, %v3616
      %v3905 = vpack.c.b16 %v3626, %v3617
      %v3906 = vpack.c.b16 %v3627, %v3618
      %v3907 = vpack.c.b16 %v3628, %v3619
      %v3908 = vpack.c.b16 %v3629, %v3620
      %v3909 = vpack.c.b16 %v3630, %v3621
      %v3910 = vpack.c.b16 %v3631, %v3622
      %v3911 = vpack.c.b16 %v3641, %v3632
      %v3912 = vpack.c.b16 %v3642, %v3633
      %v3913 = vpack.c.b16 %v3643, %v3634
      %v3914 = vpack.c.b16 %v3644, %v3635
      %v3915 = vpack.c.b16 %v3645, %v3636
      %v3916 = vpack.c.b16 %v3646, %v3637
      %v3917 = vpack.c.b16 %v3647, %v3638
      %v3918 = vpack.c.b16 %v3648, %v3639
      %v3919 = vpack.c.b16 %v3649, %v3640
      %v3920 = vpack.c.b16 %v3659, %v3650
      %v3921 = vpack.c.b16 %v3660, %v3651
      %v3922 = vpack.c.b16 %v3661, %v3652
      %v3923 = vpack.c.b16 %v3662, %v3653
      %v3924 = vpack.c.b16 %v3663, %v3654
      %v3925 = vpack.c.b16 %v3664, %v3655
      %v3926 = vpack.c.b16 %v3665, %v3656
      %v3927 = vpack.c.b16 %v3666, %v3657
      %v3928 = vpack.c.b16 %v3667, %v3658
      %v3929 = vpack.c.b16 %v3677, %v3668
      %v3930 = vpack.c.b16 %v3678, %v3669
      %v3931 = vpack.c.b16 %v3679, %v3670
      %v3932 = vpack.c.b16 %v3680, %v3671
      %v3933 = vpack.c.b16 %v3681, %v3672
      %v3934 = vpack.c.b16 %v3682, %v3673
      %v3935 = vpack.c.b16 %v3683, %v3674
      %v3936 = vpack.c.b16 %v3684, %v3675
      %v3937 = vpack.c.b16 %v3685, %v3676
      %v3938 = vpack.c.b16 %v3695, %v3686
      %v3939 = vpack.c.b16 %v3696, %v3687
      %v3940 = vpack.c.b16 %v3697, %v3688
      %v3941 = vpack.c.b16 %v3698, %v3689
      %v3942 = vpack.c.b16 %v3699, %v3690
      %v3943 = vpack.c.b16 %v3700, %v3691
      %v3944 = vpack.c.b16 %v3701, %v3692
      %v3945 = vpack.c.b16 %v3702, %v3693
      %v3946 = vpack.c.b16 %v3703, %v3694
      %v3947 = vpack.c.b16 %v3713, %v3704
      %v3948 = vpack.c.b16 %v3714, %v3705
      %v3949 = vpack.c.b16 %v3715, %v3706
      %v3950 = vpack.c.b16 %v3716, %v3707
      %v3951 = vpack.c.b16 %v3717, %v3708
      %v3952 = vpack.c.b16 %v3718, %v3709
      %v3953 = vpack.c.b16 %v3719, %v3710
      %v3954 = vpack.c.b16 %v3720, %v3711
      %v3955 = vpack.c.b16 %v3721, %v3712
      %v3956 = vpack.c.b16 %v3731, %v3722
      %v3957 = vpack.c.b16 %v3732, %v3723
      %v3958 = vpack.c.b16 %v3733, %v3724
      %v3959 = vpack.c.b16 %v3734, %v3725
      %v3960 = vpack.c.b16 %v3735, %v3726
      %v3961 = vpack.c.b16 %v3736, %v3727
      %v3962 = vpack.c.b16 %v3737, %v3728
      %v3963 = vpack.c.b16 %v3738, %v3729
      %v3964 = vpack.c.b16 %v3739, %v3730
      %v3965 = vpack.c.b16 %v3749, %v3740
      %v3966 = vpack.c.b16 %v3750, %v3741
      %v3967 = vpack.c.b16 %v3751, %v3742
      %v3968 = vpack.c.b16 %v3752, %v3743
      %v3969 = vpack.c.b16 %v3753, %v3744
      %v3970 = vpack.c.b16 %v3754, %v3745
      %v3971 = vpack.c.b16 %v3755, %v3746
      %v3972 = vpack.c.b16 %v3756, %v3747
      %v3973 = vpack.c.b16 %v3757, %v3748
      %v3974 = vpack.c.b16 %v3767, %v3758
      %v3975 = vpack.c.b16 %v3768, %v3759
      %v3976 = vpack.c.b16 %v3769, %v3760
      %v3977 = vpack.c.b16 %v3770, %v3761
      %v3978 = vpack.c.b16 %v3771, %v3762
      %v3979 = vpack.c.b16 %v3772, %v3763
      %v3980 = vpack.c.b16 %v3773, %v3764
      %v3981 = vpack.c.b16 %v3774, %v3765
      %v3982 = vpack.c.b16 %v3775, %v3766
      %v3983 = vpack.c.b16 %v3785, %v3776
      %v3984 = vpack.c.b16 %v3786, %v3777
      %v3985 = vpack.c.b16 %v3787, %v3778
      %v3986 = vpack.c.b16 %v3788, %v3779
      %v3987 = vpack.c.b16 %v3789, %v3780
      %v3988 = vpack.c.b16 %v3790, %v3781
      %v3989 = vpack.c.b16 %v3791, %v3782
      %v3990 = vpack.c.b16 %v3792, %v3783
      %v3991 = vpack.c.b16 %v3793, %v3784
      %v3992 = vpack.c.b16 %v3803, %v3794
      %v3993 = vpack.c.b16 %v3804, %v3795
      %v3994 = vpack.c.b16 %v3805, %v3796
      %v3995 = vpack.c.b16 %v3806, %v3797
      %v3996 = vpack.c.b16 %v3807, %v3798
      %v3997 = vpack.c.b16 %v3808, %v3799
      %v3998 = vpack.c.b16 %v3809, %v3800
      %v3999 = vpack.c.b16 %v3810, %v3801
      %v4000 = vpack.c.b16 %v3811, %v3802
      %v4001 = vpack.c.b16 %v3821, %v3812
      %v4002 = vpack.c.b16 %v3822, %v3813
      %v4003 = vpack.c.b16 %v3823, %v3814
      %v4004 = vpack.c.b16 %v3824, %v3815
      %v4005 = vpack.c.b16 %v3825, %v3816
      %v4006 = vpack.c.b16 %v3826, %v3817
      %v4007 = vpack.c.b16 %v3827, %v3818
      %v4008 = vpack.c.b16 %v3828, %v3819
      %v4009 = vpack.c.b16 %v3829, %v3820
      %v4010 = vpack.c.b16 %v3839, %v3830
      %v4011 = vpack.c.b16 %v3840, %v3831
      %v4012 = vpack.c.b16 %v3841, %v3832
      %v4013 = vpack.c.b16 %v3842, %v3833
      %v4014 = vpack.c.b16 %v3843, %v3834
      %v4015 = vpack.c.b16 %v3844, %v3835
      %v4016 = vpack.c.b16 %v3845, %v3836
      %v4017 = vpack.c.b16 %v3846, %v3837
      %v4018 = vpack.c.b16 %v3847, %v3838
      %v4019 = vpack.c.b16 %v3857, %v3848
      %v4020 = vpack.c.b16 %v3858, %v3849
      %v4021 = vpack.c.b16 %v3859, %v3850
      %v4022 = vpack.c.b16 %v3860, %v3851
      %v4023 = vpack.c.b16 %v3861, %v3852
      %v4024 = vpack.c.b16 %v3862, %v3853
      %v4025 = vpack.c.b16 %v3863, %v3854
      %v4026 = vpack.c.b16 %v3864, %v3855
      %v4027 = vpack.c.b16 %v3865, %v3856
      %v4334 = vunpack.c.l.b16 %v3218
      %v4335 = vunpack.c.l.b16 %v3219
      %v4336 = vunpack.c.l.b16 %v3220
      %v4337 = vunpack.c.l.b16 %v3221
      %v4338 = vunpack.c.l.b16 %v3222
      %v4339 = vunpack.c.l.b16 %v3223
      %v4340 = vunpack.c.l.b16 %v3224
      %v4341 = vunpack.c.l.b16 %v3225
      %v4342 = vunpack.c.l.b16 %v3226
      %v4343 = vunpack.c.l.b16 %v3227
      %v4344 = vunpack.c.l.b16 %v3228
      %v4345 = vunpack.c.l.b16 %v3229
      %v4346 = vunpack.c.l.b16 %v3230
      %v4347 = vunpack.c.l.b16 %v3231
      %v4348 = vunpack.c.l.b16 %v3232
      %v4349 = vunpack.c.l.b16 %v3233
      %v4350 = vunpack.c.l.b16 %v3234
      %v4351 = vunpack.c.l.b16 %v3235
      %v4352 = vunpack.c.l.b16 %v3236
      %v4353 = vunpack.c.l.b16 %v3237
      %v4354 = vunpack.c.l.b16 %v3238
      %v4355 = vunpack.c.l.b16 %v3239
      %v4356 = vunpack.c.l.b16 %v3240
      %v4357 = vunpack.c.l.b16 %v3241
      %v4358 = vunpack.c.l.b16 %v3242
      %v4359 = vunpack.c.l.b16 %v3243
      %v4360 = vunpack.c.l.b16 %v3244
      %v4361 = vunpack.c.l.b16 %v3245
      %v4362 = vunpack.c.l.b16 %v3246
      %v4363 = vunpack.c.l.b16 %v3247
      %v4364 = vunpack.c.l.b16 %v3248
      %v4365 = vunpack.c.l.b16 %v3249
      %v4366 = vunpack.c.l.b16 %v3250
      %v4367 = vunpack.c.l.b16 %v3251
      %v4368 = vunpack.c.l.b16 %v3252
      %v4369 = vunpack.c.l.b16 %v3253
      %v4370 = vunpack.c.l.b16 %v3254
      %v4371 = vunpack.c.l.b16 %v3255
      %v4372 = vunpack.c.l.b16 %v3256
      %v4373 = vunpack.c.l.b16 %v3257
      %v4374 = vunpack.c.l.b16 %v3258
      %v4375 = vunpack.c.l.b16 %v3259
      %v4376 = vunpack.c.l.b16 %v3260
      %v4377 = vunpack.c.l.b16 %v3261
      %v4378 = vunpack.c.l.b16 %v3262
      %v4379 = vunpack.c.l.b16 %v3263
      %v4380 = vunpack.c.l.b16 %v3264
      %v4381 = vunpack.c.l.b16 %v3265
      %v4382 = vunpack.c.l.b16 %v3266
      %v4383 = vunpack.c.l.b16 %v3267
      %v4384 = vunpack.c.l.b16 %v3268
      %v4385 = vunpack.c.l.b16 %v3269
      %v4386 = vunpack.c.l.b16 %v3270
      %v4387 = vunpack.c.l.b16 %v3271
      %v4388 = vunpack.c.l.b16 %v3272
      %v4389 = vunpack.c.l.b16 %v3273
      %v4390 = vunpack.c.l.b16 %v3274
      %v4391 = vunpack.c.l.b16 %v3275
      %v4392 = vunpack.c.l.b16 %v3276
      %v4393 = vunpack.c.l.b16 %v3277
      %v4394 = vunpack.c.l.b16 %v3278
      %v4395 = vunpack.c.l.b16 %v3279
      %v4396 = vunpack.c.l.b16 %v3280
      %v4397 = vunpack.c.l.b16 %v3281
      %v4398 = vunpack.c.l.b16 %v3282
      %v4399 = vunpack.c.l.b16 %v3283
      %v4400 = vunpack.c.l.b16 %v3284
      %v4401 = vunpack.c.l.b16 %v3285
      %v4402 = vunpack.c.l.b16 %v3286
      %v4403 = vunpack.c.l.b16 %v3287
      %v4404 = vunpack.c.l.b16 %v3288
      %v4405 = vunpack.c.l.b16 %v3289
      %v4406 = vunpack.c.l.b16 %v3290
      %v4407 = vunpack.c.l.b16 %v3291
      %v4408 = vunpack.c.l.b16 %v3292
      %v4409 = vunpack.c.l.b16 %v3293
      %v4410 = vunpack.c.l.b16 %v3294
      %v4411 = vunpack.c.l.b16 %v3295
      %v4412 = vunpack.c.l.b16 %v3296
      %v4413 = vunpack.c.l.b16 %v3297
      %v4414 = vunpack.c.l.b16 %v3298
      %v4415 = vunpack.c.l.b16 %v3299
      %v4416 = vunpack.c.l.b16 %v3300
      %v4417 = vunpack.c.l.b16 %v3301
      %v4418 = vunpack.c.l.b16 %v3302
      %v4419 = vunpack.c.l.b16 %v3303
      %v4420 = vunpack.c.l.b16 %v3304
      %v4421 = vunpack.c.l.b16 %v3305
      %v4422 = vunpack.c.l.b16 %v3306
      %v4423 = vunpack.c.l.b16 %v3307
      %v4424 = vunpack.c.l.b16 %v3308
      %v4425 = vunpack.c.l.b16 %v3309
      %v4426 = vunpack.c.l.b16 %v3310
      %v4427 = vunpack.c.l.b16 %v3311
      %v4428 = vunpack.c.l.b16 %v3312
      %v4429 = vunpack.c.l.b16 %v3313
      %v4430 = vunpack.c.l.b16 %v3314
      %v4431 = vunpack.c.l.b16 %v3315
      %v4432 = vunpack.c.l.b16 %v3316
      %v4433 = vunpack.c.l.b16 %v3317
      %v4434 = vunpack.c.l.b16 %v3318
      %v4435 = vunpack.c.l.b16 %v3319
      %v4436 = vunpack.c.l.b16 %v3320
      %v4437 = vunpack.c.l.b16 %v3321
      %v4438 = vunpack.c.l.b16 %v3322
      %v4439 = vunpack.c.l.b16 %v3323
      %v4440 = vunpack.c.l.b16 %v3324
      %v4441 = vunpack.c.l.b16 %v3325
      %v4442 = vunpack.c.l.b16 %v3326
      %v4443 = vunpack.c.l.b16 %v3327
      %v4444 = vunpack.c.l.b16 %v3328
      %v4445 = vunpack.c.l.b16 %v3329
      %v4446 = vunpack.c.l.b16 %v3330
      %v4447 = vunpack.c.l.b16 %v3331
      %v4448 = vunpack.c.l.b16 %v3332
      %v4449 = vunpack.c.l.b16 %v3333
      %v4450 = vunpack.c.l.b16 %v3334
      %v4451 = vunpack.c.l.b16 %v3335
      %v4452 = vunpack.c.l.b16 %v3336
      %v4453 = vunpack.c.l.b16 %v3337
      %v4454 = vunpack.c.l.b16 %v3338
      %v4455 = vunpack.c.l.b16 %v3339
      %v4456 = vunpack.c.l.b16 %v3340
      %v4457 = vunpack.c.l.b16 %v3341
      %v4458 = vunpack.c.l.b16 %v3342
      %v4459 = vunpack.c.l.b16 %v3343
      %v4460 = vunpack.c.l.b16 %v3344
      %v4461 = vunpack.c.l.b16 %v3345
      %v4462 = vunpack.c.l.b16 %v3346
      %v4463 = vunpack.c.l.b16 %v3347
      %v4464 = vunpack.c.l.b16 %v3348
      %v4465 = vunpack.c.l.b16 %v3349
      %v4466 = vunpack.c.l.b16 %v3350
      %v4467 = vunpack.c.l.b16 %v3351
      %v4468 = vunpack.c.l.b16 %v3352
      %v4469 = vunpack.c.l.b16 %v3353
      %v4470 = vunpack.c.l.b16 %v3354
      %v4471 = vunpack.c.l.b16 %v3355
      %v4472 = vunpack.c.l.b16 %v3356
      %v4473 = vunpack.c.l.b16 %v3357
      %v4474 = vunpack.c.l.b16 %v3358
      %v4475 = vunpack.c.l.b16 %v3359
      %v4476 = vunpack.c.l.b16 %v3360
      %v4477 = vunpack.c.l.b16 %v3361
      %v4478 = vpack.c.b16 %v4335, %v4334
      %v4479 = vpack.c.b16 %v4337, %v4336
      %v4480 = vpack.c.b16 %v4339, %v4338
      %v4481 = vpack.c.b16 %v4341, %v4340
      %v4482 = vpack.c.b16 %v4343, %v4342
      %v4483 = vpack.c.b16 %v4345, %v4344
      %v4484 = vpack.c.b16 %v4347, %v4346
      %v4485 = vpack.c.b16 %v4349, %v4348
      %v4486 = vpack.c.b16 %v4351, %v4350
      %v4487 = vpack.c.b16 %v4353, %v4352
      %v4488 = vpack.c.b16 %v4355, %v4354
      %v4489 = vpack.c.b16 %v4357, %v4356
      %v4490 = vpack.c.b16 %v4359, %v4358
      %v4491 = vpack.c.b16 %v4361, %v4360
      %v4492 = vpack.c.b16 %v4363, %v4362
      %v4493 = vpack.c.b16 %v4365, %v4364
      %v4494 = vpack.c.b16 %v4367, %v4366
      %v4495 = vpack.c.b16 %v4369, %v4368
      %v4496 = vpack.c.b16 %v4371, %v4370
      %v4497 = vpack.c.b16 %v4373, %v4372
      %v4498 = vpack.c.b16 %v4375, %v4374
      %v4499 = vpack.c.b16 %v4377, %v4376
      %v4500 = vpack.c.b16 %v4379, %v4378
      %v4501 = vpack.c.b16 %v4381, %v4380
      %v4502 = vpack.c.b16 %v4383, %v4382
      %v4503 = vpack.c.b16 %v4385, %v4384
      %v4504 = vpack.c.b16 %v4387, %v4386
      %v4505 = vpack.c.b16 %v4389, %v4388
      %v4506 = vpack.c.b16 %v4391, %v4390
      %v4507 = vpack.c.b16 %v4393, %v4392
      %v4508 = vpack.c.b16 %v4395, %v4394
      %v4509 = vpack.c.b16 %v4397, %v4396
      %v4510 = vpack.c.b16 %v4399, %v4398
      %v4511 = vpack.c.b16 %v4401, %v4400
      %v4512 = vpack.c.b16 %v4403, %v4402
      %v4513 = vpack.c.b16 %v4405, %v4404
      %v4514 = vpack.c.b16 %v4407, %v4406
      %v4515 = vpack.c.b16 %v4409, %v4408
      %v4516 = vpack.c.b16 %v4411, %v4410
      %v4517 = vpack.c.b16 %v4413, %v4412
      %v4518 = vpack.c.b16 %v4415, %v4414
      %v4519 = vpack.c.b16 %v4417, %v4416
      %v4520 = vpack.c.b16 %v4419, %v4418
      %v4521 = vpack.c.b16 %v4421, %v4420
      %v4522 = vpack.c.b16 %v4423, %v4422
      %v4523 = vpack.c.b16 %v4425, %v4424
      %v4524 = vpack.c.b16 %v4427, %v4426
      %v4525 = vpack.c.b16 %v4429, %v4428
      %v4526 = vpack.c.b16 %v4431, %v4430
      %v4527 = vpack.c.b16 %v4433, %v4432
      %v4528 = vpack.c.b16 %v4435, %v4434
      %v4529 = vpack.c.b16 %v4437, %v4436
      %v4530 = vpack.c.b16 %v4439, %v4438
      %v4531 = vpack.c.b16 %v4441, %v4440
      %v4532 = vpack.c.b16 %v4443, %v4442
      %v4533 = vpack.c.b16 %v4445, %v4444
      %v4534 = vpack.c.b16 %v4447, %v4446
      %v4535 = vpack.c.b16 %v4449, %v4448
      %v4536 = vpack.c.b16 %v4451, %v4450
      %v4537 = vpack.c.b16 %v4453, %v4452
      %v4538 = vpack.c.b16 %v4455, %v4454
      %v4539 = vpack.c.b16 %v4457, %v4456
      %v4540 = vpack.c.b16 %v4459, %v4458
      %v4541 = vpack.c.b16 %v4461, %v4460
      %v4542 = vpack.c.b16 %v4463, %v4462
      %v4543 = vpack.c.b16 %v4465, %v4464
      %v4544 = vpack.c.b16 %v4467, %v4466
      %v4545 = vpack.c.b16 %v4469, %v4468
      %v4546 = vpack.c.b16 %v4471, %v4470
      %v4547 = vpack.c.b16 %v4473, %v4472
      %v4548 = vpack.c.b16 %v4475, %v4474
      %v4549 = vpack.c.b16 %v4477, %v4476
      %4622 = vmatprep.subr.bf16.mxu0 0
      %4623 = vmatpush1.bf16.msra.mxu0 %v4485
      %4624 = vmatprep.subr.bf16.mxu0 0
      %4625 = vmatpush1.bf16.msra.mxu0 %v4484
      %4626 = vmatprep.subr.bf16.mxu0 0
      %4627 = vmatpush1.bf16.msra.mxu0 %v4483
      %4628 = vmatprep.subr.bf16.mxu0 0
      %4629 = vmatpush1.bf16.msra.mxu0 %v4482
      %4630 = vmatprep.subr.bf16.mxu0 0
      %4631 = vmatpush1.bf16.msra.mxu0 %v4481
      %4632 = vmatprep.subr.bf16.mxu0 0
      %4633 = vmatpush1.bf16.msra.mxu0 %v4480
      %4634 = vmatprep.subr.bf16.mxu0 0
      %4635 = vmatpush1.bf16.msra.mxu0 %v4479
      %4636 = vmatprep.subr.bf16.mxu0 0
      %4637 = vmatpush1.bf16.msra.mxu0 %v4478
      %4638 = vmatprep.subr.bf16.mxu0 0
      %4639 = vmatpush2.bf16.msra.mxu0 %v4493
      %4640 = vmatprep.subr.bf16.mxu0 0
      %4641 = vmatpush2.bf16.msra.mxu0 %v4492
      %4642 = vmatprep.subr.bf16.mxu0 0
      %4643 = vmatpush2.bf16.msra.mxu0 %v4491
      %4644 = vmatprep.subr.bf16.mxu0 0
      %4645 = vmatpush2.bf16.msra.mxu0 %v4490
      %4646 = vmatprep.subr.bf16.mxu0 0
      %4647 = vmatpush2.bf16.msra.mxu0 %v4489
      %4648 = vmatprep.subr.bf16.mxu0 0
      %4649 = vmatpush2.bf16.msra.mxu0 %v4488
      %4650 = vmatprep.subr.bf16.mxu0 0
      %4651 = vmatpush2.bf16.msra.mxu0 %v4487
      %4652 = vmatprep.subr.bf16.mxu0 0
      %4653 = vmatpush2.bf16.msra.mxu0 %v4486
      %4654 = vmatprep.mubr.bf16.mxu0 %v3867
      %4655 = vmatmul.mubr.bf16.gmra.mxu0 %v3866
      %v4656 = vpop.f32.mrf.mxu0
      %v4657 = vadd.f32 0.0, %v4656
      %v4658 = vpop.f32.mrf.mxu0
      %v4659 = vpop.f32.mrf.mxu0
      %v4660 = vadd.f32 0.0, %v4659
      %v4661 = vpop.f32.mrf.mxu0
      %4662 = vmatprep.mubr.bf16.mxu0 %v3876
      %4663 = vmatmul.mubr.bf16.gmra.mxu0 %v3875
      %v4664 = vpop.f32.mrf.mxu0
      %v4665 = vadd.f32 0.0, %v4664
      %v4666 = vpop.f32.mrf.mxu0
      %v4667 = vpop.f32.mrf.mxu0
      %v4668 = vadd.f32 0.0, %v4667
      %v4669 = vpop.f32.mrf.mxu0
      %4670 = vmatprep.mubr.bf16.mxu0 %v3885
      %4671 = vmatmul.mubr.bf16.gmra.mxu0 %v3884
      %v4672 = vpop.f32.mrf.mxu0
      %v4673 = vadd.f32 0.0, %v4672
      %v4674 = vpop.f32.mrf.mxu0
      %v4675 = vpop.f32.mrf.mxu0
      %v4676 = vadd.f32 0.0, %v4675
      %v4677 = vpop.f32.mrf.mxu0
      %4678 = vmatprep.mubr.bf16.mxu0 %v3894
      %4679 = vmatmul.mubr.bf16.gmra.mxu0 %v3893
      %v4680 = vpop.f32.mrf.mxu0
      %v4681 = vadd.f32 0.0, %v4680
      %v4682 = vpop.f32.mrf.mxu0
      %v4683 = vpop.f32.mrf.mxu0
      %v4684 = vadd.f32 0.0, %v4683
      %v4685 = vpop.f32.mrf.mxu0
      %4686 = vmatprep.mubr.bf16.mxu0 %v3903
      %4687 = vmatmul.mubr.bf16.gmra.mxu0 %v3902
      %v4688 = vpop.f32.mrf.mxu0
      %v4689 = vadd.f32 0.0, %v4688
      %v4690 = vpop.f32.mrf.mxu0
      %v4691 = vpop.f32.mrf.mxu0
      %v4692 = vadd.f32 0.0, %v4691
      %v4693 = vpop.f32.mrf.mxu0
      %4694 = vmatprep.mubr.bf16.mxu0 %v3912
      %4695 = vmatmul.mubr.bf16.gmra.mxu0 %v3911
      %v4696 = vpop.f32.mrf.mxu0
      %v4697 = vadd.f32 0.0, %v4696
      %v4698 = vpop.f32.mrf.mxu0
      %v4699 = vpop.f32.mrf.mxu0
      %v4700 = vadd.f32 0.0, %v4699
      %v4701 = vpop.f32.mrf.mxu0
      %4702 = vmatprep.mubr.bf16.mxu0 %v3921
      %4703 = vmatmul.mubr.bf16.gmra.mxu0 %v3920
      %v4704 = vpop.f32.mrf.mxu0
      %v4705 = vadd.f32 0.0, %v4704
      %v4706 = vpop.f32.mrf.mxu0
      %v4707 = vpop.f32.mrf.mxu0
      %v4708 = vadd.f32 0.0, %v4707
      %v4709 = vpop.f32.mrf.mxu0
      %4710 = vmatprep.mubr.bf16.mxu0 %v3930
      %4711 = vmatmul.mubr.bf16.gmra.mxu0 %v3929
      %v4712 = vpop.f32.mrf.mxu0
      %v4713 = vadd.f32 0.0, %v4712
      %v4714 = vpop.f32.mrf.mxu0
      %v4715 = vpop.f32.mrf.mxu0
      %v4716 = vadd.f32 0.0, %v4715
      %v4717 = vpop.f32.mrf.mxu0
      %4718 = vmatprep.mubr.bf16.mxu0 %v3939
      %4719 = vmatmul.mubr.bf16.gmra.mxu0 %v3938
      %v4720 = vpop.f32.mrf.mxu0
      %v4721 = vadd.f32 0.0, %v4720
      %v4722 = vpop.f32.mrf.mxu0
      %v4723 = vpop.f32.mrf.mxu0
      %v4724 = vadd.f32 0.0, %v4723
      %v4725 = vpop.f32.mrf.mxu0
      %4726 = vmatprep.mubr.bf16.mxu0 %v3948
      %4727 = vmatmul.mubr.bf16.gmra.mxu0 %v3947
      %v4728 = vpop.f32.mrf.mxu0
      %v4729 = vadd.f32 0.0, %v4728
      %v4730 = vpop.f32.mrf.mxu0
      %v4731 = vpop.f32.mrf.mxu0
      %v4732 = vadd.f32 0.0, %v4731
      %v4733 = vpop.f32.mrf.mxu0
      %4734 = vmatprep.mubr.bf16.mxu0 %v3957
      %4735 = vmatmul.mubr.bf16.gmra.mxu0 %v3956
      %v4736 = vpop.f32.mrf.mxu0
      %v4737 = vadd.f32 0.0, %v4736
      %v4738 = vpop.f32.mrf.mxu0
      %v4739 = vpop.f32.mrf.mxu0
      %v4740 = vadd.f32 0.0, %v4739
      %v4741 = vpop.f32.mrf.mxu0
      %4742 = vmatprep.mubr.bf16.mxu0 %v3966
      %4743 = vmatmul.mubr.bf16.gmra.mxu0 %v3965
      %v4744 = vpop.f32.mrf.mxu0
      %v4745 = vadd.f32 0.0, %v4744
      %v4746 = vpop.f32.mrf.mxu0
      %v4747 = vpop.f32.mrf.mxu0
      %v4748 = vadd.f32 0.0, %v4747
      %v4749 = vpop.f32.mrf.mxu0
      %4750 = vmatprep.mubr.bf16.mxu0 %v3975
      %4751 = vmatmul.mubr.bf16.gmra.mxu0 %v3974
      %v4752 = vpop.f32.mrf.mxu0
      %v4753 = vadd.f32 0.0, %v4752
      %v4754 = vpop.f32.mrf.mxu0
      %v4755 = vpop.f32.mrf.mxu0
      %v4756 = vadd.f32 0.0, %v4755
      %v4757 = vpop.f32.mrf.mxu0
      %4758 = vmatprep.mubr.bf16.mxu0 %v3984
      %4759 = vmatmul.mubr.bf16.gmra.mxu0 %v3983
      %v4760 = vpop.f32.mrf.mxu0
      %v4761 = vadd.f32 0.0, %v4760
      %v4762 = vpop.f32.mrf.mxu0
      %v4763 = vpop.f32.mrf.mxu0
      %v4764 = vadd.f32 0.0, %v4763
      %v4765 = vpop.f32.mrf.mxu0
      %4766 = vmatprep.mubr.bf16.mxu0 %v3993
      %4767 = vmatmul.mubr.bf16.gmra.mxu0 %v3992
      %v4768 = vpop.f32.mrf.mxu0
      %v4769 = vadd.f32 0.0, %v4768
      %v4770 = vpop.f32.mrf.mxu0
      %v4771 = vpop.f32.mrf.mxu0
      %v4772 = vadd.f32 0.0, %v4771
      %v4773 = vpop.f32.mrf.mxu0
      %4774 = vmatprep.mubr.bf16.mxu0 %v4002
      %4775 = vmatmul.mubr.bf16.gmra.mxu0 %v4001
      %v4776 = vpop.f32.mrf.mxu0
      %v4777 = vadd.f32 0.0, %v4776
      %v4778 = vpop.f32.mrf.mxu0
      %v4779 = vpop.f32.mrf.mxu0
      %v4780 = vadd.f32 0.0, %v4779
      %v4781 = vpop.f32.mrf.mxu0
      %4782 = vmatprep.mubr.bf16.mxu0 %v4011
      %4783 = vmatmul.mubr.bf16.gmra.mxu0 %v4010
      %v4784 = vpop.f32.mrf.mxu0
      %v4785 = vadd.f32 0.0, %v4784
      %v4786 = vpop.f32.mrf.mxu0
      %v4787 = vpop.f32.mrf.mxu0
      %v4788 = vadd.f32 0.0, %v4787
      %v4789 = vpop.f32.mrf.mxu0
      %4790 = vmatprep.mubr.bf16.mxu0 %v4020
      %4791 = vmatmul.mubr.bf16.gmra.mxu0 %v4019
      %v4792 = vpop.f32.mrf.mxu0
      %v4793 = vadd.f32 0.0, %v4792
      %v4794 = vpop.f32.mrf.mxu0
      %v4795 = vpop.f32.mrf.mxu0
      %v4796 = vadd.f32 0.0, %v4795
      %v4797 = vpop.f32.mrf.mxu0
      %4798 = vdwg.mxu0
      %4799 = vmatprep.subr.bf16.mxu0 0
      %4800 = vmatpush1.bf16.msra.mxu0 %v4501
      %4801 = vmatprep.subr.bf16.mxu0 0
      %4802 = vmatpush1.bf16.msra.mxu0 %v4500
      %4803 = vmatprep.subr.bf16.mxu0 0
      %4804 = vmatpush1.bf16.msra.mxu0 %v4499
      %4805 = vmatprep.subr.bf16.mxu0 0
      %4806 = vmatpush1.bf16.msra.mxu0 %v4498
      %4807 = vmatprep.subr.bf16.mxu0 0
      %4808 = vmatpush1.bf16.msra.mxu0 %v4497
      %4809 = vmatprep.subr.bf16.mxu0 0
      %4810 = vmatpush1.bf16.msra.mxu0 %v4496
      %4811 = vmatprep.subr.bf16.mxu0 0
      %4812 = vmatpush1.bf16.msra.mxu0 %v4495
      %4813 = vmatprep.subr.bf16.mxu0 0
      %4814 = vmatpush1.bf16.msra.mxu0 %v4494
      %4815 = vmatprep.subr.bf16.mxu0 0
      %4816 = vmatpush2.bf16.msra.mxu0 %v4509
      %4817 = vmatprep.subr.bf16.mxu0 0
      %4818 = vmatpush2.bf16.msra.mxu0 %v4508
      %4819 = vmatprep.subr.bf16.mxu0 0
      %4820 = vmatpush2.bf16.msra.mxu0 %v4507
      %4821 = vmatprep.subr.bf16.mxu0 0
      %4822 = vmatpush2.bf16.msra.mxu0 %v4506
      %4823 = vmatprep.subr.bf16.mxu0 0
      %4824 = vmatpush2.bf16.msra.mxu0 %v4505
      %4825 = vmatprep.subr.bf16.mxu0 0
      %4826 = vmatpush2.bf16.msra.mxu0 %v4504
      %4827 = vmatprep.subr.bf16.mxu0 0
      %4828 = vmatpush2.bf16.msra.mxu0 %v4503
      %4829 = vmatprep.subr.bf16.mxu0 0
      %4830 = vmatpush2.bf16.msra.mxu0 %v4502
      %4831 = vmatprep.mubr.bf16.mxu0 %v3869
      %4832 = vmatmul.mubr.bf16.gmra.mxu0 %v3868
      %v4833 = vpop.f32.mrf.mxu0
      %v4834 = vadd.f32 %v4657, %v4833
      %v4835 = vpop.f32.mrf.mxu0
      %v4836 = vpop.f32.mrf.mxu0
      %v4837 = vadd.f32 %v4660, %v4836
      %v4838 = vpop.f32.mrf.mxu0
      %4839 = vmatprep.mubr.bf16.mxu0 %v3878
      %4840 = vmatmul.mubr.bf16.gmra.mxu0 %v3877
      %v4841 = vpop.f32.mrf.mxu0
      %v4842 = vadd.f32 %v4665, %v4841
      %v4843 = vpop.f32.mrf.mxu0
      %v4844 = vpop.f32.mrf.mxu0
      %v4845 = vadd.f32 %v4668, %v4844
      %v4846 = vpop.f32.mrf.mxu0
      %4847 = vmatprep.mubr.bf16.mxu0 %v3887
      %4848 = vmatmul.mubr.bf16.gmra.mxu0 %v3886
      %v4849 = vpop.f32.mrf.mxu0
      %v4850 = vadd.f32 %v4673, %v4849
      %v4851 = vpop.f32.mrf.mxu0
      %v4852 = vpop.f32.mrf.mxu0
      %v4853 = vadd.f32 %v4676, %v4852
      %v4854 = vpop.f32.mrf.mxu0
      %4855 = vmatprep.mubr.bf16.mxu0 %v3896
      %4856 = vmatmul.mubr.bf16.gmra.mxu0 %v3895
      %v4857 = vpop.f32.mrf.mxu0
      %v4858 = vadd.f32 %v4681, %v4857
      %v4859 = vpop.f32.mrf.mxu0
      %v4860 = vpop.f32.mrf.mxu0
      %v4861 = vadd.f32 %v4684, %v4860
      %v4862 = vpop.f32.mrf.mxu0
      %4863 = vmatprep.mubr.bf16.mxu0 %v3905
      %4864 = vmatmul.mubr.bf16.gmra.mxu0 %v3904
      %v4865 = vpop.f32.mrf.mxu0
      %v4866 = vadd.f32 %v4689, %v4865
      %v4867 = vpop.f32.mrf.mxu0
      %v4868 = vpop.f32.mrf.mxu0
      %v4869 = vadd.f32 %v4692, %v4868
      %v4870 = vpop.f32.mrf.mxu0
      %4871 = vmatprep.mubr.bf16.mxu0 %v3914
      %4872 = vmatmul.mubr.bf16.gmra.mxu0 %v3913
      %v4873 = vpop.f32.mrf.mxu0
      %v4874 = vadd.f32 %v4697, %v4873
      %v4875 = vpop.f32.mrf.mxu0
      %v4876 = vpop.f32.mrf.mxu0
      %v4877 = vadd.f32 %v4700, %v4876
      %v4878 = vpop.f32.mrf.mxu0
      %4879 = vmatprep.mubr.bf16.mxu0 %v3923
      %4880 = vmatmul.mubr.bf16.gmra.mxu0 %v3922
      %v4881 = vpop.f32.mrf.mxu0
      %v4882 = vadd.f32 %v4705, %v4881
      %v4883 = vpop.f32.mrf.mxu0
      %v4884 = vpop.f32.mrf.mxu0
      %v4885 = vadd.f32 %v4708, %v4884
      %v4886 = vpop.f32.mrf.mxu0
      %4887 = vmatprep.mubr.bf16.mxu0 %v3932
      %4888 = vmatmul.mubr.bf16.gmra.mxu0 %v3931
      %v4889 = vpop.f32.mrf.mxu0
      %v4890 = vadd.f32 %v4713, %v4889
      %v4891 = vpop.f32.mrf.mxu0
      %v4892 = vpop.f32.mrf.mxu0
      %v4893 = vadd.f32 %v4716, %v4892
      %v4894 = vpop.f32.mrf.mxu0
      %4895 = vmatprep.mubr.bf16.mxu0 %v3941
      %4896 = vmatmul.mubr.bf16.gmra.mxu0 %v3940
      %v4897 = vpop.f32.mrf.mxu0
      %v4898 = vadd.f32 %v4721, %v4897
      %v4899 = vpop.f32.mrf.mxu0
      %v4900 = vpop.f32.mrf.mxu0
      %v4901 = vadd.f32 %v4724, %v4900
      %v4902 = vpop.f32.mrf.mxu0
      %4903 = vmatprep.mubr.bf16.mxu0 %v3950
      %4904 = vmatmul.mubr.bf16.gmra.mxu0 %v3949
      %v4905 = vpop.f32.mrf.mxu0
      %v4906 = vadd.f32 %v4729, %v4905
      %v4907 = vpop.f32.mrf.mxu0
      %v4908 = vpop.f32.mrf.mxu0
      %v4909 = vadd.f32 %v4732, %v4908
      %v4910 = vpop.f32.mrf.mxu0
      %4911 = vmatprep.mubr.bf16.mxu0 %v3959
      %4912 = vmatmul.mubr.bf16.gmra.mxu0 %v3958
      %v4913 = vpop.f32.mrf.mxu0
      %v4914 = vadd.f32 %v4737, %v4913
      %v4915 = vpop.f32.mrf.mxu0
      %v4916 = vpop.f32.mrf.mxu0
      %v4917 = vadd.f32 %v4740, %v4916
      %v4918 = vpop.f32.mrf.mxu0
      %4919 = vmatprep.mubr.bf16.mxu0 %v3968
      %4920 = vmatmul.mubr.bf16.gmra.mxu0 %v3967
      %v4921 = vpop.f32.mrf.mxu0
      %v4922 = vadd.f32 %v4745, %v4921
      %v4923 = vpop.f32.mrf.mxu0
      %v4924 = vpop.f32.mrf.mxu0
      %v4925 = vadd.f32 %v4748, %v4924
      %v4926 = vpop.f32.mrf.mxu0
      %4927 = vmatprep.mubr.bf16.mxu0 %v3977
      %4928 = vmatmul.mubr.bf16.gmra.mxu0 %v3976
      %v4929 = vpop.f32.mrf.mxu0
      %v4930 = vadd.f32 %v4753, %v4929
      %v4931 = vpop.f32.mrf.mxu0
      %v4932 = vpop.f32.mrf.mxu0
      %v4933 = vadd.f32 %v4756, %v4932
      %v4934 = vpop.f32.mrf.mxu0
      %4935 = vmatprep.mubr.bf16.mxu0 %v3986
      %4936 = vmatmul.mubr.bf16.gmra.mxu0 %v3985
      %v4937 = vpop.f32.mrf.mxu0
      %v4938 = vadd.f32 %v4761, %v4937
      %v4939 = vpop.f32.mrf.mxu0
      %v4940 = vpop.f32.mrf.mxu0
      %v4941 = vadd.f32 %v4764, %v4940
      %v4942 = vpop.f32.mrf.mxu0
      %4943 = vmatprep.mubr.bf16.mxu0 %v3995
      %4944 = vmatmul.mubr.bf16.gmra.mxu0 %v3994
      %v4945 = vpop.f32.mrf.mxu0
      %v4946 = vadd.f32 %v4769, %v4945
      %v4947 = vpop.f32.mrf.mxu0
      %v4948 = vpop.f32.mrf.mxu0
      %v4949 = vadd.f32 %v4772, %v4948
      %v4950 = vpop.f32.mrf.mxu0
      %4951 = vmatprep.mubr.bf16.mxu0 %v4004
      %4952 = vmatmul.mubr.bf16.gmra.mxu0 %v4003
      %v4953 = vpop.f32.mrf.mxu0
      %v4954 = vadd.f32 %v4777, %v4953
      %v4955 = vpop.f32.mrf.mxu0
      %v4956 = vpop.f32.mrf.mxu0
      %v4957 = vadd.f32 %v4780, %v4956
      %v4958 = vpop.f32.mrf.mxu0
      %4959 = vmatprep.mubr.bf16.mxu0 %v4013
      %4960 = vmatmul.mubr.bf16.gmra.mxu0 %v4012
      %v4961 = vpop.f32.mrf.mxu0
      %v4962 = vadd.f32 %v4785, %v4961
      %v4963 = vpop.f32.mrf.mxu0
      %v4964 = vpop.f32.mrf.mxu0
      %v4965 = vadd.f32 %v4788, %v4964
      %v4966 = vpop.f32.mrf.mxu0
      %4967 = vmatprep.mubr.bf16.mxu0 %v4022
      %4968 = vmatmul.mubr.bf16.gmra.mxu0 %v4021
      %v4969 = vpop.f32.mrf.mxu0
      %v4970 = vadd.f32 %v4793, %v4969
      %v4971 = vpop.f32.mrf.mxu0
      %v4972 = vpop.f32.mrf.mxu0
      %v4973 = vadd.f32 %v4796, %v4972
      %v4974 = vpop.f32.mrf.mxu0
      %4975 = vdwg.mxu0
      %4976 = vmatprep.subr.bf16.mxu0 0
      %4977 = vmatpush1.bf16.msra.mxu0 %v4517
      %4978 = vmatprep.subr.bf16.mxu0 0
      %4979 = vmatpush1.bf16.msra.mxu0 %v4516
      %4980 = vmatprep.subr.bf16.mxu0 0
      %4981 = vmatpush1.bf16.msra.mxu0 %v4515
      %4982 = vmatprep.subr.bf16.mxu0 0
      %4983 = vmatpush1.bf16.msra.mxu0 %v4514
      %4984 = vmatprep.subr.bf16.mxu0 0
      %4985 = vmatpush1.bf16.msra.mxu0 %v4513
      %4986 = vmatprep.subr.bf16.mxu0 0
      %4987 = vmatpush1.bf16.msra.mxu0 %v4512
      %4988 = vmatprep.subr.bf16.mxu0 0
      %4989 = vmatpush1.bf16.msra.mxu0 %v4511
      %4990 = vmatprep.subr.bf16.mxu0 0
      %4991 = vmatpush1.bf16.msra.mxu0 %v4510
      %4992 = vmatprep.subr.bf16.mxu0 0
      %4993 = vmatpush2.bf16.msra.mxu0 %v4525
      %4994 = vmatprep.subr.bf16.mxu0 0
      %4995 = vmatpush2.bf16.msra.mxu0 %v4524
      %4996 = vmatprep.subr.bf16.mxu0 0
      %4997 = vmatpush2.bf16.msra.mxu0 %v4523
      %4998 = vmatprep.subr.bf16.mxu0 0
      %4999 = vmatpush2.bf16.msra.mxu0 %v4522
      %5000 = vmatprep.subr.bf16.mxu0 0
      %5001 = vmatpush2.bf16.msra.mxu0 %v4521
      %5002 = vmatprep.subr.bf16.mxu0 0
      %5003 = vmatpush2.bf16.msra.mxu0 %v4520
      %5004 = vmatprep.subr.bf16.mxu0 0
      %5005 = vmatpush2.bf16.msra.mxu0 %v4519
      %5006 = vmatprep.subr.bf16.mxu0 0
      %5007 = vmatpush2.bf16.msra.mxu0 %v4518
      %5008 = vmatprep.mubr.bf16.mxu0 %v3871
      %5009 = vmatmul.mubr.bf16.gmra.mxu0 %v3870
      %v5010 = vpop.f32.mrf.mxu0
      %v5011 = vadd.f32 %v4834, %v5010
      %v5012 = vpop.f32.mrf.mxu0
      %v5013 = vpop.f32.mrf.mxu0
      %v5014 = vadd.f32 %v4837, %v5013
      %v5015 = vpop.f32.mrf.mxu0
      %5016 = vmatprep.mubr.bf16.mxu0 %v3880
      %5017 = vmatmul.mubr.bf16.gmra.mxu0 %v3879
      %v5018 = vpop.f32.mrf.mxu0
      %v5019 = vadd.f32 %v4842, %v5018
      %v5020 = vpop.f32.mrf.mxu0
      %v5021 = vpop.f32.mrf.mxu0
      %v5022 = vadd.f32 %v4845, %v5021
      %v5023 = vpop.f32.mrf.mxu0
      %5024 = vmatprep.mubr.bf16.mxu0 %v3889
      %5025 = vmatmul.mubr.bf16.gmra.mxu0 %v3888
      %v5026 = vpop.f32.mrf.mxu0
      %v5027 = vadd.f32 %v4850, %v5026
      %v5028 = vpop.f32.mrf.mxu0
      %v5029 = vpop.f32.mrf.mxu0
      %v5030 = vadd.f32 %v4853, %v5029
      %v5031 = vpop.f32.mrf.mxu0
      %5032 = vmatprep.mubr.bf16.mxu0 %v3898
      %5033 = vmatmul.mubr.bf16.gmra.mxu0 %v3897
      %v5034 = vpop.f32.mrf.mxu0
      %v5035 = vadd.f32 %v4858, %v5034
      %v5036 = vpop.f32.mrf.mxu0
      %v5037 = vpop.f32.mrf.mxu0
      %v5038 = vadd.f32 %v4861, %v5037
      %v5039 = vpop.f32.mrf.mxu0
      %5040 = vmatprep.mubr.bf16.mxu0 %v3907
      %5041 = vmatmul.mubr.bf16.gmra.mxu0 %v3906
      %v5042 = vpop.f32.mrf.mxu0
      %v5043 = vadd.f32 %v4866, %v5042
      %v5044 = vpop.f32.mrf.mxu0
      %v5045 = vpop.f32.mrf.mxu0
      %v5046 = vadd.f32 %v4869, %v5045
      %v5047 = vpop.f32.mrf.mxu0
      %5048 = vmatprep.mubr.bf16.mxu0 %v3916
      %5049 = vmatmul.mubr.bf16.gmra.mxu0 %v3915
      %v5050 = vpop.f32.mrf.mxu0
      %v5051 = vadd.f32 %v4874, %v5050
      %v5052 = vpop.f32.mrf.mxu0
      %v5053 = vpop.f32.mrf.mxu0
      %v5054 = vadd.f32 %v4877, %v5053
      %v5055 = vpop.f32.mrf.mxu0
      %5056 = vmatprep.mubr.bf16.mxu0 %v3925
      %5057 = vmatmul.mubr.bf16.gmra.mxu0 %v3924
      %v5058 = vpop.f32.mrf.mxu0
      %v5059 = vadd.f32 %v4882, %v5058
      %v5060 = vpop.f32.mrf.mxu0
      %v5061 = vpop.f32.mrf.mxu0
      %v5062 = vadd.f32 %v4885, %v5061
      %v5063 = vpop.f32.mrf.mxu0
      %5064 = vmatprep.mubr.bf16.mxu0 %v3934
      %5065 = vmatmul.mubr.bf16.gmra.mxu0 %v3933
      %v5066 = vpop.f32.mrf.mxu0
      %v5067 = vadd.f32 %v4890, %v5066
      %v5068 = vpop.f32.mrf.mxu0
      %v5069 = vpop.f32.mrf.mxu0
      %v5070 = vadd.f32 %v4893, %v5069
      %v5071 = vpop.f32.mrf.mxu0
      %5072 = vmatprep.mubr.bf16.mxu0 %v3943
      %5073 = vmatmul.mubr.bf16.gmra.mxu0 %v3942
      %v5074 = vpop.f32.mrf.mxu0
      %v5075 = vadd.f32 %v4898, %v5074
      %v5076 = vpop.f32.mrf.mxu0
      %v5077 = vpop.f32.mrf.mxu0
      %v5078 = vadd.f32 %v4901, %v5077
      %v5079 = vpop.f32.mrf.mxu0
      %5080 = vmatprep.mubr.bf16.mxu0 %v3952
      %5081 = vmatmul.mubr.bf16.gmra.mxu0 %v3951
      %v5082 = vpop.f32.mrf.mxu0
      %v5083 = vadd.f32 %v4906, %v5082
      %v5084 = vpop.f32.mrf.mxu0
      %v5085 = vpop.f32.mrf.mxu0
      %v5086 = vadd.f32 %v4909, %v5085
      %v5087 = vpop.f32.mrf.mxu0
      %5088 = vmatprep.mubr.bf16.mxu0 %v3961
      %5089 = vmatmul.mubr.bf16.gmra.mxu0 %v3960
      %v5090 = vpop.f32.mrf.mxu0
      %v5091 = vadd.f32 %v4914, %v5090
      %v5092 = vpop.f32.mrf.mxu0
      %v5093 = vpop.f32.mrf.mxu0
      %v5094 = vadd.f32 %v4917, %v5093
      %v5095 = vpop.f32.mrf.mxu0
      %5096 = vmatprep.mubr.bf16.mxu0 %v3970
      %5097 = vmatmul.mubr.bf16.gmra.mxu0 %v3969
      %v5098 = vpop.f32.mrf.mxu0
      %v5099 = vadd.f32 %v4922, %v5098
      %v5100 = vpop.f32.mrf.mxu0
      %v5101 = vpop.f32.mrf.mxu0
      %v5102 = vadd.f32 %v4925, %v5101
      %v5103 = vpop.f32.mrf.mxu0
      %5104 = vmatprep.mubr.bf16.mxu0 %v3979
      %5105 = vmatmul.mubr.bf16.gmra.mxu0 %v3978
      %v5106 = vpop.f32.mrf.mxu0
      %v5107 = vadd.f32 %v4930, %v5106
      %v5108 = vpop.f32.mrf.mxu0
      %v5109 = vpop.f32.mrf.mxu0
      %v5110 = vadd.f32 %v4933, %v5109
      %v5111 = vpop.f32.mrf.mxu0
      %5112 = vmatprep.mubr.bf16.mxu0 %v3988
      %5113 = vmatmul.mubr.bf16.gmra.mxu0 %v3987
      %v5114 = vpop.f32.mrf.mxu0
      %v5115 = vadd.f32 %v4938, %v5114
      %v5116 = vpop.f32.mrf.mxu0
      %v5117 = vpop.f32.mrf.mxu0
      %v5118 = vadd.f32 %v4941, %v5117
      %v5119 = vpop.f32.mrf.mxu0
      %5120 = vmatprep.mubr.bf16.mxu0 %v3997
      %5121 = vmatmul.mubr.bf16.gmra.mxu0 %v3996
      %v5122 = vpop.f32.mrf.mxu0
      %v5123 = vadd.f32 %v4946, %v5122
      %v5124 = vpop.f32.mrf.mxu0
      %v5125 = vpop.f32.mrf.mxu0
      %v5126 = vadd.f32 %v4949, %v5125
      %v5127 = vpop.f32.mrf.mxu0
      %5128 = vmatprep.mubr.bf16.mxu0 %v4006
      %5129 = vmatmul.mubr.bf16.gmra.mxu0 %v4005
      %v5130 = vpop.f32.mrf.mxu0
      %v5131 = vadd.f32 %v4954, %v5130
      %v5132 = vpop.f32.mrf.mxu0
      %v5133 = vpop.f32.mrf.mxu0
      %v5134 = vadd.f32 %v4957, %v5133
      %v5135 = vpop.f32.mrf.mxu0
      %5136 = vmatprep.mubr.bf16.mxu0 %v4015
      %5137 = vmatmul.mubr.bf16.gmra.mxu0 %v4014
      %v5138 = vpop.f32.mrf.mxu0
      %v5139 = vadd.f32 %v4962, %v5138
      %v5140 = vpop.f32.mrf.mxu0
      %v5141 = vpop.f32.mrf.mxu0
      %v5142 = vadd.f32 %v4965, %v5141
      %v5143 = vpop.f32.mrf.mxu0
      %5144 = vmatprep.mubr.bf16.mxu0 %v4024
      %5145 = vmatmul.mubr.bf16.gmra.mxu0 %v4023
      %v5146 = vpop.f32.mrf.mxu0
      %v5147 = vadd.f32 %v4970, %v5146
      %v5148 = vpop.f32.mrf.mxu0
      %v5149 = vpop.f32.mrf.mxu0
      %v5150 = vadd.f32 %v4973, %v5149
      %v5151 = vpop.f32.mrf.mxu0
      %5152 = vdwg.mxu0
      %5153 = vmatprep.subr.bf16.mxu0 0
      %5154 = vmatpush1.bf16.msra.mxu0 %v4533
      %5155 = vmatprep.subr.bf16.mxu0 0
      %5156 = vmatpush1.bf16.msra.mxu0 %v4532
      %5157 = vmatprep.subr.bf16.mxu0 0
      %5158 = vmatpush1.bf16.msra.mxu0 %v4531
      %5159 = vmatprep.subr.bf16.mxu0 0
      %5160 = vmatpush1.bf16.msra.mxu0 %v4530
      %5161 = vmatprep.subr.bf16.mxu0 0
      %5162 = vmatpush1.bf16.msra.mxu0 %v4529
      %5163 = vmatprep.subr.bf16.mxu0 0
      %5164 = vmatpush1.bf16.msra.mxu0 %v4528
      %5165 = vmatprep.subr.bf16.mxu0 0
      %5166 = vmatpush1.bf16.msra.mxu0 %v4527
      %5167 = vmatprep.subr.bf16.mxu0 0
      %5168 = vmatpush1.bf16.msra.mxu0 %v4526
      %5169 = vmatprep.subr.bf16.mxu0 0
      %5170 = vmatpush2.bf16.msra.mxu0 %v4541
      %5171 = vmatprep.subr.bf16.mxu0 0
      %5172 = vmatpush2.bf16.msra.mxu0 %v4540
      %5173 = vmatprep.subr.bf16.mxu0 0
      %5174 = vmatpush2.bf16.msra.mxu0 %v4539
      %5175 = vmatprep.subr.bf16.mxu0 0
      %5176 = vmatpush2.bf16.msra.mxu0 %v4538
      %5177 = vmatprep.subr.bf16.mxu0 0
      %5178 = vmatpush2.bf16.msra.mxu0 %v4537
      %5179 = vmatprep.subr.bf16.mxu0 0
      %5180 = vmatpush2.bf16.msra.mxu0 %v4536
      %5181 = vmatprep.subr.bf16.mxu0 0
      %5182 = vmatpush2.bf16.msra.mxu0 %v4535
      %5183 = vmatprep.subr.bf16.mxu0 0
      %5184 = vmatpush2.bf16.msra.mxu0 %v4534
      %5185 = vmatprep.mubr.bf16.mxu0 %v3873
      %5186 = vmatmul.mubr.bf16.gmra.mxu0 %v3872
      %v5187 = vpop.f32.mrf.mxu0
      %v5188 = vadd.f32 %v5011, %v5187
      %v5189 = vpop.f32.mrf.mxu0
      %v5190 = vpop.f32.mrf.mxu0
      %v5191 = vadd.f32 %v5014, %v5190
      %v5192 = vpop.f32.mrf.mxu0
      %5193 = vmatprep.mubr.bf16.mxu0 %v3882
      %5194 = vmatmul.mubr.bf16.gmra.mxu0 %v3881
      %v5195 = vpop.f32.mrf.mxu0
      %v5196 = vadd.f32 %v5019, %v5195
      %v5197 = vpop.f32.mrf.mxu0
      %v5198 = vpop.f32.mrf.mxu0
      %v5199 = vadd.f32 %v5022, %v5198
      %v5200 = vpop.f32.mrf.mxu0
      %5201 = vmatprep.mubr.bf16.mxu0 %v3891
      %5202 = vmatmul.mubr.bf16.gmra.mxu0 %v3890
      %v5203 = vpop.f32.mrf.mxu0
      %v5204 = vadd.f32 %v5027, %v5203
      %v5205 = vpop.f32.mrf.mxu0
      %v5206 = vpop.f32.mrf.mxu0
      %v5207 = vadd.f32 %v5030, %v5206
      %v5208 = vpop.f32.mrf.mxu0
      %5209 = vmatprep.mubr.bf16.mxu0 %v3900
      %5210 = vmatmul.mubr.bf16.gmra.mxu0 %v3899
      %v5211 = vpop.f32.mrf.mxu0
      %v5212 = vadd.f32 %v5035, %v5211
      %v5213 = vpop.f32.mrf.mxu0
      %v5214 = vpop.f32.mrf.mxu0
      %v5215 = vadd.f32 %v5038, %v5214
      %v5216 = vpop.f32.mrf.mxu0
      %5217 = vmatprep.mubr.bf16.mxu0 %v3909
      %5218 = vmatmul.mubr.bf16.gmra.mxu0 %v3908
      %v5219 = vpop.f32.mrf.mxu0
      %v5220 = vadd.f32 %v5043, %v5219
      %v5221 = vpop.f32.mrf.mxu0
      %v5222 = vpop.f32.mrf.mxu0
      %v5223 = vadd.f32 %v5046, %v5222
      %v5224 = vpop.f32.mrf.mxu0
      %5225 = vmatprep.mubr.bf16.mxu0 %v3918
      %5226 = vmatmul.mubr.bf16.gmra.mxu0 %v3917
      %v5227 = vpop.f32.mrf.mxu0
      %v5228 = vadd.f32 %v5051, %v5227
      %v5229 = vpop.f32.mrf.mxu0
      %v5230 = vpop.f32.mrf.mxu0
      %v5231 = vadd.f32 %v5054, %v5230
      %v5232 = vpop.f32.mrf.mxu0
      %5233 = vmatprep.mubr.bf16.mxu0 %v3927
      %5234 = vmatmul.mubr.bf16.gmra.mxu0 %v3926
      %v5235 = vpop.f32.mrf.mxu0
      %v5236 = vadd.f32 %v5059, %v5235
      %v5237 = vpop.f32.mrf.mxu0
      %v5238 = vpop.f32.mrf.mxu0
      %v5239 = vadd.f32 %v5062, %v5238
      %v5240 = vpop.f32.mrf.mxu0
      %5241 = vmatprep.mubr.bf16.mxu0 %v3936
      %5242 = vmatmul.mubr.bf16.gmra.mxu0 %v3935
      %v5243 = vpop.f32.mrf.mxu0
      %v5244 = vadd.f32 %v5067, %v5243
      %v5245 = vpop.f32.mrf.mxu0
      %v5246 = vpop.f32.mrf.mxu0
      %v5247 = vadd.f32 %v5070, %v5246
      %v5248 = vpop.f32.mrf.mxu0
      %5249 = vmatprep.mubr.bf16.mxu0 %v3945
      %5250 = vmatmul.mubr.bf16.gmra.mxu0 %v3944
      %v5251 = vpop.f32.mrf.mxu0
      %v5252 = vadd.f32 %v5075, %v5251
      %v5253 = vpop.f32.mrf.mxu0
      %v5254 = vpop.f32.mrf.mxu0
      %v5255 = vadd.f32 %v5078, %v5254
      %v5256 = vpop.f32.mrf.mxu0
      %5257 = vmatprep.mubr.bf16.mxu0 %v3954
      %5258 = vmatmul.mubr.bf16.gmra.mxu0 %v3953
      %v5259 = vpop.f32.mrf.mxu0
      %v5260 = vadd.f32 %v5083, %v5259
      %v5261 = vpop.f32.mrf.mxu0
      %v5262 = vpop.f32.mrf.mxu0
      %v5263 = vadd.f32 %v5086, %v5262
      %v5264 = vpop.f32.mrf.mxu0
      %5265 = vmatprep.mubr.bf16.mxu0 %v3963
      %5266 = vmatmul.mubr.bf16.gmra.mxu0 %v3962
      %v5267 = vpop.f32.mrf.mxu0
      %v5268 = vadd.f32 %v5091, %v5267
      %v5269 = vpop.f32.mrf.mxu0
      %v5270 = vpop.f32.mrf.mxu0
      %v5271 = vadd.f32 %v5094, %v5270
      %v5272 = vpop.f32.mrf.mxu0
      %5273 = vmatprep.mubr.bf16.mxu0 %v3972
      %5274 = vmatmul.mubr.bf16.gmra.mxu0 %v3971
      %v5275 = vpop.f32.mrf.mxu0
      %v5276 = vadd.f32 %v5099, %v5275
      %v5277 = vpop.f32.mrf.mxu0
      %v5278 = vpop.f32.mrf.mxu0
      %v5279 = vadd.f32 %v5102, %v5278
      %v5280 = vpop.f32.mrf.mxu0
      %5281 = vmatprep.mubr.bf16.mxu0 %v3981
      %5282 = vmatmul.mubr.bf16.gmra.mxu0 %v3980
      %v5283 = vpop.f32.mrf.mxu0
      %v5284 = vadd.f32 %v5107, %v5283
      %v5285 = vpop.f32.mrf.mxu0
      %v5286 = vpop.f32.mrf.mxu0
      %v5287 = vadd.f32 %v5110, %v5286
      %v5288 = vpop.f32.mrf.mxu0
      %5289 = vmatprep.mubr.bf16.mxu0 %v3990
      %5290 = vmatmul.mubr.bf16.gmra.mxu0 %v3989
      %v5291 = vpop.f32.mrf.mxu0
      %v5292 = vadd.f32 %v5115, %v5291
      %v5293 = vpop.f32.mrf.mxu0
      %v5294 = vpop.f32.mrf.mxu0
      %v5295 = vadd.f32 %v5118, %v5294
      %v5296 = vpop.f32.mrf.mxu0
      %5297 = vmatprep.mubr.bf16.mxu0 %v3999
      %5298 = vmatmul.mubr.bf16.gmra.mxu0 %v3998
      %v5299 = vpop.f32.mrf.mxu0
      %v5300 = vadd.f32 %v5123, %v5299
      %v5301 = vpop.f32.mrf.mxu0
      %v5302 = vpop.f32.mrf.mxu0
      %v5303 = vadd.f32 %v5126, %v5302
      %v5304 = vpop.f32.mrf.mxu0
      %5305 = vmatprep.mubr.bf16.mxu0 %v4008
      %5306 = vmatmul.mubr.bf16.gmra.mxu0 %v4007
      %v5307 = vpop.f32.mrf.mxu0
      %v5308 = vadd.f32 %v5131, %v5307
      %v5309 = vpop.f32.mrf.mxu0
      %v5310 = vpop.f32.mrf.mxu0
      %v5311 = vadd.f32 %v5134, %v5310
      %v5312 = vpop.f32.mrf.mxu0
      %5313 = vmatprep.mubr.bf16.mxu0 %v4017
      %5314 = vmatmul.mubr.bf16.gmra.mxu0 %v4016
      %v5315 = vpop.f32.mrf.mxu0
      %v5316 = vadd.f32 %v5139, %v5315
      %v5317 = vpop.f32.mrf.mxu0
      %v5318 = vpop.f32.mrf.mxu0
      %v5319 = vadd.f32 %v5142, %v5318
      %v5320 = vpop.f32.mrf.mxu0
      %5321 = vmatprep.mubr.bf16.mxu0 %v4026
      %5322 = vmatmul.mubr.bf16.gmra.mxu0 %v4025
      %v5323 = vpop.f32.mrf.mxu0
      %v5324 = vadd.f32 %v5147, %v5323
      %v5325 = vpop.f32.mrf.mxu0
      %v5326 = vpop.f32.mrf.mxu0
      %v5327 = vadd.f32 %v5150, %v5326
      %v5328 = vpop.f32.mrf.mxu0
      %5329 = vdwg.mxu0
      %5330 = vmatprep.subr.bf16.mxu0 0
      %5331 = vmatpush1.bf16.msra.mxu0 %v4549
      %5332 = vmatprep.subr.bf16.mxu0 0
      %5333 = vmatpush1.bf16.msra.mxu0 %v4548
      %5334 = vmatprep.subr.bf16.mxu0 0
      %5335 = vmatpush1.bf16.msra.mxu0 %v4547
      %5336 = vmatprep.subr.bf16.mxu0 0
      %5337 = vmatpush1.bf16.msra.mxu0 %v4546
      %5338 = vmatprep.subr.bf16.mxu0 0
      %5339 = vmatpush1.bf16.msra.mxu0 %v4545
      %5340 = vmatprep.subr.bf16.mxu0 0
      %5341 = vmatpush1.bf16.msra.mxu0 %v4544
      %5342 = vmatprep.subr.bf16.mxu0 0
      %5343 = vmatpush1.bf16.msra.mxu0 %v4543
      %5344 = vmatprep.subr.bf16.mxu0 0
      %5345 = vmatpush1.bf16.msra.mxu0 %v4542
      %5346 = vmatprep.subr.bf16.mxu0 0
      %5347 = vmatpush2.bf16.msra.mxu0 0
      %5348 = vmatprep.subr.bf16.mxu0 0
      %5349 = vmatpush2.bf16.msra.mxu0 0
      %5350 = vmatprep.subr.bf16.mxu0 0
      %5351 = vmatpush2.bf16.msra.mxu0 0
      %5352 = vmatprep.subr.bf16.mxu0 0
      %5353 = vmatpush2.bf16.msra.mxu0 0
      %5354 = vmatprep.subr.bf16.mxu0 0
      %5355 = vmatpush2.bf16.msra.mxu0 0
      %5356 = vmatprep.subr.bf16.mxu0 0
      %5357 = vmatpush2.bf16.msra.mxu0 0
      %5358 = vmatprep.subr.bf16.mxu0 0
      %5359 = vmatpush2.bf16.msra.mxu0 0
      %5360 = vmatprep.subr.bf16.mxu0 0
      %5361 = vmatpush2.bf16.msra.mxu0 0
      %5362 = vmatprep.mubr.bf16.mxu0 0
      %5363 = vmatmul.mubr.bf16.gmra.mxu0 %v3874
      %v5364 = vpop.f32.mrf.mxu0
      %v5365 = vadd.f32 %v5188, %v5364
      %v5366 = vpop.f32.mrf.mxu0
      %v5367 = vpop.f32.mrf.mxu0
      %v5368 = vadd.f32 %v5191, %v5367
      %v5369 = vpop.f32.mrf.mxu0
      %5370 = vmatprep.mubr.bf16.mxu0 0
      %5371 = vmatmul.mubr.bf16.gmra.mxu0 %v3883
      %v5372 = vpop.f32.mrf.mxu0
      %v5373 = vadd.f32 %v5196, %v5372
      %v5374 = vpop.f32.mrf.mxu0
      %v5375 = vpop.f32.mrf.mxu0
      %v5376 = vadd.f32 %v5199, %v5375
      %v5377 = vpop.f32.mrf.mxu0
      %5378 = vmatprep.mubr.bf16.mxu0 0
      %5379 = vmatmul.mubr.bf16.gmra.mxu0 %v3892
      %v5380 = vpop.f32.mrf.mxu0
      %v5381 = vadd.f32 %v5204, %v5380
      %v5382 = vpop.f32.mrf.mxu0
      %v5383 = vpop.f32.mrf.mxu0
      %v5384 = vadd.f32 %v5207, %v5383
      %v5385 = vpop.f32.mrf.mxu0
      %5386 = vmatprep.mubr.bf16.mxu0 0
      %5387 = vmatmul.mubr.bf16.gmra.mxu0 %v3901
      %v5388 = vpop.f32.mrf.mxu0
      %v5389 = vadd.f32 %v5212, %v5388
      %v5390 = vpop.f32.mrf.mxu0
      %v5391 = vpop.f32.mrf.mxu0
      %v5392 = vadd.f32 %v5215, %v5391
      %v5393 = vpop.f32.mrf.mxu0
      %5394 = vmatprep.mubr.bf16.mxu0 0
      %5395 = vmatmul.mubr.bf16.gmra.mxu0 %v3910
      %v5396 = vpop.f32.mrf.mxu0
      %v5397 = vadd.f32 %v5220, %v5396
      %v5398 = vpop.f32.mrf.mxu0
      %v5399 = vpop.f32.mrf.mxu0
      %v5400 = vadd.f32 %v5223, %v5399
      %v5401 = vpop.f32.mrf.mxu0
      %5402 = vmatprep.mubr.bf16.mxu0 0
      %5403 = vmatmul.mubr.bf16.gmra.mxu0 %v3919
      %v5404 = vpop.f32.mrf.mxu0
      %v5405 = vadd.f32 %v5228, %v5404
      %v5406 = vpop.f32.mrf.mxu0
      %v5407 = vpop.f32.mrf.mxu0
      %v5408 = vadd.f32 %v5231, %v5407
      %v5409 = vpop.f32.mrf.mxu0
      %5410 = vmatprep.mubr.bf16.mxu0 0
      %5411 = vmatmul.mubr.bf16.gmra.mxu0 %v3928
      %v5412 = vpop.f32.mrf.mxu0
      %v5413 = vadd.f32 %v5236, %v5412
      %v5414 = vpop.f32.mrf.mxu0
      %v5415 = vpop.f32.mrf.mxu0
      %v5416 = vadd.f32 %v5239, %v5415
      %v5417 = vpop.f32.mrf.mxu0
      %5418 = vmatprep.mubr.bf16.mxu0 0
      %5419 = vmatmul.mubr.bf16.gmra.mxu0 %v3937
      %v5420 = vpop.f32.mrf.mxu0
      %v5421 = vadd.f32 %v5244, %v5420
      %v5422 = vpop.f32.mrf.mxu0
      %v5423 = vpop.f32.mrf.mxu0
      %v5424 = vadd.f32 %v5247, %v5423
      %v5425 = vpop.f32.mrf.mxu0
      %5426 = vmatprep.mubr.bf16.mxu0 0
      %5427 = vmatmul.mubr.bf16.gmra.mxu0 %v3946
      %v5428 = vpop.f32.mrf.mxu0
      %v5429 = vadd.f32 %v5252, %v5428
      %v5430 = vpop.f32.mrf.mxu0
      %v5431 = vpop.f32.mrf.mxu0
      %v5432 = vadd.f32 %v5255, %v5431
      %v5433 = vpop.f32.mrf.mxu0
      %5434 = vmatprep.mubr.bf16.mxu0 0
      %5435 = vmatmul.mubr.bf16.gmra.mxu0 %v3955
      %v5436 = vpop.f32.mrf.mxu0
      %v5437 = vadd.f32 %v5260, %v5436
      %v5438 = vpop.f32.mrf.mxu0
      %v5439 = vpop.f32.mrf.mxu0
      %v5440 = vadd.f32 %v5263, %v5439
      %v5441 = vpop.f32.mrf.mxu0
      %5442 = vmatprep.mubr.bf16.mxu0 0
      %5443 = vmatmul.mubr.bf16.gmra.mxu0 %v3964
      %v5444 = vpop.f32.mrf.mxu0
      %v5445 = vadd.f32 %v5268, %v5444
      %v5446 = vpop.f32.mrf.mxu0
      %v5447 = vpop.f32.mrf.mxu0
      %v5448 = vadd.f32 %v5271, %v5447
      %v5449 = vpop.f32.mrf.mxu0
      %5450 = vmatprep.mubr.bf16.mxu0 0
      %5451 = vmatmul.mubr.bf16.gmra.mxu0 %v3973
      %v5452 = vpop.f32.mrf.mxu0
      %v5453 = vadd.f32 %v5276, %v5452
      %v5454 = vpop.f32.mrf.mxu0
      %v5455 = vpop.f32.mrf.mxu0
      %v5456 = vadd.f32 %v5279, %v5455
      %v5457 = vpop.f32.mrf.mxu0
      %5458 = vmatprep.mubr.bf16.mxu0 0
      %5459 = vmatmul.mubr.bf16.gmra.mxu0 %v3982
      %v5460 = vpop.f32.mrf.mxu0
      %v5461 = vadd.f32 %v5284, %v5460
      %v5462 = vpop.f32.mrf.mxu0
      %v5463 = vpop.f32.mrf.mxu0
      %v5464 = vadd.f32 %v5287, %v5463
      %v5465 = vpop.f32.mrf.mxu0
      %5466 = vmatprep.mubr.bf16.mxu0 0
      %5467 = vmatmul.mubr.bf16.gmra.mxu0 %v3991
      %v5468 = vpop.f32.mrf.mxu0
      %v5469 = vadd.f32 %v5292, %v5468
      %v5470 = vpop.f32.mrf.mxu0
      %v5471 = vpop.f32.mrf.mxu0
      %v5472 = vadd.f32 %v5295, %v5471
      %v5473 = vpop.f32.mrf.mxu0
      %5474 = vmatprep.mubr.bf16.mxu0 0
      %5475 = vmatmul.mubr.bf16.gmra.mxu0 %v4000
      %v5476 = vpop.f32.mrf.mxu0
      %v5477 = vadd.f32 %v5300, %v5476
      %v5478 = vpop.f32.mrf.mxu0
      %v5479 = vpop.f32.mrf.mxu0
      %v5480 = vadd.f32 %v5303, %v5479
      %v5481 = vpop.f32.mrf.mxu0
      %5482 = vmatprep.mubr.bf16.mxu0 0
      %5483 = vmatmul.mubr.bf16.gmra.mxu0 %v4009
      %v5484 = vpop.f32.mrf.mxu0
      %v5485 = vadd.f32 %v5308, %v5484
      %v5486 = vpop.f32.mrf.mxu0
      %v5487 = vpop.f32.mrf.mxu0
      %v5488 = vadd.f32 %v5311, %v5487
      %v5489 = vpop.f32.mrf.mxu0
      %5490 = vmatprep.mubr.bf16.mxu0 0
      %5491 = vmatmul.mubr.bf16.gmra.mxu0 %v4018
      %v5492 = vpop.f32.mrf.mxu0
      %v5493 = vadd.f32 %v5316, %v5492
      %v5494 = vpop.f32.mrf.mxu0
      %v5495 = vpop.f32.mrf.mxu0
      %v5496 = vadd.f32 %v5319, %v5495
      %v5497 = vpop.f32.mrf.mxu0
      %5498 = vmatprep.mubr.bf16.mxu0 0
      %5499 = vmatmul.mubr.bf16.gmra.mxu0 %v4027
      %v5500 = vpop.f32.mrf.mxu0
      %v5501 = vadd.f32 %v5324, %v5500
      %v5502 = vpop.f32.mrf.mxu0
      %v5503 = vpop.f32.mrf.mxu0
      %v5504 = vadd.f32 %v5327, %v5503
      %v5505 = vpop.f32.mrf.mxu0
      %5506 = vdwg.mxu0
      %v5507 = vld [vmem:[%s2] sm:$0x1]
      %v5508 = vlaneseq
      %v5509 = vshrl.u32 %v5508, 7
      %v5510 = vsub.s32 0, %v5509
      %v5511 = vrot.slane %v5507, %v5510
      %v5512 = vmul.f32 %v5365, %v5511
      %v5513 = vmul.f32 %v5368, %v5511
      %v5514 = vmul.f32 %v5373, %v5511
      %v5515 = vmul.f32 %v5376, %v5511
      %v5516 = vmul.f32 %v5381, %v5511
      %v5517 = vmul.f32 %v5384, %v5511
      %v5518 = vmul.f32 %v5389, %v5511
      %v5519 = vmul.f32 %v5392, %v5511
      %v5520 = vmul.f32 %v5397, %v5511
      %v5521 = vmul.f32 %v5400, %v5511
      %v5522 = vmul.f32 %v5405, %v5511
      %v5523 = vmul.f32 %v5408, %v5511
      %v5524 = vmul.f32 %v5413, %v5511
      %v5525 = vmul.f32 %v5416, %v5511
      %v5526 = vmul.f32 %v5421, %v5511
      %v5527 = vmul.f32 %v5424, %v5511
      %v5528 = vmul.f32 %v5429, %v5511
      %v5529 = vmul.f32 %v5432, %v5511
      %v5530 = vmul.f32 %v5437, %v5511
      %v5531 = vmul.f32 %v5440, %v5511
      %v5532 = vmul.f32 %v5445, %v5511
      %v5533 = vmul.f32 %v5448, %v5511
      %v5534 = vmul.f32 %v5453, %v5511
      %v5535 = vmul.f32 %v5456, %v5511
      %v5536 = vmul.f32 %v5461, %v5511
      %v5537 = vmul.f32 %v5464, %v5511
      %v5538 = vmul.f32 %v5469, %v5511
      %v5539 = vmul.f32 %v5472, %v5511
      %v5540 = vmul.f32 %v5477, %v5511
      %v5541 = vmul.f32 %v5480, %v5511
      %v5542 = vmul.f32 %v5485, %v5511
      %v5543 = vmul.f32 %v5488, %v5511
      %v5544 = vmul.f32 %v5493, %v5511
      %v5545 = vmul.f32 %v5496, %v5511
      %v5546 = vmul.f32 %v5501, %v5511
      %v5547 = vmul.f32 %v5504, %v5511
      %v5548 = vld [vmem:[%s2 + $0x1] sm:$0x1]
      %v5549 = vlaneseq
      %v5550 = vshrl.u32 %v5549, 7
      %v5551 = vsub.s32 0, %v5550
      %v5552 = vrot.slane %v5548, %v5551
      %v5553 = vadd.f32 %v5512, %v5552
      %v5554 = vadd.f32 %v5513, %v5552
      %v5555 = vadd.f32 %v5514, %v5552
      %v5556 = vadd.f32 %v5515, %v5552
      %v5557 = vadd.f32 %v5516, %v5552
      %v5558 = vadd.f32 %v5517, %v5552
      %v5559 = vadd.f32 %v5518, %v5552
      %v5560 = vadd.f32 %v5519, %v5552
      %v5561 = vadd.f32 %v5520, %v5552
      %v5562 = vadd.f32 %v5521, %v5552
      %v5563 = vadd.f32 %v5522, %v5552
      %v5564 = vadd.f32 %v5523, %v5552
      %v5565 = vadd.f32 %v5524, %v5552
      %v5566 = vadd.f32 %v5525, %v5552
      %v5567 = vadd.f32 %v5526, %v5552
      %v5568 = vadd.f32 %v5527, %v5552
      %v5569 = vadd.f32 %v5528, %v5552
      %v5570 = vadd.f32 %v5529, %v5552
      %v5571 = vadd.f32 %v5530, %v5552
      %v5572 = vadd.f32 %v5531, %v5552
      %v5573 = vadd.f32 %v5532, %v5552
      %v5574 = vadd.f32 %v5533, %v5552
      %v5575 = vadd.f32 %v5534, %v5552
      %v5576 = vadd.f32 %v5535, %v5552
      %v5577 = vadd.f32 %v5536, %v5552
      %v5578 = vadd.f32 %v5537, %v5552
      %v5579 = vadd.f32 %v5538, %v5552
      %v5580 = vadd.f32 %v5539, %v5552
      %v5581 = vadd.f32 %v5540, %v5552
      %v5582 = vadd.f32 %v5541, %v5552
      %v5583 = vadd.f32 %v5542, %v5552
      %v5584 = vadd.f32 %v5543, %v5552
      %v5585 = vadd.f32 %v5544, %v5552
      %v5586 = vadd.f32 %v5545, %v5552
      %v5587 = vadd.f32 %v5546, %v5552
      %v5588 = vadd.f32 %v5547, %v5552
      %v5589 = vld [vmem:[%s239 + $0x8] sm:$0xe]
      %v5590 = vld [vmem:[%s239 + $0xc] sm:$0xf]
      %v5591 = vld [vmem:[%s239 + $0x10] sm:$0xf]
      %v5592 = vld [vmem:[%s239 + $0x14] sm:$0xf]
      %v5593 = vld [vmem:[%s239 + $0x18] sm:$0xf]
      %v5594 = vld [vmem:[%s239 + $0x1c] sm:$0xf]
      %v5595 = vld [vmem:[%s239 + $0x20] sm:$0xf]
      %v5596 = vld [vmem:[%s239 + $0x24] sm:$0xf]
      %v5597 = vld [vmem:[%s239 + $0x28] sm:$0xf]
      %v5598 = vld [vmem:[%s239 + $0x2c] sm:$0xf]
      %v5599 = vld [vmem:[%s239 + $0x30] sm:$0xf]
      %v5600 = vld [vmem:[%s239 + $0x34] sm:$0xf]
      %v5601 = vld [vmem:[%s239 + $0x38] sm:$0xf]
      %v5602 = vld [vmem:[%s239 + $0x3c] sm:$0xf]
      %v5603 = vld [vmem:[%s239 + $0x40] sm:$0xf]
      %v5604 = vld [vmem:[%s239 + $0x44] sm:$0xf]
      %v5605 = vld [vmem:[%s239 + $0x48] sm:$0xf]
      %v5606 = vld [vmem:[%s239 + $0x4c] sm:$0xf]
      %v5607 = vld [vmem:[%s239 + $0x50] sm:$0xf]
      %v5608 = vld [vmem:[%s239 + $0x54] sm:$0xf]
      %v5609 = vld [vmem:[%s239 + $0x58] sm:$0xf]
      %v5610 = vld [vmem:[%s239 + $0x5c] sm:$0xf]
      %v5611 = vld [vmem:[%s239 + $0x60] sm:$0xf]
      %v5612 = vld [vmem:[%s239 + $0x64] sm:$0xf]
      %v5613 = vld [vmem:[%s239 + $0x68] sm:$0xf]
      %v5614 = vld [vmem:[%s239 + $0x6c] sm:$0xf]
      %v5615 = vld [vmem:[%s239 + $0x70] sm:$0xf]
      %v5616 = vld [vmem:[%s239 + $0x74] sm:$0xf]
      %v5617 = vld [vmem:[%s239 + $0x78] sm:$0xf]
      %v5618 = vld [vmem:[%s239 + $0x7c] sm:$0xf]
      %v5619 = vld [vmem:[%s239 + $0x80] sm:$0xf]
      %v5620 = vld [vmem:[%s239 + $0x84] sm:$0xf]
      %v5621 = vld [vmem:[%s239 + $0x88] sm:$0xf]
      %v5622 = vld [vmem:[%s239 + $0x8c] sm:$0xf]
      %v5623 = vld [vmem:[%s239 + $0x90] sm:$0xf]
      %v5624 = vld [vmem:[%s239 + $0x94] sm:$0xf]
      %v5625 = vld [vmem:[%s239 + $0x98] sm:$0x3]
      %v5626 = vld [vmem:[%s4] sm:$0xf]
      %v5627 = vld [vmem:[%s4 + $0x4] sm:$0xf]
      %v5628 = vld [vmem:[%s4 + $0x8] sm:$0xf]
      %v5629 = vld [vmem:[%s4 + $0xc] sm:$0xf]
      %v5630 = vld [vmem:[%s4 + $0x10] sm:$0xf]
      %v5631 = vld [vmem:[%s4 + $0x14] sm:$0xf]
      %v5632 = vld [vmem:[%s4 + $0x18] sm:$0xf]
      %v5633 = vld [vmem:[%s4 + $0x1c] sm:$0xf]
      %v5634 = vld [vmem:[%s4 + $0x20] sm:$0xf]
      %v5635 = vld [vmem:[%s4 + $0x24] sm:$0xf]
      %v5636 = vld [vmem:[%s4 + $0x28] sm:$0xf]
      %v5637 = vld [vmem:[%s4 + $0x2c] sm:$0xf]
      %v5638 = vld [vmem:[%s4 + $0x30] sm:$0xf]
      %v5639 = vld [vmem:[%s4 + $0x34] sm:$0xf]
      %v5640 = vld [vmem:[%s4 + $0x38] sm:$0xf]
      %v5641 = vld [vmem:[%s4 + $0x3c] sm:$0xf]
      %v5679 = vunpack.c.l.b16 %v5589
      %v5680 = vunpack.c.l.b16 %v5590
      %v5681 = vunpack.c.l.b16 %v5591
      %v5682 = vunpack.c.l.b16 %v5592
      %v5683 = vunpack.c.l.b16 %v5593
      %v5684 = vunpack.c.l.b16 %v5594
      %v5685 = vunpack.c.l.b16 %v5595
      %v5686 = vunpack.c.l.b16 %v5596
      %v5687 = vunpack.c.l.b16 %v5597
      %v5688 = vunpack.c.l.b16 %v5598
      %v5689 = vunpack.c.l.b16 %v5599
      %v5690 = vunpack.c.l.b16 %v5600
      %v5691 = vunpack.c.l.b16 %v5601
      %v5692 = vunpack.c.l.b16 %v5602
      %v5693 = vunpack.c.l.b16 %v5603
      %v5694 = vunpack.c.l.b16 %v5604
      %v5695 = vunpack.c.l.b16 %v5605
      %v5696 = vunpack.c.l.b16 %v5606
      %v5697 = vunpack.c.l.b16 %v5607
      %v5698 = vunpack.c.l.b16 %v5608
      %v5699 = vunpack.c.l.b16 %v5609
      %v5700 = vunpack.c.l.b16 %v5610
      %v5701 = vunpack.c.l.b16 %v5611
      %v5702 = vunpack.c.l.b16 %v5612
      %v5703 = vunpack.c.l.b16 %v5613
      %v5704 = vunpack.c.l.b16 %v5614
      %v5705 = vunpack.c.l.b16 %v5615
      %v5706 = vunpack.c.l.b16 %v5616
      %v5707 = vunpack.c.l.b16 %v5617
      %v5708 = vunpack.c.l.b16 %v5618
      %v5709 = vunpack.c.l.b16 %v5619
      %v5710 = vunpack.c.l.b16 %v5620
      %v5711 = vunpack.c.l.b16 %v5621
      %v5712 = vunpack.c.l.b16 %v5622
      %v5713 = vunpack.c.l.b16 %v5623
      %v5714 = vunpack.c.l.b16 %v5624
      %v5715 = vunpack.c.l.b16 %v5625
      %v5716 = vpack.c.b16 %v5680, %v5679
      %v5717 = vpack.c.b16 %v5682, %v5681
      %v5718 = vpack.c.b16 %v5684, %v5683
      %v5719 = vpack.c.b16 %v5686, %v5685
      %v5720 = vpack.c.b16 %v5688, %v5687
      %v5721 = vpack.c.b16 %v5690, %v5689
      %v5722 = vpack.c.b16 %v5692, %v5691
      %v5723 = vpack.c.b16 %v5694, %v5693
      %v5724 = vpack.c.b16 %v5696, %v5695
      %v5725 = vpack.c.b16 %v5698, %v5697
      %v5726 = vpack.c.b16 %v5700, %v5699
      %v5727 = vpack.c.b16 %v5702, %v5701
      %v5728 = vpack.c.b16 %v5704, %v5703
      %v5729 = vpack.c.b16 %v5706, %v5705
      %v5730 = vpack.c.b16 %v5708, %v5707
      %v5731 = vpack.c.b16 %v5710, %v5709
      %v5732 = vpack.c.b16 %v5712, %v5711
      %v5733 = vpack.c.b16 %v5714, %v5713
      %v5734 = vpack.c.b16 %v5715, %v5715
      %vm5735 = vsmask.f32 6400
      %v5737 = vshrl.u32 %v5716, 16
      %v5739 = vrot.slane %v5737, 1
      %v5740 = vshll.u32 %v5716, 16
      %v5742 = vrot.slane %v5740, 2
      %v5743 = vor.u32 %v5739, %v5742
      %v5745 = vshrl.u32 %v5717, 16
      %v5747 = vrot.slane %v5745, 1
      %v5748 = vshll.u32 %v5717, 16
      %v5750 = vrot.slane %v5748, 2
      %v5751 = vor.u32 %v5747, %v5750
      %v5752 = vsel %vm5735, %v5743, %v5751
      %v5754 = vshrl.u32 %v5718, 16
      %v5756 = vrot.slane %v5754, 1
      %v5757 = vshll.u32 %v5718, 16
      %v5759 = vrot.slane %v5757, 2
      %v5760 = vor.u32 %v5756, %v5759
      %v5761 = vsel %vm5735, %v5751, %v5760
      %v5763 = vshrl.u32 %v5719, 16
      %v5765 = vrot.slane %v5763, 1
      %v5766 = vshll.u32 %v5719, 16
      %v5768 = vrot.slane %v5766, 2
      %v5769 = vor.u32 %v5765, %v5768
      %v5770 = vsel %vm5735, %v5760, %v5769
      %v5772 = vshrl.u32 %v5720, 16
      %v5774 = vrot.slane %v5772, 1
      %v5775 = vshll.u32 %v5720, 16
      %v5777 = vrot.slane %v5775, 2
      %v5778 = vor.u32 %v5774, %v5777
      %v5779 = vsel %vm5735, %v5769, %v5778
      %v5781 = vshrl.u32 %v5721, 16
      %v5783 = vrot.slane %v5781, 1
      %v5784 = vshll.u32 %v5721, 16
      %v5786 = vrot.slane %v5784, 2
      %v5787 = vor.u32 %v5783, %v5786
      %v5788 = vsel %vm5735, %v5778, %v5787
      %v5790 = vshrl.u32 %v5722, 16
      %v5792 = vrot.slane %v5790, 1
      %v5793 = vshll.u32 %v5722, 16
      %v5795 = vrot.slane %v5793, 2
      %v5796 = vor.u32 %v5792, %v5795
      %v5797 = vsel %vm5735, %v5787, %v5796
      %v5799 = vshrl.u32 %v5723, 16
      %v5801 = vrot.slane %v5799, 1
      %v5802 = vshll.u32 %v5723, 16
      %v5804 = vrot.slane %v5802, 2
      %v5805 = vor.u32 %v5801, %v5804
      %v5806 = vsel %vm5735, %v5796, %v5805
      %v5808 = vshrl.u32 %v5724, 16
      %v5810 = vrot.slane %v5808, 1
      %v5811 = vshll.u32 %v5724, 16
      %v5813 = vrot.slane %v5811, 2
      %v5814 = vor.u32 %v5810, %v5813
      %v5815 = vsel %vm5735, %v5805, %v5814
      %v5817 = vshrl.u32 %v5725, 16
      %v5819 = vrot.slane %v5817, 1
      %v5820 = vshll.u32 %v5725, 16
      %v5822 = vrot.slane %v5820, 2
      %v5823 = vor.u32 %v5819, %v5822
      %v5824 = vsel %vm5735, %v5814, %v5823
      %v5826 = vshrl.u32 %v5726, 16
      %v5828 = vrot.slane %v5826, 1
      %v5829 = vshll.u32 %v5726, 16
      %v5831 = vrot.slane %v5829, 2
      %v5832 = vor.u32 %v5828, %v5831
      %v5833 = vsel %vm5735, %v5823, %v5832
      %v5835 = vshrl.u32 %v5727, 16
      %v5837 = vrot.slane %v5835, 1
      %v5838 = vshll.u32 %v5727, 16
      %v5840 = vrot.slane %v5838, 2
      %v5841 = vor.u32 %v5837, %v5840
      %v5842 = vsel %vm5735, %v5832, %v5841
      %v5844 = vshrl.u32 %v5728, 16
      %v5846 = vrot.slane %v5844, 1
      %v5847 = vshll.u32 %v5728, 16
      %v5849 = vrot.slane %v5847, 2
      %v5850 = vor.u32 %v5846, %v5849
      %v5851 = vsel %vm5735, %v5841, %v5850
      %v5853 = vshrl.u32 %v5729, 16
      %v5855 = vrot.slane %v5853, 1
      %v5856 = vshll.u32 %v5729, 16
      %v5858 = vrot.slane %v5856, 2
      %v5859 = vor.u32 %v5855, %v5858
      %v5860 = vsel %vm5735, %v5850, %v5859
      %v5862 = vshrl.u32 %v5730, 16
      %v5864 = vrot.slane %v5862, 1
      %v5865 = vshll.u32 %v5730, 16
      %v5867 = vrot.slane %v5865, 2
      %v5868 = vor.u32 %v5864, %v5867
      %v5869 = vsel %vm5735, %v5859, %v5868
      %v5871 = vshrl.u32 %v5731, 16
      %v5873 = vrot.slane %v5871, 1
      %v5874 = vshll.u32 %v5731, 16
      %v5876 = vrot.slane %v5874, 2
      %v5877 = vor.u32 %v5873, %v5876
      %v5878 = vsel %vm5735, %v5868, %v5877
      %v5880 = vshrl.u32 %v5732, 16
      %v5882 = vrot.slane %v5880, 1
      %v5883 = vshll.u32 %v5732, 16
      %v5885 = vrot.slane %v5883, 2
      %v5886 = vor.u32 %v5882, %v5885
      %v5887 = vsel %vm5735, %v5877, %v5886
      %v5889 = vshrl.u32 %v5733, 16
      %v5891 = vrot.slane %v5889, 1
      %v5892 = vshll.u32 %v5733, 16
      %v5894 = vrot.slane %v5892, 2
      %v5895 = vor.u32 %v5891, %v5894
      %v5896 = vsel %vm5735, %v5886, %v5895
      %v5898 = vshrl.u32 %v5734, 16
      %v5900 = vrot.slane %v5898, 1
      %v5901 = vshll.u32 %v5734, 16
      %v5903 = vrot.slane %v5901, 2
      %v5904 = vor.u32 %v5900, %v5903
      %v5905 = vsel %vm5735, %v5895, %v5904
      %v5940 = vunpack.c.l.b16 %v5626
      %v5941 = vunpack.c.l.b16 %v5627
      %v5942 = vunpack.c.l.b16 %v5628
      %v5943 = vunpack.c.l.b16 %v5629
      %v5944 = vunpack.c.l.b16 %v5630
      %v5945 = vunpack.c.l.b16 %v5631
      %v5946 = vunpack.c.l.b16 %v5632
      %v5947 = vunpack.c.l.b16 %v5633
      %v5948 = vunpack.c.l.b16 %v5634
      %v5949 = vunpack.c.l.b16 %v5635
      %v5950 = vunpack.c.l.b16 %v5636
      %v5951 = vunpack.c.l.b16 %v5637
      %v5952 = vunpack.c.l.b16 %v5638
      %v5953 = vunpack.c.l.b16 %v5639
      %v5954 = vunpack.c.l.b16 %v5640
      %v5955 = vunpack.c.l.b16 %v5641
      %v5956 = vpack.c.b16 %v5941, %v5940
      %v5957 = vpack.c.b16 %v5943, %v5942
      %v5958 = vpack.c.b16 %v5945, %v5944
      %v5959 = vpack.c.b16 %v5947, %v5946
      %v5960 = vpack.c.b16 %v5949, %v5948
      %v5961 = vpack.c.b16 %v5951, %v5950
      %v5962 = vpack.c.b16 %v5953, %v5952
      %v5963 = vpack.c.b16 %v5955, %v5954
      %5972 = vmatprep.subr.bf16.mxu0 0
      %5973 = vmatpush1.bf16.msra.mxu0 %v5963
      %5974 = vmatprep.subr.bf16.mxu0 0
      %5975 = vmatpush1.bf16.msra.mxu0 %v5962
      %5976 = vmatprep.subr.bf16.mxu0 0
      %5977 = vmatpush1.bf16.msra.mxu0 %v5961
      %5978 = vmatprep.subr.bf16.mxu0 0
      %5979 = vmatpush1.bf16.msra.mxu0 %v5960
      %5980 = vmatprep.subr.bf16.mxu0 0
      %5981 = vmatpush1.bf16.msra.mxu0 %v5959
      %5982 = vmatprep.subr.bf16.mxu0 0
      %5983 = vmatpush1.bf16.msra.mxu0 %v5958
      %5984 = vmatprep.subr.bf16.mxu0 0
      %5985 = vmatpush1.bf16.msra.mxu0 %v5957
      %5986 = vmatprep.subr.bf16.mxu0 0
      %5987 = vmatpush1.bf16.msra.mxu0 %v5956
      %5988 = vmatprep.subr.bf16.mxu0 0
      %5989 = vmatpush2.bf16.msra.mxu0 0
      %5990 = vmatprep.subr.bf16.mxu0 0
      %5991 = vmatpush2.bf16.msra.mxu0 0
      %5992 = vmatprep.subr.bf16.mxu0 0
      %5993 = vmatpush2.bf16.msra.mxu0 0
      %5994 = vmatprep.subr.bf16.mxu0 0
      %5995 = vmatpush2.bf16.msra.mxu0 0
      %5996 = vmatprep.subr.bf16.mxu0 0
      %5997 = vmatpush2.bf16.msra.mxu0 0
      %5998 = vmatprep.subr.bf16.mxu0 0
      %5999 = vmatpush2.bf16.msra.mxu0 0
      %6000 = vmatprep.subr.bf16.mxu0 0
      %6001 = vmatpush2.bf16.msra.mxu0 0
      %6002 = vmatprep.subr.bf16.mxu0 0
      %6003 = vmatpush2.bf16.msra.mxu0 0
      %6004 = vmatprep.mubr.bf16.mxu0 0
      %6005 = vmatmul.mubr.bf16.gmra.mxu0 %v5752
      %v6006 = vpop.f32.mrf.mxu0
      %v6007 = vadd.f32 0.0, %v6006
      %v6008 = vpop.f32.mrf.mxu0
      %v6009 = vpop.f32.mrf.mxu0
      %v6010 = vadd.f32 0.0, %v6009
      %v6011 = vpop.f32.mrf.mxu0
      %6012 = vmatprep.mubr.bf16.mxu0 0
      %6013 = vmatmul.mubr.bf16.gmra.mxu0 %v5761
      %v6014 = vpop.f32.mrf.mxu0
      %v6015 = vadd.f32 0.0, %v6014
      %v6016 = vpop.f32.mrf.mxu0
      %v6017 = vpop.f32.mrf.mxu0
      %v6018 = vadd.f32 0.0, %v6017
      %v6019 = vpop.f32.mrf.mxu0
      %6020 = vmatprep.mubr.bf16.mxu0 0
      %6021 = vmatmul.mubr.bf16.gmra.mxu0 %v5770
      %v6022 = vpop.f32.mrf.mxu0
      %v6023 = vadd.f32 0.0, %v6022
      %v6024 = vpop.f32.mrf.mxu0
      %v6025 = vpop.f32.mrf.mxu0
      %v6026 = vadd.f32 0.0, %v6025
      %v6027 = vpop.f32.mrf.mxu0
      %6028 = vmatprep.mubr.bf16.mxu0 0
      %6029 = vmatmul.mubr.bf16.gmra.mxu0 %v5779
      %v6030 = vpop.f32.mrf.mxu0
      %v6031 = vadd.f32 0.0, %v6030
      %v6032 = vpop.f32.mrf.mxu0
      %v6033 = vpop.f32.mrf.mxu0
      %v6034 = vadd.f32 0.0, %v6033
      %v6035 = vpop.f32.mrf.mxu0
      %6036 = vmatprep.mubr.bf16.mxu0 0
      %6037 = vmatmul.mubr.bf16.gmra.mxu0 %v5788
      %v6038 = vpop.f32.mrf.mxu0
      %v6039 = vadd.f32 0.0, %v6038
      %v6040 = vpop.f32.mrf.mxu0
      %v6041 = vpop.f32.mrf.mxu0
      %v6042 = vadd.f32 0.0, %v6041
      %v6043 = vpop.f32.mrf.mxu0
      %6044 = vmatprep.mubr.bf16.mxu0 0
      %6045 = vmatmul.mubr.bf16.gmra.mxu0 %v5797
      %v6046 = vpop.f32.mrf.mxu0
      %v6047 = vadd.f32 0.0, %v6046
      %v6048 = vpop.f32.mrf.mxu0
      %v6049 = vpop.f32.mrf.mxu0
      %v6050 = vadd.f32 0.0, %v6049
      %v6051 = vpop.f32.mrf.mxu0
      %6052 = vmatprep.mubr.bf16.mxu0 0
      %6053 = vmatmul.mubr.bf16.gmra.mxu0 %v5806
      %v6054 = vpop.f32.mrf.mxu0
      %v6055 = vadd.f32 0.0, %v6054
      %v6056 = vpop.f32.mrf.mxu0
      %v6057 = vpop.f32.mrf.mxu0
      %v6058 = vadd.f32 0.0, %v6057
      %v6059 = vpop.f32.mrf.mxu0
      %6060 = vmatprep.mubr.bf16.mxu0 0
      %6061 = vmatmul.mubr.bf16.gmra.mxu0 %v5815
      %v6062 = vpop.f32.mrf.mxu0
      %v6063 = vadd.f32 0.0, %v6062
      %v6064 = vpop.f32.mrf.mxu0
      %v6065 = vpop.f32.mrf.mxu0
      %v6066 = vadd.f32 0.0, %v6065
      %v6067 = vpop.f32.mrf.mxu0
      %6068 = vmatprep.mubr.bf16.mxu0 0
      %6069 = vmatmul.mubr.bf16.gmra.mxu0 %v5824
      %v6070 = vpop.f32.mrf.mxu0
      %v6071 = vadd.f32 0.0, %v6070
      %v6072 = vpop.f32.mrf.mxu0
      %v6073 = vpop.f32.mrf.mxu0
      %v6074 = vadd.f32 0.0, %v6073
      %v6075 = vpop.f32.mrf.mxu0
      %6076 = vmatprep.mubr.bf16.mxu0 0
      %6077 = vmatmul.mubr.bf16.gmra.mxu0 %v5833
      %v6078 = vpop.f32.mrf.mxu0
      %v6079 = vadd.f32 0.0, %v6078
      %v6080 = vpop.f32.mrf.mxu0
      %v6081 = vpop.f32.mrf.mxu0
      %v6082 = vadd.f32 0.0, %v6081
      %v6083 = vpop.f32.mrf.mxu0
      %6084 = vmatprep.mubr.bf16.mxu0 0
      %6085 = vmatmul.mubr.bf16.gmra.mxu0 %v5842
      %v6086 = vpop.f32.mrf.mxu0
      %v6087 = vadd.f32 0.0, %v6086
      %v6088 = vpop.f32.mrf.mxu0
      %v6089 = vpop.f32.mrf.mxu0
      %v6090 = vadd.f32 0.0, %v6089
      %v6091 = vpop.f32.mrf.mxu0
      %6092 = vmatprep.mubr.bf16.mxu0 0
      %6093 = vmatmul.mubr.bf16.gmra.mxu0 %v5851
      %v6094 = vpop.f32.mrf.mxu0
      %v6095 = vadd.f32 0.0, %v6094
      %v6096 = vpop.f32.mrf.mxu0
      %v6097 = vpop.f32.mrf.mxu0
      %v6098 = vadd.f32 0.0, %v6097
      %v6099 = vpop.f32.mrf.mxu0
      %6100 = vmatprep.mubr.bf16.mxu0 0
      %6101 = vmatmul.mubr.bf16.gmra.mxu0 %v5860
      %v6102 = vpop.f32.mrf.mxu0
      %v6103 = vadd.f32 0.0, %v6102
      %v6104 = vpop.f32.mrf.mxu0
      %v6105 = vpop.f32.mrf.mxu0
      %v6106 = vadd.f32 0.0, %v6105
      %v6107 = vpop.f32.mrf.mxu0
      %6108 = vmatprep.mubr.bf16.mxu0 0
      %6109 = vmatmul.mubr.bf16.gmra.mxu0 %v5869
      %v6110 = vpop.f32.mrf.mxu0
      %v6111 = vadd.f32 0.0, %v6110
      %v6112 = vpop.f32.mrf.mxu0
      %v6113 = vpop.f32.mrf.mxu0
      %v6114 = vadd.f32 0.0, %v6113
      %v6115 = vpop.f32.mrf.mxu0
      %6116 = vmatprep.mubr.bf16.mxu0 0
      %6117 = vmatmul.mubr.bf16.gmra.mxu0 %v5878
      %v6118 = vpop.f32.mrf.mxu0
      %v6119 = vadd.f32 0.0, %v6118
      %v6120 = vpop.f32.mrf.mxu0
      %v6121 = vpop.f32.mrf.mxu0
      %v6122 = vadd.f32 0.0, %v6121
      %v6123 = vpop.f32.mrf.mxu0
      %6124 = vmatprep.mubr.bf16.mxu0 0
      %6125 = vmatmul.mubr.bf16.gmra.mxu0 %v5887
      %v6126 = vpop.f32.mrf.mxu0
      %v6127 = vadd.f32 0.0, %v6126
      %v6128 = vpop.f32.mrf.mxu0
      %v6129 = vpop.f32.mrf.mxu0
      %v6130 = vadd.f32 0.0, %v6129
      %v6131 = vpop.f32.mrf.mxu0
      %6132 = vmatprep.mubr.bf16.mxu0 0
      %6133 = vmatmul.mubr.bf16.gmra.mxu0 %v5896
      %v6134 = vpop.f32.mrf.mxu0
      %v6135 = vadd.f32 0.0, %v6134
      %v6136 = vpop.f32.mrf.mxu0
      %v6137 = vpop.f32.mrf.mxu0
      %v6138 = vadd.f32 0.0, %v6137
      %v6139 = vpop.f32.mrf.mxu0
      %6140 = vmatprep.mubr.bf16.mxu0 0
      %6141 = vmatmul.mubr.bf16.gmra.mxu0 %v5905
      %v6142 = vpop.f32.mrf.mxu0
      %v6143 = vadd.f32 0.0, %v6142
      %v6144 = vpop.f32.mrf.mxu0
      %v6145 = vpop.f32.mrf.mxu0
      %v6146 = vadd.f32 0.0, %v6145
      %v6147 = vpop.f32.mrf.mxu0
      %6148 = vdwg.mxu0
      %v6149 = vld [vmem:[%s2 + $0x2] sm:$0x1]
      %v6150 = vlaneseq
      %v6151 = vshrl.u32 %v6150, 7
      %v6152 = vsub.s32 0, %v6151
      %v6153 = vrot.slane %v6149, %v6152
      %v6154 = vmul.f32 %v6007, %v6153
      %v6155 = vmul.f32 %v6010, %v6153
      %v6156 = vmul.f32 %v6015, %v6153
      %v6157 = vmul.f32 %v6018, %v6153
      %v6158 = vmul.f32 %v6023, %v6153
      %v6159 = vmul.f32 %v6026, %v6153
      %v6160 = vmul.f32 %v6031, %v6153
      %v6161 = vmul.f32 %v6034, %v6153
      %v6162 = vmul.f32 %v6039, %v6153
      %v6163 = vmul.f32 %v6042, %v6153
      %v6164 = vmul.f32 %v6047, %v6153
      %v6165 = vmul.f32 %v6050, %v6153
      %v6166 = vmul.f32 %v6055, %v6153
      %v6167 = vmul.f32 %v6058, %v6153
      %v6168 = vmul.f32 %v6063, %v6153
      %v6169 = vmul.f32 %v6066, %v6153
      %v6170 = vmul.f32 %v6071, %v6153
      %v6171 = vmul.f32 %v6074, %v6153
      %v6172 = vmul.f32 %v6079, %v6153
      %v6173 = vmul.f32 %v6082, %v6153
      %v6174 = vmul.f32 %v6087, %v6153
      %v6175 = vmul.f32 %v6090, %v6153
      %v6176 = vmul.f32 %v6095, %v6153
      %v6177 = vmul.f32 %v6098, %v6153
      %v6178 = vmul.f32 %v6103, %v6153
      %v6179 = vmul.f32 %v6106, %v6153
      %v6180 = vmul.f32 %v6111, %v6153
      %v6181 = vmul.f32 %v6114, %v6153
      %v6182 = vmul.f32 %v6119, %v6153
      %v6183 = vmul.f32 %v6122, %v6153
      %v6184 = vmul.f32 %v6127, %v6153
      %v6185 = vmul.f32 %v6130, %v6153
      %v6186 = vmul.f32 %v6135, %v6153
      %v6187 = vmul.f32 %v6138, %v6153
      %v6188 = vmul.f32 %v6143, %v6153
      %v6189 = vmul.f32 %v6146, %v6153
      %v6190 = vadd.f32 %v5553, %v6154
      %v6191 = vadd.f32 %v5554, %v6155
      %v6192 = vadd.f32 %v5555, %v6156
      %v6193 = vadd.f32 %v5556, %v6157
      %v6194 = vadd.f32 %v5557, %v6158
      %v6195 = vadd.f32 %v5558, %v6159
      %v6196 = vadd.f32 %v5559, %v6160
      %v6197 = vadd.f32 %v5560, %v6161
      %v6198 = vadd.f32 %v5561, %v6162
      %v6199 = vadd.f32 %v5562, %v6163
      %v6200 = vadd.f32 %v5563, %v6164
      %v6201 = vadd.f32 %v5564, %v6165
      %v6202 = vadd.f32 %v5565, %v6166
      %v6203 = vadd.f32 %v5566, %v6167
      %v6204 = vadd.f32 %v5567, %v6168
      %v6205 = vadd.f32 %v5568, %v6169
      %v6206 = vadd.f32 %v5569, %v6170
      %v6207 = vadd.f32 %v5570, %v6171
      %v6208 = vadd.f32 %v5571, %v6172
      %v6209 = vadd.f32 %v5572, %v6173
      %v6210 = vadd.f32 %v5573, %v6174
      %v6211 = vadd.f32 %v5574, %v6175
      %v6212 = vadd.f32 %v5575, %v6176
      %v6213 = vadd.f32 %v5576, %v6177
      %v6214 = vadd.f32 %v5577, %v6178
      %v6215 = vadd.f32 %v5578, %v6179
      %v6216 = vadd.f32 %v5579, %v6180
      %v6217 = vadd.f32 %v5580, %v6181
      %v6218 = vadd.f32 %v5581, %v6182
      %v6219 = vadd.f32 %v5582, %v6183
      %v6220 = vadd.f32 %v5583, %v6184
      %v6221 = vadd.f32 %v5584, %v6185
      %v6222 = vadd.f32 %v5585, %v6186
      %v6223 = vadd.f32 %v5586, %v6187
      %v6224 = vadd.f32 %v5587, %v6188
      %v6225 = vadd.f32 %v5588, %v6189
      %v6226 = vmax.f32 %v6190, 0.0
      %v6227 = vmax.f32 %v6191, 0.0
      %v6228 = vmax.f32 %v6192, 0.0
      %v6229 = vmax.f32 %v6193, 0.0
      %v6230 = vmax.f32 %v6194, 0.0
      %v6231 = vmax.f32 %v6195, 0.0
      %v6232 = vmax.f32 %v6196, 0.0
      %v6233 = vmax.f32 %v6197, 0.0
      %v6234 = vmax.f32 %v6198, 0.0
      %v6235 = vmax.f32 %v6199, 0.0
      %v6236 = vmax.f32 %v6200, 0.0
      %v6237 = vmax.f32 %v6201, 0.0
      %v6238 = vmax.f32 %v6202, 0.0
      %v6239 = vmax.f32 %v6203, 0.0
      %v6240 = vmax.f32 %v6204, 0.0
      %v6241 = vmax.f32 %v6205, 0.0
      %v6242 = vmax.f32 %v6206, 0.0
      %v6243 = vmax.f32 %v6207, 0.0
      %v6244 = vmax.f32 %v6208, 0.0
      %v6245 = vmax.f32 %v6209, 0.0
      %v6246 = vmax.f32 %v6210, 0.0
      %v6247 = vmax.f32 %v6211, 0.0
      %v6248 = vmax.f32 %v6212, 0.0
      %v6249 = vmax.f32 %v6213, 0.0
      %v6250 = vmax.f32 %v6214, 0.0
      %v6251 = vmax.f32 %v6215, 0.0
      %v6252 = vmax.f32 %v6216, 0.0
      %v6253 = vmax.f32 %v6217, 0.0
      %v6254 = vmax.f32 %v6218, 0.0
      %v6255 = vmax.f32 %v6219, 0.0
      %v6256 = vmax.f32 %v6220, 0.0
      %v6257 = vmax.f32 %v6221, 0.0
      %v6258 = vmax.f32 %v6222, 0.0
      %v6259 = vmax.f32 %v6223, 0.0
      %v6260 = vmax.f32 %v6224, 0.0
      %v6261 = vmax.f32 %v6225, 0.0
      %6262 = vst [vmem:[%s244] sm:$0xff] %v6226
      %6263 = vst [vmem:[%s244 + $0x8] sm:$0xff] %v6227
      %6264 = vst [vmem:[%s244 + $0x10] sm:$0xff] %v6228
      %6265 = vst [vmem:[%s244 + $0x18] sm:$0xff] %v6229
      %6266 = vst [vmem:[%s244 + $0x20] sm:$0xff] %v6230
      %6267 = vst [vmem:[%s244 + $0x28] sm:$0xff] %v6231
      %6268 = vst [vmem:[%s244 + $0x30] sm:$0xff] %v6232
      %6269 = vst [vmem:[%s244 + $0x38] sm:$0xff] %v6233
      %6270 = vst [vmem:[%s244 + $0x40] sm:$0xff] %v6234
      %6271 = vst [vmem:[%s244 + $0x48] sm:$0xff] %v6235
      %6272 = vst [vmem:[%s244 + $0x50] sm:$0xff] %v6236
      %6273 = vst [vmem:[%s244 + $0x58] sm:$0xff] %v6237
      %6274 = vst [vmem:[%s244 + $0x60] sm:$0xff] %v6238
      %6275 = vst [vmem:[%s244 + $0x68] sm:$0xff] %v6239
      %6276 = vst [vmem:[%s244 + $0x70] sm:$0xff] %v6240
      %6277 = vst [vmem:[%s244 + $0x78] sm:$0xff] %v6241
      %6278 = vst [vmem:[%s244 + $0x80] sm:$0xff] %v6242
      %6279 = vst [vmem:[%s244 + $0x88] sm:$0xff] %v6243
      %6280 = vst [vmem:[%s244 + $0x90] sm:$0xff] %v6244
      %6281 = vst [vmem:[%s244 + $0x98] sm:$0xff] %v6245
      %6282 = vst [vmem:[%s244 + $0xa0] sm:$0xff] %v6246
      %6283 = vst [vmem:[%s244 + $0xa8] sm:$0xff] %v6247
      %6284 = vst [vmem:[%s244 + $0xb0] sm:$0xff] %v6248
      %6285 = vst [vmem:[%s244 + $0xb8] sm:$0xff] %v6249
      %6286 = vst [vmem:[%s244 + $0xc0] sm:$0xff] %v6250
      %6287 = vst [vmem:[%s244 + $0xc8] sm:$0xff] %v6251
      %6288 = vst [vmem:[%s244 + $0xd0] sm:$0xff] %v6252
      %6289 = vst [vmem:[%s244 + $0xd8] sm:$0xff] %v6253
      %6290 = vst [vmem:[%s244 + $0xe0] sm:$0xff] %v6254
      %6291 = vst [vmem:[%s244 + $0xe8] sm:$0xff] %v6255
      %6292 = vst [vmem:[%s244 + $0xf0] sm:$0xff] %v6256
      %6293 = vst [vmem:[%s244 + $0xf8] sm:$0xff] %v6257
      %6294 = vst [vmem:[%s244 + $0x100] sm:$0xff] %v6258
      %6295 = vst [vmem:[%s244 + $0x108] sm:$0xff] %v6259
      %6296 = vst [vmem:[%s244 + $0x110] sm:$0xff] %v6260
      %6297 = vst [vmem:[%s244 + $0x118] sm:$0xff] %v6261
      %p6298 = scmp.lt.s32.totalorder %s16, 1
      %s6299 = scalar_select %p6298, %s16, 1
      %s6300 = smul.addr %s6299, 36
      %s6301 = smul.addr %s6300, 8
      %s6302 = scalar_lea.vmem %s5, %s6301
      // Predicated region
      $region41: #{residual_block_forward.3} parent=39 // pred_check
        %p6303 = pneg %p149
      $region42: #{residual_block_forward.3} parent=39 // pred_check_branch
        %6305 = sbr.rel (%p6303) target = $region44
      $region43: #{residual_block_forward.3} parent=39 // pred_region
        _
      $region44: #{residual_block_forward.3} parent=39 // pred_fallthru
        _
    $region40: #{residual_block_forward.3} parent=5 // pred_fallthru
      _
    %p6306 = scmp.le.s32.totalorder 2, %s11
    // Predicated region
    $region45: #{residual_block_forward.3} parent=5 // pred_check
      %p6307 = pneg %p6306
    $region46: #{residual_block_forward.3} parent=5 // pred_check_branch
      %6309 = sbr.rel (%p6307) target = $region48
    $region47: #{residual_block_forward.3} parent=5 // pred_region
      %s6310 = ssub.s32 %s11, 2
      // Predicated region
      $region49: #{residual_block_forward.3} parent=47 // pred_check
        %p6311 = pneg %p155
      $region50: #{residual_block_forward.3} parent=47 // pred_check_branch
        %6313 = sbr.rel (%p6311) target = $region52
      $region51: #{residual_block_forward.3} parent=47 // pred_region
        %p6314 = scmp.lt.s32.totalorder %s17, 1
        %s6315 = scalar_select %p6314, %s17, 1
        %s6316 = smul.addr %s6315, 36
        %s6317 = smul.addr %s6316, 8
        %s6318 = scalar_lea.vmem %s5, %s6317
      $region52: #{residual_block_forward.3} parent=47 // pred_fallthru
        _
    $region48: #{residual_block_forward.3} parent=5 // pred_fallthru
      _
  $region6: #{residual_block_forward.3} parent=0 // loop_footer
    %s15 = sadd.s32 1, %s11
  $region7: #{residual_block_forward.3} parent=0 // loop_footer_branch
    %10 = sbr.rel target = $region3
  $region8: #{residual_block_forward.3} parent=0 // loop_exit
    _

// kernel: residual_block_forward.2
$region0: #{residual_block_forward.2}
  #allocation0 [shape = 'u32[]', space=smem, size = 0x4, offset = 0x4, fixed_abs, tag = 'smem constant byte address 0x4 - core index']
  #allocation1 [shape = 'u32[144,128]{1,0:T(1,128)}', space=vmem, size = 0x12000, scoped, tag = 'internal scratch']
  #allocation2 [shape = 'bf16[288,1152]{1,0:T(8,128)(2,1)}', space=vmem, size = 0xa2000, scoped, tag = 'scratch operand']
  %s0 = inlined_call_operand.vmem [shape: bf16[2,342,128], index: 0, kind: input, shape index: {}]
  %s1 = inlined_call_operand.vmem [shape: bf16[1152,128], index: 1, kind: input, shape index: {}]
  %s2 = inlined_call_operand.vmem [shape: f32[3,128], index: 2, kind: input, shape index: {}]
  %s3 = inlined_call_operand.vmem [shape: bf16[2,342,128], index: 3, kind: output, shape index: {}]
  %s4 = sld [smem:[#allocation0]]
  $region45: #{residual_block_forward.2} parent=0
    _
  %s6 = ssub.s32 1, %s4
  %s7 = scalar_select 0, %s6, %s4
  loop: start=0, step=1, limit=4
  $region2: #{residual_block_forward.2} parent=0 // loop_pre_header
    _
  $region3: #{residual_block_forward.2} parent=0 // loop_header
    %s9 = sphi 0, %s13
    %p10 = scmp.ge.s32.totalorder %s9, 4
    %s19 = sphi 0, %s21
    %s22 = sphi 0, %s19
    %s23 = sphi 0, %s22
    %s39 = sphi 0, %s23
    %s43 = sphi 0, %s43
    %s45 = sphi 0, %s43
    %s46 = sphi 0, %s45
    %s60 = sphi 0, %s46
    %s64 = sphi 0, %s64
    %s66 = sphi 0, %s64
    %s67 = sphi 0, %s66
    %s81 = sphi 0, %s67
    %s87 = sphi 0, %s89
    %s90 = sphi 0, %s87
    %s91 = sphi 0, %s90
    %s107 = sphi 0, %s91
  $region4: #{residual_block_forward.2} parent=0 // loop_header_branch
    %12 = sbr.rel (%p10) target = $region8
  $region5: #{residual_block_forward.2} parent=0 // loop_body
    %s14 = ssub.s32 %s9, 1
    %s15 = ssub.s32 %s9, 2
    %s16 = sadd.s32 %s9, 1
    %s17 = ssub.s32 %s9, %s16
    %p18 = scmp.eq.s32.totalorder %s17, 0
    %s20 = sadd.s32 %s19, 1
    %s21 = scalar_select %p18, %s19, %s20
    %p24 = pneg %p18
    %p25 = scmp.eq.s32.totalorder %s9, 1
    %p26 = por %p24, %p25
    %p27 = scmp.ne.s32.totalorder %s19, %s22
    %p28 = scmp.eq.s32.totalorder %s9, 0
    %p29 = por %p27, %p28
    %p30 = scmp.ne.s32.totalorder %s19, %s22
    %p31 = scmp.eq.s32.totalorder %s14, 1
    %p32 = por %p30, %p31
    %p33 = scmp.ne.s32.totalorder %s22, %s23
    %p34 = scmp.eq.s32.totalorder %s14, 0
    %p35 = por %p33, %p34
    %p36 = scmp.ne.s32.totalorder %s22, %s23
    %p37 = scmp.eq.s32.totalorder %s15, 1
    %p38 = por %p36, %p37
    %p40 = scmp.ne.s32.totalorder %s23, %s39
    %p41 = scmp.eq.s32.totalorder %s15, 0
    %p42 = por %p40, %p41
    %s44 = sadd.s32 %s43, 1
    %p47 = scmp.eq.s32.totalorder %s9, 1
    %p48 = scmp.ne.s32.totalorder %s43, %s45
    %p49 = scmp.eq.s32.totalorder %s9, 0
    %p50 = por %p48, %p49
    %p51 = scmp.ne.s32.totalorder %s43, %s45
    %p52 = scmp.eq.s32.totalorder %s14, 1
    %p53 = por %p51, %p52
    %p54 = scmp.ne.s32.totalorder %s45, %s46
    %p55 = scmp.eq.s32.totalorder %s14, 0
    %p56 = por %p54, %p55
    %p57 = scmp.ne.s32.totalorder %s45, %s46
    %p58 = scmp.eq.s32.totalorder %s15, 1
    %p59 = por %p57, %p58
    %p61 = scmp.ne.s32.totalorder %s46, %s60
    %p62 = scmp.eq.s32.totalorder %s15, 0
    %p63 = por %p61, %p62
    %s65 = sadd.s32 %s64, 1
    %p68 = scmp.eq.s32.totalorder %s9, 1
    %p69 = scmp.ne.s32.totalorder %s64, %s66
    %p70 = scmp.eq.s32.totalorder %s9, 0
    %p71 = por %p69, %p70
    %p72 = scmp.ne.s32.totalorder %s64, %s66
    %p73 = scmp.eq.s32.totalorder %s14, 1
    %p74 = por %p72, %p73
    %p75 = scmp.ne.s32.totalorder %s66, %s67
    %p76 = scmp.eq.s32.totalorder %s14, 0
    %p77 = por %p75, %p76
    %p78 = scmp.ne.s32.totalorder %s66, %s67
    %p79 = scmp.eq.s32.totalorder %s15, 1
    %p80 = por %p78, %p79
    %p82 = scmp.ne.s32.totalorder %s67, %s81
    %p83 = scmp.eq.s32.totalorder %s15, 0
    %p84 = por %p82, %p83
    %s85 = ssub.s32 %s9, %s16
    %p86 = scmp.eq.s32.totalorder %s85, 0
    %s88 = sadd.s32 %s87, 1
    %s89 = scalar_select %p86, %s87, %s88
    %p92 = pneg %p86
    %p93 = scmp.eq.s32.totalorder %s9, 1
    %p94 = por %p92, %p93
    %p95 = scmp.ne.s32.totalorder %s87, %s90
    %p96 = scmp.eq.s32.totalorder %s9, 0
    %p97 = por %p95, %p96
    %p98 = scmp.ne.s32.totalorder %s87, %s90
    %p99 = scmp.eq.s32.totalorder %s14, 1
    %p100 = por %p98, %p99
    %p101 = scmp.ne.s32.totalorder %s90, %s91
    %p102 = scmp.eq.s32.totalorder %s14, 0
    %p103 = por %p101, %p102
    %p104 = scmp.ne.s32.totalorder %s90, %s91
    %p105 = scmp.eq.s32.totalorder %s15, 1
    %p106 = por %p104, %p105
    %p108 = scmp.ne.s32.totalorder %s91, %s107
    %p109 = scmp.eq.s32.totalorder %s15, 0
    %p110 = por %p108, %p109
    %p111 = scmp.le.s32.totalorder 1, %s9
    %p112 = scmp.lt.s32.totalorder %s9, 3
    %p113 = pnand %p111, %p112
    %p114 = pneg %p113
    // Predicated region
    $region9: #{residual_block_forward.2} parent=5 // pred_check
      _
    $region10: #{residual_block_forward.2} parent=5 // pred_check_branch
      %116 = sbr.rel (%p113) target = $region12
    $region11: #{residual_block_forward.2} parent=5 // pred_region
      %s117 = ssub.s32 %s9, 1
      // Predicated region
      $region13: #{residual_block_forward.2} parent=11 // pred_check
        %p118 = pneg %p56
      $region14: #{residual_block_forward.2} parent=11 // pred_check_branch
        %120 = sbr.rel (%p118) target = $region16
      $region15: #{residual_block_forward.2} parent=11 // pred_region
        _
      $region16: #{residual_block_forward.2} parent=11 // pred_fallthru
        _
      // Predicated region
      $region17: #{residual_block_forward.2} parent=11 // pred_check
        %p121 = pneg %p77
      $region18: #{residual_block_forward.2} parent=11 // pred_check_branch
        %123 = sbr.rel (%p121) target = $region20
      $region19: #{residual_block_forward.2} parent=11 // pred_region
        _
      $region20: #{residual_block_forward.2} parent=11 // pred_fallthru
        _
    $region12: #{residual_block_forward.2} parent=5 // pred_fallthru
      _
    %p124 = scmp.lt.s32.totalorder %s9, 2
    // Predicated region
    $region21: #{residual_block_forward.2} parent=5 // pred_check
      %p125 = pneg %p124
    $region22: #{residual_block_forward.2} parent=5 // pred_check_branch
      %127 = sbr.rel (%p125) target = $region24
    $region23: #{residual_block_forward.2} parent=5 // pred_region
      // Predicated region
      $region25: #{residual_block_forward.2} parent=23 // pred_check
        %p128 = pneg %p29
      $region26: #{residual_block_forward.2} parent=23 // pred_check_branch
        %130 = sbr.rel (%p128) target = $region28
      $region27: #{residual_block_forward.2} parent=23 // pred_region
        %p131 = scmp.lt.s32.totalorder %s9, 1
        %s132 = scalar_select %p131, %s9, 1
        %s133 = smul.addr %s132, 43
        %s134 = smul.addr %s133, 4
        %s135 = scalar_lea.vmem %s0, %s134
      $region28: #{residual_block_forward.2} parent=23 // pred_fallthru
        _
    $region24: #{residual_block_forward.2} parent=5 // pred_fallthru
      _
    %p136 = scmp.le.s32.totalorder 1, %s9
    %p137 = scmp.lt.s32.totalorder %s9, 3
    %p138 = pnand %p136, %p137
    %p139 = pneg %p138
    // Predicated region
    $region29: #{residual_block_forward.2} parent=5 // pred_check
      _
    $region30: #{residual_block_forward.2} parent=5 // pred_check_branch
      %141 = sbr.rel (%p138) target = $region32
    $region31: #{residual_block_forward.2} parent=5 // pred_region
      %s142 = ssub.s32 %s9, 1
      %p143 = scmp.lt.s32.totalorder %s14, 1
      %s144 = scalar_select %p143, %s14, 1
      %s145 = smul.addr %s144, 43
      %s146 = smul.addr %s145, 4
      %s147 = scalar_lea.vmem %s0, %s146
      %p148 = pneg %p35
      %p149 = pneg %p32
      %p150 = pneg %p56
      %p151 = pneg %p53
      %p152 = pneg %p77
      %p153 = pneg %p74
      %p154 = pneg %p103
      %p155 = pneg %p100
      %p156 = scmp.lt.s32.totalorder %s14, 1
      %s157 = scalar_select %p156, %s14, 1
      %s158 = smul.addr %s157, 43
      %s159 = smul.addr %s158, 4
      %s160 = scalar_lea.vmem %s3, %s159
      %p161 = scmp.lt.s32.totalorder %s14, 1
      %s162 = scalar_select %p161, %s14, 1
      %s163 = smul.addr %s162, 43
      %s164 = smul.addr %s163, 4
      %s165 = scalar_lea.vmem %s0, %s164
      %p166 = scmp.lt.s32.totalorder %s14, 1
      %s167 = scalar_select %p166, %s14, 1
      %s168 = smul.addr %s167, 43
      %s169 = smul.addr %s168, 4
      %s170 = scalar_lea.vmem %s3, %s169
      %v172 = vld [vmem:[%s165] sm:$0xf]
      %v173 = vld [vmem:[%s165 + $0x4] sm:$0xf]
      %v174 = vld [vmem:[%s165 + $0x8] sm:$0xf]
      %v175 = vld [vmem:[%s165 + $0xc] sm:$0xf]
      %v176 = vld [vmem:[%s165 + $0x10] sm:$0xf]
      %v177 = vld [vmem:[%s165 + $0x14] sm:$0xf]
      %v178 = vld [vmem:[%s165 + $0x18] sm:$0xf]
      %v179 = vld [vmem:[%s165 + $0x1c] sm:$0xf]
      %v180 = vld [vmem:[%s165 + $0x20] sm:$0xf]
      %v181 = vld [vmem:[%s165 + $0x24] sm:$0xf]
      %v182 = vld [vmem:[%s165 + $0x28] sm:$0xf]
      %v183 = vld [vmem:[%s165 + $0x2c] sm:$0xf]
      %v184 = vld [vmem:[%s165 + $0x30] sm:$0xf]
      %v185 = vld [vmem:[%s165 + $0x34] sm:$0xf]
      %v186 = vld [vmem:[%s165 + $0x38] sm:$0xf]
      %v187 = vld [vmem:[%s165 + $0x3c] sm:$0xf]
      %v188 = vld [vmem:[%s165 + $0x40] sm:$0xf]
      %v189 = vld [vmem:[%s165 + $0x44] sm:$0xf]
      %v190 = vld [vmem:[%s165 + $0x48] sm:$0xf]
      %v191 = vld [vmem:[%s165 + $0x4c] sm:$0xf]
      %v192 = vld [vmem:[%s165 + $0x50] sm:$0xf]
      %v193 = vld [vmem:[%s165 + $0x54] sm:$0xf]
      %v194 = vld [vmem:[%s165 + $0x58] sm:$0xf]
      %v195 = vld [vmem:[%s165 + $0x5c] sm:$0xf]
      %v196 = vld [vmem:[%s165 + $0x60] sm:$0xf]
      %v197 = vld [vmem:[%s165 + $0x64] sm:$0xf]
      %v198 = vld [vmem:[%s165 + $0x68] sm:$0xf]
      %v199 = vld [vmem:[%s165 + $0x6c] sm:$0xf]
      %v200 = vld [vmem:[%s165 + $0x70] sm:$0xf]
      %v201 = vld [vmem:[%s165 + $0x74] sm:$0xf]
      %v202 = vld [vmem:[%s165 + $0x78] sm:$0xf]
      %v203 = vld [vmem:[%s165 + $0x7c] sm:$0xf]
      %v204 = vld [vmem:[%s165 + $0x80] sm:$0xf]
      %v205 = vld [vmem:[%s165 + $0x84] sm:$0xf]
      %v206 = vld [vmem:[%s165 + $0x88] sm:$0xf]
      %v207 = vld [vmem:[%s165 + $0x8c] sm:$0xf]
      %208 = vst [vmem:[#allocation2] sm:$0xf] %v172
      %209 = vst [vmem:[#allocation2 + $0x24] sm:$0xf] %v173
      %210 = vst [vmem:[#allocation2 + $0x48] sm:$0xf] %v174
      %211 = vst [vmem:[#allocation2 + $0x6c] sm:$0xf] %v175
      %212 = vst [vmem:[#allocation2 + $0x90] sm:$0xf] %v176
      %213 = vst [vmem:[#allocation2 + $0xb4] sm:$0xf] %v177
      %214 = vst [vmem:[#allocation2 + $0xd8] sm:$0xf] %v178
      %215 = vst [vmem:[#allocation2 + $0xfc] sm:$0xf] %v179
      %216 = vst [vmem:[#allocation2 + $0x120] sm:$0xf] %v180
      %217 = vst [vmem:[#allocation2 + $0x144] sm:$0xf] %v181
      %218 = vst [vmem:[#allocation2 + $0x168] sm:$0xf] %v182
      %219 = vst [vmem:[#allocation2 + $0x18c] sm:$0xf] %v183
      %220 = vst [vmem:[#allocation2 + $0x1b0] sm:$0xf] %v184
      %221 = vst [vmem:[#allocation2 + $0x1d4] sm:$0xf] %v185
      %222 = vst [vmem:[#allocation2 + $0x1f8] sm:$0xf] %v186
      %223 = vst [vmem:[#allocation2 + $0x21c] sm:$0xf] %v187
      %224 = vst [vmem:[#allocation2 + $0x240] sm:$0xf] %v188
      %225 = vst [vmem:[#allocation2 + $0x264] sm:$0xf] %v189
      %226 = vst [vmem:[#allocation2 + $0x288] sm:$0xf] %v190
      %227 = vst [vmem:[#allocation2 + $0x2ac] sm:$0xf] %v191
      %228 = vst [vmem:[#allocation2 + $0x2d0] sm:$0xf] %v192
      %229 = vst [vmem:[#allocation2 + $0x2f4] sm:$0xf] %v193
      %230 = vst [vmem:[#allocation2 + $0x318] sm:$0xf] %v194
      %231 = vst [vmem:[#allocation2 + $0x33c] sm:$0xf] %v195
      %232 = vst [vmem:[#allocation2 + $0x360] sm:$0xf] %v196
      %233 = vst [vmem:[#allocation2 + $0x384] sm:$0xf] %v197
      %234 = vst [vmem:[#allocation2 + $0x3a8] sm:$0xf] %v198
      %235 = vst [vmem:[#allocation2 + $0x3cc] sm:$0xf] %v199
      %236 = vst [vmem:[#allocation2 + $0x3f0] sm:$0xf] %v200
      %237 = vst [vmem:[#allocation2 + $0x414] sm:$0xf] %v201
      %238 = vst [vmem:[#allocation2 + $0x438] sm:$0xf] %v202
      %239 = vst [vmem:[#allocation2 + $0x45c] sm:$0xf] %v203
      %240 = vst [vmem:[#allocation2 + $0x480] sm:$0xf] %v204
      %241 = vst [vmem:[#allocation2 + $0x4a4] sm:$0xf] %v205
      %242 = vst [vmem:[#allocation2 + $0x4c8] sm:$0xf] %v206
      %243 = vst [vmem:[#allocation2 + $0x4ec] sm:$0xf] %v207
      %v244 = vld [vmem:[%s165] sm:$0xf]
      %v245 = vld [vmem:[%s165 + $0x4] sm:$0xf]
      %v246 = vld [vmem:[%s165 + $0x8] sm:$0xf]
      %v247 = vld [vmem:[%s165 + $0xc] sm:$0xf]
      %v248 = vld [vmem:[%s165 + $0x10] sm:$0xf]
      %v249 = vld [vmem:[%s165 + $0x14] sm:$0xf]
      %v250 = vld [vmem:[%s165 + $0x18] sm:$0xf]
      %v251 = vld [vmem:[%s165 + $0x1c] sm:$0xf]
      %v252 = vld [vmem:[%s165 + $0x20] sm:$0xf]
      %v253 = vld [vmem:[%s165 + $0x24] sm:$0xf]
      %v254 = vld [vmem:[%s165 + $0x28] sm:$0xf]
      %v255 = vld [vmem:[%s165 + $0x2c] sm:$0xf]
      %v256 = vld [vmem:[%s165 + $0x30] sm:$0xf]
      %v257 = vld [vmem:[%s165 + $0x34] sm:$0xf]
      %v258 = vld [vmem:[%s165 + $0x38] sm:$0xf]
      %v259 = vld [vmem:[%s165 + $0x3c] sm:$0xf]
      %v260 = vld [vmem:[%s165 + $0x40] sm:$0xf]
      %v261 = vld [vmem:[%s165 + $0x44] sm:$0xf]
      %v262 = vld [vmem:[%s165 + $0x48] sm:$0xf]
      %v263 = vld [vmem:[%s165 + $0x4c] sm:$0xf]
      %v264 = vld [vmem:[%s165 + $0x50] sm:$0xf]
      %v265 = vld [vmem:[%s165 + $0x54] sm:$0xf]
      %v266 = vld [vmem:[%s165 + $0x58] sm:$0xf]
      %v267 = vld [vmem:[%s165 + $0x5c] sm:$0xf]
      %v268 = vld [vmem:[%s165 + $0x60] sm:$0xf]
      %v269 = vld [vmem:[%s165 + $0x64] sm:$0xf]
      %v270 = vld [vmem:[%s165 + $0x68] sm:$0xf]
      %v271 = vld [vmem:[%s165 + $0x6c] sm:$0xf]
      %v272 = vld [vmem:[%s165 + $0x70] sm:$0xf]
      %v273 = vld [vmem:[%s165 + $0x74] sm:$0xf]
      %v274 = vld [vmem:[%s165 + $0x78] sm:$0xf]
      %v275 = vld [vmem:[%s165 + $0x7c] sm:$0xf]
      %v276 = vld [vmem:[%s165 + $0x80] sm:$0xf]
      %v277 = vld [vmem:[%s165 + $0x84] sm:$0xf]
      %v278 = vld [vmem:[%s165 + $0x88] sm:$0xf]
      %v279 = vld [vmem:[%s165 + $0x8c] sm:$0xf]
      %v280 = vld [vmem:[%s165 + $0x90] sm:$0x1]
      %vm281 = vsmask.f32 3328
      %vm282 = vsmask.f32 7440
      %vm283 = vmor %vm281, %vm282
      %v285 = vshrl.u32 %v244, 16
      %v287 = vrot.slane %v285, 4
      %v288 = vshll.u32 %v244, 16
      %v290 = vrot.slane %v288, 5
      %v291 = vor.u32 %v287, %v290
      %v292 = vrot.slane %v291, 4
      %v294 = vshll.u32 %v245, 16
      %v296 = vrot.slane %v294, 5
      %v297 = vsel %vm283, %v292, %v296
      %v298 = vshrl.u32 %v245, 16
      %v300 = vrot.slane %v298, 4
      %v301 = vor.u32 %v300, %v296
      %v302 = vrot.slane %v301, 4
      %v304 = vshll.u32 %v246, 16
      %v306 = vrot.slane %v304, 5
      %v307 = vsel %vm283, %v302, %v306
      %v308 = vshrl.u32 %v246, 16
      %v310 = vrot.slane %v308, 4
      %v311 = vor.u32 %v310, %v306
      %v312 = vrot.slane %v311, 4
      %v314 = vshll.u32 %v247, 16
      %v316 = vrot.slane %v314, 5
      %v317 = vsel %vm283, %v312, %v316
      %v318 = vshrl.u32 %v247, 16
      %v320 = vrot.slane %v318, 4
      %v321 = vor.u32 %v320, %v316
      %v322 = vrot.slane %v321, 4
      %v324 = vshll.u32 %v248, 16
      %v326 = vrot.slane %v324, 5
      %v327 = vsel %vm283, %v322, %v326
      %v328 = vshrl.u32 %v248, 16
      %v330 = vrot.slane %v328, 4
      %v331 = vor.u32 %v330, %v326
      %v332 = vrot.slane %v331, 4
      %v334 = vshll.u32 %v249, 16
      %v336 = vrot.slane %v334, 5
      %v337 = vsel %vm283, %v332, %v336
      %v338 = vshrl.u32 %v249, 16
      %v340 = vrot.slane %v338, 4
      %v341 = vor.u32 %v340, %v336
      %v342 = vrot.slane %v341, 4
      %v344 = vshll.u32 %v250, 16
      %v346 = vrot.slane %v344, 5
      %v347 = vsel %vm283, %v342, %v346
      %v348 = vshrl.u32 %v250, 16
      %v350 = vrot.slane %v348, 4
      %v351 = vor.u32 %v350, %v346
      %v352 = vrot.slane %v351, 4
      %v354 = vshll.u32 %v251, 16
      %v356 = vrot.slane %v354, 5
      %v357 = vsel %vm283, %v352, %v356
      %v358 = vshrl.u32 %v251, 16
      %v360 = vrot.slane %v358, 4
      %v361 = vor.u32 %v360, %v356
      %v362 = vrot.slane %v361, 4
      %v364 = vshll.u32 %v252, 16
      %v366 = vrot.slane %v364, 5
      %v367 = vsel %vm283, %v362, %v366
      %v368 = vshrl.u32 %v252, 16
      %v370 = vrot.slane %v368, 4
      %v371 = vor.u32 %v370, %v366
      %v372 = vrot.slane %v371, 4
      %v374 = vshll.u32 %v253, 16
      %v376 = vrot.slane %v374, 5
      %v377 = vsel %vm283, %v372, %v376
      %v378 = vshrl.u32 %v253, 16
      %v380 = vrot.slane %v378, 4
      %v381 = vor.u32 %v380, %v376
      %v382 = vrot.slane %v381, 4
      %v384 = vshll.u32 %v254, 16
      %v386 = vrot.slane %v384, 5
      %v387 = vsel %vm283, %v382, %v386
      %v388 = vshrl.u32 %v254, 16
      %v390 = vrot.slane %v388, 4
      %v391 = vor.u32 %v390, %v386
      %v392 = vrot.slane %v391, 4
      %v394 = vshll.u32 %v255, 16
      %v396 = vrot.slane %v394, 5
      %v397 = vsel %vm283, %v392, %v396
      %v398 = vshrl.u32 %v255, 16
      %v400 = vrot.slane %v398, 4
      %v401 = vor.u32 %v400, %v396
      %v402 = vrot.slane %v401, 4
      %v404 = vshll.u32 %v256, 16
      %v406 = vrot.slane %v404, 5
      %v407 = vsel %vm283, %v402, %v406
      %v408 = vshrl.u32 %v256, 16
      %v410 = vrot.slane %v408, 4
      %v411 = vor.u32 %v410, %v406
      %v412 = vrot.slane %v411, 4
      %v414 = vshll.u32 %v257, 16
      %v416 = vrot.slane %v414, 5
      %v417 = vsel %vm283, %v412, %v416
      %v418 = vshrl.u32 %v257, 16
      %v420 = vrot.slane %v418, 4
      %v421 = vor.u32 %v420, %v416
      %v422 = vrot.slane %v421, 4
      %v424 = vshll.u32 %v258, 16
      %v426 = vrot.slane %v424, 5
      %v427 = vsel %vm283, %v422, %v426
      %v428 = vshrl.u32 %v258, 16
      %v430 = vrot.slane %v428, 4
      %v431 = vor.u32 %v430, %v426
      %v432 = vrot.slane %v431, 4
      %v434 = vshll.u32 %v259, 16
      %v436 = vrot.slane %v434, 5
      %v437 = vsel %vm283, %v432, %v436
      %v438 = vshrl.u32 %v259, 16
      %v440 = vrot.slane %v438, 4
      %v441 = vor.u32 %v440, %v436
      %v442 = vrot.slane %v441, 4
      %v444 = vshll.u32 %v260, 16
      %v446 = vrot.slane %v444, 5
      %v447 = vsel %vm283, %v442, %v446
      %v448 = vshrl.u32 %v260, 16
      %v450 = vrot.slane %v448, 4
      %v451 = vor.u32 %v450, %v446
      %v452 = vrot.slane %v451, 4
      %v454 = vshll.u32 %v261, 16
      %v456 = vrot.slane %v454, 5
      %v457 = vsel %vm283, %v452, %v456
      %v458 = vshrl.u32 %v261, 16
      %v460 = vrot.slane %v458, 4
      %v461 = vor.u32 %v460, %v456
      %v462 = vrot.slane %v461, 4
      %v464 = vshll.u32 %v262, 16
      %v466 = vrot.slane %v464, 5
      %v467 = vsel %vm283, %v462, %v466
      %v468 = vshrl.u32 %v262, 16
      %v470 = vrot.slane %v468, 4
      %v471 = vor.u32 %v470, %v466
      %v472 = vrot.slane %v471, 4
      %v474 = vshll.u32 %v263, 16
      %v476 = vrot.slane %v474, 5
      %v477 = vsel %vm283, %v472, %v476
      %v478 = vshrl.u32 %v263, 16
      %v480 = vrot.slane %v478, 4
      %v481 = vor.u32 %v480, %v476
      %v482 = vrot.slane %v481, 4
      %v484 = vshll.u32 %v264, 16
      %v486 = vrot.slane %v484, 5
      %v487 = vsel %vm283, %v482, %v486
      %v488 = vshrl.u32 %v264, 16
      %v490 = vrot.slane %v488, 4
      %v491 = vor.u32 %v490, %v486
      %v492 = vrot.slane %v491, 4
      %v494 = vshll.u32 %v265, 16
      %v496 = vrot.slane %v494, 5
      %v497 = vsel %vm283, %v492, %v496
      %v498 = vshrl.u32 %v265, 16
      %v500 = vrot.slane %v498, 4
      %v501 = vor.u32 %v500, %v496
      %v502 = vrot.slane %v501, 4
      %v504 = vshll.u32 %v266, 16
      %v506 = vrot.slane %v504, 5
      %v507 = vsel %vm283, %v502, %v506
      %v508 = vshrl.u32 %v266, 16
      %v510 = vrot.slane %v508, 4
      %v511 = vor.u32 %v510, %v506
      %v512 = vrot.slane %v511, 4
      %v514 = vshll.u32 %v267, 16
      %v516 = vrot.slane %v514, 5
      %v517 = vsel %vm283, %v512, %v516
      %v518 = vshrl.u32 %v267, 16
      %v520 = vrot.slane %v518, 4
      %v521 = vor.u32 %v520, %v516
      %v522 = vrot.slane %v521, 4
      %v524 = vshll.u32 %v268, 16
      %v526 = vrot.slane %v524, 5
      %v527 = vsel %vm283, %v522, %v526
      %v528 = vshrl.u32 %v268, 16
      %v530 = vrot.slane %v528, 4
      %v531 = vor.u32 %v530, %v526
      %v532 = vrot.slane %v531, 4
      %v534 = vshll.u32 %v269, 16
      %v536 = vrot.slane %v534, 5
      %v537 = vsel %vm283, %v532, %v536
      %v538 = vshrl.u32 %v269, 16
      %v540 = vrot.slane %v538, 4
      %v541 = vor.u32 %v540, %v536
      %v542 = vrot.slane %v541, 4
      %v544 = vshll.u32 %v270, 16
      %v546 = vrot.slane %v544, 5
      %v547 = vsel %vm283, %v542, %v546
      %v548 = vshrl.u32 %v270, 16
      %v550 = vrot.slane %v548, 4
      %v551 = vor.u32 %v550, %v546
      %v552 = vrot.slane %v551, 4
      %v554 = vshll.u32 %v271, 16
      %v556 = vrot.slane %v554, 5
      %v557 = vsel %vm283, %v552, %v556
      %v558 = vshrl.u32 %v271, 16
      %v560 = vrot.slane %v558, 4
      %v561 = vor.u32 %v560, %v556
      %v562 = vrot.slane %v561, 4
      %v564 = vshll.u32 %v272, 16
      %v566 = vrot.slane %v564, 5
      %v567 = vsel %vm283, %v562, %v566
      %v568 = vshrl.u32 %v272, 16
      %v570 = vrot.slane %v568, 4
      %v571 = vor.u32 %v570, %v566
      %v572 = vrot.slane %v571, 4
      %v574 = vshll.u32 %v273, 16
      %v576 = vrot.slane %v574, 5
      %v577 = vsel %vm283, %v572, %v576
      %v578 = vshrl.u32 %v273, 16
      %v580 = vrot.slane %v578, 4
      %v581 = vor.u32 %v580, %v576
      %v582 = vrot.slane %v581, 4
      %v584 = vshll.u32 %v274, 16
      %v586 = vrot.slane %v584, 5
      %v587 = vsel %vm283, %v582, %v586
      %v588 = vshrl.u32 %v274, 16
      %v590 = vrot.slane %v588, 4
      %v591 = vor.u32 %v590, %v586
      %v592 = vrot.slane %v591, 4
      %v594 = vshll.u32 %v275, 16
      %v596 = vrot.slane %v594, 5
      %v597 = vsel %vm283, %v592, %v596
      %v598 = vshrl.u32 %v275, 16
      %v600 = vrot.slane %v598, 4
      %v601 = vor.u32 %v600, %v596
      %v602 = vrot.slane %v601, 4
      %v604 = vshll.u32 %v276, 16
      %v606 = vrot.slane %v604, 5
      %v607 = vsel %vm283, %v602, %v606
      %v608 = vshrl.u32 %v276, 16
      %v610 = vrot.slane %v608, 4
      %v611 = vor.u32 %v610, %v606
      %v612 = vrot.slane %v611, 4
      %v614 = vshll.u32 %v277, 16
      %v616 = vrot.slane %v614, 5
      %v617 = vsel %vm283, %v612, %v616
      %v618 = vshrl.u32 %v277, 16
      %v620 = vrot.slane %v618, 4
      %v621 = vor.u32 %v620, %v616
      %v622 = vrot.slane %v621, 4
      %v624 = vshll.u32 %v278, 16
      %v626 = vrot.slane %v624, 5
      %v627 = vsel %vm283, %v622, %v626
      %v628 = vshrl.u32 %v278, 16
      %v630 = vrot.slane %v628, 4
      %v631 = vor.u32 %v630, %v626
      %v632 = vrot.slane %v631, 4
      %v634 = vshll.u32 %v279, 16
      %v636 = vrot.slane %v634, 5
      %v637 = vsel %vm283, %v632, %v636
      %v638 = vshrl.u32 %v279, 16
      %v640 = vrot.slane %v638, 4
      %v641 = vor.u32 %v640, %v636
      %v642 = vrot.slane %v641, 4
      %v644 = vshll.u32 %v280, 16
      %v646 = vrot.slane %v644, 5
      %v647 = vsel %vm283, %v642, %v646
      %684 = vst [vmem:[#allocation2 + $0x4] sm:$0xf] %v297
      %685 = vst [vmem:[#allocation2 + $0x28] sm:$0xf] %v307
      %686 = vst [vmem:[#allocation2 + $0x4c] sm:$0xf] %v317
      %687 = vst [vmem:[#allocation2 + $0x70] sm:$0xf] %v327
      %688 = vst [vmem:[#allocation2 + $0x94] sm:$0xf] %v337
      %689 = vst [vmem:[#allocation2 + $0xb8] sm:$0xf] %v347
      %690 = vst [vmem:[#allocation2 + $0xdc] sm:$0xf] %v357
      %691 = vst [vmem:[#allocation2 + $0x100] sm:$0xf] %v367
      %692 = vst [vmem:[#allocation2 + $0x124] sm:$0xf] %v377
      %693 = vst [vmem:[#allocation2 + $0x148] sm:$0xf] %v387
      %694 = vst [vmem:[#allocation2 + $0x16c] sm:$0xf] %v397
      %695 = vst [vmem:[#allocation2 + $0x190] sm:$0xf] %v407
      %696 = vst [vmem:[#allocation2 + $0x1b4] sm:$0xf] %v417
      %697 = vst [vmem:[#allocation2 + $0x1d8] sm:$0xf] %v427
      %698 = vst [vmem:[#allocation2 + $0x1fc] sm:$0xf] %v437
      %699 = vst [vmem:[#allocation2 + $0x220] sm:$0xf] %v447
      %700 = vst [vmem:[#allocation2 + $0x244] sm:$0xf] %v457
      %701 = vst [vmem:[#allocation2 + $0x268] sm:$0xf] %v467
      %702 = vst [vmem:[#allocation2 + $0x28c] sm:$0xf] %v477
      %703 = vst [vmem:[#allocation2 + $0x2b0] sm:$0xf] %v487
      %704 = vst [vmem:[#allocation2 + $0x2d4] sm:$0xf] %v497
      %705 = vst [vmem:[#allocation2 + $0x2f8] sm:$0xf] %v507
      %706 = vst [vmem:[#allocation2 + $0x31c] sm:$0xf] %v517
      %707 = vst [vmem:[#allocation2 + $0x340] sm:$0xf] %v527
      %708 = vst [vmem:[#allocation2 + $0x364] sm:$0xf] %v537
      %709 = vst [vmem:[#allocation2 + $0x388] sm:$0xf] %v547
      %710 = vst [vmem:[#allocation2 + $0x3ac] sm:$0xf] %v557
      %711 = vst [vmem:[#allocation2 + $0x3d0] sm:$0xf] %v567
      %712 = vst [vmem:[#allocation2 + $0x3f4] sm:$0xf] %v577
      %713 = vst [vmem:[#allocation2 + $0x418] sm:$0xf] %v587
      %714 = vst [vmem:[#allocation2 + $0x43c] sm:$0xf] %v597
      %715 = vst [vmem:[#allocation2 + $0x460] sm:$0xf] %v607
      %716 = vst [vmem:[#allocation2 + $0x484] sm:$0xf] %v617
      %717 = vst [vmem:[#allocation2 + $0x4a8] sm:$0xf] %v627
      %718 = vst [vmem:[#allocation2 + $0x4cc] sm:$0xf] %v637
      %719 = vst [vmem:[#allocation2 + $0x4f0] sm:$0xf] %v647
      %v720 = vld [vmem:[%s165] sm:$0xe]
      %v721 = vld [vmem:[%s165 + $0x4] sm:$0xf]
      %v722 = vld [vmem:[%s165 + $0x8] sm:$0xf]
      %v723 = vld [vmem:[%s165 + $0xc] sm:$0xf]
      %v724 = vld [vmem:[%s165 + $0x10] sm:$0xf]
      %v725 = vld [vmem:[%s165 + $0x14] sm:$0xf]
      %v726 = vld [vmem:[%s165 + $0x18] sm:$0xf]
      %v727 = vld [vmem:[%s165 + $0x1c] sm:$0xf]
      %v728 = vld [vmem:[%s165 + $0x20] sm:$0xf]
      %v729 = vld [vmem:[%s165 + $0x24] sm:$0xf]
      %v730 = vld [vmem:[%s165 + $0x28] sm:$0xf]
      %v731 = vld [vmem:[%s165 + $0x2c] sm:$0xf]
      %v732 = vld [vmem:[%s165 + $0x30] sm:$0xf]
      %v733 = vld [vmem:[%s165 + $0x34] sm:$0xf]
      %v734 = vld [vmem:[%s165 + $0x38] sm:$0xf]
      %v735 = vld [vmem:[%s165 + $0x3c] sm:$0xf]
      %v736 = vld [vmem:[%s165 + $0x40] sm:$0xf]
      %v737 = vld [vmem:[%s165 + $0x44] sm:$0xf]
      %v738 = vld [vmem:[%s165 + $0x48] sm:$0xf]
      %v739 = vld [vmem:[%s165 + $0x4c] sm:$0xf]
      %v740 = vld [vmem:[%s165 + $0x50] sm:$0xf]
      %v741 = vld [vmem:[%s165 + $0x54] sm:$0xf]
      %v742 = vld [vmem:[%s165 + $0x58] sm:$0xf]
      %v743 = vld [vmem:[%s165 + $0x5c] sm:$0xf]
      %v744 = vld [vmem:[%s165 + $0x60] sm:$0xf]
      %v745 = vld [vmem:[%s165 + $0x64] sm:$0xf]
      %v746 = vld [vmem:[%s165 + $0x68] sm:$0xf]
      %v747 = vld [vmem:[%s165 + $0x6c] sm:$0xf]
      %v748 = vld [vmem:[%s165 + $0x70] sm:$0xf]
      %v749 = vld [vmem:[%s165 + $0x74] sm:$0xf]
      %v750 = vld [vmem:[%s165 + $0x78] sm:$0xf]
      %v751 = vld [vmem:[%s165 + $0x7c] sm:$0xf]
      %v752 = vld [vmem:[%s165 + $0x80] sm:$0xf]
      %v753 = vld [vmem:[%s165 + $0x84] sm:$0xf]
      %v754 = vld [vmem:[%s165 + $0x88] sm:$0xf]
      %v755 = vld [vmem:[%s165 + $0x8c] sm:$0xf]
      %v756 = vld [vmem:[%s165 + $0x90] sm:$0x1]
      %vm794 = vcmask 1042432
      %vm795 = vcmask 1046532
      %vm796 = vmor %vm794, %vm795
      %v797 = vrot.slane %v720, 5
      %v798 = vrot.slane %v797, 4
      %v799 = vrot.slane %v721, 5
      %v800 = vsel %vm796, %v798, %v799
      %v801 = vrot.slane %v799, 4
      %v802 = vrot.slane %v722, 5
      %v803 = vsel %vm796, %v801, %v802
      %v804 = vrot.slane %v802, 4
      %v805 = vrot.slane %v723, 5
      %v806 = vsel %vm796, %v804, %v805
      %v807 = vrot.slane %v805, 4
      %v808 = vrot.slane %v724, 5
      %v809 = vsel %vm796, %v807, %v808
      %v810 = vrot.slane %v808, 4
      %v811 = vrot.slane %v725, 5
      %v812 = vsel %vm796, %v810, %v811
      %v813 = vrot.slane %v811, 4
      %v814 = vrot.slane %v726, 5
      %v815 = vsel %vm796, %v813, %v814
      %v816 = vrot.slane %v814, 4
      %v817 = vrot.slane %v727, 5
      %v818 = vsel %vm796, %v816, %v817
      %v819 = vrot.slane %v817, 4
      %v820 = vrot.slane %v728, 5
      %v821 = vsel %vm796, %v819, %v820
      %v822 = vrot.slane %v820, 4
      %v823 = vrot.slane %v729, 5
      %v824 = vsel %vm796, %v822, %v823
      %v825 = vrot.slane %v823, 4
      %v826 = vrot.slane %v730, 5
      %v827 = vsel %vm796, %v825, %v826
      %v828 = vrot.slane %v826, 4
      %v829 = vrot.slane %v731, 5
      %v830 = vsel %vm796, %v828, %v829
      %v831 = vrot.slane %v829, 4
      %v832 = vrot.slane %v732, 5
      %v833 = vsel %vm796, %v831, %v832
      %v834 = vrot.slane %v832, 4
      %v835 = vrot.slane %v733, 5
      %v836 = vsel %vm796, %v834, %v835
      %v837 = vrot.slane %v835, 4
      %v838 = vrot.slane %v734, 5
      %v839 = vsel %vm796, %v837, %v838
      %v840 = vrot.slane %v838, 4
      %v841 = vrot.slane %v735, 5
      %v842 = vsel %vm796, %v840, %v841
      %v843 = vrot.slane %v841, 4
      %v844 = vrot.slane %v736, 5
      %v845 = vsel %vm796, %v843, %v844
      %v846 = vrot.slane %v844, 4
      %v847 = vrot.slane %v737, 5
      %v848 = vsel %vm796, %v846, %v847
      %v849 = vrot.slane %v847, 4
      %v850 = vrot.slane %v738, 5
      %v851 = vsel %vm796, %v849, %v850
      %v852 = vrot.slane %v850, 4
      %v853 = vrot.slane %v739, 5
      %v854 = vsel %vm796, %v852, %v853
      %v855 = vrot.slane %v853, 4
      %v856 = vrot.slane %v740, 5
      %v857 = vsel %vm796, %v855, %v856
      %v858 = vrot.slane %v856, 4
      %v859 = vrot.slane %v741, 5
      %v860 = vsel %vm796, %v858, %v859
      %v861 = vrot.slane %v859, 4
      %v862 = vrot.slane %v742, 5
      %v863 = vsel %vm796, %v861, %v862
      %v864 = vrot.slane %v862, 4
      %v865 = vrot.slane %v743, 5
      %v866 = vsel %vm796, %v864, %v865
      %v867 = vrot.slane %v865, 4
      %v868 = vrot.slane %v744, 5
      %v869 = vsel %vm796, %v867, %v868
      %v870 = vrot.slane %v868, 4
      %v871 = vrot.slane %v745, 5
      %v872 = vsel %vm796, %v870, %v871
      %v873 = vrot.slane %v871, 4
      %v874 = vrot.slane %v746, 5
      %v875 = vsel %vm796, %v873, %v874
      %v876 = vrot.slane %v874, 4
      %v877 = vrot.slane %v747, 5
      %v878 = vsel %vm796, %v876, %v877
      %v879 = vrot.slane %v877, 4
      %v880 = vrot.slane %v748, 5
      %v881 = vsel %vm796, %v879, %v880
      %v882 = vrot.slane %v880, 4
      %v883 = vrot.slane %v749, 5
      %v884 = vsel %vm796, %v882, %v883
      %v885 = vrot.slane %v883, 4
      %v886 = vrot.slane %v750, 5
      %v887 = vsel %vm796, %v885, %v886
      %v888 = vrot.slane %v886, 4
      %v889 = vrot.slane %v751, 5
      %v890 = vsel %vm796, %v888, %v889
      %v891 = vrot.slane %v889, 4
      %v892 = vrot.slane %v752, 5
      %v893 = vsel %vm796, %v891, %v892
      %v894 = vrot.slane %v892, 4
      %v895 = vrot.slane %v753, 5
      %v896 = vsel %vm796, %v894, %v895
      %v897 = vrot.slane %v895, 4
      %v898 = vrot.slane %v754, 5
      %v899 = vsel %vm796, %v897, %v898
      %v900 = vrot.slane %v898, 4
      %v901 = vrot.slane %v755, 5
      %v902 = vsel %vm796, %v900, %v901
      %v903 = vrot.slane %v901, 4
      %v904 = vrot.slane %v756, 5
      %v905 = vsel %vm796, %v903, %v904
      %942 = vst [vmem:[#allocation2 + $0x8] sm:$0xf] %v800
      %943 = vst [vmem:[#allocation2 + $0x2c] sm:$0xf] %v803
      %944 = vst [vmem:[#allocation2 + $0x50] sm:$0xf] %v806
      %945 = vst [vmem:[#allocation2 + $0x74] sm:$0xf] %v809
      %946 = vst [vmem:[#allocation2 + $0x98] sm:$0xf] %v812
      %947 = vst [vmem:[#allocation2 + $0xbc] sm:$0xf] %v815
      %948 = vst [vmem:[#allocation2 + $0xe0] sm:$0xf] %v818
      %949 = vst [vmem:[#allocation2 + $0x104] sm:$0xf] %v821
      %950 = vst [vmem:[#allocation2 + $0x128] sm:$0xf] %v824
      %951 = vst [vmem:[#allocation2 + $0x14c] sm:$0xf] %v827
      %952 = vst [vmem:[#allocation2 + $0x170] sm:$0xf] %v830
      %953 = vst [vmem:[#allocation2 + $0x194] sm:$0xf] %v833
      %954 = vst [vmem:[#allocation2 + $0x1b8] sm:$0xf] %v836
      %955 = vst [vmem:[#allocation2 + $0x1dc] sm:$0xf] %v839
      %956 = vst [vmem:[#allocation2 + $0x200] sm:$0xf] %v842
      %957 = vst [vmem:[#allocation2 + $0x224] sm:$0xf] %v845
      %958 = vst [vmem:[#allocation2 + $0x248] sm:$0xf] %v848
      %959 = vst [vmem:[#allocation2 + $0x26c] sm:$0xf] %v851
      %960 = vst [vmem:[#allocation2 + $0x290] sm:$0xf] %v854
      %961 = vst [vmem:[#allocation2 + $0x2b4] sm:$0xf] %v857
      %962 = vst [vmem:[#allocation2 + $0x2d8] sm:$0xf] %v860
      %963 = vst [vmem:[#allocation2 + $0x2fc] sm:$0xf] %v863
      %964 = vst [vmem:[#allocation2 + $0x320] sm:$0xf] %v866
      %965 = vst [vmem:[#allocation2 + $0x344] sm:$0xf] %v869
      %966 = vst [vmem:[#allocation2 + $0x368] sm:$0xf] %v872
      %967 = vst [vmem:[#allocation2 + $0x38c] sm:$0xf] %v875
      %968 = vst [vmem:[#allocation2 + $0x3b0] sm:$0xf] %v878
      %969 = vst [vmem:[#allocation2 + $0x3d4] sm:$0xf] %v881
      %970 = vst [vmem:[#allocation2 + $0x3f8] sm:$0xf] %v884
      %971 = vst [vmem:[#allocation2 + $0x41c] sm:$0xf] %v887
      %972 = vst [vmem:[#allocation2 + $0x440] sm:$0xf] %v890
      %973 = vst [vmem:[#allocation2 + $0x464] sm:$0xf] %v893
      %974 = vst [vmem:[#allocation2 + $0x488] sm:$0xf] %v896
      %975 = vst [vmem:[#allocation2 + $0x4ac] sm:$0xf] %v899
      %976 = vst [vmem:[#allocation2 + $0x4d0] sm:$0xf] %v902
      %977 = vst [vmem:[#allocation2 + $0x4f4] sm:$0xf] %v905
      %v978 = vld [vmem:[%s165 + $0x8] sm:$0xe]
      %v979 = vld [vmem:[%s165 + $0xc] sm:$0xf]
      %v980 = vld [vmem:[%s165 + $0x10] sm:$0xf]
      %v981 = vld [vmem:[%s165 + $0x14] sm:$0xf]
      %v982 = vld [vmem:[%s165 + $0x18] sm:$0xf]
      %v983 = vld [vmem:[%s165 + $0x1c] sm:$0xf]
      %v984 = vld [vmem:[%s165 + $0x20] sm:$0xf]
      %v985 = vld [vmem:[%s165 + $0x24] sm:$0xf]
      %v986 = vld [vmem:[%s165 + $0x28] sm:$0xf]
      %v987 = vld [vmem:[%s165 + $0x2c] sm:$0xf]
      %v988 = vld [vmem:[%s165 + $0x30] sm:$0xf]
      %v989 = vld [vmem:[%s165 + $0x34] sm:$0xf]
      %v990 = vld [vmem:[%s165 + $0x38] sm:$0xf]
      %v991 = vld [vmem:[%s165 + $0x3c] sm:$0xf]
      %v992 = vld [vmem:[%s165 + $0x40] sm:$0xf]
      %v993 = vld [vmem:[%s165 + $0x44] sm:$0xf]
      %v994 = vld [vmem:[%s165 + $0x48] sm:$0xf]
      %v995 = vld [vmem:[%s165 + $0x4c] sm:$0xf]
      %v996 = vld [vmem:[%s165 + $0x50] sm:$0xf]
      %v997 = vld [vmem:[%s165 + $0x54] sm:$0xf]
      %v998 = vld [vmem:[%s165 + $0x58] sm:$0xf]
      %v999 = vld [vmem:[%s165 + $0x5c] sm:$0xf]
      %v1000 = vld [vmem:[%s165 + $0x60] sm:$0xf]
      %v1001 = vld [vmem:[%s165 + $0x64] sm:$0xf]
      %v1002 = vld [vmem:[%s165 + $0x68] sm:$0xf]
      %v1003 = vld [vmem:[%s165 + $0x6c] sm:$0xf]
      %v1004 = vld [vmem:[%s165 + $0x70] sm:$0xf]
      %v1005 = vld [vmem:[%s165 + $0x74] sm:$0xf]
      %v1006 = vld [vmem:[%s165 + $0x78] sm:$0xf]
      %v1007 = vld [vmem:[%s165 + $0x7c] sm:$0xf]
      %v1008 = vld [vmem:[%s165 + $0x80] sm:$0xf]
      %v1009 = vld [vmem:[%s165 + $0x84] sm:$0xf]
      %v1010 = vld [vmem:[%s165 + $0x88] sm:$0xf]
      %v1011 = vld [vmem:[%s165 + $0x8c] sm:$0xf]
      %v1012 = vld [vmem:[%s165 + $0x90] sm:$0xf]
      %v1013 = vld [vmem:[%s165 + $0x94] sm:$0xf]
      %v1014 = vld [vmem:[%s165 + $0x98] sm:$0x1]
      %v1052 = vrot.slane %v978, 5
      %v1053 = vrot.slane %v1052, 4
      %v1054 = vrot.slane %v979, 5
      %v1055 = vsel %vm796, %v1053, %v1054
      %v1056 = vrot.slane %v1054, 4
      %v1057 = vrot.slane %v980, 5
      %v1058 = vsel %vm796, %v1056, %v1057
      %v1059 = vrot.slane %v1057, 4
      %v1060 = vrot.slane %v981, 5
      %v1061 = vsel %vm796, %v1059, %v1060
      %v1062 = vrot.slane %v1060, 4
      %v1063 = vrot.slane %v982, 5
      %v1064 = vsel %vm796, %v1062, %v1063
      %v1065 = vrot.slane %v1063, 4
      %v1066 = vrot.slane %v983, 5
      %v1067 = vsel %vm796, %v1065, %v1066
      %v1068 = vrot.slane %v1066, 4
      %v1069 = vrot.slane %v984, 5
      %v1070 = vsel %vm796, %v1068, %v1069
      %v1071 = vrot.slane %v1069, 4
      %v1072 = vrot.slane %v985, 5
      %v1073 = vsel %vm796, %v1071, %v1072
      %v1074 = vrot.slane %v1072, 4
      %v1075 = vrot.slane %v986, 5
      %v1076 = vsel %vm796, %v1074, %v1075
      %v1077 = vrot.slane %v1075, 4
      %v1078 = vrot.slane %v987, 5
      %v1079 = vsel %vm796, %v1077, %v1078
      %v1080 = vrot.slane %v1078, 4
      %v1081 = vrot.slane %v988, 5
      %v1082 = vsel %vm796, %v1080, %v1081
      %v1083 = vrot.slane %v1081, 4
      %v1084 = vrot.slane %v989, 5
      %v1085 = vsel %vm796, %v1083, %v1084
      %v1086 = vrot.slane %v1084, 4
      %v1087 = vrot.slane %v990, 5
      %v1088 = vsel %vm796, %v1086, %v1087
      %v1089 = vrot.slane %v1087, 4
      %v1090 = vrot.slane %v991, 5
      %v1091 = vsel %vm796, %v1089, %v1090
      %v1092 = vrot.slane %v1090, 4
      %v1093 = vrot.slane %v992, 5
      %v1094 = vsel %vm796, %v1092, %v1093
      %v1095 = vrot.slane %v1093, 4
      %v1096 = vrot.slane %v993, 5
      %v1097 = vsel %vm796, %v1095, %v1096
      %v1098 = vrot.slane %v1096, 4
      %v1099 = vrot.slane %v994, 5
      %v1100 = vsel %vm796, %v1098, %v1099
      %v1101 = vrot.slane %v1099, 4
      %v1102 = vrot.slane %v995, 5
      %v1103 = vsel %vm796, %v1101, %v1102
      %v1104 = vrot.slane %v1102, 4
      %v1105 = vrot.slane %v996, 5
      %v1106 = vsel %vm796, %v1104, %v1105
      %v1107 = vrot.slane %v1105, 4
      %v1108 = vrot.slane %v997, 5
      %v1109 = vsel %vm796, %v1107, %v1108
      %v1110 = vrot.slane %v1108, 4
      %v1111 = vrot.slane %v998, 5
      %v1112 = vsel %vm796, %v1110, %v1111
      %v1113 = vrot.slane %v1111, 4
      %v1114 = vrot.slane %v999, 5
      %v1115 = vsel %vm796, %v1113, %v1114
      %v1116 = vrot.slane %v1114, 4
      %v1117 = vrot.slane %v1000, 5
      %v1118 = vsel %vm796, %v1116, %v1117
      %v1119 = vrot.slane %v1117, 4
      %v1120 = vrot.slane %v1001, 5
      %v1121 = vsel %vm796, %v1119, %v1120
      %v1122 = vrot.slane %v1120, 4
      %v1123 = vrot.slane %v1002, 5
      %v1124 = vsel %vm796, %v1122, %v1123
      %v1125 = vrot.slane %v1123, 4
      %v1126 = vrot.slane %v1003, 5
      %v1127 = vsel %vm796, %v1125, %v1126
      %v1128 = vrot.slane %v1126, 4
      %v1129 = vrot.slane %v1004, 5
      %v1130 = vsel %vm796, %v1128, %v1129
      %v1131 = vrot.slane %v1129, 4
      %v1132 = vrot.slane %v1005, 5
      %v1133 = vsel %vm796, %v1131, %v1132
      %v1134 = vrot.slane %v1132, 4
      %v1135 = vrot.slane %v1006, 5
      %v1136 = vsel %vm796, %v1134, %v1135
      %v1137 = vrot.slane %v1135, 4
      %v1138 = vrot.slane %v1007, 5
      %v1139 = vsel %vm796, %v1137, %v1138
      %v1140 = vrot.slane %v1138, 4
      %v1141 = vrot.slane %v1008, 5
      %v1142 = vsel %vm796, %v1140, %v1141
      %v1143 = vrot.slane %v1141, 4
      %v1144 = vrot.slane %v1009, 5
      %v1145 = vsel %vm796, %v1143, %v1144
      %v1146 = vrot.slane %v1144, 4
      %v1147 = vrot.slane %v1010, 5
      %v1148 = vsel %vm796, %v1146, %v1147
      %v1149 = vrot.slane %v1147, 4
      %v1150 = vrot.slane %v1011, 5
      %v1151 = vsel %vm796, %v1149, %v1150
      %v1152 = vrot.slane %v1150, 4
      %v1153 = vrot.slane %v1012, 5
      %v1154 = vsel %vm796, %v1152, %v1153
      %v1155 = vrot.slane %v1153, 4
      %v1156 = vrot.slane %v1013, 5
      %v1157 = vsel %vm796, %v1155, %v1156
      %v1158 = vrot.slane %v1156, 4
      %v1159 = vrot.slane %v1014, 5
      %v1160 = vsel %vm796, %v1158, %v1159
      %1197 = vst [vmem:[#allocation2 + $0xc] sm:$0xf] %v1055
      %1198 = vst [vmem:[#allocation2 + $0x30] sm:$0xf] %v1058
      %1199 = vst [vmem:[#allocation2 + $0x54] sm:$0xf] %v1061
      %1200 = vst [vmem:[#allocation2 + $0x78] sm:$0xf] %v1064
      %1201 = vst [vmem:[#allocation2 + $0x9c] sm:$0xf] %v1067
      %1202 = vst [vmem:[#allocation2 + $0xc0] sm:$0xf] %v1070
      %1203 = vst [vmem:[#allocation2 + $0xe4] sm:$0xf] %v1073
      %1204 = vst [vmem:[#allocation2 + $0x108] sm:$0xf] %v1076
      %1205 = vst [vmem:[#allocation2 + $0x12c] sm:$0xf] %v1079
      %1206 = vst [vmem:[#allocation2 + $0x150] sm:$0xf] %v1082
      %1207 = vst [vmem:[#allocation2 + $0x174] sm:$0xf] %v1085
      %1208 = vst [vmem:[#allocation2 + $0x198] sm:$0xf] %v1088
      %1209 = vst [vmem:[#allocation2 + $0x1bc] sm:$0xf] %v1091
      %1210 = vst [vmem:[#allocation2 + $0x1e0] sm:$0xf] %v1094
      %1211 = vst [vmem:[#allocation2 + $0x204] sm:$0xf] %v1097
      %1212 = vst [vmem:[#allocation2 + $0x228] sm:$0xf] %v1100
      %1213 = vst [vmem:[#allocation2 + $0x24c] sm:$0xf] %v1103
      %1214 = vst [vmem:[#allocation2 + $0x270] sm:$0xf] %v1106
      %1215 = vst [vmem:[#allocation2 + $0x294] sm:$0xf] %v1109
      %1216 = vst [vmem:[#allocation2 + $0x2b8] sm:$0xf] %v1112
      %1217 = vst [vmem:[#allocation2 + $0x2dc] sm:$0xf] %v1115
      %1218 = vst [vmem:[#allocation2 + $0x300] sm:$0xf] %v1118
      %1219 = vst [vmem:[#allocation2 + $0x324] sm:$0xf] %v1121
      %1220 = vst [vmem:[#allocation2 + $0x348] sm:$0xf] %v1124
      %1221 = vst [vmem:[#allocation2 + $0x36c] sm:$0xf] %v1127
      %1222 = vst [vmem:[#allocation2 + $0x390] sm:$0xf] %v1130
      %1223 = vst [vmem:[#allocation2 + $0x3b4] sm:$0xf] %v1133
      %1224 = vst [vmem:[#allocation2 + $0x3d8] sm:$0xf] %v1136
      %1225 = vst [vmem:[#allocation2 + $0x3fc] sm:$0xf] %v1139
      %1226 = vst [vmem:[#allocation2 + $0x420] sm:$0xf] %v1142
      %1227 = vst [vmem:[#allocation2 + $0x444] sm:$0xf] %v1145
      %1228 = vst [vmem:[#allocation2 + $0x468] sm:$0xf] %v1148
      %1229 = vst [vmem:[#allocation2 + $0x48c] sm:$0xf] %v1151
      %1230 = vst [vmem:[#allocation2 + $0x4b0] sm:$0xf] %v1154
      %1231 = vst [vmem:[#allocation2 + $0x4d4] sm:$0xf] %v1157
      %1232 = vst [vmem:[#allocation2 + $0x4f8] sm:$0xf] %v1160
      %v1233 = vld [vmem:[%s165 + $0x8] sm:$0xe]
      %v1234 = vld [vmem:[%s165 + $0xc] sm:$0xf]
      %v1235 = vld [vmem:[%s165 + $0x10] sm:$0xf]
      %v1236 = vld [vmem:[%s165 + $0x14] sm:$0xf]
      %v1237 = vld [vmem:[%s165 + $0x18] sm:$0xf]
      %v1238 = vld [vmem:[%s165 + $0x1c] sm:$0xf]
      %v1239 = vld [vmem:[%s165 + $0x20] sm:$0xf]
      %v1240 = vld [vmem:[%s165 + $0x24] sm:$0xf]
      %v1241 = vld [vmem:[%s165 + $0x28] sm:$0xf]
      %v1242 = vld [vmem:[%s165 + $0x2c] sm:$0xf]
      %v1243 = vld [vmem:[%s165 + $0x30] sm:$0xf]
      %v1244 = vld [vmem:[%s165 + $0x34] sm:$0xf]
      %v1245 = vld [vmem:[%s165 + $0x38] sm:$0xf]
      %v1246 = vld [vmem:[%s165 + $0x3c] sm:$0xf]
      %v1247 = vld [vmem:[%s165 + $0x40] sm:$0xf]
      %v1248 = vld [vmem:[%s165 + $0x44] sm:$0xf]
      %v1249 = vld [vmem:[%s165 + $0x48] sm:$0xf]
      %v1250 = vld [vmem:[%s165 + $0x4c] sm:$0xf]
      %v1251 = vld [vmem:[%s165 + $0x50] sm:$0xf]
      %v1252 = vld [vmem:[%s165 + $0x54] sm:$0xf]
      %v1253 = vld [vmem:[%s165 + $0x58] sm:$0xf]
      %v1254 = vld [vmem:[%s165 + $0x5c] sm:$0xf]
      %v1255 = vld [vmem:[%s165 + $0x60] sm:$0xf]
      %v1256 = vld [vmem:[%s165 + $0x64] sm:$0xf]
      %v1257 = vld [vmem:[%s165 + $0x68] sm:$0xf]
      %v1258 = vld [vmem:[%s165 + $0x6c] sm:$0xf]
      %v1259 = vld [vmem:[%s165 + $0x70] sm:$0xf]
      %v1260 = vld [vmem:[%s165 + $0x74] sm:$0xf]
      %v1261 = vld [vmem:[%s165 + $0x78] sm:$0xf]
      %v1262 = vld [vmem:[%s165 + $0x7c] sm:$0xf]
      %v1263 = vld [vmem:[%s165 + $0x80] sm:$0xf]
      %v1264 = vld [vmem:[%s165 + $0x84] sm:$0xf]
      %v1265 = vld [vmem:[%s165 + $0x88] sm:$0xf]
      %v1266 = vld [vmem:[%s165 + $0x8c] sm:$0xf]
      %v1267 = vld [vmem:[%s165 + $0x90] sm:$0xf]
      %v1268 = vld [vmem:[%s165 + $0x94] sm:$0xf]
      %v1269 = vld [vmem:[%s165 + $0x98] sm:$0x3]
      %vm1270 = vsmask.f32 2304
      %vm1271 = vsmask.f32 6416
      %vm1272 = vmor %vm1270, %vm1271
      %v1274 = vshrl.u32 %v1233, 16
      %v1276 = vrot.slane %v1274, 5
      %v1277 = vshll.u32 %v1233, 16
      %v1279 = vrot.slane %v1277, 6
      %v1280 = vor.u32 %v1276, %v1279
      %v1281 = vrot.slane %v1280, 4
      %v1283 = vshrl.u32 %v1234, 16
      %v1285 = vrot.slane %v1283, 5
      %v1286 = vshll.u32 %v1234, 16
      %v1288 = vrot.slane %v1286, 6
      %v1289 = vor.u32 %v1285, %v1288
      %v1290 = vsel %vm1272, %v1281, %v1289
      %v1291 = vrot.slane %v1289, 4
      %v1293 = vshrl.u32 %v1235, 16
      %v1295 = vrot.slane %v1293, 5
      %v1296 = vshll.u32 %v1235, 16
      %v1298 = vrot.slane %v1296, 6
      %v1299 = vor.u32 %v1295, %v1298
      %v1300 = vsel %vm1272, %v1291, %v1299
      %v1301 = vrot.slane %v1299, 4
      %v1303 = vshrl.u32 %v1236, 16
      %v1305 = vrot.slane %v1303, 5
      %v1306 = vshll.u32 %v1236, 16
      %v1308 = vrot.slane %v1306, 6
      %v1309 = vor.u32 %v1305, %v1308
      %v1310 = vsel %vm1272, %v1301, %v1309
      %v1311 = vrot.slane %v1309, 4
      %v1313 = vshrl.u32 %v1237, 16
      %v1315 = vrot.slane %v1313, 5
      %v1316 = vshll.u32 %v1237, 16
      %v1318 = vrot.slane %v1316, 6
      %v1319 = vor.u32 %v1315, %v1318
      %v1320 = vsel %vm1272, %v1311, %v1319
      %v1321 = vrot.slane %v1319, 4
      %v1323 = vshrl.u32 %v1238, 16
      %v1325 = vrot.slane %v1323, 5
      %v1326 = vshll.u32 %v1238, 16
      %v1328 = vrot.slane %v1326, 6
      %v1329 = vor.u32 %v1325, %v1328
      %v1330 = vsel %vm1272, %v1321, %v1329
      %v1331 = vrot.slane %v1329, 4
      %v1333 = vshrl.u32 %v1239, 16
      %v1335 = vrot.slane %v1333, 5
      %v1336 = vshll.u32 %v1239, 16
      %v1338 = vrot.slane %v1336, 6
      %v1339 = vor.u32 %v1335, %v1338
      %v1340 = vsel %vm1272, %v1331, %v1339
      %v1341 = vrot.slane %v1339, 4
      %v1343 = vshrl.u32 %v1240, 16
      %v1345 = vrot.slane %v1343, 5
      %v1346 = vshll.u32 %v1240, 16
      %v1348 = vrot.slane %v1346, 6
      %v1349 = vor.u32 %v1345, %v1348
      %v1350 = vsel %vm1272, %v1341, %v1349
      %v1351 = vrot.slane %v1349, 4
      %v1353 = vshrl.u32 %v1241, 16
      %v1355 = vrot.slane %v1353, 5
      %v1356 = vshll.u32 %v1241, 16
      %v1358 = vrot.slane %v1356, 6
      %v1359 = vor.u32 %v1355, %v1358
      %v1360 = vsel %vm1272, %v1351, %v1359
      %v1361 = vrot.slane %v1359, 4
      %v1363 = vshrl.u32 %v1242, 16
      %v1365 = vrot.slane %v1363, 5
      %v1366 = vshll.u32 %v1242, 16
      %v1368 = vrot.slane %v1366, 6
      %v1369 = vor.u32 %v1365, %v1368
      %v1370 = vsel %vm1272, %v1361, %v1369
      %v1371 = vrot.slane %v1369, 4
      %v1373 = vshrl.u32 %v1243, 16
      %v1375 = vrot.slane %v1373, 5
      %v1376 = vshll.u32 %v1243, 16
      %v1378 = vrot.slane %v1376, 6
      %v1379 = vor.u32 %v1375, %v1378
      %v1380 = vsel %vm1272, %v1371, %v1379
      %v1381 = vrot.slane %v1379, 4
      %v1383 = vshrl.u32 %v1244, 16
      %v1385 = vrot.slane %v1383, 5
      %v1386 = vshll.u32 %v1244, 16
      %v1388 = vrot.slane %v1386, 6
      %v1389 = vor.u32 %v1385, %v1388
      %v1390 = vsel %vm1272, %v1381, %v1389
      %v1391 = vrot.slane %v1389, 4
      %v1393 = vshrl.u32 %v1245, 16
      %v1395 = vrot.slane %v1393, 5
      %v1396 = vshll.u32 %v1245, 16
      %v1398 = vrot.slane %v1396, 6
      %v1399 = vor.u32 %v1395, %v1398
      %v1400 = vsel %vm1272, %v1391, %v1399
      %v1401 = vrot.slane %v1399, 4
      %v1403 = vshrl.u32 %v1246, 16
      %v1405 = vrot.slane %v1403, 5
      %v1406 = vshll.u32 %v1246, 16
      %v1408 = vrot.slane %v1406, 6
      %v1409 = vor.u32 %v1405, %v1408
      %v1410 = vsel %vm1272, %v1401, %v1409
      %v1411 = vrot.slane %v1409, 4
      %v1413 = vshrl.u32 %v1247, 16
      %v1415 = vrot.slane %v1413, 5
      %v1416 = vshll.u32 %v1247, 16
      %v1418 = vrot.slane %v1416, 6
      %v1419 = vor.u32 %v1415, %v1418
      %v1420 = vsel %vm1272, %v1411, %v1419
      %v1421 = vrot.slane %v1419, 4
      %v1423 = vshrl.u32 %v1248, 16
      %v1425 = vrot.slane %v1423, 5
      %v1426 = vshll.u32 %v1248, 16
      %v1428 = vrot.slane %v1426, 6
      %v1429 = vor.u32 %v1425, %v1428
      %v1430 = vsel %vm1272, %v1421, %v1429
      %v1431 = vrot.slane %v1429, 4
      %v1433 = vshrl.u32 %v1249, 16
      %v1435 = vrot.slane %v1433, 5
      %v1436 = vshll.u32 %v1249, 16
      %v1438 = vrot.slane %v1436, 6
      %v1439 = vor.u32 %v1435, %v1438
      %v1440 = vsel %vm1272, %v1431, %v1439
      %v1441 = vrot.slane %v1439, 4
      %v1443 = vshrl.u32 %v1250, 16
      %v1445 = vrot.slane %v1443, 5
      %v1446 = vshll.u32 %v1250, 16
      %v1448 = vrot.slane %v1446, 6
      %v1449 = vor.u32 %v1445, %v1448
      %v1450 = vsel %vm1272, %v1441, %v1449
      %v1451 = vrot.slane %v1449, 4
      %v1453 = vshrl.u32 %v1251, 16
      %v1455 = vrot.slane %v1453, 5
      %v1456 = vshll.u32 %v1251, 16
      %v1458 = vrot.slane %v1456, 6
      %v1459 = vor.u32 %v1455, %v1458
      %v1460 = vsel %vm1272, %v1451, %v1459
      %v1461 = vrot.slane %v1459, 4
      %v1463 = vshrl.u32 %v1252, 16
      %v1465 = vrot.slane %v1463, 5
      %v1466 = vshll.u32 %v1252, 16
      %v1468 = vrot.slane %v1466, 6
      %v1469 = vor.u32 %v1465, %v1468
      %v1470 = vsel %vm1272, %v1461, %v1469
      %v1471 = vrot.slane %v1469, 4
      %v1473 = vshrl.u32 %v1253, 16
      %v1475 = vrot.slane %v1473, 5
      %v1476 = vshll.u32 %v1253, 16
      %v1478 = vrot.slane %v1476, 6
      %v1479 = vor.u32 %v1475, %v1478
      %v1480 = vsel %vm1272, %v1471, %v1479
      %v1481 = vrot.slane %v1479, 4
      %v1483 = vshrl.u32 %v1254, 16
      %v1485 = vrot.slane %v1483, 5
      %v1486 = vshll.u32 %v1254, 16
      %v1488 = vrot.slane %v1486, 6
      %v1489 = vor.u32 %v1485, %v1488
      %v1490 = vsel %vm1272, %v1481, %v1489
      %v1491 = vrot.slane %v1489, 4
      %v1493 = vshrl.u32 %v1255, 16
      %v1495 = vrot.slane %v1493, 5
      %v1496 = vshll.u32 %v1255, 16
      %v1498 = vrot.slane %v1496, 6
      %v1499 = vor.u32 %v1495, %v1498
      %v1500 = vsel %vm1272, %v1491, %v1499
      %v1501 = vrot.slane %v1499, 4
      %v1503 = vshrl.u32 %v1256, 16
      %v1505 = vrot.slane %v1503, 5
      %v1506 = vshll.u32 %v1256, 16
      %v1508 = vrot.slane %v1506, 6
      %v1509 = vor.u32 %v1505, %v1508
      %v1510 = vsel %vm1272, %v1501, %v1509
      %v1511 = vrot.slane %v1509, 4
      %v1513 = vshrl.u32 %v1257, 16
      %v1515 = vrot.slane %v1513, 5
      %v1516 = vshll.u32 %v1257, 16
      %v1518 = vrot.slane %v1516, 6
      %v1519 = vor.u32 %v1515, %v1518
      %v1520 = vsel %vm1272, %v1511, %v1519
      %v1521 = vrot.slane %v1519, 4
      %v1523 = vshrl.u32 %v1258, 16
      %v1525 = vrot.slane %v1523, 5
      %v1526 = vshll.u32 %v1258, 16
      %v1528 = vrot.slane %v1526, 6
      %v1529 = vor.u32 %v1525, %v1528
      %v1530 = vsel %vm1272, %v1521, %v1529
      %v1531 = vrot.slane %v1529, 4
      %v1533 = vshrl.u32 %v1259, 16
      %v1535 = vrot.slane %v1533, 5
      %v1536 = vshll.u32 %v1259, 16
      %v1538 = vrot.slane %v1536, 6
      %v1539 = vor.u32 %v1535, %v1538
      %v1540 = vsel %vm1272, %v1531, %v1539
      %v1541 = vrot.slane %v1539, 4
      %v1543 = vshrl.u32 %v1260, 16
      %v1545 = vrot.slane %v1543, 5
      %v1546 = vshll.u32 %v1260, 16
      %v1548 = vrot.slane %v1546, 6
      %v1549 = vor.u32 %v1545, %v1548
      %v1550 = vsel %vm1272, %v1541, %v1549
      %v1551 = vrot.slane %v1549, 4
      %v1553 = vshrl.u32 %v1261, 16
      %v1555 = vrot.slane %v1553, 5
      %v1556 = vshll.u32 %v1261, 16
      %v1558 = vrot.slane %v1556, 6
      %v1559 = vor.u32 %v1555, %v1558
      %v1560 = vsel %vm1272, %v1551, %v1559
      %v1561 = vrot.slane %v1559, 4
      %v1563 = vshrl.u32 %v1262, 16
      %v1565 = vrot.slane %v1563, 5
      %v1566 = vshll.u32 %v1262, 16
      %v1568 = vrot.slane %v1566, 6
      %v1569 = vor.u32 %v1565, %v1568
      %v1570 = vsel %vm1272, %v1561, %v1569
      %v1571 = vrot.slane %v1569, 4
      %v1573 = vshrl.u32 %v1263, 16
      %v1575 = vrot.slane %v1573, 5
      %v1576 = vshll.u32 %v1263, 16
      %v1578 = vrot.slane %v1576, 6
      %v1579 = vor.u32 %v1575, %v1578
      %v1580 = vsel %vm1272, %v1571, %v1579
      %v1581 = vrot.slane %v1579, 4
      %v1583 = vshrl.u32 %v1264, 16
      %v1585 = vrot.slane %v1583, 5
      %v1586 = vshll.u32 %v1264, 16
      %v1588 = vrot.slane %v1586, 6
      %v1589 = vor.u32 %v1585, %v1588
      %v1590 = vsel %vm1272, %v1581, %v1589
      %v1591 = vrot.slane %v1589, 4
      %v1593 = vshrl.u32 %v1265, 16
      %v1595 = vrot.slane %v1593, 5
      %v1596 = vshll.u32 %v1265, 16
      %v1598 = vrot.slane %v1596, 6
      %v1599 = vor.u32 %v1595, %v1598
      %v1600 = vsel %vm1272, %v1591, %v1599
      %v1601 = vrot.slane %v1599, 4
      %v1603 = vshrl.u32 %v1266, 16
      %v1605 = vrot.slane %v1603, 5
      %v1606 = vshll.u32 %v1266, 16
      %v1608 = vrot.slane %v1606, 6
      %v1609 = vor.u32 %v1605, %v1608
      %v1610 = vsel %vm1272, %v1601, %v1609
      %v1611 = vrot.slane %v1609, 4
      %v1613 = vshrl.u32 %v1267, 16
      %v1615 = vrot.slane %v1613, 5
      %v1616 = vshll.u32 %v1267, 16
      %v1618 = vrot.slane %v1616, 6
      %v1619 = vor.u32 %v1615, %v1618
      %v1620 = vsel %vm1272, %v1611, %v1619
      %v1621 = vrot.slane %v1619, 4
      %v1623 = vshrl.u32 %v1268, 16
      %v1625 = vrot.slane %v1623, 5
      %v1626 = vshll.u32 %v1268, 16
      %v1628 = vrot.slane %v1626, 6
      %v1629 = vor.u32 %v1625, %v1628
      %v1630 = vsel %vm1272, %v1621, %v1629
      %v1631 = vrot.slane %v1629, 4
      %v1633 = vshrl.u32 %v1269, 16
      %v1635 = vrot.slane %v1633, 5
      %v1636 = vshll.u32 %v1269, 16
      %v1638 = vrot.slane %v1636, 6
      %v1639 = vor.u32 %v1635, %v1638
      %v1640 = vsel %vm1272, %v1631, %v1639
      %1677 = vst [vmem:[#allocation2 + $0x10] sm:$0xf] %v1290
      %1678 = vst [vmem:[#allocation2 + $0x34] sm:$0xf] %v1300
      %1679 = vst [vmem:[#allocation2 + $0x58] sm:$0xf] %v1310
      %1680 = vst [vmem:[#allocation2 + $0x7c] sm:$0xf] %v1320
      %1681 = vst [vmem:[#allocation2 + $0xa0] sm:$0xf] %v1330
      %1682 = vst [vmem:[#allocation2 + $0xc4] sm:$0xf] %v1340
      %1683 = vst [vmem:[#allocation2 + $0xe8] sm:$0xf] %v1350
      %1684 = vst [vmem:[#allocation2 + $0x10c] sm:$0xf] %v1360
      %1685 = vst [vmem:[#allocation2 + $0x130] sm:$0xf] %v1370
      %1686 = vst [vmem:[#allocation2 + $0x154] sm:$0xf] %v1380
      %1687 = vst [vmem:[#allocation2 + $0x178] sm:$0xf] %v1390
      %1688 = vst [vmem:[#allocation2 + $0x19c] sm:$0xf] %v1400
      %1689 = vst [vmem:[#allocation2 + $0x1c0] sm:$0xf] %v1410
      %1690 = vst [vmem:[#allocation2 + $0x1e4] sm:$0xf] %v1420
      %1691 = vst [vmem:[#allocation2 + $0x208] sm:$0xf] %v1430
      %1692 = vst [vmem:[#allocation2 + $0x22c] sm:$0xf] %v1440
      %1693 = vst [vmem:[#allocation2 + $0x250] sm:$0xf] %v1450
      %1694 = vst [vmem:[#allocation2 + $0x274] sm:$0xf] %v1460
      %1695 = vst [vmem:[#allocation2 + $0x298] sm:$0xf] %v1470
      %1696 = vst [vmem:[#allocation2 + $0x2bc] sm:$0xf] %v1480
      %1697 = vst [vmem:[#allocation2 + $0x2e0] sm:$0xf] %v1490
      %1698 = vst [vmem:[#allocation2 + $0x304] sm:$0xf] %v1500
      %1699 = vst [vmem:[#allocation2 + $0x328] sm:$0xf] %v1510
      %1700 = vst [vmem:[#allocation2 + $0x34c] sm:$0xf] %v1520
      %1701 = vst [vmem:[#allocation2 + $0x370] sm:$0xf] %v1530
      %1702 = vst [vmem:[#allocation2 + $0x394] sm:$0xf] %v1540
      %1703 = vst [vmem:[#allocation2 + $0x3b8] sm:$0xf] %v1550
      %1704 = vst [vmem:[#allocation2 + $0x3dc] sm:$0xf] %v1560
      %1705 = vst [vmem:[#allocation2 + $0x400] sm:$0xf] %v1570
      %1706 = vst [vmem:[#allocation2 + $0x424] sm:$0xf] %v1580
      %1707 = vst [vmem:[#allocation2 + $0x448] sm:$0xf] %v1590
      %1708 = vst [vmem:[#allocation2 + $0x46c] sm:$0xf] %v1600
      %1709 = vst [vmem:[#allocation2 + $0x490] sm:$0xf] %v1610
      %1710 = vst [vmem:[#allocation2 + $0x4b4] sm:$0xf] %v1620
      %1711 = vst [vmem:[#allocation2 + $0x4d8] sm:$0xf] %v1630
      %1712 = vst [vmem:[#allocation2 + $0x4fc] sm:$0xf] %v1640
      %v1713 = vld [vmem:[%s165 + $0x8] sm:$0xc]
      %v1714 = vld [vmem:[%s165 + $0xc] sm:$0xf]
      %v1715 = vld [vmem:[%s165 + $0x10] sm:$0xf]
      %v1716 = vld [vmem:[%s165 + $0x14] sm:$0xf]
      %v1717 = vld [vmem:[%s165 + $0x18] sm:$0xf]
      %v1718 = vld [vmem:[%s165 + $0x1c] sm:$0xf]
      %v1719 = vld [vmem:[%s165 + $0x20] sm:$0xf]
      %v1720 = vld [vmem:[%s165 + $0x24] sm:$0xf]
      %v1721 = vld [vmem:[%s165 + $0x28] sm:$0xf]
      %v1722 = vld [vmem:[%s165 + $0x2c] sm:$0xf]
      %v1723 = vld [vmem:[%s165 + $0x30] sm:$0xf]
      %v1724 = vld [vmem:[%s165 + $0x34] sm:$0xf]
      %v1725 = vld [vmem:[%s165 + $0x38] sm:$0xf]
      %v1726 = vld [vmem:[%s165 + $0x3c] sm:$0xf]
      %v1727 = vld [vmem:[%s165 + $0x40] sm:$0xf]
      %v1728 = vld [vmem:[%s165 + $0x44] sm:$0xf]
      %v1729 = vld [vmem:[%s165 + $0x48] sm:$0xf]
      %v1730 = vld [vmem:[%s165 + $0x4c] sm:$0xf]
      %v1731 = vld [vmem:[%s165 + $0x50] sm:$0xf]
      %v1732 = vld [vmem:[%s165 + $0x54] sm:$0xf]
      %v1733 = vld [vmem:[%s165 + $0x58] sm:$0xf]
      %v1734 = vld [vmem:[%s165 + $0x5c] sm:$0xf]
      %v1735 = vld [vmem:[%s165 + $0x60] sm:$0xf]
      %v1736 = vld [vmem:[%s165 + $0x64] sm:$0xf]
      %v1737 = vld [vmem:[%s165 + $0x68] sm:$0xf]
      %v1738 = vld [vmem:[%s165 + $0x6c] sm:$0xf]
      %v1739 = vld [vmem:[%s165 + $0x70] sm:$0xf]
      %v1740 = vld [vmem:[%s165 + $0x74] sm:$0xf]
      %v1741 = vld [vmem:[%s165 + $0x78] sm:$0xf]
      %v1742 = vld [vmem:[%s165 + $0x7c] sm:$0xf]
      %v1743 = vld [vmem:[%s165 + $0x80] sm:$0xf]
      %v1744 = vld [vmem:[%s165 + $0x84] sm:$0xf]
      %v1745 = vld [vmem:[%s165 + $0x88] sm:$0xf]
      %v1746 = vld [vmem:[%s165 + $0x8c] sm:$0xf]
      %v1747 = vld [vmem:[%s165 + $0x90] sm:$0xf]
      %v1748 = vld [vmem:[%s165 + $0x94] sm:$0xf]
      %v1749 = vld [vmem:[%s165 + $0x98] sm:$0x3]
      %vm1787 = vcmask 1041408
      %vm1788 = vcmask 1045508
      %vm1789 = vmor %vm1787, %vm1788
      %v1790 = vrot.slane %v1713, 6
      %v1791 = vrot.slane %v1790, 4
      %v1792 = vrot.slane %v1714, 6
      %v1793 = vsel %vm1789, %v1791, %v1792
      %v1794 = vrot.slane %v1792, 4
      %v1795 = vrot.slane %v1715, 6
      %v1796 = vsel %vm1789, %v1794, %v1795
      %v1797 = vrot.slane %v1795, 4
      %v1798 = vrot.slane %v1716, 6
      %v1799 = vsel %vm1789, %v1797, %v1798
      %v1800 = vrot.slane %v1798, 4
      %v1801 = vrot.slane %v1717, 6
      %v1802 = vsel %vm1789, %v1800, %v1801
      %v1803 = vrot.slane %v1801, 4
      %v1804 = vrot.slane %v1718, 6
      %v1805 = vsel %vm1789, %v1803, %v1804
      %v1806 = vrot.slane %v1804, 4
      %v1807 = vrot.slane %v1719, 6
      %v1808 = vsel %vm1789, %v1806, %v1807
      %v1809 = vrot.slane %v1807, 4
      %v1810 = vrot.slane %v1720, 6
      %v1811 = vsel %vm1789, %v1809, %v1810
      %v1812 = vrot.slane %v1810, 4
      %v1813 = vrot.slane %v1721, 6
      %v1814 = vsel %vm1789, %v1812, %v1813
      %v1815 = vrot.slane %v1813, 4
      %v1816 = vrot.slane %v1722, 6
      %v1817 = vsel %vm1789, %v1815, %v1816
      %v1818 = vrot.slane %v1816, 4
      %v1819 = vrot.slane %v1723, 6
      %v1820 = vsel %vm1789, %v1818, %v1819
      %v1821 = vrot.slane %v1819, 4
      %v1822 = vrot.slane %v1724, 6
      %v1823 = vsel %vm1789, %v1821, %v1822
      %v1824 = vrot.slane %v1822, 4
      %v1825 = vrot.slane %v1725, 6
      %v1826 = vsel %vm1789, %v1824, %v1825
      %v1827 = vrot.slane %v1825, 4
      %v1828 = vrot.slane %v1726, 6
      %v1829 = vsel %vm1789, %v1827, %v1828
      %v1830 = vrot.slane %v1828, 4
      %v1831 = vrot.slane %v1727, 6
      %v1832 = vsel %vm1789, %v1830, %v1831
      %v1833 = vrot.slane %v1831, 4
      %v1834 = vrot.slane %v1728, 6
      %v1835 = vsel %vm1789, %v1833, %v1834
      %v1836 = vrot.slane %v1834, 4
      %v1837 = vrot.slane %v1729, 6
      %v1838 = vsel %vm1789, %v1836, %v1837
      %v1839 = vrot.slane %v1837, 4
      %v1840 = vrot.slane %v1730, 6
      %v1841 = vsel %vm1789, %v1839, %v1840
      %v1842 = vrot.slane %v1840, 4
      %v1843 = vrot.slane %v1731, 6
      %v1844 = vsel %vm1789, %v1842, %v1843
      %v1845 = vrot.slane %v1843, 4
      %v1846 = vrot.slane %v1732, 6
      %v1847 = vsel %vm1789, %v1845, %v1846
      %v1848 = vrot.slane %v1846, 4
      %v1849 = vrot.slane %v1733, 6
      %v1850 = vsel %vm1789, %v1848, %v1849
      %v1851 = vrot.slane %v1849, 4
      %v1852 = vrot.slane %v1734, 6
      %v1853 = vsel %vm1789, %v1851, %v1852
      %v1854 = vrot.slane %v1852, 4
      %v1855 = vrot.slane %v1735, 6
      %v1856 = vsel %vm1789, %v1854, %v1855
      %v1857 = vrot.slane %v1855, 4
      %v1858 = vrot.slane %v1736, 6
      %v1859 = vsel %vm1789, %v1857, %v1858
      %v1860 = vrot.slane %v1858, 4
      %v1861 = vrot.slane %v1737, 6
      %v1862 = vsel %vm1789, %v1860, %v1861
      %v1863 = vrot.slane %v1861, 4
      %v1864 = vrot.slane %v1738, 6
      %v1865 = vsel %vm1789, %v1863, %v1864
      %v1866 = vrot.slane %v1864, 4
      %v1867 = vrot.slane %v1739, 6
      %v1868 = vsel %vm1789, %v1866, %v1867
      %v1869 = vrot.slane %v1867, 4
      %v1870 = vrot.slane %v1740, 6
      %v1871 = vsel %vm1789, %v1869, %v1870
      %v1872 = vrot.slane %v1870, 4
      %v1873 = vrot.slane %v1741, 6
      %v1874 = vsel %vm1789, %v1872, %v1873
      %v1875 = vrot.slane %v1873, 4
      %v1876 = vrot.slane %v1742, 6
      %v1877 = vsel %vm1789, %v1875, %v1876
      %v1878 = vrot.slane %v1876, 4
      %v1879 = vrot.slane %v1743, 6
      %v1880 = vsel %vm1789, %v1878, %v1879
      %v1881 = vrot.slane %v1879, 4
      %v1882 = vrot.slane %v1744, 6
      %v1883 = vsel %vm1789, %v1881, %v1882
      %v1884 = vrot.slane %v1882, 4
      %v1885 = vrot.slane %v1745, 6
      %v1886 = vsel %vm1789, %v1884, %v1885
      %v1887 = vrot.slane %v1885, 4
      %v1888 = vrot.slane %v1746, 6
      %v1889 = vsel %vm1789, %v1887, %v1888
      %v1890 = vrot.slane %v1888, 4
      %v1891 = vrot.slane %v1747, 6
      %v1892 = vsel %vm1789, %v1890, %v1891
      %v1893 = vrot.slane %v1891, 4
      %v1894 = vrot.slane %v1748, 6
      %v1895 = vsel %vm1789, %v1893, %v1894
      %v1896 = vrot.slane %v1894, 4
      %v1897 = vrot.slane %v1749, 6
      %v1898 = vsel %vm1789, %v1896, %v1897
      %1935 = vst [vmem:[#allocation2 + $0x14] sm:$0xf] %v1793
      %1936 = vst [vmem:[#allocation2 + $0x38] sm:$0xf] %v1796
      %1937 = vst [vmem:[#allocation2 + $0x5c] sm:$0xf] %v1799
      %1938 = vst [vmem:[#allocation2 + $0x80] sm:$0xf] %v1802
      %1939 = vst [vmem:[#allocation2 + $0xa4] sm:$0xf] %v1805
      %1940 = vst [vmem:[#allocation2 + $0xc8] sm:$0xf] %v1808
      %1941 = vst [vmem:[#allocation2 + $0xec] sm:$0xf] %v1811
      %1942 = vst [vmem:[#allocation2 + $0x110] sm:$0xf] %v1814
      %1943 = vst [vmem:[#allocation2 + $0x134] sm:$0xf] %v1817
      %1944 = vst [vmem:[#allocation2 + $0x158] sm:$0xf] %v1820
      %1945 = vst [vmem:[#allocation2 + $0x17c] sm:$0xf] %v1823
      %1946 = vst [vmem:[#allocation2 + $0x1a0] sm:$0xf] %v1826
      %1947 = vst [vmem:[#allocation2 + $0x1c4] sm:$0xf] %v1829
      %1948 = vst [vmem:[#allocation2 + $0x1e8] sm:$0xf] %v1832
      %1949 = vst [vmem:[#allocation2 + $0x20c] sm:$0xf] %v1835
      %1950 = vst [vmem:[#allocation2 + $0x230] sm:$0xf] %v1838
      %1951 = vst [vmem:[#allocation2 + $0x254] sm:$0xf] %v1841
      %1952 = vst [vmem:[#allocation2 + $0x278] sm:$0xf] %v1844
      %1953 = vst [vmem:[#allocation2 + $0x29c] sm:$0xf] %v1847
      %1954 = vst [vmem:[#allocation2 + $0x2c0] sm:$0xf] %v1850
      %1955 = vst [vmem:[#allocation2 + $0x2e4] sm:$0xf] %v1853
      %1956 = vst [vmem:[#allocation2 + $0x308] sm:$0xf] %v1856
      %1957 = vst [vmem:[#allocation2 + $0x32c] sm:$0xf] %v1859
      %1958 = vst [vmem:[#allocation2 + $0x350] sm:$0xf] %v1862
      %1959 = vst [vmem:[#allocation2 + $0x374] sm:$0xf] %v1865
      %1960 = vst [vmem:[#allocation2 + $0x398] sm:$0xf] %v1868
      %1961 = vst [vmem:[#allocation2 + $0x3bc] sm:$0xf] %v1871
      %1962 = vst [vmem:[#allocation2 + $0x3e0] sm:$0xf] %v1874
      %1963 = vst [vmem:[#allocation2 + $0x404] sm:$0xf] %v1877
      %1964 = vst [vmem:[#allocation2 + $0x428] sm:$0xf] %v1880
      %1965 = vst [vmem:[#allocation2 + $0x44c] sm:$0xf] %v1883
      %1966 = vst [vmem:[#allocation2 + $0x470] sm:$0xf] %v1886
      %1967 = vst [vmem:[#allocation2 + $0x494] sm:$0xf] %v1889
      %1968 = vst [vmem:[#allocation2 + $0x4b8] sm:$0xf] %v1892
      %1969 = vst [vmem:[#allocation2 + $0x4dc] sm:$0xf] %v1895
      %1970 = vst [vmem:[#allocation2 + $0x500] sm:$0xf] %v1898
      %v1971 = vld [vmem:[%s165 + $0x10] sm:$0xc]
      %v1972 = vld [vmem:[%s165 + $0x14] sm:$0xf]
      %v1973 = vld [vmem:[%s165 + $0x18] sm:$0xf]
      %v1974 = vld [vmem:[%s165 + $0x1c] sm:$0xf]
      %v1975 = vld [vmem:[%s165 + $0x20] sm:$0xf]
      %v1976 = vld [vmem:[%s165 + $0x24] sm:$0xf]
      %v1977 = vld [vmem:[%s165 + $0x28] sm:$0xf]
      %v1978 = vld [vmem:[%s165 + $0x2c] sm:$0xf]
      %v1979 = vld [vmem:[%s165 + $0x30] sm:$0xf]
      %v1980 = vld [vmem:[%s165 + $0x34] sm:$0xf]
      %v1981 = vld [vmem:[%s165 + $0x38] sm:$0xf]
      %v1982 = vld [vmem:[%s165 + $0x3c] sm:$0xf]
      %v1983 = vld [vmem:[%s165 + $0x40] sm:$0xf]
      %v1984 = vld [vmem:[%s165 + $0x44] sm:$0xf]
      %v1985 = vld [vmem:[%s165 + $0x48] sm:$0xf]
      %v1986 = vld [vmem:[%s165 + $0x4c] sm:$0xf]
      %v1987 = vld [vmem:[%s165 + $0x50] sm:$0xf]
      %v1988 = vld [vmem:[%s165 + $0x54] sm:$0xf]
      %v1989 = vld [vmem:[%s165 + $0x58] sm:$0xf]
      %v1990 = vld [vmem:[%s165 + $0x5c] sm:$0xf]
      %v1991 = vld [vmem:[%s165 + $0x60] sm:$0xf]
      %v1992 = vld [vmem:[%s165 + $0x64] sm:$0xf]
      %v1993 = vld [vmem:[%s165 + $0x68] sm:$0xf]
      %v1994 = vld [vmem:[%s165 + $0x6c] sm:$0xf]
      %v1995 = vld [vmem:[%s165 + $0x70] sm:$0xf]
      %v1996 = vld [vmem:[%s165 + $0x74] sm:$0xf]
      %v1997 = vld [vmem:[%s165 + $0x78] sm:$0xf]
      %v1998 = vld [vmem:[%s165 + $0x7c] sm:$0xf]
      %v1999 = vld [vmem:[%s165 + $0x80] sm:$0xf]
      %v2000 = vld [vmem:[%s165 + $0x84] sm:$0xf]
      %v2001 = vld [vmem:[%s165 + $0x88] sm:$0xf]
      %v2002 = vld [vmem:[%s165 + $0x8c] sm:$0xf]
      %v2003 = vld [vmem:[%s165 + $0x90] sm:$0xf]
      %v2004 = vld [vmem:[%s165 + $0x94] sm:$0xf]
      %v2005 = vld [vmem:[%s165 + $0x98] sm:$0xf]
      %v2006 = vld [vmem:[%s165 + $0x9c] sm:$0xf]
      %v2007 = vld [vmem:[%s165 + $0xa0] sm:$0x3]
      %v2045 = vrot.slane %v1971, 6
      %v2046 = vrot.slane %v2045, 4
      %v2047 = vrot.slane %v1972, 6
      %v2048 = vsel %vm1789, %v2046, %v2047
      %v2049 = vrot.slane %v2047, 4
      %v2050 = vrot.slane %v1973, 6
      %v2051 = vsel %vm1789, %v2049, %v2050
      %v2052 = vrot.slane %v2050, 4
      %v2053 = vrot.slane %v1974, 6
      %v2054 = vsel %vm1789, %v2052, %v2053
      %v2055 = vrot.slane %v2053, 4
      %v2056 = vrot.slane %v1975, 6
      %v2057 = vsel %vm1789, %v2055, %v2056
      %v2058 = vrot.slane %v2056, 4
      %v2059 = vrot.slane %v1976, 6
      %v2060 = vsel %vm1789, %v2058, %v2059
      %v2061 = vrot.slane %v2059, 4
      %v2062 = vrot.slane %v1977, 6
      %v2063 = vsel %vm1789, %v2061, %v2062
      %v2064 = vrot.slane %v2062, 4
      %v2065 = vrot.slane %v1978, 6
      %v2066 = vsel %vm1789, %v2064, %v2065
      %v2067 = vrot.slane %v2065, 4
      %v2068 = vrot.slane %v1979, 6
      %v2069 = vsel %vm1789, %v2067, %v2068
      %v2070 = vrot.slane %v2068, 4
      %v2071 = vrot.slane %v1980, 6
      %v2072 = vsel %vm1789, %v2070, %v2071
      %v2073 = vrot.slane %v2071, 4
      %v2074 = vrot.slane %v1981, 6
      %v2075 = vsel %vm1789, %v2073, %v2074
      %v2076 = vrot.slane %v2074, 4
      %v2077 = vrot.slane %v1982, 6
      %v2078 = vsel %vm1789, %v2076, %v2077
      %v2079 = vrot.slane %v2077, 4
      %v2080 = vrot.slane %v1983, 6
      %v2081 = vsel %vm1789, %v2079, %v2080
      %v2082 = vrot.slane %v2080, 4
      %v2083 = vrot.slane %v1984, 6
      %v2084 = vsel %vm1789, %v2082, %v2083
      %v2085 = vrot.slane %v2083, 4
      %v2086 = vrot.slane %v1985, 6
      %v2087 = vsel %vm1789, %v2085, %v2086
      %v2088 = vrot.slane %v2086, 4
      %v2089 = vrot.slane %v1986, 6
      %v2090 = vsel %vm1789, %v2088, %v2089
      %v2091 = vrot.slane %v2089, 4
      %v2092 = vrot.slane %v1987, 6
      %v2093 = vsel %vm1789, %v2091, %v2092
      %v2094 = vrot.slane %v2092, 4
      %v2095 = vrot.slane %v1988, 6
      %v2096 = vsel %vm1789, %v2094, %v2095
      %v2097 = vrot.slane %v2095, 4
      %v2098 = vrot.slane %v1989, 6
      %v2099 = vsel %vm1789, %v2097, %v2098
      %v2100 = vrot.slane %v2098, 4
      %v2101 = vrot.slane %v1990, 6
      %v2102 = vsel %vm1789, %v2100, %v2101
      %v2103 = vrot.slane %v2101, 4
      %v2104 = vrot.slane %v1991, 6
      %v2105 = vsel %vm1789, %v2103, %v2104
      %v2106 = vrot.slane %v2104, 4
      %v2107 = vrot.slane %v1992, 6
      %v2108 = vsel %vm1789, %v2106, %v2107
      %v2109 = vrot.slane %v2107, 4
      %v2110 = vrot.slane %v1993, 6
      %v2111 = vsel %vm1789, %v2109, %v2110
      %v2112 = vrot.slane %v2110, 4
      %v2113 = vrot.slane %v1994, 6
      %v2114 = vsel %vm1789, %v2112, %v2113
      %v2115 = vrot.slane %v2113, 4
      %v2116 = vrot.slane %v1995, 6
      %v2117 = vsel %vm1789, %v2115, %v2116
      %v2118 = vrot.slane %v2116, 4
      %v2119 = vrot.slane %v1996, 6
      %v2120 = vsel %vm1789, %v2118, %v2119
      %v2121 = vrot.slane %v2119, 4
      %v2122 = vrot.slane %v1997, 6
      %v2123 = vsel %vm1789, %v2121, %v2122
      %v2124 = vrot.slane %v2122, 4
      %v2125 = vrot.slane %v1998, 6
      %v2126 = vsel %vm1789, %v2124, %v2125
      %v2127 = vrot.slane %v2125, 4
      %v2128 = vrot.slane %v1999, 6
      %v2129 = vsel %vm1789, %v2127, %v2128
      %v2130 = vrot.slane %v2128, 4
      %v2131 = vrot.slane %v2000, 6
      %v2132 = vsel %vm1789, %v2130, %v2131
      %v2133 = vrot.slane %v2131, 4
      %v2134 = vrot.slane %v2001, 6
      %v2135 = vsel %vm1789, %v2133, %v2134
      %v2136 = vrot.slane %v2134, 4
      %v2137 = vrot.slane %v2002, 6
      %v2138 = vsel %vm1789, %v2136, %v2137
      %v2139 = vrot.slane %v2137, 4
      %v2140 = vrot.slane %v2003, 6
      %v2141 = vsel %vm1789, %v2139, %v2140
      %v2142 = vrot.slane %v2140, 4
      %v2143 = vrot.slane %v2004, 6
      %v2144 = vsel %vm1789, %v2142, %v2143
      %v2145 = vrot.slane %v2143, 4
      %v2146 = vrot.slane %v2005, 6
      %v2147 = vsel %vm1789, %v2145, %v2146
      %v2148 = vrot.slane %v2146, 4
      %v2149 = vrot.slane %v2006, 6
      %v2150 = vsel %vm1789, %v2148, %v2149
      %v2151 = vrot.slane %v2149, 4
      %v2152 = vrot.slane %v2007, 6
      %v2153 = vsel %vm1789, %v2151, %v2152
      %2190 = vst [vmem:[#allocation2 + $0x18] sm:$0xf] %v2048
      %2191 = vst [vmem:[#allocation2 + $0x3c] sm:$0xf] %v2051
      %2192 = vst [vmem:[#allocation2 + $0x60] sm:$0xf] %v2054
      %2193 = vst [vmem:[#allocation2 + $0x84] sm:$0xf] %v2057
      %2194 = vst [vmem:[#allocation2 + $0xa8] sm:$0xf] %v2060
      %2195 = vst [vmem:[#allocation2 + $0xcc] sm:$0xf] %v2063
      %2196 = vst [vmem:[#allocation2 + $0xf0] sm:$0xf] %v2066
      %2197 = vst [vmem:[#allocation2 + $0x114] sm:$0xf] %v2069
      %2198 = vst [vmem:[#allocation2 + $0x138] sm:$0xf] %v2072
      %2199 = vst [vmem:[#allocation2 + $0x15c] sm:$0xf] %v2075
      %2200 = vst [vmem:[#allocation2 + $0x180] sm:$0xf] %v2078
      %2201 = vst [vmem:[#allocation2 + $0x1a4] sm:$0xf] %v2081
      %2202 = vst [vmem:[#allocation2 + $0x1c8] sm:$0xf] %v2084
      %2203 = vst [vmem:[#allocation2 + $0x1ec] sm:$0xf] %v2087
      %2204 = vst [vmem:[#allocation2 + $0x210] sm:$0xf] %v2090
      %2205 = vst [vmem:[#allocation2 + $0x234] sm:$0xf] %v2093
      %2206 = vst [vmem:[#allocation2 + $0x258] sm:$0xf] %v2096
      %2207 = vst [vmem:[#allocation2 + $0x27c] sm:$0xf] %v2099
      %2208 = vst [vmem:[#allocation2 + $0x2a0] sm:$0xf] %v2102
      %2209 = vst [vmem:[#allocation2 + $0x2c4] sm:$0xf] %v2105
      %2210 = vst [vmem:[#allocation2 + $0x2e8] sm:$0xf] %v2108
      %2211 = vst [vmem:[#allocation2 + $0x30c] sm:$0xf] %v2111
      %2212 = vst [vmem:[#allocation2 + $0x330] sm:$0xf] %v2114
      %2213 = vst [vmem:[#allocation2 + $0x354] sm:$0xf] %v2117
      %2214 = vst [vmem:[#allocation2 + $0x378] sm:$0xf] %v2120
      %2215 = vst [vmem:[#allocation2 + $0x39c] sm:$0xf] %v2123
      %2216 = vst [vmem:[#allocation2 + $0x3c0] sm:$0xf] %v2126
      %2217 = vst [vmem:[#allocation2 + $0x3e4] sm:$0xf] %v2129
      %2218 = vst [vmem:[#allocation2 + $0x408] sm:$0xf] %v2132
      %2219 = vst [vmem:[#allocation2 + $0x42c] sm:$0xf] %v2135
      %2220 = vst [vmem:[#allocation2 + $0x450] sm:$0xf] %v2138
      %2221 = vst [vmem:[#allocation2 + $0x474] sm:$0xf] %v2141
      %2222 = vst [vmem:[#allocation2 + $0x498] sm:$0xf] %v2144
      %2223 = vst [vmem:[#allocation2 + $0x4bc] sm:$0xf] %v2147
      %2224 = vst [vmem:[#allocation2 + $0x4e0] sm:$0xf] %v2150
      %2225 = vst [vmem:[#allocation2 + $0x504] sm:$0xf] %v2153
      %v2226 = vld [vmem:[%s165 + $0x10] sm:$0xc]
      %v2227 = vld [vmem:[%s165 + $0x14] sm:$0xf]
      %v2228 = vld [vmem:[%s165 + $0x18] sm:$0xf]
      %v2229 = vld [vmem:[%s165 + $0x1c] sm:$0xf]
      %v2230 = vld [vmem:[%s165 + $0x20] sm:$0xf]
      %v2231 = vld [vmem:[%s165 + $0x24] sm:$0xf]
      %v2232 = vld [vmem:[%s165 + $0x28] sm:$0xf]
      %v2233 = vld [vmem:[%s165 + $0x2c] sm:$0xf]
      %v2234 = vld [vmem:[%s165 + $0x30] sm:$0xf]
      %v2235 = vld [vmem:[%s165 + $0x34] sm:$0xf]
      %v2236 = vld [vmem:[%s165 + $0x38] sm:$0xf]
      %v2237 = vld [vmem:[%s165 + $0x3c] sm:$0xf]
      %v2238 = vld [vmem:[%s165 + $0x40] sm:$0xf]
      %v2239 = vld [vmem:[%s165 + $0x44] sm:$0xf]
      %v2240 = vld [vmem:[%s165 + $0x48] sm:$0xf]
      %v2241 = vld [vmem:[%s165 + $0x4c] sm:$0xf]
      %v2242 = vld [vmem:[%s165 + $0x50] sm:$0xf]
      %v2243 = vld [vmem:[%s165 + $0x54] sm:$0xf]
      %v2244 = vld [vmem:[%s165 + $0x58] sm:$0xf]
      %v2245 = vld [vmem:[%s165 + $0x5c] sm:$0xf]
      %v2246 = vld [vmem:[%s165 + $0x60] sm:$0xf]
      %v2247 = vld [vmem:[%s165 + $0x64] sm:$0xf]
      %v2248 = vld [vmem:[%s165 + $0x68] sm:$0xf]
      %v2249 = vld [vmem:[%s165 + $0x6c] sm:$0xf]
      %v2250 = vld [vmem:[%s165 + $0x70] sm:$0xf]
      %v2251 = vld [vmem:[%s165 + $0x74] sm:$0xf]
      %v2252 = vld [vmem:[%s165 + $0x78] sm:$0xf]
      %v2253 = vld [vmem:[%s165 + $0x7c] sm:$0xf]
      %v2254 = vld [vmem:[%s165 + $0x80] sm:$0xf]
      %v2255 = vld [vmem:[%s165 + $0x84] sm:$0xf]
      %v2256 = vld [vmem:[%s165 + $0x88] sm:$0xf]
      %v2257 = vld [vmem:[%s165 + $0x8c] sm:$0xf]
      %v2258 = vld [vmem:[%s165 + $0x90] sm:$0xf]
      %v2259 = vld [vmem:[%s165 + $0x94] sm:$0xf]
      %v2260 = vld [vmem:[%s165 + $0x98] sm:$0xf]
      %v2261 = vld [vmem:[%s165 + $0x9c] sm:$0xf]
      %v2262 = vld [vmem:[%s165 + $0xa0] sm:$0x7]
      %vm2263 = vsmask.f32 1280
      %vm2264 = vsmask.f32 5392
      %vm2265 = vmor %vm2263, %vm2264
      %v2267 = vshrl.u32 %v2226, 16
      %v2269 = vrot.slane %v2267, 6
      %v2270 = vshll.u32 %v2226, 16
      %v2272 = vrot.slane %v2270, 7
      %v2273 = vor.u32 %v2269, %v2272
      %v2274 = vrot.slane %v2273, 4
      %v2276 = vshrl.u32 %v2227, 16
      %v2278 = vrot.slane %v2276, 6
      %v2279 = vshll.u32 %v2227, 16
      %v2281 = vrot.slane %v2279, 7
      %v2282 = vor.u32 %v2278, %v2281
      %v2283 = vsel %vm2265, %v2274, %v2282
      %v2284 = vrot.slane %v2282, 4
      %v2286 = vshrl.u32 %v2228, 16
      %v2288 = vrot.slane %v2286, 6
      %v2289 = vshll.u32 %v2228, 16
      %v2291 = vrot.slane %v2289, 7
      %v2292 = vor.u32 %v2288, %v2291
      %v2293 = vsel %vm2265, %v2284, %v2292
      %v2294 = vrot.slane %v2292, 4
      %v2296 = vshrl.u32 %v2229, 16
      %v2298 = vrot.slane %v2296, 6
      %v2299 = vshll.u32 %v2229, 16
      %v2301 = vrot.slane %v2299, 7
      %v2302 = vor.u32 %v2298, %v2301
      %v2303 = vsel %vm2265, %v2294, %v2302
      %v2304 = vrot.slane %v2302, 4
      %v2306 = vshrl.u32 %v2230, 16
      %v2308 = vrot.slane %v2306, 6
      %v2309 = vshll.u32 %v2230, 16
      %v2311 = vrot.slane %v2309, 7
      %v2312 = vor.u32 %v2308, %v2311
      %v2313 = vsel %vm2265, %v2304, %v2312
      %v2314 = vrot.slane %v2312, 4
      %v2316 = vshrl.u32 %v2231, 16
      %v2318 = vrot.slane %v2316, 6
      %v2319 = vshll.u32 %v2231, 16
      %v2321 = vrot.slane %v2319, 7
      %v2322 = vor.u32 %v2318, %v2321
      %v2323 = vsel %vm2265, %v2314, %v2322
      %v2324 = vrot.slane %v2322, 4
      %v2326 = vshrl.u32 %v2232, 16
      %v2328 = vrot.slane %v2326, 6
      %v2329 = vshll.u32 %v2232, 16
      %v2331 = vrot.slane %v2329, 7
      %v2332 = vor.u32 %v2328, %v2331
      %v2333 = vsel %vm2265, %v2324, %v2332
      %v2334 = vrot.slane %v2332, 4
      %v2336 = vshrl.u32 %v2233, 16
      %v2338 = vrot.slane %v2336, 6
      %v2339 = vshll.u32 %v2233, 16
      %v2341 = vrot.slane %v2339, 7
      %v2342 = vor.u32 %v2338, %v2341
      %v2343 = vsel %vm2265, %v2334, %v2342
      %v2344 = vrot.slane %v2342, 4
      %v2346 = vshrl.u32 %v2234, 16
      %v2348 = vrot.slane %v2346, 6
      %v2349 = vshll.u32 %v2234, 16
      %v2351 = vrot.slane %v2349, 7
      %v2352 = vor.u32 %v2348, %v2351
      %v2353 = vsel %vm2265, %v2344, %v2352
      %v2354 = vrot.slane %v2352, 4
      %v2356 = vshrl.u32 %v2235, 16
      %v2358 = vrot.slane %v2356, 6
      %v2359 = vshll.u32 %v2235, 16
      %v2361 = vrot.slane %v2359, 7
      %v2362 = vor.u32 %v2358, %v2361
      %v2363 = vsel %vm2265, %v2354, %v2362
      %v2364 = vrot.slane %v2362, 4
      %v2366 = vshrl.u32 %v2236, 16
      %v2368 = vrot.slane %v2366, 6
      %v2369 = vshll.u32 %v2236, 16
      %v2371 = vrot.slane %v2369, 7
      %v2372 = vor.u32 %v2368, %v2371
      %v2373 = vsel %vm2265, %v2364, %v2372
      %v2374 = vrot.slane %v2372, 4
      %v2376 = vshrl.u32 %v2237, 16
      %v2378 = vrot.slane %v2376, 6
      %v2379 = vshll.u32 %v2237, 16
      %v2381 = vrot.slane %v2379, 7
      %v2382 = vor.u32 %v2378, %v2381
      %v2383 = vsel %vm2265, %v2374, %v2382
      %v2384 = vrot.slane %v2382, 4
      %v2386 = vshrl.u32 %v2238, 16
      %v2388 = vrot.slane %v2386, 6
      %v2389 = vshll.u32 %v2238, 16
      %v2391 = vrot.slane %v2389, 7
      %v2392 = vor.u32 %v2388, %v2391
      %v2393 = vsel %vm2265, %v2384, %v2392
      %v2394 = vrot.slane %v2392, 4
      %v2396 = vshrl.u32 %v2239, 16
      %v2398 = vrot.slane %v2396, 6
      %v2399 = vshll.u32 %v2239, 16
      %v2401 = vrot.slane %v2399, 7
      %v2402 = vor.u32 %v2398, %v2401
      %v2403 = vsel %vm2265, %v2394, %v2402
      %v2404 = vrot.slane %v2402, 4
      %v2406 = vshrl.u32 %v2240, 16
      %v2408 = vrot.slane %v2406, 6
      %v2409 = vshll.u32 %v2240, 16
      %v2411 = vrot.slane %v2409, 7
      %v2412 = vor.u32 %v2408, %v2411
      %v2413 = vsel %vm2265, %v2404, %v2412
      %v2414 = vrot.slane %v2412, 4
      %v2416 = vshrl.u32 %v2241, 16
      %v2418 = vrot.slane %v2416, 6
      %v2419 = vshll.u32 %v2241, 16
      %v2421 = vrot.slane %v2419, 7
      %v2422 = vor.u32 %v2418, %v2421
      %v2423 = vsel %vm2265, %v2414, %v2422
      %v2424 = vrot.slane %v2422, 4
      %v2426 = vshrl.u32 %v2242, 16
      %v2428 = vrot.slane %v2426, 6
      %v2429 = vshll.u32 %v2242, 16
      %v2431 = vrot.slane %v2429, 7
      %v2432 = vor.u32 %v2428, %v2431
      %v2433 = vsel %vm2265, %v2424, %v2432
      %v2434 = vrot.slane %v2432, 4
      %v2436 = vshrl.u32 %v2243, 16
      %v2438 = vrot.slane %v2436, 6
      %v2439 = vshll.u32 %v2243, 16
      %v2441 = vrot.slane %v2439, 7
      %v2442 = vor.u32 %v2438, %v2441
      %v2443 = vsel %vm2265, %v2434, %v2442
      %v2444 = vrot.slane %v2442, 4
      %v2446 = vshrl.u32 %v2244, 16
      %v2448 = vrot.slane %v2446, 6
      %v2449 = vshll.u32 %v2244, 16
      %v2451 = vrot.slane %v2449, 7
      %v2452 = vor.u32 %v2448, %v2451
      %v2453 = vsel %vm2265, %v2444, %v2452
      %v2454 = vrot.slane %v2452, 4
      %v2456 = vshrl.u32 %v2245, 16
      %v2458 = vrot.slane %v2456, 6
      %v2459 = vshll.u32 %v2245, 16
      %v2461 = vrot.slane %v2459, 7
      %v2462 = vor.u32 %v2458, %v2461
      %v2463 = vsel %vm2265, %v2454, %v2462
      %v2464 = vrot.slane %v2462, 4
      %v2466 = vshrl.u32 %v2246, 16
      %v2468 = vrot.slane %v2466, 6
      %v2469 = vshll.u32 %v2246, 16
      %v2471 = vrot.slane %v2469, 7
      %v2472 = vor.u32 %v2468, %v2471
      %v2473 = vsel %vm2265, %v2464, %v2472
      %v2474 = vrot.slane %v2472, 4
      %v2476 = vshrl.u32 %v2247, 16
      %v2478 = vrot.slane %v2476, 6
      %v2479 = vshll.u32 %v2247, 16
      %v2481 = vrot.slane %v2479, 7
      %v2482 = vor.u32 %v2478, %v2481
      %v2483 = vsel %vm2265, %v2474, %v2482
      %v2484 = vrot.slane %v2482, 4
      %v2486 = vshrl.u32 %v2248, 16
      %v2488 = vrot.slane %v2486, 6
      %v2489 = vshll.u32 %v2248, 16
      %v2491 = vrot.slane %v2489, 7
      %v2492 = vor.u32 %v2488, %v2491
      %v2493 = vsel %vm2265, %v2484, %v2492
      %v2494 = vrot.slane %v2492, 4
      %v2496 = vshrl.u32 %v2249, 16
      %v2498 = vrot.slane %v2496, 6
      %v2499 = vshll.u32 %v2249, 16
      %v2501 = vrot.slane %v2499, 7
      %v2502 = vor.u32 %v2498, %v2501
      %v2503 = vsel %vm2265, %v2494, %v2502
      %v2504 = vrot.slane %v2502, 4
      %v2506 = vshrl.u32 %v2250, 16
      %v2508 = vrot.slane %v2506, 6
      %v2509 = vshll.u32 %v2250, 16
      %v2511 = vrot.slane %v2509, 7
      %v2512 = vor.u32 %v2508, %v2511
      %v2513 = vsel %vm2265, %v2504, %v2512
      %v2514 = vrot.slane %v2512, 4
      %v2516 = vshrl.u32 %v2251, 16
      %v2518 = vrot.slane %v2516, 6
      %v2519 = vshll.u32 %v2251, 16
      %v2521 = vrot.slane %v2519, 7
      %v2522 = vor.u32 %v2518, %v2521
      %v2523 = vsel %vm2265, %v2514, %v2522
      %v2524 = vrot.slane %v2522, 4
      %v2526 = vshrl.u32 %v2252, 16
      %v2528 = vrot.slane %v2526, 6
      %v2529 = vshll.u32 %v2252, 16
      %v2531 = vrot.slane %v2529, 7
      %v2532 = vor.u32 %v2528, %v2531
      %v2533 = vsel %vm2265, %v2524, %v2532
      %v2534 = vrot.slane %v2532, 4
      %v2536 = vshrl.u32 %v2253, 16
      %v2538 = vrot.slane %v2536, 6
      %v2539 = vshll.u32 %v2253, 16
      %v2541 = vrot.slane %v2539, 7
      %v2542 = vor.u32 %v2538, %v2541
      %v2543 = vsel %vm2265, %v2534, %v2542
      %v2544 = vrot.slane %v2542, 4
      %v2546 = vshrl.u32 %v2254, 16
      %v2548 = vrot.slane %v2546, 6
      %v2549 = vshll.u32 %v2254, 16
      %v2551 = vrot.slane %v2549, 7
      %v2552 = vor.u32 %v2548, %v2551
      %v2553 = vsel %vm2265, %v2544, %v2552
      %v2554 = vrot.slane %v2552, 4
      %v2556 = vshrl.u32 %v2255, 16
      %v2558 = vrot.slane %v2556, 6
      %v2559 = vshll.u32 %v2255, 16
      %v2561 = vrot.slane %v2559, 7
      %v2562 = vor.u32 %v2558, %v2561
      %v2563 = vsel %vm2265, %v2554, %v2562
      %v2564 = vrot.slane %v2562, 4
      %v2566 = vshrl.u32 %v2256, 16
      %v2568 = vrot.slane %v2566, 6
      %v2569 = vshll.u32 %v2256, 16
      %v2571 = vrot.slane %v2569, 7
      %v2572 = vor.u32 %v2568, %v2571
      %v2573 = vsel %vm2265, %v2564, %v2572
      %v2574 = vrot.slane %v2572, 4
      %v2576 = vshrl.u32 %v2257, 16
      %v2578 = vrot.slane %v2576, 6
      %v2579 = vshll.u32 %v2257, 16
      %v2581 = vrot.slane %v2579, 7
      %v2582 = vor.u32 %v2578, %v2581
      %v2583 = vsel %vm2265, %v2574, %v2582
      %v2584 = vrot.slane %v2582, 4
      %v2586 = vshrl.u32 %v2258, 16
      %v2588 = vrot.slane %v2586, 6
      %v2589 = vshll.u32 %v2258, 16
      %v2591 = vrot.slane %v2589, 7
      %v2592 = vor.u32 %v2588, %v2591
      %v2593 = vsel %vm2265, %v2584, %v2592
      %v2594 = vrot.slane %v2592, 4
      %v2596 = vshrl.u32 %v2259, 16
      %v2598 = vrot.slane %v2596, 6
      %v2599 = vshll.u32 %v2259, 16
      %v2601 = vrot.slane %v2599, 7
      %v2602 = vor.u32 %v2598, %v2601
      %v2603 = vsel %vm2265, %v2594, %v2602
      %v2604 = vrot.slane %v2602, 4
      %v2606 = vshrl.u32 %v2260, 16
      %v2608 = vrot.slane %v2606, 6
      %v2609 = vshll.u32 %v2260, 16
      %v2611 = vrot.slane %v2609, 7
      %v2612 = vor.u32 %v2608, %v2611
      %v2613 = vsel %vm2265, %v2604, %v2612
      %v2614 = vrot.slane %v2612, 4
      %v2616 = vshrl.u32 %v2261, 16
      %v2618 = vrot.slane %v2616, 6
      %v2619 = vshll.u32 %v2261, 16
      %v2621 = vrot.slane %v2619, 7
      %v2622 = vor.u32 %v2618, %v2621
      %v2623 = vsel %vm2265, %v2614, %v2622
      %v2624 = vrot.slane %v2622, 4
      %v2626 = vshrl.u32 %v2262, 16
      %v2628 = vrot.slane %v2626, 6
      %v2629 = vshll.u32 %v2262, 16
      %v2631 = vrot.slane %v2629, 7
      %v2632 = vor.u32 %v2628, %v2631
      %v2633 = vsel %vm2265, %v2624, %v2632
      %2670 = vst [vmem:[#allocation2 + $0x1c] sm:$0xf] %v2283
      %2671 = vst [vmem:[#allocation2 + $0x40] sm:$0xf] %v2293
      %2672 = vst [vmem:[#allocation2 + $0x64] sm:$0xf] %v2303
      %2673 = vst [vmem:[#allocation2 + $0x88] sm:$0xf] %v2313
      %2674 = vst [vmem:[#allocation2 + $0xac] sm:$0xf] %v2323
      %2675 = vst [vmem:[#allocation2 + $0xd0] sm:$0xf] %v2333
      %2676 = vst [vmem:[#allocation2 + $0xf4] sm:$0xf] %v2343
      %2677 = vst [vmem:[#allocation2 + $0x118] sm:$0xf] %v2353
      %2678 = vst [vmem:[#allocation2 + $0x13c] sm:$0xf] %v2363
      %2679 = vst [vmem:[#allocation2 + $0x160] sm:$0xf] %v2373
      %2680 = vst [vmem:[#allocation2 + $0x184] sm:$0xf] %v2383
      %2681 = vst [vmem:[#allocation2 + $0x1a8] sm:$0xf] %v2393
      %2682 = vst [vmem:[#allocation2 + $0x1cc] sm:$0xf] %v2403
      %2683 = vst [vmem:[#allocation2 + $0x1f0] sm:$0xf] %v2413
      %2684 = vst [vmem:[#allocation2 + $0x214] sm:$0xf] %v2423
      %2685 = vst [vmem:[#allocation2 + $0x238] sm:$0xf] %v2433
      %2686 = vst [vmem:[#allocation2 + $0x25c] sm:$0xf] %v2443
      %2687 = vst [vmem:[#allocation2 + $0x280] sm:$0xf] %v2453
      %2688 = vst [vmem:[#allocation2 + $0x2a4] sm:$0xf] %v2463
      %2689 = vst [vmem:[#allocation2 + $0x2c8] sm:$0xf] %v2473
      %2690 = vst [vmem:[#allocation2 + $0x2ec] sm:$0xf] %v2483
      %2691 = vst [vmem:[#allocation2 + $0x310] sm:$0xf] %v2493
      %2692 = vst [vmem:[#allocation2 + $0x334] sm:$0xf] %v2503
      %2693 = vst [vmem:[#allocation2 + $0x358] sm:$0xf] %v2513
      %2694 = vst [vmem:[#allocation2 + $0x37c] sm:$0xf] %v2523
      %2695 = vst [vmem:[#allocation2 + $0x3a0] sm:$0xf] %v2533
      %2696 = vst [vmem:[#allocation2 + $0x3c4] sm:$0xf] %v2543
      %2697 = vst [vmem:[#allocation2 + $0x3e8] sm:$0xf] %v2553
      %2698 = vst [vmem:[#allocation2 + $0x40c] sm:$0xf] %v2563
      %2699 = vst [vmem:[#allocation2 + $0x430] sm:$0xf] %v2573
      %2700 = vst [vmem:[#allocation2 + $0x454] sm:$0xf] %v2583
      %2701 = vst [vmem:[#allocation2 + $0x478] sm:$0xf] %v2593
      %2702 = vst [vmem:[#allocation2 + $0x49c] sm:$0xf] %v2603
      %2703 = vst [vmem:[#allocation2 + $0x4c0] sm:$0xf] %v2613
      %2704 = vst [vmem:[#allocation2 + $0x4e4] sm:$0xf] %v2623
      %2705 = vst [vmem:[#allocation2 + $0x508] sm:$0xf] %v2633
      %v2706 = vld [vmem:[%s165 + $0x10] sm:$0x8]
      %v2707 = vld [vmem:[%s165 + $0x14] sm:$0xf]
      %v2708 = vld [vmem:[%s165 + $0x18] sm:$0xf]
      %v2709 = vld [vmem:[%s165 + $0x1c] sm:$0xf]
      %v2710 = vld [vmem:[%s165 + $0x20] sm:$0xf]
      %v2711 = vld [vmem:[%s165 + $0x24] sm:$0xf]
      %v2712 = vld [vmem:[%s165 + $0x28] sm:$0xf]
      %v2713 = vld [vmem:[%s165 + $0x2c] sm:$0xf]
      %v2714 = vld [vmem:[%s165 + $0x30] sm:$0xf]
      %v2715 = vld [vmem:[%s165 + $0x34] sm:$0xf]
      %v2716 = vld [vmem:[%s165 + $0x38] sm:$0xf]
      %v2717 = vld [vmem:[%s165 + $0x3c] sm:$0xf]
      %v2718 = vld [vmem:[%s165 + $0x40] sm:$0xf]
      %v2719 = vld [vmem:[%s165 + $0x44] sm:$0xf]
      %v2720 = vld [vmem:[%s165 + $0x48] sm:$0xf]
      %v2721 = vld [vmem:[%s165 + $0x4c] sm:$0xf]
      %v2722 = vld [vmem:[%s165 + $0x50] sm:$0xf]
      %v2723 = vld [vmem:[%s165 + $0x54] sm:$0xf]
      %v2724 = vld [vmem:[%s165 + $0x58] sm:$0xf]
      %v2725 = vld [vmem:[%s165 + $0x5c] sm:$0xf]
      %v2726 = vld [vmem:[%s165 + $0x60] sm:$0xf]
      %v2727 = vld [vmem:[%s165 + $0x64] sm:$0xf]
      %v2728 = vld [vmem:[%s165 + $0x68] sm:$0xf]
      %v2729 = vld [vmem:[%s165 + $0x6c] sm:$0xf]
      %v2730 = vld [vmem:[%s165 + $0x70] sm:$0xf]
      %v2731 = vld [vmem:[%s165 + $0x74] sm:$0xf]
      %v2732 = vld [vmem:[%s165 + $0x78] sm:$0xf]
      %v2733 = vld [vmem:[%s165 + $0x7c] sm:$0xf]
      %v2734 = vld [vmem:[%s165 + $0x80] sm:$0xf]
      %v2735 = vld [vmem:[%s165 + $0x84] sm:$0xf]
      %v2736 = vld [vmem:[%s165 + $0x88] sm:$0xf]
      %v2737 = vld [vmem:[%s165 + $0x8c] sm:$0xf]
      %v2738 = vld [vmem:[%s165 + $0x90] sm:$0xf]
      %v2739 = vld [vmem:[%s165 + $0x94] sm:$0xf]
      %v2740 = vld [vmem:[%s165 + $0x98] sm:$0xf]
      %v2741 = vld [vmem:[%s165 + $0x9c] sm:$0xf]
      %v2742 = vld [vmem:[%s165 + $0xa0] sm:$0x7]
      %vm2780 = vcmask 1040384
      %vm2781 = vcmask 1044484
      %vm2782 = vmor %vm2780, %vm2781
      %v2783 = vrot.slane %v2706, 7
      %v2784 = vrot.slane %v2783, 4
      %v2785 = vrot.slane %v2707, 7
      %v2786 = vsel %vm2782, %v2784, %v2785
      %v2787 = vrot.slane %v2785, 4
      %v2788 = vrot.slane %v2708, 7
      %v2789 = vsel %vm2782, %v2787, %v2788
      %v2790 = vrot.slane %v2788, 4
      %v2791 = vrot.slane %v2709, 7
      %v2792 = vsel %vm2782, %v2790, %v2791
      %v2793 = vrot.slane %v2791, 4
      %v2794 = vrot.slane %v2710, 7
      %v2795 = vsel %vm2782, %v2793, %v2794
      %v2796 = vrot.slane %v2794, 4
      %v2797 = vrot.slane %v2711, 7
      %v2798 = vsel %vm2782, %v2796, %v2797
      %v2799 = vrot.slane %v2797, 4
      %v2800 = vrot.slane %v2712, 7
      %v2801 = vsel %vm2782, %v2799, %v2800
      %v2802 = vrot.slane %v2800, 4
      %v2803 = vrot.slane %v2713, 7
      %v2804 = vsel %vm2782, %v2802, %v2803
      %v2805 = vrot.slane %v2803, 4
      %v2806 = vrot.slane %v2714, 7
      %v2807 = vsel %vm2782, %v2805, %v2806
      %v2808 = vrot.slane %v2806, 4
      %v2809 = vrot.slane %v2715, 7
      %v2810 = vsel %vm2782, %v2808, %v2809
      %v2811 = vrot.slane %v2809, 4
      %v2812 = vrot.slane %v2716, 7
      %v2813 = vsel %vm2782, %v2811, %v2812
      %v2814 = vrot.slane %v2812, 4
      %v2815 = vrot.slane %v2717, 7
      %v2816 = vsel %vm2782, %v2814, %v2815
      %v2817 = vrot.slane %v2815, 4
      %v2818 = vrot.slane %v2718, 7
      %v2819 = vsel %vm2782, %v2817, %v2818
      %v2820 = vrot.slane %v2818, 4
      %v2821 = vrot.slane %v2719, 7
      %v2822 = vsel %vm2782, %v2820, %v2821
      %v2823 = vrot.slane %v2821, 4
      %v2824 = vrot.slane %v2720, 7
      %v2825 = vsel %vm2782, %v2823, %v2824
      %v2826 = vrot.slane %v2824, 4
      %v2827 = vrot.slane %v2721, 7
      %v2828 = vsel %vm2782, %v2826, %v2827
      %v2829 = vrot.slane %v2827, 4
      %v2830 = vrot.slane %v2722, 7
      %v2831 = vsel %vm2782, %v2829, %v2830
      %v2832 = vrot.slane %v2830, 4
      %v2833 = vrot.slane %v2723, 7
      %v2834 = vsel %vm2782, %v2832, %v2833
      %v2835 = vrot.slane %v2833, 4
      %v2836 = vrot.slane %v2724, 7
      %v2837 = vsel %vm2782, %v2835, %v2836
      %v2838 = vrot.slane %v2836, 4
      %v2839 = vrot.slane %v2725, 7
      %v2840 = vsel %vm2782, %v2838, %v2839
      %v2841 = vrot.slane %v2839, 4
      %v2842 = vrot.slane %v2726, 7
      %v2843 = vsel %vm2782, %v2841, %v2842
      %v2844 = vrot.slane %v2842, 4
      %v2845 = vrot.slane %v2727, 7
      %v2846 = vsel %vm2782, %v2844, %v2845
      %v2847 = vrot.slane %v2845, 4
      %v2848 = vrot.slane %v2728, 7
      %v2849 = vsel %vm2782, %v2847, %v2848
      %v2850 = vrot.slane %v2848, 4
      %v2851 = vrot.slane %v2729, 7
      %v2852 = vsel %vm2782, %v2850, %v2851
      %v2853 = vrot.slane %v2851, 4
      %v2854 = vrot.slane %v2730, 7
      %v2855 = vsel %vm2782, %v2853, %v2854
      %v2856 = vrot.slane %v2854, 4
      %v2857 = vrot.slane %v2731, 7
      %v2858 = vsel %vm2782, %v2856, %v2857
      %v2859 = vrot.slane %v2857, 4
      %v2860 = vrot.slane %v2732, 7
      %v2861 = vsel %vm2782, %v2859, %v2860
      %v2862 = vrot.slane %v2860, 4
      %v2863 = vrot.slane %v2733, 7
      %v2864 = vsel %vm2782, %v2862, %v2863
      %v2865 = vrot.slane %v2863, 4
      %v2866 = vrot.slane %v2734, 7
      %v2867 = vsel %vm2782, %v2865, %v2866
      %v2868 = vrot.slane %v2866, 4
      %v2869 = vrot.slane %v2735, 7
      %v2870 = vsel %vm2782, %v2868, %v2869
      %v2871 = vrot.slane %v2869, 4
      %v2872 = vrot.slane %v2736, 7
      %v2873 = vsel %vm2782, %v2871, %v2872
      %v2874 = vrot.slane %v2872, 4
      %v2875 = vrot.slane %v2737, 7
      %v2876 = vsel %vm2782, %v2874, %v2875
      %v2877 = vrot.slane %v2875, 4
      %v2878 = vrot.slane %v2738, 7
      %v2879 = vsel %vm2782, %v2877, %v2878
      %v2880 = vrot.slane %v2878, 4
      %v2881 = vrot.slane %v2739, 7
      %v2882 = vsel %vm2782, %v2880, %v2881
      %v2883 = vrot.slane %v2881, 4
      %v2884 = vrot.slane %v2740, 7
      %v2885 = vsel %vm2782, %v2883, %v2884
      %v2886 = vrot.slane %v2884, 4
      %v2887 = vrot.slane %v2741, 7
      %v2888 = vsel %vm2782, %v2886, %v2887
      %v2889 = vrot.slane %v2887, 4
      %v2890 = vrot.slane %v2742, 7
      %v2891 = vsel %vm2782, %v2889, %v2890
      %2928 = vst [vmem:[#allocation2 + $0x20] sm:$0xf] %v2786
      %2929 = vst [vmem:[#allocation2 + $0x44] sm:$0xf] %v2789
      %2930 = vst [vmem:[#allocation2 + $0x68] sm:$0xf] %v2792
      %2931 = vst [vmem:[#allocation2 + $0x8c] sm:$0xf] %v2795
      %2932 = vst [vmem:[#allocation2 + $0xb0] sm:$0xf] %v2798
      %2933 = vst [vmem:[#allocation2 + $0xd4] sm:$0xf] %v2801
      %2934 = vst [vmem:[#allocation2 + $0xf8] sm:$0xf] %v2804
      %2935 = vst [vmem:[#allocation2 + $0x11c] sm:$0xf] %v2807
      %2936 = vst [vmem:[#allocation2 + $0x140] sm:$0xf] %v2810
      %2937 = vst [vmem:[#allocation2 + $0x164] sm:$0xf] %v2813
      %2938 = vst [vmem:[#allocation2 + $0x188] sm:$0xf] %v2816
      %2939 = vst [vmem:[#allocation2 + $0x1ac] sm:$0xf] %v2819
      %2940 = vst [vmem:[#allocation2 + $0x1d0] sm:$0xf] %v2822
      %2941 = vst [vmem:[#allocation2 + $0x1f4] sm:$0xf] %v2825
      %2942 = vst [vmem:[#allocation2 + $0x218] sm:$0xf] %v2828
      %2943 = vst [vmem:[#allocation2 + $0x23c] sm:$0xf] %v2831
      %2944 = vst [vmem:[#allocation2 + $0x260] sm:$0xf] %v2834
      %2945 = vst [vmem:[#allocation2 + $0x284] sm:$0xf] %v2837
      %2946 = vst [vmem:[#allocation2 + $0x2a8] sm:$0xf] %v2840
      %2947 = vst [vmem:[#allocation2 + $0x2cc] sm:$0xf] %v2843
      %2948 = vst [vmem:[#allocation2 + $0x2f0] sm:$0xf] %v2846
      %2949 = vst [vmem:[#allocation2 + $0x314] sm:$0xf] %v2849
      %2950 = vst [vmem:[#allocation2 + $0x338] sm:$0xf] %v2852
      %2951 = vst [vmem:[#allocation2 + $0x35c] sm:$0xf] %v2855
      %2952 = vst [vmem:[#allocation2 + $0x380] sm:$0xf] %v2858
      %2953 = vst [vmem:[#allocation2 + $0x3a4] sm:$0xf] %v2861
      %2954 = vst [vmem:[#allocation2 + $0x3c8] sm:$0xf] %v2864
      %2955 = vst [vmem:[#allocation2 + $0x3ec] sm:$0xf] %v2867
      %2956 = vst [vmem:[#allocation2 + $0x410] sm:$0xf] %v2870
      %2957 = vst [vmem:[#allocation2 + $0x434] sm:$0xf] %v2873
      %2958 = vst [vmem:[#allocation2 + $0x458] sm:$0xf] %v2876
      %2959 = vst [vmem:[#allocation2 + $0x47c] sm:$0xf] %v2879
      %2960 = vst [vmem:[#allocation2 + $0x4a0] sm:$0xf] %v2882
      %2961 = vst [vmem:[#allocation2 + $0x4c4] sm:$0xf] %v2885
      %2962 = vst [vmem:[#allocation2 + $0x4e8] sm:$0xf] %v2888
      %2963 = vst [vmem:[#allocation2 + $0x50c] sm:$0xf] %v2891
      %v2964 = vld [vmem:[#allocation2] sm:$0xff]
      %v2965 = vld [vmem:[#allocation2 + $0x8] sm:$0xff]
      %v2966 = vld [vmem:[#allocation2 + $0x10] sm:$0xff]
      %v2967 = vld [vmem:[#allocation2 + $0x18] sm:$0xff]
      %v2968 = vld [vmem:[#allocation2 + $0x20] sm:$0xf]
      %v2969 = vld [vmem:[#allocation2 + $0x24] sm:$0xff]
      %v2970 = vld [vmem:[#allocation2 + $0x2c] sm:$0xff]
      %v2971 = vld [vmem:[#allocation2 + $0x34] sm:$0xff]
      %v2972 = vld [vmem:[#allocation2 + $0x3c] sm:$0xff]
      %v2973 = vld [vmem:[#allocation2 + $0x44] sm:$0xf]
      %v2974 = vld [vmem:[#allocation2 + $0x48] sm:$0xff]
      %v2975 = vld [vmem:[#allocation2 + $0x50] sm:$0xff]
      %v2976 = vld [vmem:[#allocation2 + $0x58] sm:$0xff]
      %v2977 = vld [vmem:[#allocation2 + $0x60] sm:$0xff]
      %v2978 = vld [vmem:[#allocation2 + $0x68] sm:$0xf]
      %v2979 = vld [vmem:[#allocation2 + $0x6c] sm:$0xff]
      %v2980 = vld [vmem:[#allocation2 + $0x74] sm:$0xff]
      %v2981 = vld [vmem:[#allocation2 + $0x7c] sm:$0xff]
      %v2982 = vld [vmem:[#allocation2 + $0x84] sm:$0xff]
      %v2983 = vld [vmem:[#allocation2 + $0x8c] sm:$0xf]
      %v2984 = vld [vmem:[#allocation2 + $0x90] sm:$0xff]
      %v2985 = vld [vmem:[#allocation2 + $0x98] sm:$0xff]
      %v2986 = vld [vmem:[#allocation2 + $0xa0] sm:$0xff]
      %v2987 = vld [vmem:[#allocation2 + $0xa8] sm:$0xff]
      %v2988 = vld [vmem:[#allocation2 + $0xb0] sm:$0xf]
      %v2989 = vld [vmem:[#allocation2 + $0xb4] sm:$0xff]
      %v2990 = vld [vmem:[#allocation2 + $0xbc] sm:$0xff]
      %v2991 = vld [vmem:[#allocation2 + $0xc4] sm:$0xff]
      %v2992 = vld [vmem:[#allocation2 + $0xcc] sm:$0xff]
      %v2993 = vld [vmem:[#allocation2 + $0xd4] sm:$0xf]
      %v2994 = vld [vmem:[#allocation2 + $0xd8] sm:$0xff]
      %v2995 = vld [vmem:[#allocation2 + $0xe0] sm:$0xff]
      %v2996 = vld [vmem:[#allocation2 + $0xe8] sm:$0xff]
      %v2997 = vld [vmem:[#allocation2 + $0xf0] sm:$0xff]
      %v2998 = vld [vmem:[#allocation2 + $0xf8] sm:$0xf]
      %v2999 = vld [vmem:[#allocation2 + $0xfc] sm:$0xff]
      %v3000 = vld [vmem:[#allocation2 + $0x104] sm:$0xff]
      %v3001 = vld [vmem:[#allocation2 + $0x10c] sm:$0xff]
      %v3002 = vld [vmem:[#allocation2 + $0x114] sm:$0xff]
      %v3003 = vld [vmem:[#allocation2 + $0x11c] sm:$0xf]
      %v3004 = vld [vmem:[#allocation2 + $0x120] sm:$0xff]
      %v3005 = vld [vmem:[#allocation2 + $0x128] sm:$0xff]
      %v3006 = vld [vmem:[#allocation2 + $0x130] sm:$0xff]
      %v3007 = vld [vmem:[#allocation2 + $0x138] sm:$0xff]
      %v3008 = vld [vmem:[#allocation2 + $0x140] sm:$0xf]
      %v3009 = vld [vmem:[#allocation2 + $0x144] sm:$0xff]
      %v3010 = vld [vmem:[#allocation2 + $0x14c] sm:$0xff]
      %v3011 = vld [vmem:[#allocation2 + $0x154] sm:$0xff]
      %v3012 = vld [vmem:[#allocation2 + $0x15c] sm:$0xff]
      %v3013 = vld [vmem:[#allocation2 + $0x164] sm:$0xf]
      %v3014 = vld [vmem:[#allocation2 + $0x168] sm:$0xff]
      %v3015 = vld [vmem:[#allocation2 + $0x170] sm:$0xff]
      %v3016 = vld [vmem:[#allocation2 + $0x178] sm:$0xff]
      %v3017 = vld [vmem:[#allocation2 + $0x180] sm:$0xff]
      %v3018 = vld [vmem:[#allocation2 + $0x188] sm:$0xf]
      %v3019 = vld [vmem:[#allocation2 + $0x18c] sm:$0xff]
      %v3020 = vld [vmem:[#allocation2 + $0x194] sm:$0xff]
      %v3021 = vld [vmem:[#allocation2 + $0x19c] sm:$0xff]
      %v3022 = vld [vmem:[#allocation2 + $0x1a4] sm:$0xff]
      %v3023 = vld [vmem:[#allocation2 + $0x1ac] sm:$0xf]
      %v3024 = vld [vmem:[#allocation2 + $0x1b0] sm:$0xff]
      %v3025 = vld [vmem:[#allocation2 + $0x1b8] sm:$0xff]
      %v3026 = vld [vmem:[#allocation2 + $0x1c0] sm:$0xff]
      %v3027 = vld [vmem:[#allocation2 + $0x1c8] sm:$0xff]
      %v3028 = vld [vmem:[#allocation2 + $0x1d0] sm:$0xf]
      %v3029 = vld [vmem:[#allocation2 + $0x1d4] sm:$0xff]
      %v3030 = vld [vmem:[#allocation2 + $0x1dc] sm:$0xff]
      %v3031 = vld [vmem:[#allocation2 + $0x1e4] sm:$0xff]
      %v3032 = vld [vmem:[#allocation2 + $0x1ec] sm:$0xff]
      %v3033 = vld [vmem:[#allocation2 + $0x1f4] sm:$0xf]
      %v3034 = vld [vmem:[#allocation2 + $0x1f8] sm:$0xff]
      %v3035 = vld [vmem:[#allocation2 + $0x200] sm:$0xff]
      %v3036 = vld [vmem:[#allocation2 + $0x208] sm:$0xff]
      %v3037 = vld [vmem:[#allocation2 + $0x210] sm:$0xff]
      %v3038 = vld [vmem:[#allocation2 + $0x218] sm:$0xf]
      %v3039 = vld [vmem:[#allocation2 + $0x21c] sm:$0xff]
      %v3040 = vld [vmem:[#allocation2 + $0x224] sm:$0xff]
      %v3041 = vld [vmem:[#allocation2 + $0x22c] sm:$0xff]
      %v3042 = vld [vmem:[#allocation2 + $0x234] sm:$0xff]
      %v3043 = vld [vmem:[#allocation2 + $0x23c] sm:$0xf]
      %v3044 = vld [vmem:[#allocation2 + $0x240] sm:$0xff]
      %v3045 = vld [vmem:[#allocation2 + $0x248] sm:$0xff]
      %v3046 = vld [vmem:[#allocation2 + $0x250] sm:$0xff]
      %v3047 = vld [vmem:[#allocation2 + $0x258] sm:$0xff]
      %v3048 = vld [vmem:[#allocation2 + $0x260] sm:$0xf]
      %v3049 = vld [vmem:[#allocation2 + $0x264] sm:$0xff]
      %v3050 = vld [vmem:[#allocation2 + $0x26c] sm:$0xff]
      %v3051 = vld [vmem:[#allocation2 + $0x274] sm:$0xff]
      %v3052 = vld [vmem:[#allocation2 + $0x27c] sm:$0xff]
      %v3053 = vld [vmem:[#allocation2 + $0x284] sm:$0xf]
      %v3054 = vld [vmem:[#allocation2 + $0x288] sm:$0xff]
      %v3055 = vld [vmem:[#allocation2 + $0x290] sm:$0xff]
      %v3056 = vld [vmem:[#allocation2 + $0x298] sm:$0xff]
      %v3057 = vld [vmem:[#allocation2 + $0x2a0] sm:$0xff]
      %v3058 = vld [vmem:[#allocation2 + $0x2a8] sm:$0xf]
      %v3059 = vld [vmem:[#allocation2 + $0x2ac] sm:$0xff]
      %v3060 = vld [vmem:[#allocation2 + $0x2b4] sm:$0xff]
      %v3061 = vld [vmem:[#allocation2 + $0x2bc] sm:$0xff]
      %v3062 = vld [vmem:[#allocation2 + $0x2c4] sm:$0xff]
      %v3063 = vld [vmem:[#allocation2 + $0x2cc] sm:$0xf]
      %v3064 = vld [vmem:[#allocation2 + $0x2d0] sm:$0xff]
      %v3065 = vld [vmem:[#allocation2 + $0x2d8] sm:$0xff]
      %v3066 = vld [vmem:[#allocation2 + $0x2e0] sm:$0xff]
      %v3067 = vld [vmem:[#allocation2 + $0x2e8] sm:$0xff]
      %v3068 = vld [vmem:[#allocation2 + $0x2f0] sm:$0xf]
      %v3069 = vld [vmem:[#allocation2 + $0x2f4] sm:$0xff]
      %v3070 = vld [vmem:[#allocation2 + $0x2fc] sm:$0xff]
      %v3071 = vld [vmem:[#allocation2 + $0x304] sm:$0xff]
      %v3072 = vld [vmem:[#allocation2 + $0x30c] sm:$0xff]
      %v3073 = vld [vmem:[#allocation2 + $0x314] sm:$0xf]
      %v3074 = vld [vmem:[#allocation2 + $0x318] sm:$0xff]
      %v3075 = vld [vmem:[#allocation2 + $0x320] sm:$0xff]
      %v3076 = vld [vmem:[#allocation2 + $0x328] sm:$0xff]
      %v3077 = vld [vmem:[#allocation2 + $0x330] sm:$0xff]
      %v3078 = vld [vmem:[#allocation2 + $0x338] sm:$0xf]
      %v3079 = vld [vmem:[#allocation2 + $0x33c] sm:$0xff]
      %v3080 = vld [vmem:[#allocation2 + $0x344] sm:$0xff]
      %v3081 = vld [vmem:[#allocation2 + $0x34c] sm:$0xff]
      %v3082 = vld [vmem:[#allocation2 + $0x354] sm:$0xff]
      %v3083 = vld [vmem:[#allocation2 + $0x35c] sm:$0xf]
      %v3084 = vld [vmem:[#allocation2 + $0x360] sm:$0xff]
      %v3085 = vld [vmem:[#allocation2 + $0x368] sm:$0xff]
      %v3086 = vld [vmem:[#allocation2 + $0x370] sm:$0xff]
      %v3087 = vld [vmem:[#allocation2 + $0x378] sm:$0xff]
      %v3088 = vld [vmem:[#allocation2 + $0x380] sm:$0xf]
      %v3089 = vld [vmem:[#allocation2 + $0x384] sm:$0xff]
      %v3090 = vld [vmem:[#allocation2 + $0x38c] sm:$0xff]
      %v3091 = vld [vmem:[#allocation2 + $0x394] sm:$0xff]
      %v3092 = vld [vmem:[#allocation2 + $0x39c] sm:$0xff]
      %v3093 = vld [vmem:[#allocation2 + $0x3a4] sm:$0xf]
      %v3094 = vld [vmem:[#allocation2 + $0x3a8] sm:$0xff]
      %v3095 = vld [vmem:[#allocation2 + $0x3b0] sm:$0xff]
      %v3096 = vld [vmem:[#allocation2 + $0x3b8] sm:$0xff]
      %v3097 = vld [vmem:[#allocation2 + $0x3c0] sm:$0xff]
      %v3098 = vld [vmem:[#allocation2 + $0x3c8] sm:$0xf]
      %v3099 = vld [vmem:[#allocation2 + $0x3cc] sm:$0xff]
      %v3100 = vld [vmem:[#allocation2 + $0x3d4] sm:$0xff]
      %v3101 = vld [vmem:[#allocation2 + $0x3dc] sm:$0xff]
      %v3102 = vld [vmem:[#allocation2 + $0x3e4] sm:$0xff]
      %v3103 = vld [vmem:[#allocation2 + $0x3ec] sm:$0xf]
      %v3104 = vld [vmem:[#allocation2 + $0x3f0] sm:$0xff]
      %v3105 = vld [vmem:[#allocation2 + $0x3f8] sm:$0xff]
      %v3106 = vld [vmem:[#allocation2 + $0x400] sm:$0xff]
      %v3107 = vld [vmem:[#allocation2 + $0x408] sm:$0xff]
      %v3108 = vld [vmem:[#allocation2 + $0x410] sm:$0xf]
      %v3109 = vld [vmem:[#allocation2 + $0x414] sm:$0xff]
      %v3110 = vld [vmem:[#allocation2 + $0x41c] sm:$0xff]
      %v3111 = vld [vmem:[#allocation2 + $0x424] sm:$0xff]
      %v3112 = vld [vmem:[#allocation2 + $0x42c] sm:$0xff]
      %v3113 = vld [vmem:[#allocation2 + $0x434] sm:$0xf]
      %v3114 = vld [vmem:[#allocation2 + $0x438] sm:$0xff]
      %v3115 = vld [vmem:[#allocation2 + $0x440] sm:$0xff]
      %v3116 = vld [vmem:[#allocation2 + $0x448] sm:$0xff]
      %v3117 = vld [vmem:[#allocation2 + $0x450] sm:$0xff]
      %v3118 = vld [vmem:[#allocation2 + $0x458] sm:$0xf]
      %v3119 = vld [vmem:[#allocation2 + $0x45c] sm:$0xff]
      %v3120 = vld [vmem:[#allocation2 + $0x464] sm:$0xff]
      %v3121 = vld [vmem:[#allocation2 + $0x46c] sm:$0xff]
      %v3122 = vld [vmem:[#allocation2 + $0x474] sm:$0xff]
      %v3123 = vld [vmem:[#allocation2 + $0x47c] sm:$0xf]
      %v3124 = vld [vmem:[#allocation2 + $0x480] sm:$0xff]
      %v3125 = vld [vmem:[#allocation2 + $0x488] sm:$0xff]
      %v3126 = vld [vmem:[#allocation2 + $0x490] sm:$0xff]
      %v3127 = vld [vmem:[#allocation2 + $0x498] sm:$0xff]
      %v3128 = vld [vmem:[#allocation2 + $0x4a0] sm:$0xf]
      %v3129 = vld [vmem:[#allocation2 + $0x4a4] sm:$0xff]
      %v3130 = vld [vmem:[#allocation2 + $0x4ac] sm:$0xff]
      %v3131 = vld [vmem:[#allocation2 + $0x4b4] sm:$0xff]
      %v3132 = vld [vmem:[#allocation2 + $0x4bc] sm:$0xff]
      %v3133 = vld [vmem:[#allocation2 + $0x4c4] sm:$0xf]
      %v3134 = vld [vmem:[#allocation2 + $0x4c8] sm:$0xff]
      %v3135 = vld [vmem:[#allocation2 + $0x4d0] sm:$0xff]
      %v3136 = vld [vmem:[#allocation2 + $0x4d8] sm:$0xff]
      %v3137 = vld [vmem:[#allocation2 + $0x4e0] sm:$0xff]
      %v3138 = vld [vmem:[#allocation2 + $0x4e8] sm:$0xf]
      %v3139 = vld [vmem:[#allocation2 + $0x4ec] sm:$0xff]
      %v3140 = vld [vmem:[#allocation2 + $0x4f4] sm:$0xff]
      %v3141 = vld [vmem:[#allocation2 + $0x4fc] sm:$0xff]
      %v3142 = vld [vmem:[#allocation2 + $0x504] sm:$0xff]
      %v3143 = vld [vmem:[#allocation2 + $0x50c] sm:$0xf]
      %v3144 = vld [vmem:[%s1] sm:$0xf]
      %v3145 = vld [vmem:[%s1 + $0x4] sm:$0xf]
      %v3146 = vld [vmem:[%s1 + $0x8] sm:$0xf]
      %v3147 = vld [vmem:[%s1 + $0xc] sm:$0xf]
      %v3148 = vld [vmem:[%s1 + $0x10] sm:$0xf]
      %v3149 = vld [vmem:[%s1 + $0x14] sm:$0xf]
      %v3150 = vld [vmem:[%s1 + $0x18] sm:$0xf]
      %v3151 = vld [vmem:[%s1 + $0x1c] sm:$0xf]
      %v3152 = vld [vmem:[%s1 + $0x20] sm:$0xf]
      %v3153 = vld [vmem:[%s1 + $0x24] sm:$0xf]
      %v3154 = vld [vmem:[%s1 + $0x28] sm:$0xf]
      %v3155 = vld [vmem:[%s1 + $0x2c] sm:$0xf]
      %v3156 = vld [vmem:[%s1 + $0x30] sm:$0xf]
      %v3157 = vld [vmem:[%s1 + $0x34] sm:$0xf]
      %v3158 = vld [vmem:[%s1 + $0x38] sm:$0xf]
      %v3159 = vld [vmem:[%s1 + $0x3c] sm:$0xf]
      %v3160 = vld [vmem:[%s1 + $0x40] sm:$0xf]
      %v3161 = vld [vmem:[%s1 + $0x44] sm:$0xf]
      %v3162 = vld [vmem:[%s1 + $0x48] sm:$0xf]
      %v3163 = vld [vmem:[%s1 + $0x4c] sm:$0xf]
      %v3164 = vld [vmem:[%s1 + $0x50] sm:$0xf]
      %v3165 = vld [vmem:[%s1 + $0x54] sm:$0xf]
      %v3166 = vld [vmem:[%s1 + $0x58] sm:$0xf]
      %v3167 = vld [vmem:[%s1 + $0x5c] sm:$0xf]
      %v3168 = vld [vmem:[%s1 + $0x60] sm:$0xf]
      %v3169 = vld [vmem:[%s1 + $0x64] sm:$0xf]
      %v3170 = vld [vmem:[%s1 + $0x68] sm:$0xf]
      %v3171 = vld [vmem:[%s1 + $0x6c] sm:$0xf]
      %v3172 = vld [vmem:[%s1 + $0x70] sm:$0xf]
      %v3173 = vld [vmem:[%s1 + $0x74] sm:$0xf]
      %v3174 = vld [vmem:[%s1 + $0x78] sm:$0xf]
      %v3175 = vld [vmem:[%s1 + $0x7c] sm:$0xf]
      %v3176 = vld [vmem:[%s1 + $0x80] sm:$0xf]
      %v3177 = vld [vmem:[%s1 + $0x84] sm:$0xf]
      %v3178 = vld [vmem:[%s1 + $0x88] sm:$0xf]
      %v3179 = vld [vmem:[%s1 + $0x8c] sm:$0xf]
      %v3180 = vld [vmem:[%s1 + $0x90] sm:$0xf]
      %v3181 = vld [vmem:[%s1 + $0x94] sm:$0xf]
      %v3182 = vld [vmem:[%s1 + $0x98] sm:$0xf]
      %v3183 = vld [vmem:[%s1 + $0x9c] sm:$0xf]
      %v3184 = vld [vmem:[%s1 + $0xa0] sm:$0xf]
      %v3185 = vld [vmem:[%s1 + $0xa4] sm:$0xf]
      %v3186 = vld [vmem:[%s1 + $0xa8] sm:$0xf]
      %v3187 = vld [vmem:[%s1 + $0xac] sm:$0xf]
      %v3188 = vld [vmem:[%s1 + $0xb0] sm:$0xf]
      %v3189 = vld [vmem:[%s1 + $0xb4] sm:$0xf]
      %v3190 = vld [vmem:[%s1 + $0xb8] sm:$0xf]
      %v3191 = vld [vmem:[%s1 + $0xbc] sm:$0xf]
      %v3192 = vld [vmem:[%s1 + $0xc0] sm:$0xf]
      %v3193 = vld [vmem:[%s1 + $0xc4] sm:$0xf]
      %v3194 = vld [vmem:[%s1 + $0xc8] sm:$0xf]
      %v3195 = vld [vmem:[%s1 + $0xcc] sm:$0xf]
      %v3196 = vld [vmem:[%s1 + $0xd0] sm:$0xf]
      %v3197 = vld [vmem:[%s1 + $0xd4] sm:$0xf]
      %v3198 = vld [vmem:[%s1 + $0xd8] sm:$0xf]
      %v3199 = vld [vmem:[%s1 + $0xdc] sm:$0xf]
      %v3200 = vld [vmem:[%s1 + $0xe0] sm:$0xf]
      %v3201 = vld [vmem:[%s1 + $0xe4] sm:$0xf]
      %v3202 = vld [vmem:[%s1 + $0xe8] sm:$0xf]
      %v3203 = vld [vmem:[%s1 + $0xec] sm:$0xf]
      %v3204 = vld [vmem:[%s1 + $0xf0] sm:$0xf]
      %v3205 = vld [vmem:[%s1 + $0xf4] sm:$0xf]
      %v3206 = vld [vmem:[%s1 + $0xf8] sm:$0xf]
      %v3207 = vld [vmem:[%s1 + $0xfc] sm:$0xf]
      %v3208 = vld [vmem:[%s1 + $0x100] sm:$0xf]
      %v3209 = vld [vmem:[%s1 + $0x104] sm:$0xf]
      %v3210 = vld [vmem:[%s1 + $0x108] sm:$0xf]
      %v3211 = vld [vmem:[%s1 + $0x10c] sm:$0xf]
      %v3212 = vld [vmem:[%s1 + $0x110] sm:$0xf]
      %v3213 = vld [vmem:[%s1 + $0x114] sm:$0xf]
      %v3214 = vld [vmem:[%s1 + $0x118] sm:$0xf]
      %v3215 = vld [vmem:[%s1 + $0x11c] sm:$0xf]
      %v3216 = vld [vmem:[%s1 + $0x120] sm:$0xf]
      %v3217 = vld [vmem:[%s1 + $0x124] sm:$0xf]
      %v3218 = vld [vmem:[%s1 + $0x128] sm:$0xf]
      %v3219 = vld [vmem:[%s1 + $0x12c] sm:$0xf]
      %v3220 = vld [vmem:[%s1 + $0x130] sm:$0xf]
      %v3221 = vld [vmem:[%s1 + $0x134] sm:$0xf]
      %v3222 = vld [vmem:[%s1 + $0x138] sm:$0xf]
      %v3223 = vld [vmem:[%s1 + $0x13c] sm:$0xf]
      %v3224 = vld [vmem:[%s1 + $0x140] sm:$0xf]
      %v3225 = vld [vmem:[%s1 + $0x144] sm:$0xf]
      %v3226 = vld [vmem:[%s1 + $0x148] sm:$0xf]
      %v3227 = vld [vmem:[%s1 + $0x14c] sm:$0xf]
      %v3228 = vld [vmem:[%s1 + $0x150] sm:$0xf]
      %v3229 = vld [vmem:[%s1 + $0x154] sm:$0xf]
      %v3230 = vld [vmem:[%s1 + $0x158] sm:$0xf]
      %v3231 = vld [vmem:[%s1 + $0x15c] sm:$0xf]
      %v3232 = vld [vmem:[%s1 + $0x160] sm:$0xf]
      %v3233 = vld [vmem:[%s1 + $0x164] sm:$0xf]
      %v3234 = vld [vmem:[%s1 + $0x168] sm:$0xf]
      %v3235 = vld [vmem:[%s1 + $0x16c] sm:$0xf]
      %v3236 = vld [vmem:[%s1 + $0x170] sm:$0xf]
      %v3237 = vld [vmem:[%s1 + $0x174] sm:$0xf]
      %v3238 = vld [vmem:[%s1 + $0x178] sm:$0xf]
      %v3239 = vld [vmem:[%s1 + $0x17c] sm:$0xf]
      %v3240 = vld [vmem:[%s1 + $0x180] sm:$0xf]
      %v3241 = vld [vmem:[%s1 + $0x184] sm:$0xf]
      %v3242 = vld [vmem:[%s1 + $0x188] sm:$0xf]
      %v3243 = vld [vmem:[%s1 + $0x18c] sm:$0xf]
      %v3244 = vld [vmem:[%s1 + $0x190] sm:$0xf]
      %v3245 = vld [vmem:[%s1 + $0x194] sm:$0xf]
      %v3246 = vld [vmem:[%s1 + $0x198] sm:$0xf]
      %v3247 = vld [vmem:[%s1 + $0x19c] sm:$0xf]
      %v3248 = vld [vmem:[%s1 + $0x1a0] sm:$0xf]
      %v3249 = vld [vmem:[%s1 + $0x1a4] sm:$0xf]
      %v3250 = vld [vmem:[%s1 + $0x1a8] sm:$0xf]
      %v3251 = vld [vmem:[%s1 + $0x1ac] sm:$0xf]
      %v3252 = vld [vmem:[%s1 + $0x1b0] sm:$0xf]
      %v3253 = vld [vmem:[%s1 + $0x1b4] sm:$0xf]
      %v3254 = vld [vmem:[%s1 + $0x1b8] sm:$0xf]
      %v3255 = vld [vmem:[%s1 + $0x1bc] sm:$0xf]
      %v3256 = vld [vmem:[%s1 + $0x1c0] sm:$0xf]
      %v3257 = vld [vmem:[%s1 + $0x1c4] sm:$0xf]
      %v3258 = vld [vmem:[%s1 + $0x1c8] sm:$0xf]
      %v3259 = vld [vmem:[%s1 + $0x1cc] sm:$0xf]
      %v3260 = vld [vmem:[%s1 + $0x1d0] sm:$0xf]
      %v3261 = vld [vmem:[%s1 + $0x1d4] sm:$0xf]
      %v3262 = vld [vmem:[%s1 + $0x1d8] sm:$0xf]
      %v3263 = vld [vmem:[%s1 + $0x1dc] sm:$0xf]
      %v3264 = vld [vmem:[%s1 + $0x1e0] sm:$0xf]
      %v3265 = vld [vmem:[%s1 + $0x1e4] sm:$0xf]
      %v3266 = vld [vmem:[%s1 + $0x1e8] sm:$0xf]
      %v3267 = vld [vmem:[%s1 + $0x1ec] sm:$0xf]
      %v3268 = vld [vmem:[%s1 + $0x1f0] sm:$0xf]
      %v3269 = vld [vmem:[%s1 + $0x1f4] sm:$0xf]
      %v3270 = vld [vmem:[%s1 + $0x1f8] sm:$0xf]
      %v3271 = vld [vmem:[%s1 + $0x1fc] sm:$0xf]
      %v3272 = vld [vmem:[%s1 + $0x200] sm:$0xf]
      %v3273 = vld [vmem:[%s1 + $0x204] sm:$0xf]
      %v3274 = vld [vmem:[%s1 + $0x208] sm:$0xf]
      %v3275 = vld [vmem:[%s1 + $0x20c] sm:$0xf]
      %v3276 = vld [vmem:[%s1 + $0x210] sm:$0xf]
      %v3277 = vld [vmem:[%s1 + $0x214] sm:$0xf]
      %v3278 = vld [vmem:[%s1 + $0x218] sm:$0xf]
      %v3279 = vld [vmem:[%s1 + $0x21c] sm:$0xf]
      %v3280 = vld [vmem:[%s1 + $0x220] sm:$0xf]
      %v3281 = vld [vmem:[%s1 + $0x224] sm:$0xf]
      %v3282 = vld [vmem:[%s1 + $0x228] sm:$0xf]
      %v3283 = vld [vmem:[%s1 + $0x22c] sm:$0xf]
      %v3284 = vld [vmem:[%s1 + $0x230] sm:$0xf]
      %v3285 = vld [vmem:[%s1 + $0x234] sm:$0xf]
      %v3286 = vld [vmem:[%s1 + $0x238] sm:$0xf]
      %v3287 = vld [vmem:[%s1 + $0x23c] sm:$0xf]
      %v3468 = vunpack.c.l.b16 %v2964
      %v3469 = vunpack.c.h.b16 %v2964
      %v3470 = vunpack.c.l.b16 %v2965
      %v3471 = vunpack.c.h.b16 %v2965
      %v3472 = vunpack.c.l.b16 %v2966
      %v3473 = vunpack.c.h.b16 %v2966
      %v3474 = vunpack.c.l.b16 %v2967
      %v3475 = vunpack.c.h.b16 %v2967
      %v3476 = vunpack.c.l.b16 %v2968
      %v3477 = vunpack.c.l.b16 %v2969
      %v3478 = vunpack.c.h.b16 %v2969
      %v3479 = vunpack.c.l.b16 %v2970
      %v3480 = vunpack.c.h.b16 %v2970
      %v3481 = vunpack.c.l.b16 %v2971
      %v3482 = vunpack.c.h.b16 %v2971
      %v3483 = vunpack.c.l.b16 %v2972
      %v3484 = vunpack.c.h.b16 %v2972
      %v3485 = vunpack.c.l.b16 %v2973
      %v3486 = vunpack.c.l.b16 %v2974
      %v3487 = vunpack.c.h.b16 %v2974
      %v3488 = vunpack.c.l.b16 %v2975
      %v3489 = vunpack.c.h.b16 %v2975
      %v3490 = vunpack.c.l.b16 %v2976
      %v3491 = vunpack.c.h.b16 %v2976
      %v3492 = vunpack.c.l.b16 %v2977
      %v3493 = vunpack.c.h.b16 %v2977
      %v3494 = vunpack.c.l.b16 %v2978
      %v3495 = vunpack.c.l.b16 %v2979
      %v3496 = vunpack.c.h.b16 %v2979
      %v3497 = vunpack.c.l.b16 %v2980
      %v3498 = vunpack.c.h.b16 %v2980
      %v3499 = vunpack.c.l.b16 %v2981
      %v3500 = vunpack.c.h.b16 %v2981
      %v3501 = vunpack.c.l.b16 %v2982
      %v3502 = vunpack.c.h.b16 %v2982
      %v3503 = vunpack.c.l.b16 %v2983
      %v3504 = vunpack.c.l.b16 %v2984
      %v3505 = vunpack.c.h.b16 %v2984
      %v3506 = vunpack.c.l.b16 %v2985
      %v3507 = vunpack.c.h.b16 %v2985
      %v3508 = vunpack.c.l.b16 %v2986
      %v3509 = vunpack.c.h.b16 %v2986
      %v3510 = vunpack.c.l.b16 %v2987
      %v3511 = vunpack.c.h.b16 %v2987
      %v3512 = vunpack.c.l.b16 %v2988
      %v3513 = vunpack.c.l.b16 %v2989
      %v3514 = vunpack.c.h.b16 %v2989
      %v3515 = vunpack.c.l.b16 %v2990
      %v3516 = vunpack.c.h.b16 %v2990
      %v3517 = vunpack.c.l.b16 %v2991
      %v3518 = vunpack.c.h.b16 %v2991
      %v3519 = vunpack.c.l.b16 %v2992
      %v3520 = vunpack.c.h.b16 %v2992
      %v3521 = vunpack.c.l.b16 %v2993
      %v3522 = vunpack.c.l.b16 %v2994
      %v3523 = vunpack.c.h.b16 %v2994
      %v3524 = vunpack.c.l.b16 %v2995
      %v3525 = vunpack.c.h.b16 %v2995
      %v3526 = vunpack.c.l.b16 %v2996
      %v3527 = vunpack.c.h.b16 %v2996
      %v3528 = vunpack.c.l.b16 %v2997
      %v3529 = vunpack.c.h.b16 %v2997
      %v3530 = vunpack.c.l.b16 %v2998
      %v3531 = vunpack.c.l.b16 %v2999
      %v3532 = vunpack.c.h.b16 %v2999
      %v3533 = vunpack.c.l.b16 %v3000
      %v3534 = vunpack.c.h.b16 %v3000
      %v3535 = vunpack.c.l.b16 %v3001
      %v3536 = vunpack.c.h.b16 %v3001
      %v3537 = vunpack.c.l.b16 %v3002
      %v3538 = vunpack.c.h.b16 %v3002
      %v3539 = vunpack.c.l.b16 %v3003
      %v3540 = vunpack.c.l.b16 %v3004
      %v3541 = vunpack.c.h.b16 %v3004
      %v3542 = vunpack.c.l.b16 %v3005
      %v3543 = vunpack.c.h.b16 %v3005
      %v3544 = vunpack.c.l.b16 %v3006
      %v3545 = vunpack.c.h.b16 %v3006
      %v3546 = vunpack.c.l.b16 %v3007
      %v3547 = vunpack.c.h.b16 %v3007
      %v3548 = vunpack.c.l.b16 %v3008
      %v3549 = vunpack.c.l.b16 %v3009
      %v3550 = vunpack.c.h.b16 %v3009
      %v3551 = vunpack.c.l.b16 %v3010
      %v3552 = vunpack.c.h.b16 %v3010
      %v3553 = vunpack.c.l.b16 %v3011
      %v3554 = vunpack.c.h.b16 %v3011
      %v3555 = vunpack.c.l.b16 %v3012
      %v3556 = vunpack.c.h.b16 %v3012
      %v3557 = vunpack.c.l.b16 %v3013
      %v3558 = vunpack.c.l.b16 %v3014
      %v3559 = vunpack.c.h.b16 %v3014
      %v3560 = vunpack.c.l.b16 %v3015
      %v3561 = vunpack.c.h.b16 %v3015
      %v3562 = vunpack.c.l.b16 %v3016
      %v3563 = vunpack.c.h.b16 %v3016
      %v3564 = vunpack.c.l.b16 %v3017
      %v3565 = vunpack.c.h.b16 %v3017
      %v3566 = vunpack.c.l.b16 %v3018
      %v3567 = vunpack.c.l.b16 %v3019
      %v3568 = vunpack.c.h.b16 %v3019
      %v3569 = vunpack.c.l.b16 %v3020
      %v3570 = vunpack.c.h.b16 %v3020
      %v3571 = vunpack.c.l.b16 %v3021
      %v3572 = vunpack.c.h.b16 %v3021
      %v3573 = vunpack.c.l.b16 %v3022
      %v3574 = vunpack.c.h.b16 %v3022
      %v3575 = vunpack.c.l.b16 %v3023
      %v3576 = vunpack.c.l.b16 %v3024
      %v3577 = vunpack.c.h.b16 %v3024
      %v3578 = vunpack.c.l.b16 %v3025
      %v3579 = vunpack.c.h.b16 %v3025
      %v3580 = vunpack.c.l.b16 %v3026
      %v3581 = vunpack.c.h.b16 %v3026
      %v3582 = vunpack.c.l.b16 %v3027
      %v3583 = vunpack.c.h.b16 %v3027
      %v3584 = vunpack.c.l.b16 %v3028
      %v3585 = vunpack.c.l.b16 %v3029
      %v3586 = vunpack.c.h.b16 %v3029
      %v3587 = vunpack.c.l.b16 %v3030
      %v3588 = vunpack.c.h.b16 %v3030
      %v3589 = vunpack.c.l.b16 %v3031
      %v3590 = vunpack.c.h.b16 %v3031
      %v3591 = vunpack.c.l.b16 %v3032
      %v3592 = vunpack.c.h.b16 %v3032
      %v3593 = vunpack.c.l.b16 %v3033
      %v3594 = vunpack.c.l.b16 %v3034
      %v3595 = vunpack.c.h.b16 %v3034
      %v3596 = vunpack.c.l.b16 %v3035
      %v3597 = vunpack.c.h.b16 %v3035
      %v3598 = vunpack.c.l.b16 %v3036
      %v3599 = vunpack.c.h.b16 %v3036
      %v3600 = vunpack.c.l.b16 %v3037
      %v3601 = vunpack.c.h.b16 %v3037
      %v3602 = vunpack.c.l.b16 %v3038
      %v3603 = vunpack.c.l.b16 %v3039
      %v3604 = vunpack.c.h.b16 %v3039
      %v3605 = vunpack.c.l.b16 %v3040
      %v3606 = vunpack.c.h.b16 %v3040
      %v3607 = vunpack.c.l.b16 %v3041
      %v3608 = vunpack.c.h.b16 %v3041
      %v3609 = vunpack.c.l.b16 %v3042
      %v3610 = vunpack.c.h.b16 %v3042
      %v3611 = vunpack.c.l.b16 %v3043
      %v3612 = vunpack.c.l.b16 %v3044
      %v3613 = vunpack.c.h.b16 %v3044
      %v3614 = vunpack.c.l.b16 %v3045
      %v3615 = vunpack.c.h.b16 %v3045
      %v3616 = vunpack.c.l.b16 %v3046
      %v3617 = vunpack.c.h.b16 %v3046
      %v3618 = vunpack.c.l.b16 %v3047
      %v3619 = vunpack.c.h.b16 %v3047
      %v3620 = vunpack.c.l.b16 %v3048
      %v3621 = vunpack.c.l.b16 %v3049
      %v3622 = vunpack.c.h.b16 %v3049
      %v3623 = vunpack.c.l.b16 %v3050
      %v3624 = vunpack.c.h.b16 %v3050
      %v3625 = vunpack.c.l.b16 %v3051
      %v3626 = vunpack.c.h.b16 %v3051
      %v3627 = vunpack.c.l.b16 %v3052
      %v3628 = vunpack.c.h.b16 %v3052
      %v3629 = vunpack.c.l.b16 %v3053
      %v3630 = vunpack.c.l.b16 %v3054
      %v3631 = vunpack.c.h.b16 %v3054
      %v3632 = vunpack.c.l.b16 %v3055
      %v3633 = vunpack.c.h.b16 %v3055
      %v3634 = vunpack.c.l.b16 %v3056
      %v3635 = vunpack.c.h.b16 %v3056
      %v3636 = vunpack.c.l.b16 %v3057
      %v3637 = vunpack.c.h.b16 %v3057
      %v3638 = vunpack.c.l.b16 %v3058
      %v3639 = vunpack.c.l.b16 %v3059
      %v3640 = vunpack.c.h.b16 %v3059
      %v3641 = vunpack.c.l.b16 %v3060
      %v3642 = vunpack.c.h.b16 %v3060
      %v3643 = vunpack.c.l.b16 %v3061
      %v3644 = vunpack.c.h.b16 %v3061
      %v3645 = vunpack.c.l.b16 %v3062
      %v3646 = vunpack.c.h.b16 %v3062
      %v3647 = vunpack.c.l.b16 %v3063
      %v3648 = vunpack.c.l.b16 %v3064
      %v3649 = vunpack.c.h.b16 %v3064
      %v3650 = vunpack.c.l.b16 %v3065
      %v3651 = vunpack.c.h.b16 %v3065
      %v3652 = vunpack.c.l.b16 %v3066
      %v3653 = vunpack.c.h.b16 %v3066
      %v3654 = vunpack.c.l.b16 %v3067
      %v3655 = vunpack.c.h.b16 %v3067
      %v3656 = vunpack.c.l.b16 %v3068
      %v3657 = vunpack.c.l.b16 %v3069
      %v3658 = vunpack.c.h.b16 %v3069
      %v3659 = vunpack.c.l.b16 %v3070
      %v3660 = vunpack.c.h.b16 %v3070
      %v3661 = vunpack.c.l.b16 %v3071
      %v3662 = vunpack.c.h.b16 %v3071
      %v3663 = vunpack.c.l.b16 %v3072
      %v3664 = vunpack.c.h.b16 %v3072
      %v3665 = vunpack.c.l.b16 %v3073
      %v3666 = vunpack.c.l.b16 %v3074
      %v3667 = vunpack.c.h.b16 %v3074
      %v3668 = vunpack.c.l.b16 %v3075
      %v3669 = vunpack.c.h.b16 %v3075
      %v3670 = vunpack.c.l.b16 %v3076
      %v3671 = vunpack.c.h.b16 %v3076
      %v3672 = vunpack.c.l.b16 %v3077
      %v3673 = vunpack.c.h.b16 %v3077
      %v3674 = vunpack.c.l.b16 %v3078
      %v3675 = vunpack.c.l.b16 %v3079
      %v3676 = vunpack.c.h.b16 %v3079
      %v3677 = vunpack.c.l.b16 %v3080
      %v3678 = vunpack.c.h.b16 %v3080
      %v3679 = vunpack.c.l.b16 %v3081
      %v3680 = vunpack.c.h.b16 %v3081
      %v3681 = vunpack.c.l.b16 %v3082
      %v3682 = vunpack.c.h.b16 %v3082
      %v3683 = vunpack.c.l.b16 %v3083
      %v3684 = vunpack.c.l.b16 %v3084
      %v3685 = vunpack.c.h.b16 %v3084
      %v3686 = vunpack.c.l.b16 %v3085
      %v3687 = vunpack.c.h.b16 %v3085
      %v3688 = vunpack.c.l.b16 %v3086
      %v3689 = vunpack.c.h.b16 %v3086
      %v3690 = vunpack.c.l.b16 %v3087
      %v3691 = vunpack.c.h.b16 %v3087
      %v3692 = vunpack.c.l.b16 %v3088
      %v3693 = vunpack.c.l.b16 %v3089
      %v3694 = vunpack.c.h.b16 %v3089
      %v3695 = vunpack.c.l.b16 %v3090
      %v3696 = vunpack.c.h.b16 %v3090
      %v3697 = vunpack.c.l.b16 %v3091
      %v3698 = vunpack.c.h.b16 %v3091
      %v3699 = vunpack.c.l.b16 %v3092
      %v3700 = vunpack.c.h.b16 %v3092
      %v3701 = vunpack.c.l.b16 %v3093
      %v3702 = vunpack.c.l.b16 %v3094
      %v3703 = vunpack.c.h.b16 %v3094
      %v3704 = vunpack.c.l.b16 %v3095
      %v3705 = vunpack.c.h.b16 %v3095
      %v3706 = vunpack.c.l.b16 %v3096
      %v3707 = vunpack.c.h.b16 %v3096
      %v3708 = vunpack.c.l.b16 %v3097
      %v3709 = vunpack.c.h.b16 %v3097
      %v3710 = vunpack.c.l.b16 %v3098
      %v3711 = vunpack.c.l.b16 %v3099
      %v3712 = vunpack.c.h.b16 %v3099
      %v3713 = vunpack.c.l.b16 %v3100
      %v3714 = vunpack.c.h.b16 %v3100
      %v3715 = vunpack.c.l.b16 %v3101
      %v3716 = vunpack.c.h.b16 %v3101
      %v3717 = vunpack.c.l.b16 %v3102
      %v3718 = vunpack.c.h.b16 %v3102
      %v3719 = vunpack.c.l.b16 %v3103
      %v3720 = vunpack.c.l.b16 %v3104
      %v3721 = vunpack.c.h.b16 %v3104
      %v3722 = vunpack.c.l.b16 %v3105
      %v3723 = vunpack.c.h.b16 %v3105
      %v3724 = vunpack.c.l.b16 %v3106
      %v3725 = vunpack.c.h.b16 %v3106
      %v3726 = vunpack.c.l.b16 %v3107
      %v3727 = vunpack.c.h.b16 %v3107
      %v3728 = vunpack.c.l.b16 %v3108
      %v3729 = vunpack.c.l.b16 %v3109
      %v3730 = vunpack.c.h.b16 %v3109
      %v3731 = vunpack.c.l.b16 %v3110
      %v3732 = vunpack.c.h.b16 %v3110
      %v3733 = vunpack.c.l.b16 %v3111
      %v3734 = vunpack.c.h.b16 %v3111
      %v3735 = vunpack.c.l.b16 %v3112
      %v3736 = vunpack.c.h.b16 %v3112
      %v3737 = vunpack.c.l.b16 %v3113
      %v3738 = vunpack.c.l.b16 %v3114
      %v3739 = vunpack.c.h.b16 %v3114
      %v3740 = vunpack.c.l.b16 %v3115
      %v3741 = vunpack.c.h.b16 %v3115
      %v3742 = vunpack.c.l.b16 %v3116
      %v3743 = vunpack.c.h.b16 %v3116
      %v3744 = vunpack.c.l.b16 %v3117
      %v3745 = vunpack.c.h.b16 %v3117
      %v3746 = vunpack.c.l.b16 %v3118
      %v3747 = vunpack.c.l.b16 %v3119
      %v3748 = vunpack.c.h.b16 %v3119
      %v3749 = vunpack.c.l.b16 %v3120
      %v3750 = vunpack.c.h.b16 %v3120
      %v3751 = vunpack.c.l.b16 %v3121
      %v3752 = vunpack.c.h.b16 %v3121
      %v3753 = vunpack.c.l.b16 %v3122
      %v3754 = vunpack.c.h.b16 %v3122
      %v3755 = vunpack.c.l.b16 %v3123
      %v3756 = vunpack.c.l.b16 %v3124
      %v3757 = vunpack.c.h.b16 %v3124
      %v3758 = vunpack.c.l.b16 %v3125
      %v3759 = vunpack.c.h.b16 %v3125
      %v3760 = vunpack.c.l.b16 %v3126
      %v3761 = vunpack.c.h.b16 %v3126
      %v3762 = vunpack.c.l.b16 %v3127
      %v3763 = vunpack.c.h.b16 %v3127
      %v3764 = vunpack.c.l.b16 %v3128
      %v3765 = vunpack.c.l.b16 %v3129
      %v3766 = vunpack.c.h.b16 %v3129
      %v3767 = vunpack.c.l.b16 %v3130
      %v3768 = vunpack.c.h.b16 %v3130
      %v3769 = vunpack.c.l.b16 %v3131
      %v3770 = vunpack.c.h.b16 %v3131
      %v3771 = vunpack.c.l.b16 %v3132
      %v3772 = vunpack.c.h.b16 %v3132
      %v3773 = vunpack.c.l.b16 %v3133
      %v3774 = vunpack.c.l.b16 %v3134
      %v3775 = vunpack.c.h.b16 %v3134
      %v3776 = vunpack.c.l.b16 %v3135
      %v3777 = vunpack.c.h.b16 %v3135
      %v3778 = vunpack.c.l.b16 %v3136
      %v3779 = vunpack.c.h.b16 %v3136
      %v3780 = vunpack.c.l.b16 %v3137
      %v3781 = vunpack.c.h.b16 %v3137
      %v3782 = vunpack.c.l.b16 %v3138
      %v3783 = vunpack.c.l.b16 %v3139
      %v3784 = vunpack.c.h.b16 %v3139
      %v3785 = vunpack.c.l.b16 %v3140
      %v3786 = vunpack.c.h.b16 %v3140
      %v3787 = vunpack.c.l.b16 %v3141
      %v3788 = vunpack.c.h.b16 %v3141
      %v3789 = vunpack.c.l.b16 %v3142
      %v3790 = vunpack.c.h.b16 %v3142
      %v3791 = vunpack.c.l.b16 %v3143
      %v3792 = vpack.c.b16 %v3477, %v3468
      %v3793 = vpack.c.b16 %v3478, %v3469
      %v3794 = vpack.c.b16 %v3479, %v3470
      %v3795 = vpack.c.b16 %v3480, %v3471
      %v3796 = vpack.c.b16 %v3481, %v3472
      %v3797 = vpack.c.b16 %v3482, %v3473
      %v3798 = vpack.c.b16 %v3483, %v3474
      %v3799 = vpack.c.b16 %v3484, %v3475
      %v3800 = vpack.c.b16 %v3485, %v3476
      %v3801 = vpack.c.b16 %v3495, %v3486
      %v3802 = vpack.c.b16 %v3496, %v3487
      %v3803 = vpack.c.b16 %v3497, %v3488
      %v3804 = vpack.c.b16 %v3498, %v3489
      %v3805 = vpack.c.b16 %v3499, %v3490
      %v3806 = vpack.c.b16 %v3500, %v3491
      %v3807 = vpack.c.b16 %v3501, %v3492
      %v3808 = vpack.c.b16 %v3502, %v3493
      %v3809 = vpack.c.b16 %v3503, %v3494
      %v3810 = vpack.c.b16 %v3513, %v3504
      %v3811 = vpack.c.b16 %v3514, %v3505
      %v3812 = vpack.c.b16 %v3515, %v3506
      %v3813 = vpack.c.b16 %v3516, %v3507
      %v3814 = vpack.c.b16 %v3517, %v3508
      %v3815 = vpack.c.b16 %v3518, %v3509
      %v3816 = vpack.c.b16 %v3519, %v3510
      %v3817 = vpack.c.b16 %v3520, %v3511
      %v3818 = vpack.c.b16 %v3521, %v3512
      %v3819 = vpack.c.b16 %v3531, %v3522
      %v3820 = vpack.c.b16 %v3532, %v3523
      %v3821 = vpack.c.b16 %v3533, %v3524
      %v3822 = vpack.c.b16 %v3534, %v3525
      %v3823 = vpack.c.b16 %v3535, %v3526
      %v3824 = vpack.c.b16 %v3536, %v3527
      %v3825 = vpack.c.b16 %v3537, %v3528
      %v3826 = vpack.c.b16 %v3538, %v3529
      %v3827 = vpack.c.b16 %v3539, %v3530
      %v3828 = vpack.c.b16 %v3549, %v3540
      %v3829 = vpack.c.b16 %v3550, %v3541
      %v3830 = vpack.c.b16 %v3551, %v3542
      %v3831 = vpack.c.b16 %v3552, %v3543
      %v3832 = vpack.c.b16 %v3553, %v3544
      %v3833 = vpack.c.b16 %v3554, %v3545
      %v3834 = vpack.c.b16 %v3555, %v3546
      %v3835 = vpack.c.b16 %v3556, %v3547
      %v3836 = vpack.c.b16 %v3557, %v3548
      %v3837 = vpack.c.b16 %v3567, %v3558
      %v3838 = vpack.c.b16 %v3568, %v3559
      %v3839 = vpack.c.b16 %v3569, %v3560
      %v3840 = vpack.c.b16 %v3570, %v3561
      %v3841 = vpack.c.b16 %v3571, %v3562
      %v3842 = vpack.c.b16 %v3572, %v3563
      %v3843 = vpack.c.b16 %v3573, %v3564
      %v3844 = vpack.c.b16 %v3574, %v3565
      %v3845 = vpack.c.b16 %v3575, %v3566
      %v3846 = vpack.c.b16 %v3585, %v3576
      %v3847 = vpack.c.b16 %v3586, %v3577
      %v3848 = vpack.c.b16 %v3587, %v3578
      %v3849 = vpack.c.b16 %v3588, %v3579
      %v3850 = vpack.c.b16 %v3589, %v3580
      %v3851 = vpack.c.b16 %v3590, %v3581
      %v3852 = vpack.c.b16 %v3591, %v3582
      %v3853 = vpack.c.b16 %v3592, %v3583
      %v3854 = vpack.c.b16 %v3593, %v3584
      %v3855 = vpack.c.b16 %v3603, %v3594
      %v3856 = vpack.c.b16 %v3604, %v3595
      %v3857 = vpack.c.b16 %v3605, %v3596
      %v3858 = vpack.c.b16 %v3606, %v3597
      %v3859 = vpack.c.b16 %v3607, %v3598
      %v3860 = vpack.c.b16 %v3608, %v3599
      %v3861 = vpack.c.b16 %v3609, %v3600
      %v3862 = vpack.c.b16 %v3610, %v3601
      %v3863 = vpack.c.b16 %v3611, %v3602
      %v3864 = vpack.c.b16 %v3621, %v3612
      %v3865 = vpack.c.b16 %v3622, %v3613
      %v3866 = vpack.c.b16 %v3623, %v3614
      %v3867 = vpack.c.b16 %v3624, %v3615
      %v3868 = vpack.c.b16 %v3625, %v3616
      %v3869 = vpack.c.b16 %v3626, %v3617
      %v3870 = vpack.c.b16 %v3627, %v3618
      %v3871 = vpack.c.b16 %v3628, %v3619
      %v3872 = vpack.c.b16 %v3629, %v3620
      %v3873 = vpack.c.b16 %v3639, %v3630
      %v3874 = vpack.c.b16 %v3640, %v3631
      %v3875 = vpack.c.b16 %v3641, %v3632
      %v3876 = vpack.c.b16 %v3642, %v3633
      %v3877 = vpack.c.b16 %v3643, %v3634
      %v3878 = vpack.c.b16 %v3644, %v3635
      %v3879 = vpack.c.b16 %v3645, %v3636
      %v3880 = vpack.c.b16 %v3646, %v3637
      %v3881 = vpack.c.b16 %v3647, %v3638
      %v3882 = vpack.c.b16 %v3657, %v3648
      %v3883 = vpack.c.b16 %v3658, %v3649
      %v3884 = vpack.c.b16 %v3659, %v3650
      %v3885 = vpack.c.b16 %v3660, %v3651
      %v3886 = vpack.c.b16 %v3661, %v3652
      %v3887 = vpack.c.b16 %v3662, %v3653
      %v3888 = vpack.c.b16 %v3663, %v3654
      %v3889 = vpack.c.b16 %v3664, %v3655
      %v3890 = vpack.c.b16 %v3665, %v3656
      %v3891 = vpack.c.b16 %v3675, %v3666
      %v3892 = vpack.c.b16 %v3676, %v3667
      %v3893 = vpack.c.b16 %v3677, %v3668
      %v3894 = vpack.c.b16 %v3678, %v3669
      %v3895 = vpack.c.b16 %v3679, %v3670
      %v3896 = vpack.c.b16 %v3680, %v3671
      %v3897 = vpack.c.b16 %v3681, %v3672
      %v3898 = vpack.c.b16 %v3682, %v3673
      %v3899 = vpack.c.b16 %v3683, %v3674
      %v3900 = vpack.c.b16 %v3693, %v3684
      %v3901 = vpack.c.b16 %v3694, %v3685
      %v3902 = vpack.c.b16 %v3695, %v3686
      %v3903 = vpack.c.b16 %v3696, %v3687
      %v3904 = vpack.c.b16 %v3697, %v3688
      %v3905 = vpack.c.b16 %v3698, %v3689
      %v3906 = vpack.c.b16 %v3699, %v3690
      %v3907 = vpack.c.b16 %v3700, %v3691
      %v3908 = vpack.c.b16 %v3701, %v3692
      %v3909 = vpack.c.b16 %v3711, %v3702
      %v3910 = vpack.c.b16 %v3712, %v3703
      %v3911 = vpack.c.b16 %v3713, %v3704
      %v3912 = vpack.c.b16 %v3714, %v3705
      %v3913 = vpack.c.b16 %v3715, %v3706
      %v3914 = vpack.c.b16 %v3716, %v3707
      %v3915 = vpack.c.b16 %v3717, %v3708
      %v3916 = vpack.c.b16 %v3718, %v3709
      %v3917 = vpack.c.b16 %v3719, %v3710
      %v3918 = vpack.c.b16 %v3729, %v3720
      %v3919 = vpack.c.b16 %v3730, %v3721
      %v3920 = vpack.c.b16 %v3731, %v3722
      %v3921 = vpack.c.b16 %v3732, %v3723
      %v3922 = vpack.c.b16 %v3733, %v3724
      %v3923 = vpack.c.b16 %v3734, %v3725
      %v3924 = vpack.c.b16 %v3735, %v3726
      %v3925 = vpack.c.b16 %v3736, %v3727
      %v3926 = vpack.c.b16 %v3737, %v3728
      %v3927 = vpack.c.b16 %v3747, %v3738
      %v3928 = vpack.c.b16 %v3748, %v3739
      %v3929 = vpack.c.b16 %v3749, %v3740
      %v3930 = vpack.c.b16 %v3750, %v3741
      %v3931 = vpack.c.b16 %v3751, %v3742
      %v3932 = vpack.c.b16 %v3752, %v3743
      %v3933 = vpack.c.b16 %v3753, %v3744
      %v3934 = vpack.c.b16 %v3754, %v3745
      %v3935 = vpack.c.b16 %v3755, %v3746
      %v3936 = vpack.c.b16 %v3765, %v3756
      %v3937 = vpack.c.b16 %v3766, %v3757
      %v3938 = vpack.c.b16 %v3767, %v3758
      %v3939 = vpack.c.b16 %v3768, %v3759
      %v3940 = vpack.c.b16 %v3769, %v3760
      %v3941 = vpack.c.b16 %v3770, %v3761
      %v3942 = vpack.c.b16 %v3771, %v3762
      %v3943 = vpack.c.b16 %v3772, %v3763
      %v3944 = vpack.c.b16 %v3773, %v3764
      %v3945 = vpack.c.b16 %v3783, %v3774
      %v3946 = vpack.c.b16 %v3784, %v3775
      %v3947 = vpack.c.b16 %v3785, %v3776
      %v3948 = vpack.c.b16 %v3786, %v3777
      %v3949 = vpack.c.b16 %v3787, %v3778
      %v3950 = vpack.c.b16 %v3788, %v3779
      %v3951 = vpack.c.b16 %v3789, %v3780
      %v3952 = vpack.c.b16 %v3790, %v3781
      %v3953 = vpack.c.b16 %v3791, %v3782
      %v4260 = vunpack.c.l.b16 %v3144
      %v4261 = vunpack.c.l.b16 %v3145
      %v4262 = vunpack.c.l.b16 %v3146
      %v4263 = vunpack.c.l.b16 %v3147
      %v4264 = vunpack.c.l.b16 %v3148
      %v4265 = vunpack.c.l.b16 %v3149
      %v4266 = vunpack.c.l.b16 %v3150
      %v4267 = vunpack.c.l.b16 %v3151
      %v4268 = vunpack.c.l.b16 %v3152
      %v4269 = vunpack.c.l.b16 %v3153
      %v4270 = vunpack.c.l.b16 %v3154
      %v4271 = vunpack.c.l.b16 %v3155
      %v4272 = vunpack.c.l.b16 %v3156
      %v4273 = vunpack.c.l.b16 %v3157
      %v4274 = vunpack.c.l.b16 %v3158
      %v4275 = vunpack.c.l.b16 %v3159
      %v4276 = vunpack.c.l.b16 %v3160
      %v4277 = vunpack.c.l.b16 %v3161
      %v4278 = vunpack.c.l.b16 %v3162
      %v4279 = vunpack.c.l.b16 %v3163
      %v4280 = vunpack.c.l.b16 %v3164
      %v4281 = vunpack.c.l.b16 %v3165
      %v4282 = vunpack.c.l.b16 %v3166
      %v4283 = vunpack.c.l.b16 %v3167
      %v4284 = vunpack.c.l.b16 %v3168
      %v4285 = vunpack.c.l.b16 %v3169
      %v4286 = vunpack.c.l.b16 %v3170
      %v4287 = vunpack.c.l.b16 %v3171
      %v4288 = vunpack.c.l.b16 %v3172
      %v4289 = vunpack.c.l.b16 %v3173
      %v4290 = vunpack.c.l.b16 %v3174
      %v4291 = vunpack.c.l.b16 %v3175
      %v4292 = vunpack.c.l.b16 %v3176
      %v4293 = vunpack.c.l.b16 %v3177
      %v4294 = vunpack.c.l.b16 %v3178
      %v4295 = vunpack.c.l.b16 %v3179
      %v4296 = vunpack.c.l.b16 %v3180
      %v4297 = vunpack.c.l.b16 %v3181
      %v4298 = vunpack.c.l.b16 %v3182
      %v4299 = vunpack.c.l.b16 %v3183
      %v4300 = vunpack.c.l.b16 %v3184
      %v4301 = vunpack.c.l.b16 %v3185
      %v4302 = vunpack.c.l.b16 %v3186
      %v4303 = vunpack.c.l.b16 %v3187
      %v4304 = vunpack.c.l.b16 %v3188
      %v4305 = vunpack.c.l.b16 %v3189
      %v4306 = vunpack.c.l.b16 %v3190
      %v4307 = vunpack.c.l.b16 %v3191
      %v4308 = vunpack.c.l.b16 %v3192
      %v4309 = vunpack.c.l.b16 %v3193
      %v4310 = vunpack.c.l.b16 %v3194
      %v4311 = vunpack.c.l.b16 %v3195
      %v4312 = vunpack.c.l.b16 %v3196
      %v4313 = vunpack.c.l.b16 %v3197
      %v4314 = vunpack.c.l.b16 %v3198
      %v4315 = vunpack.c.l.b16 %v3199
      %v4316 = vunpack.c.l.b16 %v3200
      %v4317 = vunpack.c.l.b16 %v3201
      %v4318 = vunpack.c.l.b16 %v3202
      %v4319 = vunpack.c.l.b16 %v3203
      %v4320 = vunpack.c.l.b16 %v3204
      %v4321 = vunpack.c.l.b16 %v3205
      %v4322 = vunpack.c.l.b16 %v3206
      %v4323 = vunpack.c.l.b16 %v3207
      %v4324 = vunpack.c.l.b16 %v3208
      %v4325 = vunpack.c.l.b16 %v3209
      %v4326 = vunpack.c.l.b16 %v3210
      %v4327 = vunpack.c.l.b16 %v3211
      %v4328 = vunpack.c.l.b16 %v3212
      %v4329 = vunpack.c.l.b16 %v3213
      %v4330 = vunpack.c.l.b16 %v3214
      %v4331 = vunpack.c.l.b16 %v3215
      %v4332 = vunpack.c.l.b16 %v3216
      %v4333 = vunpack.c.l.b16 %v3217
      %v4334 = vunpack.c.l.b16 %v3218
      %v4335 = vunpack.c.l.b16 %v3219
      %v4336 = vunpack.c.l.b16 %v3220
      %v4337 = vunpack.c.l.b16 %v3221
      %v4338 = vunpack.c.l.b16 %v3222
      %v4339 = vunpack.c.l.b16 %v3223
      %v4340 = vunpack.c.l.b16 %v3224
      %v4341 = vunpack.c.l.b16 %v3225
      %v4342 = vunpack.c.l.b16 %v3226
      %v4343 = vunpack.c.l.b16 %v3227
      %v4344 = vunpack.c.l.b16 %v3228
      %v4345 = vunpack.c.l.b16 %v3229
      %v4346 = vunpack.c.l.b16 %v3230
      %v4347 = vunpack.c.l.b16 %v3231
      %v4348 = vunpack.c.l.b16 %v3232
      %v4349 = vunpack.c.l.b16 %v3233
      %v4350 = vunpack.c.l.b16 %v3234
      %v4351 = vunpack.c.l.b16 %v3235
      %v4352 = vunpack.c.l.b16 %v3236
      %v4353 = vunpack.c.l.b16 %v3237
      %v4354 = vunpack.c.l.b16 %v3238
      %v4355 = vunpack.c.l.b16 %v3239
      %v4356 = vunpack.c.l.b16 %v3240
      %v4357 = vunpack.c.l.b16 %v3241
      %v4358 = vunpack.c.l.b16 %v3242
      %v4359 = vunpack.c.l.b16 %v3243
      %v4360 = vunpack.c.l.b16 %v3244
      %v4361 = vunpack.c.l.b16 %v3245
      %v4362 = vunpack.c.l.b16 %v3246
      %v4363 = vunpack.c.l.b16 %v3247
      %v4364 = vunpack.c.l.b16 %v3248
      %v4365 = vunpack.c.l.b16 %v3249
      %v4366 = vunpack.c.l.b16 %v3250
      %v4367 = vunpack.c.l.b16 %v3251
      %v4368 = vunpack.c.l.b16 %v3252
      %v4369 = vunpack.c.l.b16 %v3253
      %v4370 = vunpack.c.l.b16 %v3254
      %v4371 = vunpack.c.l.b16 %v3255
      %v4372 = vunpack.c.l.b16 %v3256
      %v4373 = vunpack.c.l.b16 %v3257
      %v4374 = vunpack.c.l.b16 %v3258
      %v4375 = vunpack.c.l.b16 %v3259
      %v4376 = vunpack.c.l.b16 %v3260
      %v4377 = vunpack.c.l.b16 %v3261
      %v4378 = vunpack.c.l.b16 %v3262
      %v4379 = vunpack.c.l.b16 %v3263
      %v4380 = vunpack.c.l.b16 %v3264
      %v4381 = vunpack.c.l.b16 %v3265
      %v4382 = vunpack.c.l.b16 %v3266
      %v4383 = vunpack.c.l.b16 %v3267
      %v4384 = vunpack.c.l.b16 %v3268
      %v4385 = vunpack.c.l.b16 %v3269
      %v4386 = vunpack.c.l.b16 %v3270
      %v4387 = vunpack.c.l.b16 %v3271
      %v4388 = vunpack.c.l.b16 %v3272
      %v4389 = vunpack.c.l.b16 %v3273
      %v4390 = vunpack.c.l.b16 %v3274
      %v4391 = vunpack.c.l.b16 %v3275
      %v4392 = vunpack.c.l.b16 %v3276
      %v4393 = vunpack.c.l.b16 %v3277
      %v4394 = vunpack.c.l.b16 %v3278
      %v4395 = vunpack.c.l.b16 %v3279
      %v4396 = vunpack.c.l.b16 %v3280
      %v4397 = vunpack.c.l.b16 %v3281
      %v4398 = vunpack.c.l.b16 %v3282
      %v4399 = vunpack.c.l.b16 %v3283
      %v4400 = vunpack.c.l.b16 %v3284
      %v4401 = vunpack.c.l.b16 %v3285
      %v4402 = vunpack.c.l.b16 %v3286
      %v4403 = vunpack.c.l.b16 %v3287
      %v4404 = vpack.c.b16 %v4261, %v4260
      %v4405 = vpack.c.b16 %v4263, %v4262
      %v4406 = vpack.c.b16 %v4265, %v4264
      %v4407 = vpack.c.b16 %v4267, %v4266
      %v4408 = vpack.c.b16 %v4269, %v4268
      %v4409 = vpack.c.b16 %v4271, %v4270
      %v4410 = vpack.c.b16 %v4273, %v4272
      %v4411 = vpack.c.b16 %v4275, %v4274
      %v4412 = vpack.c.b16 %v4277, %v4276
      %v4413 = vpack.c.b16 %v4279, %v4278
      %v4414 = vpack.c.b16 %v4281, %v4280
      %v4415 = vpack.c.b16 %v4283, %v4282
      %v4416 = vpack.c.b16 %v4285, %v4284
      %v4417 = vpack.c.b16 %v4287, %v4286
      %v4418 = vpack.c.b16 %v4289, %v4288
      %v4419 = vpack.c.b16 %v4291, %v4290
      %v4420 = vpack.c.b16 %v4293, %v4292
      %v4421 = vpack.c.b16 %v4295, %v4294
      %v4422 = vpack.c.b16 %v4297, %v4296
      %v4423 = vpack.c.b16 %v4299, %v4298
      %v4424 = vpack.c.b16 %v4301, %v4300
      %v4425 = vpack.c.b16 %v4303, %v4302
      %v4426 = vpack.c.b16 %v4305, %v4304
      %v4427 = vpack.c.b16 %v4307, %v4306
      %v4428 = vpack.c.b16 %v4309, %v4308
      %v4429 = vpack.c.b16 %v4311, %v4310
      %v4430 = vpack.c.b16 %v4313, %v4312
      %v4431 = vpack.c.b16 %v4315, %v4314
      %v4432 = vpack.c.b16 %v4317, %v4316
      %v4433 = vpack.c.b16 %v4319, %v4318
      %v4434 = vpack.c.b16 %v4321, %v4320
      %v4435 = vpack.c.b16 %v4323, %v4322
      %v4436 = vpack.c.b16 %v4325, %v4324
      %v4437 = vpack.c.b16 %v4327, %v4326
      %v4438 = vpack.c.b16 %v4329, %v4328
      %v4439 = vpack.c.b16 %v4331, %v4330
      %v4440 = vpack.c.b16 %v4333, %v4332
      %v4441 = vpack.c.b16 %v4335, %v4334
      %v4442 = vpack.c.b16 %v4337, %v4336
      %v4443 = vpack.c.b16 %v4339, %v4338
      %v4444 = vpack.c.b16 %v4341, %v4340
      %v4445 = vpack.c.b16 %v4343, %v4342
      %v4446 = vpack.c.b16 %v4345, %v4344
      %v4447 = vpack.c.b16 %v4347, %v4346
      %v4448 = vpack.c.b16 %v4349, %v4348
      %v4449 = vpack.c.b16 %v4351, %v4350
      %v4450 = vpack.c.b16 %v4353, %v4352
      %v4451 = vpack.c.b16 %v4355, %v4354
      %v4452 = vpack.c.b16 %v4357, %v4356
      %v4453 = vpack.c.b16 %v4359, %v4358
      %v4454 = vpack.c.b16 %v4361, %v4360
      %v4455 = vpack.c.b16 %v4363, %v4362
      %v4456 = vpack.c.b16 %v4365, %v4364
      %v4457 = vpack.c.b16 %v4367, %v4366
      %v4458 = vpack.c.b16 %v4369, %v4368
      %v4459 = vpack.c.b16 %v4371, %v4370
      %v4460 = vpack.c.b16 %v4373, %v4372
      %v4461 = vpack.c.b16 %v4375, %v4374
      %v4462 = vpack.c.b16 %v4377, %v4376
      %v4463 = vpack.c.b16 %v4379, %v4378
      %v4464 = vpack.c.b16 %v4381, %v4380
      %v4465 = vpack.c.b16 %v4383, %v4382
      %v4466 = vpack.c.b16 %v4385, %v4384
      %v4467 = vpack.c.b16 %v4387, %v4386
      %v4468 = vpack.c.b16 %v4389, %v4388
      %v4469 = vpack.c.b16 %v4391, %v4390
      %v4470 = vpack.c.b16 %v4393, %v4392
      %v4471 = vpack.c.b16 %v4395, %v4394
      %v4472 = vpack.c.b16 %v4397, %v4396
      %v4473 = vpack.c.b16 %v4399, %v4398
      %v4474 = vpack.c.b16 %v4401, %v4400
      %v4475 = vpack.c.b16 %v4403, %v4402
      %4548 = vmatprep.subr.bf16.mxu0 0
      %4549 = vmatpush1.bf16.msra.mxu0 %v4411
      %4550 = vmatprep.subr.bf16.mxu0 0
      %4551 = vmatpush1.bf16.msra.mxu0 %v4410
      %4552 = vmatprep.subr.bf16.mxu0 0
      %4553 = vmatpush1.bf16.msra.mxu0 %v4409
      %4554 = vmatprep.subr.bf16.mxu0 0
      %4555 = vmatpush1.bf16.msra.mxu0 %v4408
      %4556 = vmatprep.subr.bf16.mxu0 0
      %4557 = vmatpush1.bf16.msra.mxu0 %v4407
      %4558 = vmatprep.subr.bf16.mxu0 0
      %4559 = vmatpush1.bf16.msra.mxu0 %v4406
      %4560 = vmatprep.subr.bf16.mxu0 0
      %4561 = vmatpush1.bf16.msra.mxu0 %v4405
      %4562 = vmatprep.subr.bf16.mxu0 0
      %4563 = vmatpush1.bf16.msra.mxu0 %v4404
      %4564 = vmatprep.subr.bf16.mxu0 0
      %4565 = vmatpush2.bf16.msra.mxu0 %v4419
      %4566 = vmatprep.subr.bf16.mxu0 0
      %4567 = vmatpush2.bf16.msra.mxu0 %v4418
      %4568 = vmatprep.subr.bf16.mxu0 0
      %4569 = vmatpush2.bf16.msra.mxu0 %v4417
      %4570 = vmatprep.subr.bf16.mxu0 0
      %4571 = vmatpush2.bf16.msra.mxu0 %v4416
      %4572 = vmatprep.subr.bf16.mxu0 0
      %4573 = vmatpush2.bf16.msra.mxu0 %v4415
      %4574 = vmatprep.subr.bf16.mxu0 0
      %4575 = vmatpush2.bf16.msra.mxu0 %v4414
      %4576 = vmatprep.subr.bf16.mxu0 0
      %4577 = vmatpush2.bf16.msra.mxu0 %v4413
      %4578 = vmatprep.subr.bf16.mxu0 0
      %4579 = vmatpush2.bf16.msra.mxu0 %v4412
      %4580 = vmatprep.mubr.bf16.mxu0 %v3793
      %4581 = vmatmul.mubr.bf16.gmra.mxu0 %v3792
      %v4582 = vpop.f32.mrf.mxu0
      %v4583 = vadd.f32 0.0, %v4582
      %v4584 = vpop.f32.mrf.mxu0
      %v4585 = vpop.f32.mrf.mxu0
      %v4586 = vadd.f32 0.0, %v4585
      %v4587 = vpop.f32.mrf.mxu0
      %4588 = vmatprep.mubr.bf16.mxu0 %v3802
      %4589 = vmatmul.mubr.bf16.gmra.mxu0 %v3801
      %v4590 = vpop.f32.mrf.mxu0
      %v4591 = vadd.f32 0.0, %v4590
      %v4592 = vpop.f32.mrf.mxu0
      %v4593 = vpop.f32.mrf.mxu0
      %v4594 = vadd.f32 0.0, %v4593
      %v4595 = vpop.f32.mrf.mxu0
      %4596 = vmatprep.mubr.bf16.mxu0 %v3811
      %4597 = vmatmul.mubr.bf16.gmra.mxu0 %v3810
      %v4598 = vpop.f32.mrf.mxu0
      %v4599 = vadd.f32 0.0, %v4598
      %v4600 = vpop.f32.mrf.mxu0
      %v4601 = vpop.f32.mrf.mxu0
      %v4602 = vadd.f32 0.0, %v4601
      %v4603 = vpop.f32.mrf.mxu0
      %4604 = vmatprep.mubr.bf16.mxu0 %v3820
      %4605 = vmatmul.mubr.bf16.gmra.mxu0 %v3819
      %v4606 = vpop.f32.mrf.mxu0
      %v4607 = vadd.f32 0.0, %v4606
      %v4608 = vpop.f32.mrf.mxu0
      %v4609 = vpop.f32.mrf.mxu0
      %v4610 = vadd.f32 0.0, %v4609
      %v4611 = vpop.f32.mrf.mxu0
      %4612 = vmatprep.mubr.bf16.mxu0 %v3829
      %4613 = vmatmul.mubr.bf16.gmra.mxu0 %v3828
      %v4614 = vpop.f32.mrf.mxu0
      %v4615 = vadd.f32 0.0, %v4614
      %v4616 = vpop.f32.mrf.mxu0
      %v4617 = vpop.f32.mrf.mxu0
      %v4618 = vadd.f32 0.0, %v4617
      %v4619 = vpop.f32.mrf.mxu0
      %4620 = vmatprep.mubr.bf16.mxu0 %v3838
      %4621 = vmatmul.mubr.bf16.gmra.mxu0 %v3837
      %v4622 = vpop.f32.mrf.mxu0
      %v4623 = vadd.f32 0.0, %v4622
      %v4624 = vpop.f32.mrf.mxu0
      %v4625 = vpop.f32.mrf.mxu0
      %v4626 = vadd.f32 0.0, %v4625
      %v4627 = vpop.f32.mrf.mxu0
      %4628 = vmatprep.mubr.bf16.mxu0 %v3847
      %4629 = vmatmul.mubr.bf16.gmra.mxu0 %v3846
      %v4630 = vpop.f32.mrf.mxu0
      %v4631 = vadd.f32 0.0, %v4630
      %v4632 = vpop.f32.mrf.mxu0
      %v4633 = vpop.f32.mrf.mxu0
      %v4634 = vadd.f32 0.0, %v4633
      %v4635 = vpop.f32.mrf.mxu0
      %4636 = vmatprep.mubr.bf16.mxu0 %v3856
      %4637 = vmatmul.mubr.bf16.gmra.mxu0 %v3855
      %v4638 = vpop.f32.mrf.mxu0
      %v4639 = vadd.f32 0.0, %v4638
      %v4640 = vpop.f32.mrf.mxu0
      %v4641 = vpop.f32.mrf.mxu0
      %v4642 = vadd.f32 0.0, %v4641
      %v4643 = vpop.f32.mrf.mxu0
      %4644 = vmatprep.mubr.bf16.mxu0 %v3865
      %4645 = vmatmul.mubr.bf16.gmra.mxu0 %v3864
      %v4646 = vpop.f32.mrf.mxu0
      %v4647 = vadd.f32 0.0, %v4646
      %v4648 = vpop.f32.mrf.mxu0
      %v4649 = vpop.f32.mrf.mxu0
      %v4650 = vadd.f32 0.0, %v4649
      %v4651 = vpop.f32.mrf.mxu0
      %4652 = vmatprep.mubr.bf16.mxu0 %v3874
      %4653 = vmatmul.mubr.bf16.gmra.mxu0 %v3873
      %v4654 = vpop.f32.mrf.mxu0
      %v4655 = vadd.f32 0.0, %v4654
      %v4656 = vpop.f32.mrf.mxu0
      %v4657 = vpop.f32.mrf.mxu0
      %v4658 = vadd.f32 0.0, %v4657
      %v4659 = vpop.f32.mrf.mxu0
      %4660 = vmatprep.mubr.bf16.mxu0 %v3883
      %4661 = vmatmul.mubr.bf16.gmra.mxu0 %v3882
      %v4662 = vpop.f32.mrf.mxu0
      %v4663 = vadd.f32 0.0, %v4662
      %v4664 = vpop.f32.mrf.mxu0
      %v4665 = vpop.f32.mrf.mxu0
      %v4666 = vadd.f32 0.0, %v4665
      %v4667 = vpop.f32.mrf.mxu0
      %4668 = vmatprep.mubr.bf16.mxu0 %v3892
      %4669 = vmatmul.mubr.bf16.gmra.mxu0 %v3891
      %v4670 = vpop.f32.mrf.mxu0
      %v4671 = vadd.f32 0.0, %v4670
      %v4672 = vpop.f32.mrf.mxu0
      %v4673 = vpop.f32.mrf.mxu0
      %v4674 = vadd.f32 0.0, %v4673
      %v4675 = vpop.f32.mrf.mxu0
      %4676 = vmatprep.mubr.bf16.mxu0 %v3901
      %4677 = vmatmul.mubr.bf16.gmra.mxu0 %v3900
      %v4678 = vpop.f32.mrf.mxu0
      %v4679 = vadd.f32 0.0, %v4678
      %v4680 = vpop.f32.mrf.mxu0
      %v4681 = vpop.f32.mrf.mxu0
      %v4682 = vadd.f32 0.0, %v4681
      %v4683 = vpop.f32.mrf.mxu0
      %4684 = vmatprep.mubr.bf16.mxu0 %v3910
      %4685 = vmatmul.mubr.bf16.gmra.mxu0 %v3909
      %v4686 = vpop.f32.mrf.mxu0
      %v4687 = vadd.f32 0.0, %v4686
      %v4688 = vpop.f32.mrf.mxu0
      %v4689 = vpop.f32.mrf.mxu0
      %v4690 = vadd.f32 0.0, %v4689
      %v4691 = vpop.f32.mrf.mxu0
      %4692 = vmatprep.mubr.bf16.mxu0 %v3919
      %4693 = vmatmul.mubr.bf16.gmra.mxu0 %v3918
      %v4694 = vpop.f32.mrf.mxu0
      %v4695 = vadd.f32 0.0, %v4694
      %v4696 = vpop.f32.mrf.mxu0
      %v4697 = vpop.f32.mrf.mxu0
      %v4698 = vadd.f32 0.0, %v4697
      %v4699 = vpop.f32.mrf.mxu0
      %4700 = vmatprep.mubr.bf16.mxu0 %v3928
      %4701 = vmatmul.mubr.bf16.gmra.mxu0 %v3927
      %v4702 = vpop.f32.mrf.mxu0
      %v4703 = vadd.f32 0.0, %v4702
      %v4704 = vpop.f32.mrf.mxu0
      %v4705 = vpop.f32.mrf.mxu0
      %v4706 = vadd.f32 0.0, %v4705
      %v4707 = vpop.f32.mrf.mxu0
      %4708 = vmatprep.mubr.bf16.mxu0 %v3937
      %4709 = vmatmul.mubr.bf16.gmra.mxu0 %v3936
      %v4710 = vpop.f32.mrf.mxu0
      %v4711 = vadd.f32 0.0, %v4710
      %v4712 = vpop.f32.mrf.mxu0
      %v4713 = vpop.f32.mrf.mxu0
      %v4714 = vadd.f32 0.0, %v4713
      %v4715 = vpop.f32.mrf.mxu0
      %4716 = vmatprep.mubr.bf16.mxu0 %v3946
      %4717 = vmatmul.mubr.bf16.gmra.mxu0 %v3945
      %v4718 = vpop.f32.mrf.mxu0
      %v4719 = vadd.f32 0.0, %v4718
      %v4720 = vpop.f32.mrf.mxu0
      %v4721 = vpop.f32.mrf.mxu0
      %v4722 = vadd.f32 0.0, %v4721
      %v4723 = vpop.f32.mrf.mxu0
      %4724 = vdwg.mxu0
      %4725 = vmatprep.subr.bf16.mxu0 0
      %4726 = vmatpush1.bf16.msra.mxu0 %v4427
      %4727 = vmatprep.subr.bf16.mxu0 0
      %4728 = vmatpush1.bf16.msra.mxu0 %v4426
      %4729 = vmatprep.subr.bf16.mxu0 0
      %4730 = vmatpush1.bf16.msra.mxu0 %v4425
      %4731 = vmatprep.subr.bf16.mxu0 0
      %4732 = vmatpush1.bf16.msra.mxu0 %v4424
      %4733 = vmatprep.subr.bf16.mxu0 0
      %4734 = vmatpush1.bf16.msra.mxu0 %v4423
      %4735 = vmatprep.subr.bf16.mxu0 0
      %4736 = vmatpush1.bf16.msra.mxu0 %v4422
      %4737 = vmatprep.subr.bf16.mxu0 0
      %4738 = vmatpush1.bf16.msra.mxu0 %v4421
      %4739 = vmatprep.subr.bf16.mxu0 0
      %4740 = vmatpush1.bf16.msra.mxu0 %v4420
      %4741 = vmatprep.subr.bf16.mxu0 0
      %4742 = vmatpush2.bf16.msra.mxu0 %v4435
      %4743 = vmatprep.subr.bf16.mxu0 0
      %4744 = vmatpush2.bf16.msra.mxu0 %v4434
      %4745 = vmatprep.subr.bf16.mxu0 0
      %4746 = vmatpush2.bf16.msra.mxu0 %v4433
      %4747 = vmatprep.subr.bf16.mxu0 0
      %4748 = vmatpush2.bf16.msra.mxu0 %v4432
      %4749 = vmatprep.subr.bf16.mxu0 0
      %4750 = vmatpush2.bf16.msra.mxu0 %v4431
      %4751 = vmatprep.subr.bf16.mxu0 0
      %4752 = vmatpush2.bf16.msra.mxu0 %v4430
      %4753 = vmatprep.subr.bf16.mxu0 0
      %4754 = vmatpush2.bf16.msra.mxu0 %v4429
      %4755 = vmatprep.subr.bf16.mxu0 0
      %4756 = vmatpush2.bf16.msra.mxu0 %v4428
      %4757 = vmatprep.mubr.bf16.mxu0 %v3795
      %4758 = vmatmul.mubr.bf16.gmra.mxu0 %v3794
      %v4759 = vpop.f32.mrf.mxu0
      %v4760 = vadd.f32 %v4583, %v4759
      %v4761 = vpop.f32.mrf.mxu0
      %v4762 = vpop.f32.mrf.mxu0
      %v4763 = vadd.f32 %v4586, %v4762
      %v4764 = vpop.f32.mrf.mxu0
      %4765 = vmatprep.mubr.bf16.mxu0 %v3804
      %4766 = vmatmul.mubr.bf16.gmra.mxu0 %v3803
      %v4767 = vpop.f32.mrf.mxu0
      %v4768 = vadd.f32 %v4591, %v4767
      %v4769 = vpop.f32.mrf.mxu0
      %v4770 = vpop.f32.mrf.mxu0
      %v4771 = vadd.f32 %v4594, %v4770
      %v4772 = vpop.f32.mrf.mxu0
      %4773 = vmatprep.mubr.bf16.mxu0 %v3813
      %4774 = vmatmul.mubr.bf16.gmra.mxu0 %v3812
      %v4775 = vpop.f32.mrf.mxu0
      %v4776 = vadd.f32 %v4599, %v4775
      %v4777 = vpop.f32.mrf.mxu0
      %v4778 = vpop.f32.mrf.mxu0
      %v4779 = vadd.f32 %v4602, %v4778
      %v4780 = vpop.f32.mrf.mxu0
      %4781 = vmatprep.mubr.bf16.mxu0 %v3822
      %4782 = vmatmul.mubr.bf16.gmra.mxu0 %v3821
      %v4783 = vpop.f32.mrf.mxu0
      %v4784 = vadd.f32 %v4607, %v4783
      %v4785 = vpop.f32.mrf.mxu0
      %v4786 = vpop.f32.mrf.mxu0
      %v4787 = vadd.f32 %v4610, %v4786
      %v4788 = vpop.f32.mrf.mxu0
      %4789 = vmatprep.mubr.bf16.mxu0 %v3831
      %4790 = vmatmul.mubr.bf16.gmra.mxu0 %v3830
      %v4791 = vpop.f32.mrf.mxu0
      %v4792 = vadd.f32 %v4615, %v4791
      %v4793 = vpop.f32.mrf.mxu0
      %v4794 = vpop.f32.mrf.mxu0
      %v4795 = vadd.f32 %v4618, %v4794
      %v4796 = vpop.f32.mrf.mxu0
      %4797 = vmatprep.mubr.bf16.mxu0 %v3840
      %4798 = vmatmul.mubr.bf16.gmra.mxu0 %v3839
      %v4799 = vpop.f32.mrf.mxu0
      %v4800 = vadd.f32 %v4623, %v4799
      %v4801 = vpop.f32.mrf.mxu0
      %v4802 = vpop.f32.mrf.mxu0
      %v4803 = vadd.f32 %v4626, %v4802
      %v4804 = vpop.f32.mrf.mxu0
      %4805 = vmatprep.mubr.bf16.mxu0 %v3849
      %4806 = vmatmul.mubr.bf16.gmra.mxu0 %v3848
      %v4807 = vpop.f32.mrf.mxu0
      %v4808 = vadd.f32 %v4631, %v4807
      %v4809 = vpop.f32.mrf.mxu0
      %v4810 = vpop.f32.mrf.mxu0
      %v4811 = vadd.f32 %v4634, %v4810
      %v4812 = vpop.f32.mrf.mxu0
      %4813 = vmatprep.mubr.bf16.mxu0 %v3858
      %4814 = vmatmul.mubr.bf16.gmra.mxu0 %v3857
      %v4815 = vpop.f32.mrf.mxu0
      %v4816 = vadd.f32 %v4639, %v4815
      %v4817 = vpop.f32.mrf.mxu0
      %v4818 = vpop.f32.mrf.mxu0
      %v4819 = vadd.f32 %v4642, %v4818
      %v4820 = vpop.f32.mrf.mxu0
      %4821 = vmatprep.mubr.bf16.mxu0 %v3867
      %4822 = vmatmul.mubr.bf16.gmra.mxu0 %v3866
      %v4823 = vpop.f32.mrf.mxu0
      %v4824 = vadd.f32 %v4647, %v4823
      %v4825 = vpop.f32.mrf.mxu0
      %v4826 = vpop.f32.mrf.mxu0
      %v4827 = vadd.f32 %v4650, %v4826
      %v4828 = vpop.f32.mrf.mxu0
      %4829 = vmatprep.mubr.bf16.mxu0 %v3876
      %4830 = vmatmul.mubr.bf16.gmra.mxu0 %v3875
      %v4831 = vpop.f32.mrf.mxu0
      %v4832 = vadd.f32 %v4655, %v4831
      %v4833 = vpop.f32.mrf.mxu0
      %v4834 = vpop.f32.mrf.mxu0
      %v4835 = vadd.f32 %v4658, %v4834
      %v4836 = vpop.f32.mrf.mxu0
      %4837 = vmatprep.mubr.bf16.mxu0 %v3885
      %4838 = vmatmul.mubr.bf16.gmra.mxu0 %v3884
      %v4839 = vpop.f32.mrf.mxu0
      %v4840 = vadd.f32 %v4663, %v4839
      %v4841 = vpop.f32.mrf.mxu0
      %v4842 = vpop.f32.mrf.mxu0
      %v4843 = vadd.f32 %v4666, %v4842
      %v4844 = vpop.f32.mrf.mxu0
      %4845 = vmatprep.mubr.bf16.mxu0 %v3894
      %4846 = vmatmul.mubr.bf16.gmra.mxu0 %v3893
      %v4847 = vpop.f32.mrf.mxu0
      %v4848 = vadd.f32 %v4671, %v4847
      %v4849 = vpop.f32.mrf.mxu0
      %v4850 = vpop.f32.mrf.mxu0
      %v4851 = vadd.f32 %v4674, %v4850
      %v4852 = vpop.f32.mrf.mxu0
      %4853 = vmatprep.mubr.bf16.mxu0 %v3903
      %4854 = vmatmul.mubr.bf16.gmra.mxu0 %v3902
      %v4855 = vpop.f32.mrf.mxu0
      %v4856 = vadd.f32 %v4679, %v4855
      %v4857 = vpop.f32.mrf.mxu0
      %v4858 = vpop.f32.mrf.mxu0
      %v4859 = vadd.f32 %v4682, %v4858
      %v4860 = vpop.f32.mrf.mxu0
      %4861 = vmatprep.mubr.bf16.mxu0 %v3912
      %4862 = vmatmul.mubr.bf16.gmra.mxu0 %v3911
      %v4863 = vpop.f32.mrf.mxu0
      %v4864 = vadd.f32 %v4687, %v4863
      %v4865 = vpop.f32.mrf.mxu0
      %v4866 = vpop.f32.mrf.mxu0
      %v4867 = vadd.f32 %v4690, %v4866
      %v4868 = vpop.f32.mrf.mxu0
      %4869 = vmatprep.mubr.bf16.mxu0 %v3921
      %4870 = vmatmul.mubr.bf16.gmra.mxu0 %v3920
      %v4871 = vpop.f32.mrf.mxu0
      %v4872 = vadd.f32 %v4695, %v4871
      %v4873 = vpop.f32.mrf.mxu0
      %v4874 = vpop.f32.mrf.mxu0
      %v4875 = vadd.f32 %v4698, %v4874
      %v4876 = vpop.f32.mrf.mxu0
      %4877 = vmatprep.mubr.bf16.mxu0 %v3930
      %4878 = vmatmul.mubr.bf16.gmra.mxu0 %v3929
      %v4879 = vpop.f32.mrf.mxu0
      %v4880 = vadd.f32 %v4703, %v4879
      %v4881 = vpop.f32.mrf.mxu0
      %v4882 = vpop.f32.mrf.mxu0
      %v4883 = vadd.f32 %v4706, %v4882
      %v4884 = vpop.f32.mrf.mxu0
      %4885 = vmatprep.mubr.bf16.mxu0 %v3939
      %4886 = vmatmul.mubr.bf16.gmra.mxu0 %v3938
      %v4887 = vpop.f32.mrf.mxu0
      %v4888 = vadd.f32 %v4711, %v4887
      %v4889 = vpop.f32.mrf.mxu0
      %v4890 = vpop.f32.mrf.mxu0
      %v4891 = vadd.f32 %v4714, %v4890
      %v4892 = vpop.f32.mrf.mxu0
      %4893 = vmatprep.mubr.bf16.mxu0 %v3948
      %4894 = vmatmul.mubr.bf16.gmra.mxu0 %v3947
      %v4895 = vpop.f32.mrf.mxu0
      %v4896 = vadd.f32 %v4719, %v4895
      %v4897 = vpop.f32.mrf.mxu0
      %v4898 = vpop.f32.mrf.mxu0
      %v4899 = vadd.f32 %v4722, %v4898
      %v4900 = vpop.f32.mrf.mxu0
      %4901 = vdwg.mxu0
      %4902 = vmatprep.subr.bf16.mxu0 0
      %4903 = vmatpush1.bf16.msra.mxu0 %v4443
      %4904 = vmatprep.subr.bf16.mxu0 0
      %4905 = vmatpush1.bf16.msra.mxu0 %v4442
      %4906 = vmatprep.subr.bf16.mxu0 0
      %4907 = vmatpush1.bf16.msra.mxu0 %v4441
      %4908 = vmatprep.subr.bf16.mxu0 0
      %4909 = vmatpush1.bf16.msra.mxu0 %v4440
      %4910 = vmatprep.subr.bf16.mxu0 0
      %4911 = vmatpush1.bf16.msra.mxu0 %v4439
      %4912 = vmatprep.subr.bf16.mxu0 0
      %4913 = vmatpush1.bf16.msra.mxu0 %v4438
      %4914 = vmatprep.subr.bf16.mxu0 0
      %4915 = vmatpush1.bf16.msra.mxu0 %v4437
      %4916 = vmatprep.subr.bf16.mxu0 0
      %4917 = vmatpush1.bf16.msra.mxu0 %v4436
      %4918 = vmatprep.subr.bf16.mxu0 0
      %4919 = vmatpush2.bf16.msra.mxu0 %v4451
      %4920 = vmatprep.subr.bf16.mxu0 0
      %4921 = vmatpush2.bf16.msra.mxu0 %v4450
      %4922 = vmatprep.subr.bf16.mxu0 0
      %4923 = vmatpush2.bf16.msra.mxu0 %v4449
      %4924 = vmatprep.subr.bf16.mxu0 0
      %4925 = vmatpush2.bf16.msra.mxu0 %v4448
      %4926 = vmatprep.subr.bf16.mxu0 0
      %4927 = vmatpush2.bf16.msra.mxu0 %v4447
      %4928 = vmatprep.subr.bf16.mxu0 0
      %4929 = vmatpush2.bf16.msra.mxu0 %v4446
      %4930 = vmatprep.subr.bf16.mxu0 0
      %4931 = vmatpush2.bf16.msra.mxu0 %v4445
      %4932 = vmatprep.subr.bf16.mxu0 0
      %4933 = vmatpush2.bf16.msra.mxu0 %v4444
      %4934 = vmatprep.mubr.bf16.mxu0 %v3797
      %4935 = vmatmul.mubr.bf16.gmra.mxu0 %v3796
      %v4936 = vpop.f32.mrf.mxu0
      %v4937 = vadd.f32 %v4760, %v4936
      %v4938 = vpop.f32.mrf.mxu0
      %v4939 = vpop.f32.mrf.mxu0
      %v4940 = vadd.f32 %v4763, %v4939
      %v4941 = vpop.f32.mrf.mxu0
      %4942 = vmatprep.mubr.bf16.mxu0 %v3806
      %4943 = vmatmul.mubr.bf16.gmra.mxu0 %v3805
      %v4944 = vpop.f32.mrf.mxu0
      %v4945 = vadd.f32 %v4768, %v4944
      %v4946 = vpop.f32.mrf.mxu0
      %v4947 = vpop.f32.mrf.mxu0
      %v4948 = vadd.f32 %v4771, %v4947
      %v4949 = vpop.f32.mrf.mxu0
      %4950 = vmatprep.mubr.bf16.mxu0 %v3815
      %4951 = vmatmul.mubr.bf16.gmra.mxu0 %v3814
      %v4952 = vpop.f32.mrf.mxu0
      %v4953 = vadd.f32 %v4776, %v4952
      %v4954 = vpop.f32.mrf.mxu0
      %v4955 = vpop.f32.mrf.mxu0
      %v4956 = vadd.f32 %v4779, %v4955
      %v4957 = vpop.f32.mrf.mxu0
      %4958 = vmatprep.mubr.bf16.mxu0 %v3824
      %4959 = vmatmul.mubr.bf16.gmra.mxu0 %v3823
      %v4960 = vpop.f32.mrf.mxu0
      %v4961 = vadd.f32 %v4784, %v4960
      %v4962 = vpop.f32.mrf.mxu0
      %v4963 = vpop.f32.mrf.mxu0
      %v4964 = vadd.f32 %v4787, %v4963
      %v4965 = vpop.f32.mrf.mxu0
      %4966 = vmatprep.mubr.bf16.mxu0 %v3833
      %4967 = vmatmul.mubr.bf16.gmra.mxu0 %v3832
      %v4968 = vpop.f32.mrf.mxu0
      %v4969 = vadd.f32 %v4792, %v4968
      %v4970 = vpop.f32.mrf.mxu0
      %v4971 = vpop.f32.mrf.mxu0
      %v4972 = vadd.f32 %v4795, %v4971
      %v4973 = vpop.f32.mrf.mxu0
      %4974 = vmatprep.mubr.bf16.mxu0 %v3842
      %4975 = vmatmul.mubr.bf16.gmra.mxu0 %v3841
      %v4976 = vpop.f32.mrf.mxu0
      %v4977 = vadd.f32 %v4800, %v4976
      %v4978 = vpop.f32.mrf.mxu0
      %v4979 = vpop.f32.mrf.mxu0
      %v4980 = vadd.f32 %v4803, %v4979
      %v4981 = vpop.f32.mrf.mxu0
      %4982 = vmatprep.mubr.bf16.mxu0 %v3851
      %4983 = vmatmul.mubr.bf16.gmra.mxu0 %v3850
      %v4984 = vpop.f32.mrf.mxu0
      %v4985 = vadd.f32 %v4808, %v4984
      %v4986 = vpop.f32.mrf.mxu0
      %v4987 = vpop.f32.mrf.mxu0
      %v4988 = vadd.f32 %v4811, %v4987
      %v4989 = vpop.f32.mrf.mxu0
      %4990 = vmatprep.mubr.bf16.mxu0 %v3860
      %4991 = vmatmul.mubr.bf16.gmra.mxu0 %v3859
      %v4992 = vpop.f32.mrf.mxu0
      %v4993 = vadd.f32 %v4816, %v4992
      %v4994 = vpop.f32.mrf.mxu0
      %v4995 = vpop.f32.mrf.mxu0
      %v4996 = vadd.f32 %v4819, %v4995
      %v4997 = vpop.f32.mrf.mxu0
      %4998 = vmatprep.mubr.bf16.mxu0 %v3869
      %4999 = vmatmul.mubr.bf16.gmra.mxu0 %v3868
      %v5000 = vpop.f32.mrf.mxu0
      %v5001 = vadd.f32 %v4824, %v5000
      %v5002 = vpop.f32.mrf.mxu0
      %v5003 = vpop.f32.mrf.mxu0
      %v5004 = vadd.f32 %v4827, %v5003
      %v5005 = vpop.f32.mrf.mxu0
      %5006 = vmatprep.mubr.bf16.mxu0 %v3878
      %5007 = vmatmul.mubr.bf16.gmra.mxu0 %v3877
      %v5008 = vpop.f32.mrf.mxu0
      %v5009 = vadd.f32 %v4832, %v5008
      %v5010 = vpop.f32.mrf.mxu0
      %v5011 = vpop.f32.mrf.mxu0
      %v5012 = vadd.f32 %v4835, %v5011
      %v5013 = vpop.f32.mrf.mxu0
      %5014 = vmatprep.mubr.bf16.mxu0 %v3887
      %5015 = vmatmul.mubr.bf16.gmra.mxu0 %v3886
      %v5016 = vpop.f32.mrf.mxu0
      %v5017 = vadd.f32 %v4840, %v5016
      %v5018 = vpop.f32.mrf.mxu0
      %v5019 = vpop.f32.mrf.mxu0
      %v5020 = vadd.f32 %v4843, %v5019
      %v5021 = vpop.f32.mrf.mxu0
      %5022 = vmatprep.mubr.bf16.mxu0 %v3896
      %5023 = vmatmul.mubr.bf16.gmra.mxu0 %v3895
      %v5024 = vpop.f32.mrf.mxu0
      %v5025 = vadd.f32 %v4848, %v5024
      %v5026 = vpop.f32.mrf.mxu0
      %v5027 = vpop.f32.mrf.mxu0
      %v5028 = vadd.f32 %v4851, %v5027
      %v5029 = vpop.f32.mrf.mxu0
      %5030 = vmatprep.mubr.bf16.mxu0 %v3905
      %5031 = vmatmul.mubr.bf16.gmra.mxu0 %v3904
      %v5032 = vpop.f32.mrf.mxu0
      %v5033 = vadd.f32 %v4856, %v5032
      %v5034 = vpop.f32.mrf.mxu0
      %v5035 = vpop.f32.mrf.mxu0
      %v5036 = vadd.f32 %v4859, %v5035
      %v5037 = vpop.f32.mrf.mxu0
      %5038 = vmatprep.mubr.bf16.mxu0 %v3914
      %5039 = vmatmul.mubr.bf16.gmra.mxu0 %v3913
      %v5040 = vpop.f32.mrf.mxu0
      %v5041 = vadd.f32 %v4864, %v5040
      %v5042 = vpop.f32.mrf.mxu0
      %v5043 = vpop.f32.mrf.mxu0
      %v5044 = vadd.f32 %v4867, %v5043
      %v5045 = vpop.f32.mrf.mxu0
      %5046 = vmatprep.mubr.bf16.mxu0 %v3923
      %5047 = vmatmul.mubr.bf16.gmra.mxu0 %v3922
      %v5048 = vpop.f32.mrf.mxu0
      %v5049 = vadd.f32 %v4872, %v5048
      %v5050 = vpop.f32.mrf.mxu0
      %v5051 = vpop.f32.mrf.mxu0
      %v5052 = vadd.f32 %v4875, %v5051
      %v5053 = vpop.f32.mrf.mxu0
      %5054 = vmatprep.mubr.bf16.mxu0 %v3932
      %5055 = vmatmul.mubr.bf16.gmra.mxu0 %v3931
      %v5056 = vpop.f32.mrf.mxu0
      %v5057 = vadd.f32 %v4880, %v5056
      %v5058 = vpop.f32.mrf.mxu0
      %v5059 = vpop.f32.mrf.mxu0
      %v5060 = vadd.f32 %v4883, %v5059
      %v5061 = vpop.f32.mrf.mxu0
      %5062 = vmatprep.mubr.bf16.mxu0 %v3941
      %5063 = vmatmul.mubr.bf16.gmra.mxu0 %v3940
      %v5064 = vpop.f32.mrf.mxu0
      %v5065 = vadd.f32 %v4888, %v5064
      %v5066 = vpop.f32.mrf.mxu0
      %v5067 = vpop.f32.mrf.mxu0
      %v5068 = vadd.f32 %v4891, %v5067
      %v5069 = vpop.f32.mrf.mxu0
      %5070 = vmatprep.mubr.bf16.mxu0 %v3950
      %5071 = vmatmul.mubr.bf16.gmra.mxu0 %v3949
      %v5072 = vpop.f32.mrf.mxu0
      %v5073 = vadd.f32 %v4896, %v5072
      %v5074 = vpop.f32.mrf.mxu0
      %v5075 = vpop.f32.mrf.mxu0
      %v5076 = vadd.f32 %v4899, %v5075
      %v5077 = vpop.f32.mrf.mxu0
      %5078 = vdwg.mxu0
      %5079 = vmatprep.subr.bf16.mxu0 0
      %5080 = vmatpush1.bf16.msra.mxu0 %v4459
      %5081 = vmatprep.subr.bf16.mxu0 0
      %5082 = vmatpush1.bf16.msra.mxu0 %v4458
      %5083 = vmatprep.subr.bf16.mxu0 0
      %5084 = vmatpush1.bf16.msra.mxu0 %v4457
      %5085 = vmatprep.subr.bf16.mxu0 0
      %5086 = vmatpush1.bf16.msra.mxu0 %v4456
      %5087 = vmatprep.subr.bf16.mxu0 0
      %5088 = vmatpush1.bf16.msra.mxu0 %v4455
      %5089 = vmatprep.subr.bf16.mxu0 0
      %5090 = vmatpush1.bf16.msra.mxu0 %v4454
      %5091 = vmatprep.subr.bf16.mxu0 0
      %5092 = vmatpush1.bf16.msra.mxu0 %v4453
      %5093 = vmatprep.subr.bf16.mxu0 0
      %5094 = vmatpush1.bf16.msra.mxu0 %v4452
      %5095 = vmatprep.subr.bf16.mxu0 0
      %5096 = vmatpush2.bf16.msra.mxu0 %v4467
      %5097 = vmatprep.subr.bf16.mxu0 0
      %5098 = vmatpush2.bf16.msra.mxu0 %v4466
      %5099 = vmatprep.subr.bf16.mxu0 0
      %5100 = vmatpush2.bf16.msra.mxu0 %v4465
      %5101 = vmatprep.subr.bf16.mxu0 0
      %5102 = vmatpush2.bf16.msra.mxu0 %v4464
      %5103 = vmatprep.subr.bf16.mxu0 0
      %5104 = vmatpush2.bf16.msra.mxu0 %v4463
      %5105 = vmatprep.subr.bf16.mxu0 0
      %5106 = vmatpush2.bf16.msra.mxu0 %v4462
      %5107 = vmatprep.subr.bf16.mxu0 0
      %5108 = vmatpush2.bf16.msra.mxu0 %v4461
      %5109 = vmatprep.subr.bf16.mxu0 0
      %5110 = vmatpush2.bf16.msra.mxu0 %v4460
      %5111 = vmatprep.mubr.bf16.mxu0 %v3799
      %5112 = vmatmul.mubr.bf16.gmra.mxu0 %v3798
      %v5113 = vpop.f32.mrf.mxu0
      %v5114 = vadd.f32 %v4937, %v5113
      %v5115 = vpop.f32.mrf.mxu0
      %v5116 = vpop.f32.mrf.mxu0
      %v5117 = vadd.f32 %v4940, %v5116
      %v5118 = vpop.f32.mrf.mxu0
      %5119 = vmatprep.mubr.bf16.mxu0 %v3808
      %5120 = vmatmul.mubr.bf16.gmra.mxu0 %v3807
      %v5121 = vpop.f32.mrf.mxu0
      %v5122 = vadd.f32 %v4945, %v5121
      %v5123 = vpop.f32.mrf.mxu0
      %v5124 = vpop.f32.mrf.mxu0
      %v5125 = vadd.f32 %v4948, %v5124
      %v5126 = vpop.f32.mrf.mxu0
      %5127 = vmatprep.mubr.bf16.mxu0 %v3817
      %5128 = vmatmul.mubr.bf16.gmra.mxu0 %v3816
      %v5129 = vpop.f32.mrf.mxu0
      %v5130 = vadd.f32 %v4953, %v5129
      %v5131 = vpop.f32.mrf.mxu0
      %v5132 = vpop.f32.mrf.mxu0
      %v5133 = vadd.f32 %v4956, %v5132
      %v5134 = vpop.f32.mrf.mxu0
      %5135 = vmatprep.mubr.bf16.mxu0 %v3826
      %5136 = vmatmul.mubr.bf16.gmra.mxu0 %v3825
      %v5137 = vpop.f32.mrf.mxu0
      %v5138 = vadd.f32 %v4961, %v5137
      %v5139 = vpop.f32.mrf.mxu0
      %v5140 = vpop.f32.mrf.mxu0
      %v5141 = vadd.f32 %v4964, %v5140
      %v5142 = vpop.f32.mrf.mxu0
      %5143 = vmatprep.mubr.bf16.mxu0 %v3835
      %5144 = vmatmul.mubr.bf16.gmra.mxu0 %v3834
      %v5145 = vpop.f32.mrf.mxu0
      %v5146 = vadd.f32 %v4969, %v5145
      %v5147 = vpop.f32.mrf.mxu0
      %v5148 = vpop.f32.mrf.mxu0
      %v5149 = vadd.f32 %v4972, %v5148
      %v5150 = vpop.f32.mrf.mxu0
      %5151 = vmatprep.mubr.bf16.mxu0 %v3844
      %5152 = vmatmul.mubr.bf16.gmra.mxu0 %v3843
      %v5153 = vpop.f32.mrf.mxu0
      %v5154 = vadd.f32 %v4977, %v5153
      %v5155 = vpop.f32.mrf.mxu0
      %v5156 = vpop.f32.mrf.mxu0
      %v5157 = vadd.f32 %v4980, %v5156
      %v5158 = vpop.f32.mrf.mxu0
      %5159 = vmatprep.mubr.bf16.mxu0 %v3853
      %5160 = vmatmul.mubr.bf16.gmra.mxu0 %v3852
      %v5161 = vpop.f32.mrf.mxu0
      %v5162 = vadd.f32 %v4985, %v5161
      %v5163 = vpop.f32.mrf.mxu0
      %v5164 = vpop.f32.mrf.mxu0
      %v5165 = vadd.f32 %v4988, %v5164
      %v5166 = vpop.f32.mrf.mxu0
      %5167 = vmatprep.mubr.bf16.mxu0 %v3862
      %5168 = vmatmul.mubr.bf16.gmra.mxu0 %v3861
      %v5169 = vpop.f32.mrf.mxu0
      %v5170 = vadd.f32 %v4993, %v5169
      %v5171 = vpop.f32.mrf.mxu0
      %v5172 = vpop.f32.mrf.mxu0
      %v5173 = vadd.f32 %v4996, %v5172
      %v5174 = vpop.f32.mrf.mxu0
      %5175 = vmatprep.mubr.bf16.mxu0 %v3871
      %5176 = vmatmul.mubr.bf16.gmra.mxu0 %v3870
      %v5177 = vpop.f32.mrf.mxu0
      %v5178 = vadd.f32 %v5001, %v5177
      %v5179 = vpop.f32.mrf.mxu0
      %v5180 = vpop.f32.mrf.mxu0
      %v5181 = vadd.f32 %v5004, %v5180
      %v5182 = vpop.f32.mrf.mxu0
      %5183 = vmatprep.mubr.bf16.mxu0 %v3880
      %5184 = vmatmul.mubr.bf16.gmra.mxu0 %v3879
      %v5185 = vpop.f32.mrf.mxu0
      %v5186 = vadd.f32 %v5009, %v5185
      %v5187 = vpop.f32.mrf.mxu0
      %v5188 = vpop.f32.mrf.mxu0
      %v5189 = vadd.f32 %v5012, %v5188
      %v5190 = vpop.f32.mrf.mxu0
      %5191 = vmatprep.mubr.bf16.mxu0 %v3889
      %5192 = vmatmul.mubr.bf16.gmra.mxu0 %v3888
      %v5193 = vpop.f32.mrf.mxu0
      %v5194 = vadd.f32 %v5017, %v5193
      %v5195 = vpop.f32.mrf.mxu0
      %v5196 = vpop.f32.mrf.mxu0
      %v5197 = vadd.f32 %v5020, %v5196
      %v5198 = vpop.f32.mrf.mxu0
      %5199 = vmatprep.mubr.bf16.mxu0 %v3898
      %5200 = vmatmul.mubr.bf16.gmra.mxu0 %v3897
      %v5201 = vpop.f32.mrf.mxu0
      %v5202 = vadd.f32 %v5025, %v5201
      %v5203 = vpop.f32.mrf.mxu0
      %v5204 = vpop.f32.mrf.mxu0
      %v5205 = vadd.f32 %v5028, %v5204
      %v5206 = vpop.f32.mrf.mxu0
      %5207 = vmatprep.mubr.bf16.mxu0 %v3907
      %5208 = vmatmul.mubr.bf16.gmra.mxu0 %v3906
      %v5209 = vpop.f32.mrf.mxu0
      %v5210 = vadd.f32 %v5033, %v5209
      %v5211 = vpop.f32.mrf.mxu0
      %v5212 = vpop.f32.mrf.mxu0
      %v5213 = vadd.f32 %v5036, %v5212
      %v5214 = vpop.f32.mrf.mxu0
      %5215 = vmatprep.mubr.bf16.mxu0 %v3916
      %5216 = vmatmul.mubr.bf16.gmra.mxu0 %v3915
      %v5217 = vpop.f32.mrf.mxu0
      %v5218 = vadd.f32 %v5041, %v5217
      %v5219 = vpop.f32.mrf.mxu0
      %v5220 = vpop.f32.mrf.mxu0
      %v5221 = vadd.f32 %v5044, %v5220
      %v5222 = vpop.f32.mrf.mxu0
      %5223 = vmatprep.mubr.bf16.mxu0 %v3925
      %5224 = vmatmul.mubr.bf16.gmra.mxu0 %v3924
      %v5225 = vpop.f32.mrf.mxu0
      %v5226 = vadd.f32 %v5049, %v5225
      %v5227 = vpop.f32.mrf.mxu0
      %v5228 = vpop.f32.mrf.mxu0
      %v5229 = vadd.f32 %v5052, %v5228
      %v5230 = vpop.f32.mrf.mxu0
      %5231 = vmatprep.mubr.bf16.mxu0 %v3934
      %5232 = vmatmul.mubr.bf16.gmra.mxu0 %v3933
      %v5233 = vpop.f32.mrf.mxu0
      %v5234 = vadd.f32 %v5057, %v5233
      %v5235 = vpop.f32.mrf.mxu0
      %v5236 = vpop.f32.mrf.mxu0
      %v5237 = vadd.f32 %v5060, %v5236
      %v5238 = vpop.f32.mrf.mxu0
      %5239 = vmatprep.mubr.bf16.mxu0 %v3943
      %5240 = vmatmul.mubr.bf16.gmra.mxu0 %v3942
      %v5241 = vpop.f32.mrf.mxu0
      %v5242 = vadd.f32 %v5065, %v5241
      %v5243 = vpop.f32.mrf.mxu0
      %v5244 = vpop.f32.mrf.mxu0
      %v5245 = vadd.f32 %v5068, %v5244
      %v5246 = vpop.f32.mrf.mxu0
      %5247 = vmatprep.mubr.bf16.mxu0 %v3952
      %5248 = vmatmul.mubr.bf16.gmra.mxu0 %v3951
      %v5249 = vpop.f32.mrf.mxu0
      %v5250 = vadd.f32 %v5073, %v5249
      %v5251 = vpop.f32.mrf.mxu0
      %v5252 = vpop.f32.mrf.mxu0
      %v5253 = vadd.f32 %v5076, %v5252
      %v5254 = vpop.f32.mrf.mxu0
      %5255 = vdwg.mxu0
      %5256 = vmatprep.subr.bf16.mxu0 0
      %5257 = vmatpush1.bf16.msra.mxu0 %v4475
      %5258 = vmatprep.subr.bf16.mxu0 0
      %5259 = vmatpush1.bf16.msra.mxu0 %v4474
      %5260 = vmatprep.subr.bf16.mxu0 0
      %5261 = vmatpush1.bf16.msra.mxu0 %v4473
      %5262 = vmatprep.subr.bf16.mxu0 0
      %5263 = vmatpush1.bf16.msra.mxu0 %v4472
      %5264 = vmatprep.subr.bf16.mxu0 0
      %5265 = vmatpush1.bf16.msra.mxu0 %v4471
      %5266 = vmatprep.subr.bf16.mxu0 0
      %5267 = vmatpush1.bf16.msra.mxu0 %v4470
      %5268 = vmatprep.subr.bf16.mxu0 0
      %5269 = vmatpush1.bf16.msra.mxu0 %v4469
      %5270 = vmatprep.subr.bf16.mxu0 0
      %5271 = vmatpush1.bf16.msra.mxu0 %v4468
      %5272 = vmatprep.subr.bf16.mxu0 0
      %5273 = vmatpush2.bf16.msra.mxu0 0
      %5274 = vmatprep.subr.bf16.mxu0 0
      %5275 = vmatpush2.bf16.msra.mxu0 0
      %5276 = vmatprep.subr.bf16.mxu0 0
      %5277 = vmatpush2.bf16.msra.mxu0 0
      %5278 = vmatprep.subr.bf16.mxu0 0
      %5279 = vmatpush2.bf16.msra.mxu0 0
      %5280 = vmatprep.subr.bf16.mxu0 0
      %5281 = vmatpush2.bf16.msra.mxu0 0
      %5282 = vmatprep.subr.bf16.mxu0 0
      %5283 = vmatpush2.bf16.msra.mxu0 0
      %5284 = vmatprep.subr.bf16.mxu0 0
      %5285 = vmatpush2.bf16.msra.mxu0 0
      %5286 = vmatprep.subr.bf16.mxu0 0
      %5287 = vmatpush2.bf16.msra.mxu0 0
      %5288 = vmatprep.mubr.bf16.mxu0 0
      %5289 = vmatmul.mubr.bf16.gmra.mxu0 %v3800
      %v5290 = vpop.f32.mrf.mxu0
      %v5291 = vadd.f32 %v5114, %v5290
      %v5292 = vpop.f32.mrf.mxu0
      %v5293 = vpop.f32.mrf.mxu0
      %v5294 = vadd.f32 %v5117, %v5293
      %v5295 = vpop.f32.mrf.mxu0
      %5296 = vmatprep.mubr.bf16.mxu0 0
      %5297 = vmatmul.mubr.bf16.gmra.mxu0 %v3809
      %v5298 = vpop.f32.mrf.mxu0
      %v5299 = vadd.f32 %v5122, %v5298
      %v5300 = vpop.f32.mrf.mxu0
      %v5301 = vpop.f32.mrf.mxu0
      %v5302 = vadd.f32 %v5125, %v5301
      %v5303 = vpop.f32.mrf.mxu0
      %5304 = vmatprep.mubr.bf16.mxu0 0
      %5305 = vmatmul.mubr.bf16.gmra.mxu0 %v3818
      %v5306 = vpop.f32.mrf.mxu0
      %v5307 = vadd.f32 %v5130, %v5306
      %v5308 = vpop.f32.mrf.mxu0
      %v5309 = vpop.f32.mrf.mxu0
      %v5310 = vadd.f32 %v5133, %v5309
      %v5311 = vpop.f32.mrf.mxu0
      %5312 = vmatprep.mubr.bf16.mxu0 0
      %5313 = vmatmul.mubr.bf16.gmra.mxu0 %v3827
      %v5314 = vpop.f32.mrf.mxu0
      %v5315 = vadd.f32 %v5138, %v5314
      %v5316 = vpop.f32.mrf.mxu0
      %v5317 = vpop.f32.mrf.mxu0
      %v5318 = vadd.f32 %v5141, %v5317
      %v5319 = vpop.f32.mrf.mxu0
      %5320 = vmatprep.mubr.bf16.mxu0 0
      %5321 = vmatmul.mubr.bf16.gmra.mxu0 %v3836
      %v5322 = vpop.f32.mrf.mxu0
      %v5323 = vadd.f32 %v5146, %v5322
      %v5324 = vpop.f32.mrf.mxu0
      %v5325 = vpop.f32.mrf.mxu0
      %v5326 = vadd.f32 %v5149, %v5325
      %v5327 = vpop.f32.mrf.mxu0
      %5328 = vmatprep.mubr.bf16.mxu0 0
      %5329 = vmatmul.mubr.bf16.gmra.mxu0 %v3845
      %v5330 = vpop.f32.mrf.mxu0
      %v5331 = vadd.f32 %v5154, %v5330
      %v5332 = vpop.f32.mrf.mxu0
      %v5333 = vpop.f32.mrf.mxu0
      %v5334 = vadd.f32 %v5157, %v5333
      %v5335 = vpop.f32.mrf.mxu0
      %5336 = vmatprep.mubr.bf16.mxu0 0
      %5337 = vmatmul.mubr.bf16.gmra.mxu0 %v3854
      %v5338 = vpop.f32.mrf.mxu0
      %v5339 = vadd.f32 %v5162, %v5338
      %v5340 = vpop.f32.mrf.mxu0
      %v5341 = vpop.f32.mrf.mxu0
      %v5342 = vadd.f32 %v5165, %v5341
      %v5343 = vpop.f32.mrf.mxu0
      %5344 = vmatprep.mubr.bf16.mxu0 0
      %5345 = vmatmul.mubr.bf16.gmra.mxu0 %v3863
      %v5346 = vpop.f32.mrf.mxu0
      %v5347 = vadd.f32 %v5170, %v5346
      %v5348 = vpop.f32.mrf.mxu0
      %v5349 = vpop.f32.mrf.mxu0
      %v5350 = vadd.f32 %v5173, %v5349
      %v5351 = vpop.f32.mrf.mxu0
      %5352 = vmatprep.mubr.bf16.mxu0 0
      %5353 = vmatmul.mubr.bf16.gmra.mxu0 %v3872
      %v5354 = vpop.f32.mrf.mxu0
      %v5355 = vadd.f32 %v5178, %v5354
      %v5356 = vpop.f32.mrf.mxu0
      %v5357 = vpop.f32.mrf.mxu0
      %v5358 = vadd.f32 %v5181, %v5357
      %v5359 = vpop.f32.mrf.mxu0
      %5360 = vmatprep.mubr.bf16.mxu0 0
      %5361 = vmatmul.mubr.bf16.gmra.mxu0 %v3881
      %v5362 = vpop.f32.mrf.mxu0
      %v5363 = vadd.f32 %v5186, %v5362
      %v5364 = vpop.f32.mrf.mxu0
      %v5365 = vpop.f32.mrf.mxu0
      %v5366 = vadd.f32 %v5189, %v5365
      %v5367 = vpop.f32.mrf.mxu0
      %5368 = vmatprep.mubr.bf16.mxu0 0
      %5369 = vmatmul.mubr.bf16.gmra.mxu0 %v3890
      %v5370 = vpop.f32.mrf.mxu0
      %v5371 = vadd.f32 %v5194, %v5370
      %v5372 = vpop.f32.mrf.mxu0
      %v5373 = vpop.f32.mrf.mxu0
      %v5374 = vadd.f32 %v5197, %v5373
      %v5375 = vpop.f32.mrf.mxu0
      %5376 = vmatprep.mubr.bf16.mxu0 0
      %5377 = vmatmul.mubr.bf16.gmra.mxu0 %v3899
      %v5378 = vpop.f32.mrf.mxu0
      %v5379 = vadd.f32 %v5202, %v5378
      %v5380 = vpop.f32.mrf.mxu0
      %v5381 = vpop.f32.mrf.mxu0
      %v5382 = vadd.f32 %v5205, %v5381
      %v5383 = vpop.f32.mrf.mxu0
      %5384 = vmatprep.mubr.bf16.mxu0 0
      %5385 = vmatmul.mubr.bf16.gmra.mxu0 %v3908
      %v5386 = vpop.f32.mrf.mxu0
      %v5387 = vadd.f32 %v5210, %v5386
      %v5388 = vpop.f32.mrf.mxu0
      %v5389 = vpop.f32.mrf.mxu0
      %v5390 = vadd.f32 %v5213, %v5389
      %v5391 = vpop.f32.mrf.mxu0
      %5392 = vmatprep.mubr.bf16.mxu0 0
      %5393 = vmatmul.mubr.bf16.gmra.mxu0 %v3917
      %v5394 = vpop.f32.mrf.mxu0
      %v5395 = vadd.f32 %v5218, %v5394
      %v5396 = vpop.f32.mrf.mxu0
      %v5397 = vpop.f32.mrf.mxu0
      %v5398 = vadd.f32 %v5221, %v5397
      %v5399 = vpop.f32.mrf.mxu0
      %5400 = vmatprep.mubr.bf16.mxu0 0
      %5401 = vmatmul.mubr.bf16.gmra.mxu0 %v3926
      %v5402 = vpop.f32.mrf.mxu0
      %v5403 = vadd.f32 %v5226, %v5402
      %v5404 = vpop.f32.mrf.mxu0
      %v5405 = vpop.f32.mrf.mxu0
      %v5406 = vadd.f32 %v5229, %v5405
      %v5407 = vpop.f32.mrf.mxu0
      %5408 = vmatprep.mubr.bf16.mxu0 0
      %5409 = vmatmul.mubr.bf16.gmra.mxu0 %v3935
      %v5410 = vpop.f32.mrf.mxu0
      %v5411 = vadd.f32 %v5234, %v5410
      %v5412 = vpop.f32.mrf.mxu0
      %v5413 = vpop.f32.mrf.mxu0
      %v5414 = vadd.f32 %v5237, %v5413
      %v5415 = vpop.f32.mrf.mxu0
      %5416 = vmatprep.mubr.bf16.mxu0 0
      %5417 = vmatmul.mubr.bf16.gmra.mxu0 %v3944
      %v5418 = vpop.f32.mrf.mxu0
      %v5419 = vadd.f32 %v5242, %v5418
      %v5420 = vpop.f32.mrf.mxu0
      %v5421 = vpop.f32.mrf.mxu0
      %v5422 = vadd.f32 %v5245, %v5421
      %v5423 = vpop.f32.mrf.mxu0
      %5424 = vmatprep.mubr.bf16.mxu0 0
      %5425 = vmatmul.mubr.bf16.gmra.mxu0 %v3953
      %v5426 = vpop.f32.mrf.mxu0
      %v5427 = vadd.f32 %v5250, %v5426
      %v5428 = vpop.f32.mrf.mxu0
      %v5429 = vpop.f32.mrf.mxu0
      %v5430 = vadd.f32 %v5253, %v5429
      %v5431 = vpop.f32.mrf.mxu0
      %5432 = vdwg.mxu0
      %v5433 = vld [vmem:[%s2] sm:$0x1]
      %v5434 = vlaneseq
      %v5435 = vshrl.u32 %v5434, 7
      %v5436 = vsub.s32 0, %v5435
      %v5437 = vrot.slane %v5433, %v5436
      %v5438 = vmul.f32 %v5291, %v5437
      %v5439 = vmul.f32 %v5294, %v5437
      %v5440 = vmul.f32 %v5299, %v5437
      %v5441 = vmul.f32 %v5302, %v5437
      %v5442 = vmul.f32 %v5307, %v5437
      %v5443 = vmul.f32 %v5310, %v5437
      %v5444 = vmul.f32 %v5315, %v5437
      %v5445 = vmul.f32 %v5318, %v5437
      %v5446 = vmul.f32 %v5323, %v5437
      %v5447 = vmul.f32 %v5326, %v5437
      %v5448 = vmul.f32 %v5331, %v5437
      %v5449 = vmul.f32 %v5334, %v5437
      %v5450 = vmul.f32 %v5339, %v5437
      %v5451 = vmul.f32 %v5342, %v5437
      %v5452 = vmul.f32 %v5347, %v5437
      %v5453 = vmul.f32 %v5350, %v5437
      %v5454 = vmul.f32 %v5355, %v5437
      %v5455 = vmul.f32 %v5358, %v5437
      %v5456 = vmul.f32 %v5363, %v5437
      %v5457 = vmul.f32 %v5366, %v5437
      %v5458 = vmul.f32 %v5371, %v5437
      %v5459 = vmul.f32 %v5374, %v5437
      %v5460 = vmul.f32 %v5379, %v5437
      %v5461 = vmul.f32 %v5382, %v5437
      %v5462 = vmul.f32 %v5387, %v5437
      %v5463 = vmul.f32 %v5390, %v5437
      %v5464 = vmul.f32 %v5395, %v5437
      %v5465 = vmul.f32 %v5398, %v5437
      %v5466 = vmul.f32 %v5403, %v5437
      %v5467 = vmul.f32 %v5406, %v5437
      %v5468 = vmul.f32 %v5411, %v5437
      %v5469 = vmul.f32 %v5414, %v5437
      %v5470 = vmul.f32 %v5419, %v5437
      %v5471 = vmul.f32 %v5422, %v5437
      %v5472 = vmul.f32 %v5427, %v5437
      %v5473 = vmul.f32 %v5430, %v5437
      %v5474 = vld [vmem:[%s2 + $0x1] sm:$0x1]
      %v5475 = vlaneseq
      %v5476 = vshrl.u32 %v5475, 7
      %v5477 = vsub.s32 0, %v5476
      %v5478 = vrot.slane %v5474, %v5477
      %v5479 = vadd.f32 %v5438, %v5478
      %v5480 = vadd.f32 %v5439, %v5478
      %v5481 = vadd.f32 %v5440, %v5478
      %v5482 = vadd.f32 %v5441, %v5478
      %v5483 = vadd.f32 %v5442, %v5478
      %v5484 = vadd.f32 %v5443, %v5478
      %v5485 = vadd.f32 %v5444, %v5478
      %v5486 = vadd.f32 %v5445, %v5478
      %v5487 = vadd.f32 %v5446, %v5478
      %v5488 = vadd.f32 %v5447, %v5478
      %v5489 = vadd.f32 %v5448, %v5478
      %v5490 = vadd.f32 %v5449, %v5478
      %v5491 = vadd.f32 %v5450, %v5478
      %v5492 = vadd.f32 %v5451, %v5478
      %v5493 = vadd.f32 %v5452, %v5478
      %v5494 = vadd.f32 %v5453, %v5478
      %v5495 = vadd.f32 %v5454, %v5478
      %v5496 = vadd.f32 %v5455, %v5478
      %v5497 = vadd.f32 %v5456, %v5478
      %v5498 = vadd.f32 %v5457, %v5478
      %v5499 = vadd.f32 %v5458, %v5478
      %v5500 = vadd.f32 %v5459, %v5478
      %v5501 = vadd.f32 %v5460, %v5478
      %v5502 = vadd.f32 %v5461, %v5478
      %v5503 = vadd.f32 %v5462, %v5478
      %v5504 = vadd.f32 %v5463, %v5478
      %v5505 = vadd.f32 %v5464, %v5478
      %v5506 = vadd.f32 %v5465, %v5478
      %v5507 = vadd.f32 %v5466, %v5478
      %v5508 = vadd.f32 %v5467, %v5478
      %v5509 = vadd.f32 %v5468, %v5478
      %v5510 = vadd.f32 %v5469, %v5478
      %v5511 = vadd.f32 %v5470, %v5478
      %v5512 = vadd.f32 %v5471, %v5478
      %v5513 = vadd.f32 %v5472, %v5478
      %v5514 = vadd.f32 %v5473, %v5478
      %v5515 = vmax.f32 %v5479, 0.0
      %v5516 = vmax.f32 %v5480, 0.0
      %v5517 = vmax.f32 %v5481, 0.0
      %v5518 = vmax.f32 %v5482, 0.0
      %v5519 = vmax.f32 %v5483, 0.0
      %v5520 = vmax.f32 %v5484, 0.0
      %v5521 = vmax.f32 %v5485, 0.0
      %v5522 = vmax.f32 %v5486, 0.0
      %v5523 = vmax.f32 %v5487, 0.0
      %v5524 = vmax.f32 %v5488, 0.0
      %v5525 = vmax.f32 %v5489, 0.0
      %v5526 = vmax.f32 %v5490, 0.0
      %v5527 = vmax.f32 %v5491, 0.0
      %v5528 = vmax.f32 %v5492, 0.0
      %v5529 = vmax.f32 %v5493, 0.0
      %v5530 = vmax.f32 %v5494, 0.0
      %v5531 = vmax.f32 %v5495, 0.0
      %v5532 = vmax.f32 %v5496, 0.0
      %v5533 = vmax.f32 %v5497, 0.0
      %v5534 = vmax.f32 %v5498, 0.0
      %v5535 = vmax.f32 %v5499, 0.0
      %v5536 = vmax.f32 %v5500, 0.0
      %v5537 = vmax.f32 %v5501, 0.0
      %v5538 = vmax.f32 %v5502, 0.0
      %v5539 = vmax.f32 %v5503, 0.0
      %v5540 = vmax.f32 %v5504, 0.0
      %v5541 = vmax.f32 %v5505, 0.0
      %v5542 = vmax.f32 %v5506, 0.0
      %v5543 = vmax.f32 %v5507, 0.0
      %v5544 = vmax.f32 %v5508, 0.0
      %v5545 = vmax.f32 %v5509, 0.0
      %v5546 = vmax.f32 %v5510, 0.0
      %v5547 = vmax.f32 %v5511, 0.0
      %v5548 = vmax.f32 %v5512, 0.0
      %v5549 = vmax.f32 %v5513, 0.0
      %v5550 = vmax.f32 %v5514, 0.0
      %v5551 = vlaneseq
      %v5552 = vshrl.u32 %v5551, 7
      %v5553 = vadd.s32 %v5552, 8
      %v5554 = vadd.s32 %v5552, 16
      %v5555 = vadd.s32 %v5552, 24
      %v5556 = vadd.s32 %v5552, 32
      %v5557 = vadd.s32 %v5552, 40
      %v5558 = vadd.s32 %v5552, 48
      %v5559 = vadd.s32 %v5552, 56
      %v5560 = vadd.s32 %v5552, 64
      %v5561 = vadd.s32 %v5552, 72
      %v5562 = vadd.s32 %v5552, 80
      %v5563 = vadd.s32 %v5552, 88
      %v5564 = vadd.s32 %v5552, 96
      %v5565 = vadd.s32 %v5552, 104
      %v5566 = vadd.s32 %v5552, 112
      %v5567 = vadd.s32 %v5552, 120
      %v5568 = vadd.s32 %v5552, 128
      %v5569 = vadd.s32 %v5552, 136
      %v5570 = vadd.s32 %v5552, 144
      %v5571 = vadd.s32 %v5552, 152
      %v5572 = vadd.s32 %v5552, 160
      %v5573 = vadd.s32 %v5552, 168
      %v5574 = vadd.s32 %v5552, 176
      %v5575 = vadd.s32 %v5552, 184
      %v5576 = vadd.s32 %v5552, 192
      %v5577 = vadd.s32 %v5552, 200
      %v5578 = vadd.s32 %v5552, 208
      %v5579 = vadd.s32 %v5552, 216
      %v5580 = vadd.s32 %v5552, 224
      %v5581 = vadd.s32 %v5552, 232
      %v5582 = vadd.s32 %v5552, 240
      %v5583 = vadd.s32 %v5552, 248
      %v5584 = vadd.s32 %v5552, 256
      %v5585 = vadd.s32 %v5552, 264
      %v5586 = vadd.s32 %v5552, 272
      %v5587 = vadd.s32 %v5552, 280
      %vm5588 = vcmp.lt.s32.totalorder %v5552, 0
      %v5589 = vsub.s32 0, %v5552
      %v5590 = vsel %vm5588, %v5589, %v5552
      %v5591 = vmul.u32.u64.compose %v5590, 3817748708
      %v5592 = vextract.low.u32 %v5591
      %v5593 = vextract.high.u32 %v5591
      %v5594 = vshrl.u32 %v5593, 4
      %v5595 = vmul.u32 %v5594, 18
      %v5596 = vsub.s32 %v5590, %v5595
      %v5597 = vsub.s32 0, %v5596
      %v5598 = vsel %vm5588, %v5597, %v5596
      %vm5599 = vcmp.lt.s32.totalorder %v5553, 0
      %v5600 = vsub.s32 0, %v5553
      %v5601 = vsel %vm5599, %v5600, %v5553
      %v5602 = vmul.u32.u64.compose %v5601, 3817748708
      %v5603 = vextract.low.u32 %v5602
      %v5604 = vextract.high.u32 %v5602
      %v5605 = vshrl.u32 %v5604, 4
      %v5606 = vmul.u32 %v5605, 18
      %v5607 = vsub.s32 %v5601, %v5606
      %v5608 = vsub.s32 0, %v5607
      %v5609 = vsel %vm5599, %v5608, %v5607
      %vm5610 = vcmp.lt.s32.totalorder %v5554, 0
      %v5611 = vsub.s32 0, %v5554
      %v5612 = vsel %vm5610, %v5611, %v5554
      %v5613 = vmul.u32.u64.compose %v5612, 3817748708
      %v5614 = vextract.low.u32 %v5613
      %v5615 = vextract.high.u32 %v5613
      %v5616 = vshrl.u32 %v5615, 4
      %v5617 = vmul.u32 %v5616, 18
      %v5618 = vsub.s32 %v5612, %v5617
      %v5619 = vsub.s32 0, %v5618
      %v5620 = vsel %vm5610, %v5619, %v5618
      %vm5621 = vcmp.lt.s32.totalorder %v5555, 0
      %v5622 = vsub.s32 0, %v5555
      %v5623 = vsel %vm5621, %v5622, %v5555
      %v5624 = vmul.u32.u64.compose %v5623, 3817748708
      %v5625 = vextract.low.u32 %v5624
      %v5626 = vextract.high.u32 %v5624
      %v5627 = vshrl.u32 %v5626, 4
      %v5628 = vmul.u32 %v5627, 18
      %v5629 = vsub.s32 %v5623, %v5628
      %v5630 = vsub.s32 0, %v5629
      %v5631 = vsel %vm5621, %v5630, %v5629
      %vm5632 = vcmp.lt.s32.totalorder %v5556, 0
      %v5633 = vsub.s32 0, %v5556
      %v5634 = vsel %vm5632, %v5633, %v5556
      %v5635 = vmul.u32.u64.compose %v5634, 3817748708
      %v5636 = vextract.low.u32 %v5635
      %v5637 = vextract.high.u32 %v5635
      %v5638 = vshrl.u32 %v5637, 4
      %v5639 = vmul.u32 %v5638, 18
      %v5640 = vsub.s32 %v5634, %v5639
      %v5641 = vsub.s32 0, %v5640
      %v5642 = vsel %vm5632, %v5641, %v5640
      %vm5643 = vcmp.lt.s32.totalorder %v5557, 0
      %v5644 = vsub.s32 0, %v5557
      %v5645 = vsel %vm5643, %v5644, %v5557
      %v5646 = vmul.u32.u64.compose %v5645, 3817748708
      %v5647 = vextract.low.u32 %v5646
      %v5648 = vextract.high.u32 %v5646
      %v5649 = vshrl.u32 %v5648, 4
      %v5650 = vmul.u32 %v5649, 18
      %v5651 = vsub.s32 %v5645, %v5650
      %v5652 = vsub.s32 0, %v5651
      %v5653 = vsel %vm5643, %v5652, %v5651
      %vm5654 = vcmp.lt.s32.totalorder %v5558, 0
      %v5655 = vsub.s32 0, %v5558
      %v5656 = vsel %vm5654, %v5655, %v5558
      %v5657 = vmul.u32.u64.compose %v5656, 3817748708
      %v5658 = vextract.low.u32 %v5657
      %v5659 = vextract.high.u32 %v5657
      %v5660 = vshrl.u32 %v5659, 4
      %v5661 = vmul.u32 %v5660, 18
      %v5662 = vsub.s32 %v5656, %v5661
      %v5663 = vsub.s32 0, %v5662
      %v5664 = vsel %vm5654, %v5663, %v5662
      %vm5665 = vcmp.lt.s32.totalorder %v5559, 0
      %v5666 = vsub.s32 0, %v5559
      %v5667 = vsel %vm5665, %v5666, %v5559
      %v5668 = vmul.u32.u64.compose %v5667, 3817748708
      %v5669 = vextract.low.u32 %v5668
      %v5670 = vextract.high.u32 %v5668
      %v5671 = vshrl.u32 %v5670, 4
      %v5672 = vmul.u32 %v5671, 18
      %v5673 = vsub.s32 %v5667, %v5672
      %v5674 = vsub.s32 0, %v5673
      %v5675 = vsel %vm5665, %v5674, %v5673
      %vm5676 = vcmp.lt.s32.totalorder %v5560, 0
      %v5677 = vsub.s32 0, %v5560
      %v5678 = vsel %vm5676, %v5677, %v5560
      %v5679 = vmul.u32.u64.compose %v5678, 3817748708
      %v5680 = vextract.low.u32 %v5679
      %v5681 = vextract.high.u32 %v5679
      %v5682 = vshrl.u32 %v5681, 4
      %v5683 = vmul.u32 %v5682, 18
      %v5684 = vsub.s32 %v5678, %v5683
      %v5685 = vsub.s32 0, %v5684
      %v5686 = vsel %vm5676, %v5685, %v5684
      %vm5687 = vcmp.lt.s32.totalorder %v5561, 0
      %v5688 = vsub.s32 0, %v5561
      %v5689 = vsel %vm5687, %v5688, %v5561
      %v5690 = vmul.u32.u64.compose %v5689, 3817748708
      %v5691 = vextract.low.u32 %v5690
      %v5692 = vextract.high.u32 %v5690
      %v5693 = vshrl.u32 %v5692, 4
      %v5694 = vmul.u32 %v5693, 18
      %v5695 = vsub.s32 %v5689, %v5694
      %v5696 = vsub.s32 0, %v5695
      %v5697 = vsel %vm5687, %v5696, %v5695
      %vm5698 = vcmp.lt.s32.totalorder %v5562, 0
      %v5699 = vsub.s32 0, %v5562
      %v5700 = vsel %vm5698, %v5699, %v5562
      %v5701 = vmul.u32.u64.compose %v5700, 3817748708
      %v5702 = vextract.low.u32 %v5701
      %v5703 = vextract.high.u32 %v5701
      %v5704 = vshrl.u32 %v5703, 4
      %v5705 = vmul.u32 %v5704, 18
      %v5706 = vsub.s32 %v5700, %v5705
      %v5707 = vsub.s32 0, %v5706
      %v5708 = vsel %vm5698, %v5707, %v5706
      %vm5709 = vcmp.lt.s32.totalorder %v5563, 0
      %v5710 = vsub.s32 0, %v5563
      %v5711 = vsel %vm5709, %v5710, %v5563
      %v5712 = vmul.u32.u64.compose %v5711, 3817748708
      %v5713 = vextract.low.u32 %v5712
      %v5714 = vextract.high.u32 %v5712
      %v5715 = vshrl.u32 %v5714, 4
      %v5716 = vmul.u32 %v5715, 18
      %v5717 = vsub.s32 %v5711, %v5716
      %v5718 = vsub.s32 0, %v5717
      %v5719 = vsel %vm5709, %v5718, %v5717
      %vm5720 = vcmp.lt.s32.totalorder %v5564, 0
      %v5721 = vsub.s32 0, %v5564
      %v5722 = vsel %vm5720, %v5721, %v5564
      %v5723 = vmul.u32.u64.compose %v5722, 3817748708
      %v5724 = vextract.low.u32 %v5723
      %v5725 = vextract.high.u32 %v5723
      %v5726 = vshrl.u32 %v5725, 4
      %v5727 = vmul.u32 %v5726, 18
      %v5728 = vsub.s32 %v5722, %v5727
      %v5729 = vsub.s32 0, %v5728
      %v5730 = vsel %vm5720, %v5729, %v5728
      %vm5731 = vcmp.lt.s32.totalorder %v5565, 0
      %v5732 = vsub.s32 0, %v5565
      %v5733 = vsel %vm5731, %v5732, %v5565
      %v5734 = vmul.u32.u64.compose %v5733, 3817748708
      %v5735 = vextract.low.u32 %v5734
      %v5736 = vextract.high.u32 %v5734
      %v5737 = vshrl.u32 %v5736, 4
      %v5738 = vmul.u32 %v5737, 18
      %v5739 = vsub.s32 %v5733, %v5738
      %v5740 = vsub.s32 0, %v5739
      %v5741 = vsel %vm5731, %v5740, %v5739
      %vm5742 = vcmp.lt.s32.totalorder %v5566, 0
      %v5743 = vsub.s32 0, %v5566
      %v5744 = vsel %vm5742, %v5743, %v5566
      %v5745 = vmul.u32.u64.compose %v5744, 3817748708
      %v5746 = vextract.low.u32 %v5745
      %v5747 = vextract.high.u32 %v5745
      %v5748 = vshrl.u32 %v5747, 4
      %v5749 = vmul.u32 %v5748, 18
      %v5750 = vsub.s32 %v5744, %v5749
      %v5751 = vsub.s32 0, %v5750
      %v5752 = vsel %vm5742, %v5751, %v5750
      %vm5753 = vcmp.lt.s32.totalorder %v5567, 0
      %v5754 = vsub.s32 0, %v5567
      %v5755 = vsel %vm5753, %v5754, %v5567
      %v5756 = vmul.u32.u64.compose %v5755, 3817748708
      %v5757 = vextract.low.u32 %v5756
      %v5758 = vextract.high.u32 %v5756
      %v5759 = vshrl.u32 %v5758, 4
      %v5760 = vmul.u32 %v5759, 18
      %v5761 = vsub.s32 %v5755, %v5760
      %v5762 = vsub.s32 0, %v5761
      %v5763 = vsel %vm5753, %v5762, %v5761
      %vm5764 = vcmp.lt.s32.totalorder %v5568, 0
      %v5765 = vsub.s32 0, %v5568
      %v5766 = vsel %vm5764, %v5765, %v5568
      %v5767 = vmul.u32.u64.compose %v5766, 3817748708
      %v5768 = vextract.low.u32 %v5767
      %v5769 = vextract.high.u32 %v5767
      %v5770 = vshrl.u32 %v5769, 4
      %v5771 = vmul.u32 %v5770, 18
      %v5772 = vsub.s32 %v5766, %v5771
      %v5773 = vsub.s32 0, %v5772
      %v5774 = vsel %vm5764, %v5773, %v5772
      %vm5775 = vcmp.lt.s32.totalorder %v5569, 0
      %v5776 = vsub.s32 0, %v5569
      %v5777 = vsel %vm5775, %v5776, %v5569
      %v5778 = vmul.u32.u64.compose %v5777, 3817748708
      %v5779 = vextract.low.u32 %v5778
      %v5780 = vextract.high.u32 %v5778
      %v5781 = vshrl.u32 %v5780, 4
      %v5782 = vmul.u32 %v5781, 18
      %v5783 = vsub.s32 %v5777, %v5782
      %v5784 = vsub.s32 0, %v5783
      %v5785 = vsel %vm5775, %v5784, %v5783
      %vm5786 = vcmp.lt.s32.totalorder %v5570, 0
      %v5787 = vsub.s32 0, %v5570
      %v5788 = vsel %vm5786, %v5787, %v5570
      %v5789 = vmul.u32.u64.compose %v5788, 3817748708
      %v5790 = vextract.low.u32 %v5789
      %v5791 = vextract.high.u32 %v5789
      %v5792 = vshrl.u32 %v5791, 4
      %v5793 = vmul.u32 %v5792, 18
      %v5794 = vsub.s32 %v5788, %v5793
      %v5795 = vsub.s32 0, %v5794
      %v5796 = vsel %vm5786, %v5795, %v5794
      %vm5797 = vcmp.lt.s32.totalorder %v5571, 0
      %v5798 = vsub.s32 0, %v5571
      %v5799 = vsel %vm5797, %v5798, %v5571
      %v5800 = vmul.u32.u64.compose %v5799, 3817748708
      %v5801 = vextract.low.u32 %v5800
      %v5802 = vextract.high.u32 %v5800
      %v5803 = vshrl.u32 %v5802, 4
      %v5804 = vmul.u32 %v5803, 18
      %v5805 = vsub.s32 %v5799, %v5804
      %v5806 = vsub.s32 0, %v5805
      %v5807 = vsel %vm5797, %v5806, %v5805
      %vm5808 = vcmp.lt.s32.totalorder %v5572, 0
      %v5809 = vsub.s32 0, %v5572
      %v5810 = vsel %vm5808, %v5809, %v5572
      %v5811 = vmul.u32.u64.compose %v5810, 3817748708
      %v5812 = vextract.low.u32 %v5811
      %v5813 = vextract.high.u32 %v5811
      %v5814 = vshrl.u32 %v5813, 4
      %v5815 = vmul.u32 %v5814, 18
      %v5816 = vsub.s32 %v5810, %v5815
      %v5817 = vsub.s32 0, %v5816
      %v5818 = vsel %vm5808, %v5817, %v5816
      %vm5819 = vcmp.lt.s32.totalorder %v5573, 0
      %v5820 = vsub.s32 0, %v5573
      %v5821 = vsel %vm5819, %v5820, %v5573
      %v5822 = vmul.u32.u64.compose %v5821, 3817748708
      %v5823 = vextract.low.u32 %v5822
      %v5824 = vextract.high.u32 %v5822
      %v5825 = vshrl.u32 %v5824, 4
      %v5826 = vmul.u32 %v5825, 18
      %v5827 = vsub.s32 %v5821, %v5826
      %v5828 = vsub.s32 0, %v5827
      %v5829 = vsel %vm5819, %v5828, %v5827
      %vm5830 = vcmp.lt.s32.totalorder %v5574, 0
      %v5831 = vsub.s32 0, %v5574
      %v5832 = vsel %vm5830, %v5831, %v5574
      %v5833 = vmul.u32.u64.compose %v5832, 3817748708
      %v5834 = vextract.low.u32 %v5833
      %v5835 = vextract.high.u32 %v5833
      %v5836 = vshrl.u32 %v5835, 4
      %v5837 = vmul.u32 %v5836, 18
      %v5838 = vsub.s32 %v5832, %v5837
      %v5839 = vsub.s32 0, %v5838
      %v5840 = vsel %vm5830, %v5839, %v5838
      %vm5841 = vcmp.lt.s32.totalorder %v5575, 0
      %v5842 = vsub.s32 0, %v5575
      %v5843 = vsel %vm5841, %v5842, %v5575
      %v5844 = vmul.u32.u64.compose %v5843, 3817748708
      %v5845 = vextract.low.u32 %v5844
      %v5846 = vextract.high.u32 %v5844
      %v5847 = vshrl.u32 %v5846, 4
      %v5848 = vmul.u32 %v5847, 18
      %v5849 = vsub.s32 %v5843, %v5848
      %v5850 = vsub.s32 0, %v5849
      %v5851 = vsel %vm5841, %v5850, %v5849
      %vm5852 = vcmp.lt.s32.totalorder %v5576, 0
      %v5853 = vsub.s32 0, %v5576
      %v5854 = vsel %vm5852, %v5853, %v5576
      %v5855 = vmul.u32.u64.compose %v5854, 3817748708
      %v5856 = vextract.low.u32 %v5855
      %v5857 = vextract.high.u32 %v5855
      %v5858 = vshrl.u32 %v5857, 4
      %v5859 = vmul.u32 %v5858, 18
      %v5860 = vsub.s32 %v5854, %v5859
      %v5861 = vsub.s32 0, %v5860
      %v5862 = vsel %vm5852, %v5861, %v5860
      %vm5863 = vcmp.lt.s32.totalorder %v5577, 0
      %v5864 = vsub.s32 0, %v5577
      %v5865 = vsel %vm5863, %v5864, %v5577
      %v5866 = vmul.u32.u64.compose %v5865, 3817748708
      %v5867 = vextract.low.u32 %v5866
      %v5868 = vextract.high.u32 %v5866
      %v5869 = vshrl.u32 %v5868, 4
      %v5870 = vmul.u32 %v5869, 18
      %v5871 = vsub.s32 %v5865, %v5870
      %v5872 = vsub.s32 0, %v5871
      %v5873 = vsel %vm5863, %v5872, %v5871
      %vm5874 = vcmp.lt.s32.totalorder %v5578, 0
      %v5875 = vsub.s32 0, %v5578
      %v5876 = vsel %vm5874, %v5875, %v5578
      %v5877 = vmul.u32.u64.compose %v5876, 3817748708
      %v5878 = vextract.low.u32 %v5877
      %v5879 = vextract.high.u32 %v5877
      %v5880 = vshrl.u32 %v5879, 4
      %v5881 = vmul.u32 %v5880, 18
      %v5882 = vsub.s32 %v5876, %v5881
      %v5883 = vsub.s32 0, %v5882
      %v5884 = vsel %vm5874, %v5883, %v5882
      %vm5885 = vcmp.lt.s32.totalorder %v5579, 0
      %v5886 = vsub.s32 0, %v5579
      %v5887 = vsel %vm5885, %v5886, %v5579
      %v5888 = vmul.u32.u64.compose %v5887, 3817748708
      %v5889 = vextract.low.u32 %v5888
      %v5890 = vextract.high.u32 %v5888
      %v5891 = vshrl.u32 %v5890, 4
      %v5892 = vmul.u32 %v5891, 18
      %v5893 = vsub.s32 %v5887, %v5892
      %v5894 = vsub.s32 0, %v5893
      %v5895 = vsel %vm5885, %v5894, %v5893
      %vm5896 = vcmp.lt.s32.totalorder %v5580, 0
      %v5897 = vsub.s32 0, %v5580
      %v5898 = vsel %vm5896, %v5897, %v5580
      %v5899 = vmul.u32.u64.compose %v5898, 3817748708
      %v5900 = vextract.low.u32 %v5899
      %v5901 = vextract.high.u32 %v5899
      %v5902 = vshrl.u32 %v5901, 4
      %v5903 = vmul.u32 %v5902, 18
      %v5904 = vsub.s32 %v5898, %v5903
      %v5905 = vsub.s32 0, %v5904
      %v5906 = vsel %vm5896, %v5905, %v5904
      %vm5907 = vcmp.lt.s32.totalorder %v5581, 0
      %v5908 = vsub.s32 0, %v5581
      %v5909 = vsel %vm5907, %v5908, %v5581
      %v5910 = vmul.u32.u64.compose %v5909, 3817748708
      %v5911 = vextract.low.u32 %v5910
      %v5912 = vextract.high.u32 %v5910
      %v5913 = vshrl.u32 %v5912, 4
      %v5914 = vmul.u32 %v5913, 18
      %v5915 = vsub.s32 %v5909, %v5914
      %v5916 = vsub.s32 0, %v5915
      %v5917 = vsel %vm5907, %v5916, %v5915
      %vm5918 = vcmp.lt.s32.totalorder %v5582, 0
      %v5919 = vsub.s32 0, %v5582
      %v5920 = vsel %vm5918, %v5919, %v5582
      %v5921 = vmul.u32.u64.compose %v5920, 3817748708
      %v5922 = vextract.low.u32 %v5921
      %v5923 = vextract.high.u32 %v5921
      %v5924 = vshrl.u32 %v5923, 4
      %v5925 = vmul.u32 %v5924, 18
      %v5926 = vsub.s32 %v5920, %v5925
      %v5927 = vsub.s32 0, %v5926
      %v5928 = vsel %vm5918, %v5927, %v5926
      %vm5929 = vcmp.lt.s32.totalorder %v5583, 0
      %v5930 = vsub.s32 0, %v5583
      %v5931 = vsel %vm5929, %v5930, %v5583
      %v5932 = vmul.u32.u64.compose %v5931, 3817748708
      %v5933 = vextract.low.u32 %v5932
      %v5934 = vextract.high.u32 %v5932
      %v5935 = vshrl.u32 %v5934, 4
      %v5936 = vmul.u32 %v5935, 18
      %v5937 = vsub.s32 %v5931, %v5936
      %v5938 = vsub.s32 0, %v5937
      %v5939 = vsel %vm5929, %v5938, %v5937
      %vm5940 = vcmp.lt.s32.totalorder %v5584, 0
      %v5941 = vsub.s32 0, %v5584
      %v5942 = vsel %vm5940, %v5941, %v5584
      %v5943 = vmul.u32.u64.compose %v5942, 3817748708
      %v5944 = vextract.low.u32 %v5943
      %v5945 = vextract.high.u32 %v5943
      %v5946 = vshrl.u32 %v5945, 4
      %v5947 = vmul.u32 %v5946, 18
      %v5948 = vsub.s32 %v5942, %v5947
      %v5949 = vsub.s32 0, %v5948
      %v5950 = vsel %vm5940, %v5949, %v5948
      %vm5951 = vcmp.lt.s32.totalorder %v5585, 0
      %v5952 = vsub.s32 0, %v5585
      %v5953 = vsel %vm5951, %v5952, %v5585
      %v5954 = vmul.u32.u64.compose %v5953, 3817748708
      %v5955 = vextract.low.u32 %v5954
      %v5956 = vextract.high.u32 %v5954
      %v5957 = vshrl.u32 %v5956, 4
      %v5958 = vmul.u32 %v5957, 18
      %v5959 = vsub.s32 %v5953, %v5958
      %v5960 = vsub.s32 0, %v5959
      %v5961 = vsel %vm5951, %v5960, %v5959
      %vm5962 = vcmp.lt.s32.totalorder %v5586, 0
      %v5963 = vsub.s32 0, %v5586
      %v5964 = vsel %vm5962, %v5963, %v5586
      %v5965 = vmul.u32.u64.compose %v5964, 3817748708
      %v5966 = vextract.low.u32 %v5965
      %v5967 = vextract.high.u32 %v5965
      %v5968 = vshrl.u32 %v5967, 4
      %v5969 = vmul.u32 %v5968, 18
      %v5970 = vsub.s32 %v5964, %v5969
      %v5971 = vsub.s32 0, %v5970
      %v5972 = vsel %vm5962, %v5971, %v5970
      %vm5973 = vcmp.lt.s32.totalorder %v5587, 0
      %v5974 = vsub.s32 0, %v5587
      %v5975 = vsel %vm5973, %v5974, %v5587
      %v5976 = vmul.u32.u64.compose %v5975, 3817748708
      %v5977 = vextract.low.u32 %v5976
      %v5978 = vextract.high.u32 %v5976
      %v5979 = vshrl.u32 %v5978, 4
      %v5980 = vmul.u32 %v5979, 18
      %v5981 = vsub.s32 %v5975, %v5980
      %v5982 = vsub.s32 0, %v5981
      %v5983 = vsel %vm5973, %v5982, %v5981
      %vm5984 = vcmp.ne.s32.totalorder %v5598, 0
      %vm5985 = vcmp.ne.s32.totalorder %v5609, 0
      %vm5986 = vcmp.ne.s32.totalorder %v5620, 0
      %vm5987 = vcmp.ne.s32.totalorder %v5631, 0
      %vm5988 = vcmp.ne.s32.totalorder %v5642, 0
      %vm5989 = vcmp.ne.s32.totalorder %v5653, 0
      %vm5990 = vcmp.ne.s32.totalorder %v5664, 0
      %vm5991 = vcmp.ne.s32.totalorder %v5675, 0
      %vm5992 = vcmp.ne.s32.totalorder %v5686, 0
      %vm5993 = vcmp.ne.s32.totalorder %v5697, 0
      %vm5994 = vcmp.ne.s32.totalorder %v5708, 0
      %vm5995 = vcmp.ne.s32.totalorder %v5719, 0
      %vm5996 = vcmp.ne.s32.totalorder %v5730, 0
      %vm5997 = vcmp.ne.s32.totalorder %v5741, 0
      %vm5998 = vcmp.ne.s32.totalorder %v5752, 0
      %vm5999 = vcmp.ne.s32.totalorder %v5763, 0
      %vm6000 = vcmp.ne.s32.totalorder %v5774, 0
      %vm6001 = vcmp.ne.s32.totalorder %v5785, 0
      %vm6002 = vcmp.ne.s32.totalorder %v5796, 0
      %vm6003 = vcmp.ne.s32.totalorder %v5807, 0
      %vm6004 = vcmp.ne.s32.totalorder %v5818, 0
      %vm6005 = vcmp.ne.s32.totalorder %v5829, 0
      %vm6006 = vcmp.ne.s32.totalorder %v5840, 0
      %vm6007 = vcmp.ne.s32.totalorder %v5851, 0
      %vm6008 = vcmp.ne.s32.totalorder %v5862, 0
      %vm6009 = vcmp.ne.s32.totalorder %v5873, 0
      %vm6010 = vcmp.ne.s32.totalorder %v5884, 0
      %vm6011 = vcmp.ne.s32.totalorder %v5895, 0
      %vm6012 = vcmp.ne.s32.totalorder %v5906, 0
      %vm6013 = vcmp.ne.s32.totalorder %v5917, 0
      %vm6014 = vcmp.ne.s32.totalorder %v5928, 0
      %vm6015 = vcmp.ne.s32.totalorder %v5939, 0
      %vm6016 = vcmp.ne.s32.totalorder %v5950, 0
      %vm6017 = vcmp.ne.s32.totalorder %v5961, 0
      %vm6018 = vcmp.ne.s32.totalorder %v5972, 0
      %vm6019 = vcmp.ne.s32.totalorder %v5983, 0
      %vm6020 = vcmp.lt.s32.totalorder %v5598, 0
      %vm6021 = vcmp.lt.s32.totalorder %v5609, 0
      %vm6022 = vcmp.lt.s32.totalorder %v5620, 0
      %vm6023 = vcmp.lt.s32.totalorder %v5631, 0
      %vm6024 = vcmp.lt.s32.totalorder %v5642, 0
      %vm6025 = vcmp.lt.s32.totalorder %v5653, 0
      %vm6026 = vcmp.lt.s32.totalorder %v5664, 0
      %vm6027 = vcmp.lt.s32.totalorder %v5675, 0
      %vm6028 = vcmp.lt.s32.totalorder %v5686, 0
      %vm6029 = vcmp.lt.s32.totalorder %v5697, 0
      %vm6030 = vcmp.lt.s32.totalorder %v5708, 0
      %vm6031 = vcmp.lt.s32.totalorder %v5719, 0
      %vm6032 = vcmp.lt.s32.totalorder %v5730, 0
      %vm6033 = vcmp.lt.s32.totalorder %v5741, 0
      %vm6034 = vcmp.lt.s32.totalorder %v5752, 0
      %vm6035 = vcmp.lt.s32.totalorder %v5763, 0
      %vm6036 = vcmp.lt.s32.totalorder %v5774, 0
      %vm6037 = vcmp.lt.s32.totalorder %v5785, 0
      %vm6038 = vcmp.lt.s32.totalorder %v5796, 0
      %vm6039 = vcmp.lt.s32.totalorder %v5807, 0
      %vm6040 = vcmp.lt.s32.totalorder %v5818, 0
      %vm6041 = vcmp.lt.s32.totalorder %v5829, 0
      %vm6042 = vcmp.lt.s32.totalorder %v5840, 0
      %vm6043 = vcmp.lt.s32.totalorder %v5851, 0
      %vm6044 = vcmp.lt.s32.totalorder %v5862, 0
      %vm6045 = vcmp.lt.s32.totalorder %v5873, 0
      %vm6046 = vcmp.lt.s32.totalorder %v5884, 0
      %vm6047 = vcmp.lt.s32.totalorder %v5895, 0
      %vm6048 = vcmp.lt.s32.totalorder %v5906, 0
      %vm6049 = vcmp.lt.s32.totalorder %v5917, 0
      %vm6050 = vcmp.lt.s32.totalorder %v5928, 0
      %vm6051 = vcmp.lt.s32.totalorder %v5939, 0
      %vm6052 = vcmp.lt.s32.totalorder %v5950, 0
      %vm6053 = vcmp.lt.s32.totalorder %v5961, 0
      %vm6054 = vcmp.lt.s32.totalorder %v5972, 0
      %vm6055 = vcmp.lt.s32.totalorder %v5983, 0
      %vm6056 = vmand %vm6020, %vm5984
      %vm6057 = vmand %vm6021, %vm5985
      %vm6058 = vmand %vm6022, %vm5986
      %vm6059 = vmand %vm6023, %vm5987
      %vm6060 = vmand %vm6024, %vm5988
      %vm6061 = vmand %vm6025, %vm5989
      %vm6062 = vmand %vm6026, %vm5990
      %vm6063 = vmand %vm6027, %vm5991
      %vm6064 = vmand %vm6028, %vm5992
      %vm6065 = vmand %vm6029, %vm5993
      %vm6066 = vmand %vm6030, %vm5994
      %vm6067 = vmand %vm6031, %vm5995
      %vm6068 = vmand %vm6032, %vm5996
      %vm6069 = vmand %vm6033, %vm5997
      %vm6070 = vmand %vm6034, %vm5998
      %vm6071 = vmand %vm6035, %vm5999
      %vm6072 = vmand %vm6036, %vm6000
      %vm6073 = vmand %vm6037, %vm6001
      %vm6074 = vmand %vm6038, %vm6002
      %vm6075 = vmand %vm6039, %vm6003
      %vm6076 = vmand %vm6040, %vm6004
      %vm6077 = vmand %vm6041, %vm6005
      %vm6078 = vmand %vm6042, %vm6006
      %vm6079 = vmand %vm6043, %vm6007
      %vm6080 = vmand %vm6044, %vm6008
      %vm6081 = vmand %vm6045, %vm6009
      %vm6082 = vmand %vm6046, %vm6010
      %vm6083 = vmand %vm6047, %vm6011
      %vm6084 = vmand %vm6048, %vm6012
      %vm6085 = vmand %vm6049, %vm6013
      %vm6086 = vmand %vm6050, %vm6014
      %vm6087 = vmand %vm6051, %vm6015
      %vm6088 = vmand %vm6052, %vm6016
      %vm6089 = vmand %vm6053, %vm6017
      %vm6090 = vmand %vm6054, %vm6018
      %vm6091 = vmand %vm6055, %vm6019
      %v6092 = vadd.s32 %v5598, 18
      %v6093 = vadd.s32 %v5609, 18
      %v6094 = vadd.s32 %v5620, 18
      %v6095 = vadd.s32 %v5631, 18
      %v6096 = vadd.s32 %v5642, 18
      %v6097 = vadd.s32 %v5653, 18
      %v6098 = vadd.s32 %v5664, 18
      %v6099 = vadd.s32 %v5675, 18
      %v6100 = vadd.s32 %v5686, 18
      %v6101 = vadd.s32 %v5697, 18
      %v6102 = vadd.s32 %v5708, 18
      %v6103 = vadd.s32 %v5719, 18
      %v6104 = vadd.s32 %v5730, 18
      %v6105 = vadd.s32 %v5741, 18
      %v6106 = vadd.s32 %v5752, 18
      %v6107 = vadd.s32 %v5763, 18
      %v6108 = vadd.s32 %v5774, 18
      %v6109 = vadd.s32 %v5785, 18
      %v6110 = vadd.s32 %v5796, 18
      %v6111 = vadd.s32 %v5807, 18
      %v6112 = vadd.s32 %v5818, 18
      %v6113 = vadd.s32 %v5829, 18
      %v6114 = vadd.s32 %v5840, 18
      %v6115 = vadd.s32 %v5851, 18
      %v6116 = vadd.s32 %v5862, 18
      %v6117 = vadd.s32 %v5873, 18
      %v6118 = vadd.s32 %v5884, 18
      %v6119 = vadd.s32 %v5895, 18
      %v6120 = vadd.s32 %v5906, 18
      %v6121 = vadd.s32 %v5917, 18
      %v6122 = vadd.s32 %v5928, 18
      %v6123 = vadd.s32 %v5939, 18
      %v6124 = vadd.s32 %v5950, 18
      %v6125 = vadd.s32 %v5961, 18
      %v6126 = vadd.s32 %v5972, 18
      %v6127 = vadd.s32 %v5983, 18
      %v6128 = vsel %vm6056, %v6092, %v5598
      %v6129 = vsel %vm6057, %v6093, %v5609
      %v6130 = vsel %vm6058, %v6094, %v5620
      %v6131 = vsel %vm6059, %v6095, %v5631
      %v6132 = vsel %vm6060, %v6096, %v5642
      %v6133 = vsel %vm6061, %v6097, %v5653
      %v6134 = vsel %vm6062, %v6098, %v5664
      %v6135 = vsel %vm6063, %v6099, %v5675
      %v6136 = vsel %vm6064, %v6100, %v5686
      %v6137 = vsel %vm6065, %v6101, %v5697
      %v6138 = vsel %vm6066, %v6102, %v5708
      %v6139 = vsel %vm6067, %v6103, %v5719
      %v6140 = vsel %vm6068, %v6104, %v5730
      %v6141 = vsel %vm6069, %v6105, %v5741
      %v6142 = vsel %vm6070, %v6106, %v5752
      %v6143 = vsel %vm6071, %v6107, %v5763
      %v6144 = vsel %vm6072, %v6108, %v5774
      %v6145 = vsel %vm6073, %v6109, %v5785
      %v6146 = vsel %vm6074, %v6110, %v5796
      %v6147 = vsel %vm6075, %v6111, %v5807
      %v6148 = vsel %vm6076, %v6112, %v5818
      %v6149 = vsel %vm6077, %v6113, %v5829
      %v6150 = vsel %vm6078, %v6114, %v5840
      %v6151 = vsel %vm6079, %v6115, %v5851
      %v6152 = vsel %vm6080, %v6116, %v5862
      %v6153 = vsel %vm6081, %v6117, %v5873
      %v6154 = vsel %vm6082, %v6118, %v5884
      %v6155 = vsel %vm6083, %v6119, %v5895
      %v6156 = vsel %vm6084, %v6120, %v5906
      %v6157 = vsel %vm6085, %v6121, %v5917
      %v6158 = vsel %vm6086, %v6122, %v5928
      %v6159 = vsel %vm6087, %v6123, %v5939
      %v6160 = vsel %vm6088, %v6124, %v5950
      %v6161 = vsel %vm6089, %v6125, %v5961
      %v6162 = vsel %vm6090, %v6126, %v5972
      %v6163 = vsel %vm6091, %v6127, %v5983
      %vm6164 = vcmp.lt.s32.totalorder %v6128, 16
      %vm6165 = vcmp.lt.s32.totalorder %v6129, 16
      %vm6166 = vcmp.lt.s32.totalorder %v6130, 16
      %vm6167 = vcmp.lt.s32.totalorder %v6131, 16
      %vm6168 = vcmp.lt.s32.totalorder %v6132, 16
      %vm6169 = vcmp.lt.s32.totalorder %v6133, 16
      %vm6170 = vcmp.lt.s32.totalorder %v6134, 16
      %vm6171 = vcmp.lt.s32.totalorder %v6135, 16
      %vm6172 = vcmp.lt.s32.totalorder %v6136, 16
      %vm6173 = vcmp.lt.s32.totalorder %v6137, 16
      %vm6174 = vcmp.lt.s32.totalorder %v6138, 16
      %vm6175 = vcmp.lt.s32.totalorder %v6139, 16
      %vm6176 = vcmp.lt.s32.totalorder %v6140, 16
      %vm6177 = vcmp.lt.s32.totalorder %v6141, 16
      %vm6178 = vcmp.lt.s32.totalorder %v6142, 16
      %vm6179 = vcmp.lt.s32.totalorder %v6143, 16
      %vm6180 = vcmp.lt.s32.totalorder %v6144, 16
      %vm6181 = vcmp.lt.s32.totalorder %v6145, 16
      %vm6182 = vcmp.lt.s32.totalorder %v6146, 16
      %vm6183 = vcmp.lt.s32.totalorder %v6147, 16
      %vm6184 = vcmp.lt.s32.totalorder %v6148, 16
      %vm6185 = vcmp.lt.s32.totalorder %v6149, 16
      %vm6186 = vcmp.lt.s32.totalorder %v6150, 16
      %vm6187 = vcmp.lt.s32.totalorder %v6151, 16
      %vm6188 = vcmp.lt.s32.totalorder %v6152, 16
      %vm6189 = vcmp.lt.s32.totalorder %v6153, 16
      %vm6190 = vcmp.lt.s32.totalorder %v6154, 16
      %vm6191 = vcmp.lt.s32.totalorder %v6155, 16
      %vm6192 = vcmp.lt.s32.totalorder %v6156, 16
      %vm6193 = vcmp.lt.s32.totalorder %v6157, 16
      %vm6194 = vcmp.lt.s32.totalorder %v6158, 16
      %vm6195 = vcmp.lt.s32.totalorder %v6159, 16
      %vm6196 = vcmp.lt.s32.totalorder %v6160, 16
      %vm6197 = vcmp.lt.s32.totalorder %v6161, 16
      %vm6198 = vcmp.lt.s32.totalorder %v6162, 16
      %vm6199 = vcmp.lt.s32.totalorder %v6163, 16
      %v6200 = vsel %vm6164, 1, 0
      %v6201 = vsel %vm6165, 1, 0
      %v6202 = vsel %vm6166, 1, 0
      %v6203 = vsel %vm6167, 1, 0
      %v6204 = vsel %vm6168, 1, 0
      %v6205 = vsel %vm6169, 1, 0
      %v6206 = vsel %vm6170, 1, 0
      %v6207 = vsel %vm6171, 1, 0
      %v6208 = vsel %vm6172, 1, 0
      %v6209 = vsel %vm6173, 1, 0
      %v6210 = vsel %vm6174, 1, 0
      %v6211 = vsel %vm6175, 1, 0
      %v6212 = vsel %vm6176, 1, 0
      %v6213 = vsel %vm6177, 1, 0
      %v6214 = vsel %vm6178, 1, 0
      %v6215 = vsel %vm6179, 1, 0
      %v6216 = vsel %vm6180, 1, 0
      %v6217 = vsel %vm6181, 1, 0
      %v6218 = vsel %vm6182, 1, 0
      %v6219 = vsel %vm6183, 1, 0
      %v6220 = vsel %vm6184, 1, 0
      %v6221 = vsel %vm6185, 1, 0
      %v6222 = vsel %vm6186, 1, 0
      %v6223 = vsel %vm6187, 1, 0
      %v6224 = vsel %vm6188, 1, 0
      %v6225 = vsel %vm6189, 1, 0
      %v6226 = vsel %vm6190, 1, 0
      %v6227 = vsel %vm6191, 1, 0
      %v6228 = vsel %vm6192, 1, 0
      %v6229 = vsel %vm6193, 1, 0
      %v6230 = vsel %vm6194, 1, 0
      %v6231 = vsel %vm6195, 1, 0
      %v6232 = vsel %vm6196, 1, 0
      %v6233 = vsel %vm6197, 1, 0
      %v6234 = vsel %vm6198, 1, 0
      %v6235 = vsel %vm6199, 1, 0
      %vm6236 = vcmp.eq.s32.totalorder %v6200, 1
      %vm6237 = vcmp.eq.s32.totalorder %v6201, 1
      %vm6238 = vcmp.eq.s32.totalorder %v6202, 1
      %vm6239 = vcmp.eq.s32.totalorder %v6203, 1
      %vm6240 = vcmp.eq.s32.totalorder %v6204, 1
      %vm6241 = vcmp.eq.s32.totalorder %v6205, 1
      %vm6242 = vcmp.eq.s32.totalorder %v6206, 1
      %vm6243 = vcmp.eq.s32.totalorder %v6207, 1
      %vm6244 = vcmp.eq.s32.totalorder %v6208, 1
      %vm6245 = vcmp.eq.s32.totalorder %v6209, 1
      %vm6246 = vcmp.eq.s32.totalorder %v6210, 1
      %vm6247 = vcmp.eq.s32.totalorder %v6211, 1
      %vm6248 = vcmp.eq.s32.totalorder %v6212, 1
      %vm6249 = vcmp.eq.s32.totalorder %v6213, 1
      %vm6250 = vcmp.eq.s32.totalorder %v6214, 1
      %vm6251 = vcmp.eq.s32.totalorder %v6215, 1
      %vm6252 = vcmp.eq.s32.totalorder %v6216, 1
      %vm6253 = vcmp.eq.s32.totalorder %v6217, 1
      %vm6254 = vcmp.eq.s32.totalorder %v6218, 1
      %vm6255 = vcmp.eq.s32.totalorder %v6219, 1
      %vm6256 = vcmp.eq.s32.totalorder %v6220, 1
      %vm6257 = vcmp.eq.s32.totalorder %v6221, 1
      %vm6258 = vcmp.eq.s32.totalorder %v6222, 1
      %vm6259 = vcmp.eq.s32.totalorder %v6223, 1
      %vm6260 = vcmp.eq.s32.totalorder %v6224, 1
      %vm6261 = vcmp.eq.s32.totalorder %v6225, 1
      %vm6262 = vcmp.eq.s32.totalorder %v6226, 1
      %vm6263 = vcmp.eq.s32.totalorder %v6227, 1
      %vm6264 = vcmp.eq.s32.totalorder %v6228, 1
      %vm6265 = vcmp.eq.s32.totalorder %v6229, 1
      %vm6266 = vcmp.eq.s32.totalorder %v6230, 1
      %vm6267 = vcmp.eq.s32.totalorder %v6231, 1
      %vm6268 = vcmp.eq.s32.totalorder %v6232, 1
      %vm6269 = vcmp.eq.s32.totalorder %v6233, 1
      %vm6270 = vcmp.eq.s32.totalorder %v6234, 1
      %vm6271 = vcmp.eq.s32.totalorder %v6235, 1
      %v6272 = vsel %vm6236, %v5515, 0.0
      %v6273 = vsel %vm6237, %v5516, 0.0
      %v6274 = vsel %vm6238, %v5517, 0.0
      %v6275 = vsel %vm6239, %v5518, 0.0
      %v6276 = vsel %vm6240, %v5519, 0.0
      %v6277 = vsel %vm6241, %v5520, 0.0
      %v6278 = vsel %vm6242, %v5521, 0.0
      %v6279 = vsel %vm6243, %v5522, 0.0
      %v6280 = vsel %vm6244, %v5523, 0.0
      %v6281 = vsel %vm6245, %v5524, 0.0
      %v6282 = vsel %vm6246, %v5525, 0.0
      %v6283 = vsel %vm6247, %v5526, 0.0
      %v6284 = vsel %vm6248, %v5527, 0.0
      %v6285 = vsel %vm6249, %v5528, 0.0
      %v6286 = vsel %vm6250, %v5529, 0.0
      %v6287 = vsel %vm6251, %v5530, 0.0
      %v6288 = vsel %vm6252, %v5531, 0.0
      %v6289 = vsel %vm6253, %v5532, 0.0
      %v6290 = vsel %vm6254, %v5533, 0.0
      %v6291 = vsel %vm6255, %v5534, 0.0
      %v6292 = vsel %vm6256, %v5535, 0.0
      %v6293 = vsel %vm6257, %v5536, 0.0
      %v6294 = vsel %vm6258, %v5537, 0.0
      %v6295 = vsel %vm6259, %v5538, 0.0
      %v6296 = vsel %vm6260, %v5539, 0.0
      %v6297 = vsel %vm6261, %v5540, 0.0
      %v6298 = vsel %vm6262, %v5541, 0.0
      %v6299 = vsel %vm6263, %v5542, 0.0
      %v6300 = vsel %vm6264, %v5543, 0.0
      %v6301 = vsel %vm6265, %v5544, 0.0
      %v6302 = vsel %vm6266, %v5545, 0.0
      %v6303 = vsel %vm6267, %v5546, 0.0
      %v6304 = vsel %vm6268, %v5547, 0.0
      %v6305 = vsel %vm6269, %v5548, 0.0
      %v6306 = vsel %vm6270, %v5549, 0.0
      %v6307 = vsel %vm6271, %v5550, 0.0
      %6308 = vst [vmem:[%s170] sm:$0xf] 0
      %6309 = vst [vmem:[%s170 + $0x4] sm:$0xf] 0
      %6310 = vst [vmem:[%s170 + $0x8] sm:$0xf] 0
      %6311 = vst [vmem:[%s170 + $0xc] sm:$0xf] 0
      %6312 = vst [vmem:[%s170 + $0x10] sm:$0xf] 0
      %6313 = vst [vmem:[%s170 + $0x14] sm:$0xf] 0
      %6314 = vst [vmem:[%s170 + $0x18] sm:$0xf] 0
      %6315 = vst [vmem:[%s170 + $0x1c] sm:$0xf] 0
      %6316 = vst [vmem:[%s170 + $0x20] sm:$0xf] 0
      %6317 = vst [vmem:[%s170 + $0x24] sm:$0xf] 0
      %6318 = vst [vmem:[%s170 + $0x28] sm:$0xf] 0
      %6319 = vst [vmem:[%s170 + $0x2c] sm:$0xf] 0
      %6320 = vst [vmem:[%s170 + $0x30] sm:$0xf] 0
      %6321 = vst [vmem:[%s170 + $0x34] sm:$0xf] 0
      %6322 = vst [vmem:[%s170 + $0x38] sm:$0xf] 0
      %6323 = vst [vmem:[%s170 + $0x3c] sm:$0xf] 0
      %6324 = vst [vmem:[%s170 + $0x40] sm:$0xf] 0
      %6325 = vst [vmem:[%s170 + $0x44] sm:$0xf] 0
      %6326 = vst [vmem:[%s170 + $0x48] sm:$0xf] 0
      %6327 = vst [vmem:[%s170 + $0x4c] sm:$0xf] 0
      %6328 = vst [vmem:[%s170 + $0x50] sm:$0xf] 0
      %6329 = vst [vmem:[%s170 + $0x54] sm:$0xf] 0
      %6330 = vst [vmem:[%s170 + $0x58] sm:$0xf] 0
      %6331 = vst [vmem:[%s170 + $0x5c] sm:$0xf] 0
      %6332 = vst [vmem:[%s170 + $0x60] sm:$0xf] 0
      %6333 = vst [vmem:[%s170 + $0x64] sm:$0xf] 0
      %6334 = vst [vmem:[%s170 + $0x68] sm:$0xf] 0
      %6335 = vst [vmem:[%s170 + $0x6c] sm:$0xf] 0
      %6336 = vst [vmem:[%s170 + $0x70] sm:$0xf] 0
      %6337 = vst [vmem:[%s170 + $0x74] sm:$0xf] 0
      %6338 = vst [vmem:[%s170 + $0x78] sm:$0xf] 0
      %6339 = vst [vmem:[%s170 + $0x7c] sm:$0xf] 0
      %6340 = vst [vmem:[%s170 + $0x80] sm:$0xf] 0
      %6341 = vst [vmem:[%s170 + $0x84] sm:$0xf] 0
      %6342 = vst [vmem:[%s170 + $0x88] sm:$0xf] 0
      %6343 = vst [vmem:[%s170 + $0x8c] sm:$0xf] 0
      %6344 = vst [vmem:[%s170 + $0x90] sm:$0xf] 0
      %6345 = vst [vmem:[%s170 + $0x94] sm:$0xf] 0
      %6346 = vst [vmem:[%s170 + $0x98] sm:$0xf] 0
      %6347 = vst [vmem:[%s170 + $0x9c] sm:$0xf] 0
      %6348 = vst [vmem:[%s170 + $0xa0] sm:$0xf] 0
      %6349 = vst [vmem:[%s170 + $0xa4] sm:$0xf] 0
      %6350 = vst [vmem:[%s170 + $0xa8] sm:$0x7] 0
      %v6351 = vpack.c.bf16 %v6273, %v6272
      %v6352 = vpack.c.bf16 %v6275, %v6274
      %v6353 = vpack.c.bf16 %v6277, %v6276
      %v6354 = vpack.c.bf16 %v6279, %v6278
      %v6355 = vpack.c.bf16 %v6281, %v6280
      %v6356 = vpack.c.bf16 %v6283, %v6282
      %v6357 = vpack.c.bf16 %v6285, %v6284
      %v6358 = vpack.c.bf16 %v6287, %v6286
      %v6359 = vpack.c.bf16 %v6289, %v6288
      %v6360 = vpack.c.bf16 %v6291, %v6290
      %v6361 = vpack.c.bf16 %v6293, %v6292
      %v6362 = vpack.c.bf16 %v6295, %v6294
      %v6363 = vpack.c.bf16 %v6297, %v6296
      %v6364 = vpack.c.bf16 %v6299, %v6298
      %v6365 = vpack.c.bf16 %v6301, %v6300
      %v6366 = vpack.c.bf16 %v6303, %v6302
      %v6367 = vpack.c.bf16 %v6305, %v6304
      %v6368 = vpack.c.bf16 %v6307, %v6306
      %v6387 = vunpack.c.l.b16 %v6351
      %v6388 = vunpack.c.h.b16 %v6351
      %v6389 = vunpack.c.l.b16 %v6352
      %v6390 = vunpack.c.h.b16 %v6352
      %v6391 = vunpack.c.l.b16 %v6353
      %v6392 = vunpack.c.h.b16 %v6353
      %v6393 = vunpack.c.l.b16 %v6354
      %v6394 = vunpack.c.h.b16 %v6354
      %v6395 = vunpack.c.l.b16 %v6355
      %v6396 = vunpack.c.h.b16 %v6355
      %v6397 = vunpack.c.l.b16 %v6356
      %v6398 = vunpack.c.h.b16 %v6356
      %v6399 = vunpack.c.l.b16 %v6357
      %v6400 = vunpack.c.h.b16 %v6357
      %v6401 = vunpack.c.l.b16 %v6358
      %v6402 = vunpack.c.h.b16 %v6358
      %v6403 = vunpack.c.l.b16 %v6359
      %v6404 = vunpack.c.h.b16 %v6359
      %v6405 = vunpack.c.l.b16 %v6360
      %v6406 = vunpack.c.h.b16 %v6360
      %v6407 = vunpack.c.l.b16 %v6361
      %v6408 = vunpack.c.h.b16 %v6361
      %v6409 = vunpack.c.l.b16 %v6362
      %v6410 = vunpack.c.h.b16 %v6362
      %v6411 = vunpack.c.l.b16 %v6363
      %v6412 = vunpack.c.h.b16 %v6363
      %v6413 = vunpack.c.l.b16 %v6364
      %v6414 = vunpack.c.h.b16 %v6364
      %v6415 = vunpack.c.l.b16 %v6365
      %v6416 = vunpack.c.h.b16 %v6365
      %v6417 = vunpack.c.l.b16 %v6366
      %v6418 = vunpack.c.h.b16 %v6366
      %v6419 = vunpack.c.l.b16 %v6367
      %v6420 = vunpack.c.h.b16 %v6367
      %v6421 = vunpack.c.l.b16 %v6368
      %v6422 = vunpack.c.h.b16 %v6368
      %v6423 = vpack.c.b16 %v6387, %v6387
      %v6424 = vpack.c.b16 %v6388, %v6388
      %v6425 = vpack.c.b16 %v6389, %v6389
      %v6426 = vpack.c.b16 %v6390, %v6390
      %v6427 = vpack.c.b16 %v6391, %v6391
      %v6428 = vpack.c.b16 %v6392, %v6392
      %v6429 = vpack.c.b16 %v6393, %v6393
      %v6430 = vpack.c.b16 %v6394, %v6394
      %v6431 = vpack.c.b16 %v6395, %v6395
      %v6432 = vpack.c.b16 %v6396, %v6396
      %v6433 = vpack.c.b16 %v6397, %v6397
      %v6434 = vpack.c.b16 %v6398, %v6398
      %v6435 = vpack.c.b16 %v6399, %v6399
      %v6436 = vpack.c.b16 %v6400, %v6400
      %v6437 = vpack.c.b16 %v6401, %v6401
      %v6438 = vpack.c.b16 %v6402, %v6402
      %v6439 = vpack.c.b16 %v6403, %v6403
      %v6440 = vpack.c.b16 %v6404, %v6404
      %v6441 = vpack.c.b16 %v6405, %v6405
      %v6442 = vpack.c.b16 %v6406, %v6406
      %v6443 = vpack.c.b16 %v6407, %v6407
      %v6444 = vpack.c.b16 %v6408, %v6408
      %v6445 = vpack.c.b16 %v6409, %v6409
      %v6446 = vpack.c.b16 %v6410, %v6410
      %v6447 = vpack.c.b16 %v6411, %v6411
      %v6448 = vpack.c.b16 %v6412, %v6412
      %v6449 = vpack.c.b16 %v6413, %v6413
      %v6450 = vpack.c.b16 %v6414, %v6414
      %v6451 = vpack.c.b16 %v6415, %v6415
      %v6452 = vpack.c.b16 %v6416, %v6416
      %v6453 = vpack.c.b16 %v6417, %v6417
      %v6454 = vpack.c.b16 %v6418, %v6418
      %v6455 = vpack.c.b16 %v6419, %v6419
      %v6456 = vpack.c.b16 %v6420, %v6420
      %v6457 = vpack.c.b16 %v6421, %v6421
      %v6458 = vpack.c.b16 %v6422, %v6422
      %v6460 = vshrl.u32 %v6423, 16
      %v6462 = vrot.slane %v6460, 6
      %v6463 = vshll.u32 %v6423, 16
      %v6465 = vrot.slane %v6463, 7
      %v6466 = vor.u32 %v6462, %v6465
      %v6467 = vrot.slane %v6466, 4
      %v6469 = vshrl.u32 %v6424, 16
      %v6471 = vrot.slane %v6469, 6
      %v6472 = vshll.u32 %v6424, 16
      %v6474 = vrot.slane %v6472, 7
      %v6475 = vor.u32 %v6471, %v6474
      %v6476 = vsel %vm2265, %v6467, %v6475
      %v6477 = vrot.slane %v6475, 4
      %v6479 = vshrl.u32 %v6425, 16
      %v6481 = vrot.slane %v6479, 6
      %v6482 = vshll.u32 %v6425, 16
      %v6484 = vrot.slane %v6482, 7
      %v6485 = vor.u32 %v6481, %v6484
      %v6486 = vsel %vm2265, %v6477, %v6485
      %v6487 = vrot.slane %v6485, 4
      %v6489 = vshrl.u32 %v6426, 16
      %v6491 = vrot.slane %v6489, 6
      %v6492 = vshll.u32 %v6426, 16
      %v6494 = vrot.slane %v6492, 7
      %v6495 = vor.u32 %v6491, %v6494
      %v6496 = vsel %vm2265, %v6487, %v6495
      %v6497 = vrot.slane %v6495, 4
      %v6499 = vshrl.u32 %v6427, 16
      %v6501 = vrot.slane %v6499, 6
      %v6502 = vshll.u32 %v6427, 16
      %v6504 = vrot.slane %v6502, 7
      %v6505 = vor.u32 %v6501, %v6504
      %v6506 = vsel %vm2265, %v6497, %v6505
      %v6507 = vrot.slane %v6505, 4
      %v6509 = vshrl.u32 %v6428, 16
      %v6511 = vrot.slane %v6509, 6
      %v6512 = vshll.u32 %v6428, 16
      %v6514 = vrot.slane %v6512, 7
      %v6515 = vor.u32 %v6511, %v6514
      %v6516 = vsel %vm2265, %v6507, %v6515
      %v6517 = vrot.slane %v6515, 4
      %v6519 = vshrl.u32 %v6429, 16
      %v6521 = vrot.slane %v6519, 6
      %v6522 = vshll.u32 %v6429, 16
      %v6524 = vrot.slane %v6522, 7
      %v6525 = vor.u32 %v6521, %v6524
      %v6526 = vsel %vm2265, %v6517, %v6525
      %v6527 = vrot.slane %v6525, 4
      %v6529 = vshrl.u32 %v6430, 16
      %v6531 = vrot.slane %v6529, 6
      %v6532 = vshll.u32 %v6430, 16
      %v6534 = vrot.slane %v6532, 7
      %v6535 = vor.u32 %v6531, %v6534
      %v6536 = vsel %vm2265, %v6527, %v6535
      %v6537 = vrot.slane %v6535, 4
      %v6539 = vshrl.u32 %v6431, 16
      %v6541 = vrot.slane %v6539, 6
      %v6542 = vshll.u32 %v6431, 16
      %v6544 = vrot.slane %v6542, 7
      %v6545 = vor.u32 %v6541, %v6544
      %v6546 = vsel %vm2265, %v6537, %v6545
      %v6547 = vrot.slane %v6545, 4
      %v6549 = vshrl.u32 %v6432, 16
      %v6551 = vrot.slane %v6549, 6
      %v6552 = vshll.u32 %v6432, 16
      %v6554 = vrot.slane %v6552, 7
      %v6555 = vor.u32 %v6551, %v6554
      %v6556 = vsel %vm2265, %v6547, %v6555
      %v6557 = vrot.slane %v6555, 4
      %v6559 = vshrl.u32 %v6433, 16
      %v6561 = vrot.slane %v6559, 6
      %v6562 = vshll.u32 %v6433, 16
      %v6564 = vrot.slane %v6562, 7
      %v6565 = vor.u32 %v6561, %v6564
      %v6566 = vsel %vm2265, %v6557, %v6565
      %v6567 = vrot.slane %v6565, 4
      %v6569 = vshrl.u32 %v6434, 16
      %v6571 = vrot.slane %v6569, 6
      %v6572 = vshll.u32 %v6434, 16
      %v6574 = vrot.slane %v6572, 7
      %v6575 = vor.u32 %v6571, %v6574
      %v6576 = vsel %vm2265, %v6567, %v6575
      %v6577 = vrot.slane %v6575, 4
      %v6579 = vshrl.u32 %v6435, 16
      %v6581 = vrot.slane %v6579, 6
      %v6582 = vshll.u32 %v6435, 16
      %v6584 = vrot.slane %v6582, 7
      %v6585 = vor.u32 %v6581, %v6584
      %v6586 = vsel %vm2265, %v6577, %v6585
      %v6587 = vrot.slane %v6585, 4
      %v6589 = vshrl.u32 %v6436, 16
      %v6591 = vrot.slane %v6589, 6
      %v6592 = vshll.u32 %v6436, 16
      %v6594 = vrot.slane %v6592, 7
      %v6595 = vor.u32 %v6591, %v6594
      %v6596 = vsel %vm2265, %v6587, %v6595
      %v6597 = vrot.slane %v6595, 4
      %v6599 = vshrl.u32 %v6437, 16
      %v6601 = vrot.slane %v6599, 6
      %v6602 = vshll.u32 %v6437, 16
      %v6604 = vrot.slane %v6602, 7
      %v6605 = vor.u32 %v6601, %v6604
      %v6606 = vsel %vm2265, %v6597, %v6605
      %v6607 = vrot.slane %v6605, 4
      %v6609 = vshrl.u32 %v6438, 16
      %v6611 = vrot.slane %v6609, 6
      %v6612 = vshll.u32 %v6438, 16
      %v6614 = vrot.slane %v6612, 7
      %v6615 = vor.u32 %v6611, %v6614
      %v6616 = vsel %vm2265, %v6607, %v6615
      %v6617 = vrot.slane %v6615, 4
      %v6619 = vshrl.u32 %v6439, 16
      %v6621 = vrot.slane %v6619, 6
      %v6622 = vshll.u32 %v6439, 16
      %v6624 = vrot.slane %v6622, 7
      %v6625 = vor.u32 %v6621, %v6624
      %v6626 = vsel %vm2265, %v6617, %v6625
      %v6627 = vrot.slane %v6625, 4
      %v6629 = vshrl.u32 %v6440, 16
      %v6631 = vrot.slane %v6629, 6
      %v6632 = vshll.u32 %v6440, 16
      %v6634 = vrot.slane %v6632, 7
      %v6635 = vor.u32 %v6631, %v6634
      %v6636 = vsel %vm2265, %v6627, %v6635
      %v6637 = vrot.slane %v6635, 4
      %v6639 = vshrl.u32 %v6441, 16
      %v6641 = vrot.slane %v6639, 6
      %v6642 = vshll.u32 %v6441, 16
      %v6644 = vrot.slane %v6642, 7
      %v6645 = vor.u32 %v6641, %v6644
      %v6646 = vsel %vm2265, %v6637, %v6645
      %v6647 = vrot.slane %v6645, 4
      %v6649 = vshrl.u32 %v6442, 16
      %v6651 = vrot.slane %v6649, 6
      %v6652 = vshll.u32 %v6442, 16
      %v6654 = vrot.slane %v6652, 7
      %v6655 = vor.u32 %v6651, %v6654
      %v6656 = vsel %vm2265, %v6647, %v6655
      %v6657 = vrot.slane %v6655, 4
      %v6659 = vshrl.u32 %v6443, 16
      %v6661 = vrot.slane %v6659, 6
      %v6662 = vshll.u32 %v6443, 16
      %v6664 = vrot.slane %v6662, 7
      %v6665 = vor.u32 %v6661, %v6664
      %v6666 = vsel %vm2265, %v6657, %v6665
      %v6667 = vrot.slane %v6665, 4
      %v6669 = vshrl.u32 %v6444, 16
      %v6671 = vrot.slane %v6669, 6
      %v6672 = vshll.u32 %v6444, 16
      %v6674 = vrot.slane %v6672, 7
      %v6675 = vor.u32 %v6671, %v6674
      %v6676 = vsel %vm2265, %v6667, %v6675
      %v6677 = vrot.slane %v6675, 4
      %v6679 = vshrl.u32 %v6445, 16
      %v6681 = vrot.slane %v6679, 6
      %v6682 = vshll.u32 %v6445, 16
      %v6684 = vrot.slane %v6682, 7
      %v6685 = vor.u32 %v6681, %v6684
      %v6686 = vsel %vm2265, %v6677, %v6685
      %v6687 = vrot.slane %v6685, 4
      %v6689 = vshrl.u32 %v6446, 16
      %v6691 = vrot.slane %v6689, 6
      %v6692 = vshll.u32 %v6446, 16
      %v6694 = vrot.slane %v6692, 7
      %v6695 = vor.u32 %v6691, %v6694
      %v6696 = vsel %vm2265, %v6687, %v6695
      %v6697 = vrot.slane %v6695, 4
      %v6699 = vshrl.u32 %v6447, 16
      %v6701 = vrot.slane %v6699, 6
      %v6702 = vshll.u32 %v6447, 16
      %v6704 = vrot.slane %v6702, 7
      %v6705 = vor.u32 %v6701, %v6704
      %v6706 = vsel %vm2265, %v6697, %v6705
      %v6707 = vrot.slane %v6705, 4
      %v6709 = vshrl.u32 %v6448, 16
      %v6711 = vrot.slane %v6709, 6
      %v6712 = vshll.u32 %v6448, 16
      %v6714 = vrot.slane %v6712, 7
      %v6715 = vor.u32 %v6711, %v6714
      %v6716 = vsel %vm2265, %v6707, %v6715
      %v6717 = vrot.slane %v6715, 4
      %v6719 = vshrl.u32 %v6449, 16
      %v6721 = vrot.slane %v6719, 6
      %v6722 = vshll.u32 %v6449, 16
      %v6724 = vrot.slane %v6722, 7
      %v6725 = vor.u32 %v6721, %v6724
      %v6726 = vsel %vm2265, %v6717, %v6725
      %v6727 = vrot.slane %v6725, 4
      %v6729 = vshrl.u32 %v6450, 16
      %v6731 = vrot.slane %v6729, 6
      %v6732 = vshll.u32 %v6450, 16
      %v6734 = vrot.slane %v6732, 7
      %v6735 = vor.u32 %v6731, %v6734
      %v6736 = vsel %vm2265, %v6727, %v6735
      %v6737 = vrot.slane %v6735, 4
      %v6739 = vshrl.u32 %v6451, 16
      %v6741 = vrot.slane %v6739, 6
      %v6742 = vshll.u32 %v6451, 16
      %v6744 = vrot.slane %v6742, 7
      %v6745 = vor.u32 %v6741, %v6744
      %v6746 = vsel %vm2265, %v6737, %v6745
      %v6747 = vrot.slane %v6745, 4
      %v6749 = vshrl.u32 %v6452, 16
      %v6751 = vrot.slane %v6749, 6
      %v6752 = vshll.u32 %v6452, 16
      %v6754 = vrot.slane %v6752, 7
      %v6755 = vor.u32 %v6751, %v6754
      %v6756 = vsel %vm2265, %v6747, %v6755
      %v6757 = vrot.slane %v6755, 4
      %v6759 = vshrl.u32 %v6453, 16
      %v6761 = vrot.slane %v6759, 6
      %v6762 = vshll.u32 %v6453, 16
      %v6764 = vrot.slane %v6762, 7
      %v6765 = vor.u32 %v6761, %v6764
      %v6766 = vsel %vm2265, %v6757, %v6765
      %v6767 = vrot.slane %v6765, 4
      %v6769 = vshrl.u32 %v6454, 16
      %v6771 = vrot.slane %v6769, 6
      %v6772 = vshll.u32 %v6454, 16
      %v6774 = vrot.slane %v6772, 7
      %v6775 = vor.u32 %v6771, %v6774
      %v6776 = vsel %vm2265, %v6767, %v6775
      %v6777 = vrot.slane %v6775, 4
      %v6779 = vshrl.u32 %v6455, 16
      %v6781 = vrot.slane %v6779, 6
      %v6782 = vshll.u32 %v6455, 16
      %v6784 = vrot.slane %v6782, 7
      %v6785 = vor.u32 %v6781, %v6784
      %v6786 = vsel %vm2265, %v6777, %v6785
      %v6787 = vrot.slane %v6785, 4
      %v6789 = vshrl.u32 %v6456, 16
      %v6791 = vrot.slane %v6789, 6
      %v6792 = vshll.u32 %v6456, 16
      %v6794 = vrot.slane %v6792, 7
      %v6795 = vor.u32 %v6791, %v6794
      %v6796 = vsel %vm2265, %v6787, %v6795
      %v6797 = vrot.slane %v6795, 4
      %v6799 = vshrl.u32 %v6457, 16
      %v6801 = vrot.slane %v6799, 6
      %v6802 = vshll.u32 %v6457, 16
      %v6804 = vrot.slane %v6802, 7
      %v6805 = vor.u32 %v6801, %v6804
      %v6806 = vsel %vm2265, %v6797, %v6805
      %v6807 = vrot.slane %v6805, 4
      %v6809 = vshrl.u32 %v6458, 16
      %v6811 = vrot.slane %v6809, 6
      %v6812 = vshll.u32 %v6458, 16
      %v6814 = vrot.slane %v6812, 7
      %v6815 = vor.u32 %v6811, %v6814
      %v6816 = vsel %vm2265, %v6807, %v6815
      %v6817 = vrot.slane %v6815, 4
      %vm6855 = vcmask 1043457
      %vm6856 = vsmask.f32 7942
      %vm6857 = vmand %vm6855, %vm6856
      %v6858 = vld [vmem:[%s170 + $0x8] sm:$0xe]
      %v6859 = vsel %vm6857, %v6466, %v6858
      %6860 = vst [vmem:[%s170 + $0x8] sm:$0xe] %v6859
      %6861 = vst [vmem:[%s170 + $0xc] sm:$0xf] %v6476
      %6862 = vst [vmem:[%s170 + $0x10] sm:$0xf] %v6486
      %6863 = vst [vmem:[%s170 + $0x14] sm:$0xf] %v6496
      %6864 = vst [vmem:[%s170 + $0x18] sm:$0xf] %v6506
      %6865 = vst [vmem:[%s170 + $0x1c] sm:$0xf] %v6516
      %6866 = vst [vmem:[%s170 + $0x20] sm:$0xf] %v6526
      %6867 = vst [vmem:[%s170 + $0x24] sm:$0xf] %v6536
      %6868 = vst [vmem:[%s170 + $0x28] sm:$0xf] %v6546
      %6869 = vst [vmem:[%s170 + $0x2c] sm:$0xf] %v6556
      %6870 = vst [vmem:[%s170 + $0x30] sm:$0xf] %v6566
      %6871 = vst [vmem:[%s170 + $0x34] sm:$0xf] %v6576
      %6872 = vst [vmem:[%s170 + $0x38] sm:$0xf] %v6586
      %6873 = vst [vmem:[%s170 + $0x3c] sm:$0xf] %v6596
      %6874 = vst [vmem:[%s170 + $0x40] sm:$0xf] %v6606
      %6875 = vst [vmem:[%s170 + $0x44] sm:$0xf] %v6616
      %6876 = vst [vmem:[%s170 + $0x48] sm:$0xf] %v6626
      %6877 = vst [vmem:[%s170 + $0x4c] sm:$0xf] %v6636
      %6878 = vst [vmem:[%s170 + $0x50] sm:$0xf] %v6646
      %6879 = vst [vmem:[%s170 + $0x54] sm:$0xf] %v6656
      %6880 = vst [vmem:[%s170 + $0x58] sm:$0xf] %v6666
      %6881 = vst [vmem:[%s170 + $0x5c] sm:$0xf] %v6676
      %6882 = vst [vmem:[%s170 + $0x60] sm:$0xf] %v6686
      %6883 = vst [vmem:[%s170 + $0x64] sm:$0xf] %v6696
      %6884 = vst [vmem:[%s170 + $0x68] sm:$0xf] %v6706
      %6885 = vst [vmem:[%s170 + $0x6c] sm:$0xf] %v6716
      %6886 = vst [vmem:[%s170 + $0x70] sm:$0xf] %v6726
      %6887 = vst [vmem:[%s170 + $0x74] sm:$0xf] %v6736
      %6888 = vst [vmem:[%s170 + $0x78] sm:$0xf] %v6746
      %6889 = vst [vmem:[%s170 + $0x7c] sm:$0xf] %v6756
      %6890 = vst [vmem:[%s170 + $0x80] sm:$0xf] %v6766
      %6891 = vst [vmem:[%s170 + $0x84] sm:$0xf] %v6776
      %6892 = vst [vmem:[%s170 + $0x88] sm:$0xf] %v6786
      %6893 = vst [vmem:[%s170 + $0x8c] sm:$0xf] %v6796
      %6894 = vst [vmem:[%s170 + $0x90] sm:$0xf] %v6806
      %6895 = vst [vmem:[%s170 + $0x94] sm:$0xf] %v6816
      %vm6896 = vmand %vm1787, %vm2263
      %v6897 = vld [vmem:[%s170 + $0x98] sm:$0x3]
      %v6898 = vsel %vm6896, %v6817, %v6897
      %6899 = vst [vmem:[%s170 + $0x98] sm:$0x3] %v6898
      %p6900 = scmp.lt.s32.totalorder %s14, 1
      %s6901 = scalar_select %p6900, %s14, 1
      %s6902 = smul.addr %s6901, 43
      %s6903 = smul.addr %s6902, 4
      %s6904 = scalar_lea.vmem %s3, %s6903
      // Predicated region
      $region33: #{residual_block_forward.2} parent=31 // pred_check
        %p6905 = pneg %p100
      $region34: #{residual_block_forward.2} parent=31 // pred_check_branch
        %6907 = sbr.rel (%p6905) target = $region36
      $region35: #{residual_block_forward.2} parent=31 // pred_region
        _
      $region36: #{residual_block_forward.2} parent=31 // pred_fallthru
        _
    $region32: #{residual_block_forward.2} parent=5 // pred_fallthru
      _
    %p6908 = scmp.le.s32.totalorder 2, %s9
    // Predicated region
    $region37: #{residual_block_forward.2} parent=5 // pred_check
      %p6909 = pneg %p6908
    $region38: #{residual_block_forward.2} parent=5 // pred_check_branch
      %6911 = sbr.rel (%p6909) target = $region40
    $region39: #{residual_block_forward.2} parent=5 // pred_region
      %s6912 = ssub.s32 %s9, 2
      // Predicated region
      $region41: #{residual_block_forward.2} parent=39 // pred_check
        %p6913 = pneg %p106
      $region42: #{residual_block_forward.2} parent=39 // pred_check_branch
        %6915 = sbr.rel (%p6913) target = $region44
      $region43: #{residual_block_forward.2} parent=39 // pred_region
        %p6916 = scmp.lt.s32.totalorder %s15, 1
        %s6917 = scalar_select %p6916, %s15, 1
        %s6918 = smul.addr %s6917, 43
        %s6919 = smul.addr %s6918, 4
        %s6920 = scalar_lea.vmem %s3, %s6919
      $region44: #{residual_block_forward.2} parent=39 // pred_fallthru
        _
    $region40: #{residual_block_forward.2} parent=5 // pred_fallthru
      _
  $region6: #{residual_block_forward.2} parent=0 // loop_footer
    %s13 = sadd.s32 1, %s9
  $region7: #{residual_block_forward.2} parent=0 // loop_footer_branch
    %8 = sbr.rel target = $region3
  $region8: #{residual_block_forward.2} parent=0 // loop_exit
    _

</llo_original>
